<compile_context>
chip_gen: v6e
topology: v6e:2x2x1
jax: 0.10.0
libtpu: 0.0.40
codegen_flags: <defaults>
</compile_context>

<pallas_src>
import jax
import jax.numpy as jnp
from jax import lax
from jax.experimental import pallas as pl
from jax.experimental.pallas import tpu as pltpu


def _round_up(n, m):
    return ((n + m - 1) // m) * m


def _vmem_capacity_bytes():
    # Per-TensorCore VMEM (v5e/v6e: 128 MiB, v7x: 64 MiB); conservative fallback.
    try:
        cap = getattr(pltpu.get_tpu_info(), "vmem_capacity_bytes", None)
        if cap:
            return int(cap)
    except Exception:
        pass
    return 64 << 20


def bilstm2vec_kernel(x_ref,
                      wih0_ref, whh0f_ref, whh0b_ref, b0_ref,
                      wih1_ref, whh1_ref, b1_ref,
                      wlin_ref, blin_ref,
                      out_ref,
                      g0_ref, l01_ref, g1_ref):
    T, Bt, _ = x_ref.shape
    Hp = whh0f_ref.shape[0]          # padded hidden size (multiple of 128)
    G4 = 4 * Hp
    # Unroll scaled by vreg pressure: the layer-0 loop carries 4 x (Bt, Hp) f32
    # states plus per-iter gate temps; full unroll only for small tiles.
    unroll = (True if T <= 32 else 4) if Bt <= 16 else 2

    def gates_to_hc(gates, c_prev):
        # Host-side gate order is (i, f, o, g): one contiguous sigmoid slab and
        # one tanh slab.  All slices are 128-lane aligned.
        s = jax.nn.sigmoid(gates[:, 0:3 * Hp])
        g = jnp.tanh(gates[:, 3 * Hp:4 * Hp])
        i = s[:, 0:Hp]
        f = s[:, Hp:2 * Hp]
        o = s[:, 2 * Hp:3 * Hp]
        c_new = f * c_prev + i * g
        h_new = o * jnp.tanh(c_new)
        return h_new, c_new

    # ---- Stage 1: hoisted input->hidden matmul for layer 0, both directions.
    # One (T*Bt, E3p) @ (E3p, 8Hp) bf16 MXU call (f32 accumulation), written
    # straight into the fused gate scratch; biases folded here once.
    x_flat = x_ref[...].reshape(T * Bt, x_ref.shape[2]).astype(jnp.bfloat16)
    g0_ref[...] = (jnp.dot(x_flat, wih0_ref[...],
                           preferred_element_type=jnp.float32)
                   + b0_ref[...])

    zeros = jnp.zeros((Bt, Hp), jnp.float32)

    # ---- Stage 2: layer-0 forward & backward recurrences, interleaved.
    # Only one (Bt, Hp) bf16 matmul per direction per step; the two independent
    # chains overlap inside each (unrolled) iteration.
    def l0_body(s, carry):
        hf, cf, hb, cb = carry
        rf = pl.multiple_of(s * Bt, Bt)               # fwd reads timestep s
        rb = pl.multiple_of((T - 1 - s) * Bt, Bt)     # bwd reads timestep T-1-s
        gf = g0_ref[pl.ds(rf, Bt), 0:G4] + jnp.dot(
            hf.astype(jnp.bfloat16), whh0f_ref[...],
            preferred_element_type=jnp.float32)
        gb = g0_ref[pl.ds(rb, Bt), G4:2 * G4] + jnp.dot(
            hb.astype(jnp.bfloat16), whh0b_ref[...],
            preferred_element_type=jnp.float32)
        hf, cf = gates_to_hc(gf, cf)
        hb, cb = gates_to_hc(gb, cb)
        l01_ref[pl.ds(rf, Bt), 0:Hp] = hf             # fused [fwd | bwd] outputs
        l01_ref[pl.ds(rb, Bt), Hp:2 * Hp] = hb
        return hf, cf, hb, cb

    lax.fori_loop(0, T, l0_body, (zeros, zeros, zeros, zeros), unroll=unroll)

    # ---- Stage 3: hoisted layer-1 input matmul: ONE K=2*Hp (=256) bf16 matmul
    # against the fused [fwd|bwd] layer-0 outputs (bias folded).
    g1_ref[...] = (jnp.dot(l01_ref[...].astype(jnp.bfloat16), wih1_ref[...],
                           preferred_element_type=jnp.float32)
                   + b1_ref[...])

    # ---- Stage 4: layer-1 backward recurrence -> (h[-1], c[-1]).
    def l1_body(i, carry):
        h, c = carry
        r = pl.multiple_of((T - 1 - i) * Bt, Bt)
        gates = g1_ref[pl.ds(r, Bt), :] + jnp.dot(
            h.astype(jnp.bfloat16), whh1_ref[...],
            preferred_element_type=jnp.float32)
        return gates_to_hc(gates, c)

    h_last, c_last = lax.fori_loop(0, T, l1_body, (zeros, zeros), unroll=unroll)

    pooled = jnp.tanh(h_last + c_last)                 # nn.Tanh()
    out_ref[...] = (jnp.dot(pooled.astype(jnp.bfloat16), wlin_ref[...],
                            preferred_element_type=jnp.float32)
                    + blin_ref[...])


@jax.jit
def bilstm2vec_forward(params, starts, paths, ends):
    # ---- Embedding lookups + concat: plain-JAX glue. ----
    es = jnp.take(params['node_emb'], starts, axis=0)            # (B, T, E)
    ep = jnp.take(params['path_emb'], paths, axis=0)             # (B, T, E)
    ee = jnp.take(params['node_emb'], ends, axis=0)              # (B, T, E)
    c = jnp.concatenate([es, ep, ee], axis=2)                    # (B, T, 3E)
    x = jnp.transpose(c, (1, 0, 2)).astype(jnp.float32)          # (T, B, 3E)

    T, B, E3 = x.shape
    H = params['whh0f'].shape[0]          # logical hidden size = 3E
    O = params['wlin'].shape[1]

    # ---- Padded sizes: 128 lanes for features/hidden/output, 8-sublane batch.
    Hp = _round_up(H, 128)
    E3p = _round_up(E3, 128)
    Opad = _round_up(O, 128)
    G4 = 4 * Hp

    # ---- Zero-pad weights per gate block (exact: padded hidden units stay 0)
    # and reorder gates (i,f,g,o)->(i,f,o,g) for a contiguous sigmoid slab. ----
    def pad_gate_cols(w):
        lead = w.shape[:-1]
        w4 = w.reshape(lead + (4, H))
        w4 = jnp.stack([w4[..., 0, :], w4[..., 1, :],
                        w4[..., 3, :], w4[..., 2, :]], axis=-2)
        w4 = jnp.pad(w4, [(0, 0)] * len(lead) + [(0, 0), (0, Hp - H)])
        return w4.reshape(lead + (4 * Hp,))

    def pad_rows(w, rows_to):
        return jnp.pad(w, ((0, rows_to - w.shape[0]),) + ((0, 0),) * (w.ndim - 1))

    bf16 = jnp.bfloat16
    wih0 = jnp.concatenate(
        [pad_rows(pad_gate_cols(params['wih0f']), E3p),
         pad_rows(pad_gate_cols(params['wih0b']), E3p)], axis=1).astype(bf16)  # (E3p, 8Hp)
    b0 = jnp.concatenate([pad_gate_cols(params['b0f']),
                          pad_gate_cols(params['b0b'])], axis=1)               # (1, 8Hp) f32
    whh0f = pad_rows(pad_gate_cols(params['whh0f']), Hp).astype(bf16)          # (Hp, 4Hp)
    whh0b = pad_rows(pad_gate_cols(params['whh0b']), Hp).astype(bf16)
    wih1 = jnp.concatenate(
        [pad_rows(pad_gate_cols(params['wih1f']), Hp),
         pad_rows(pad_gate_cols(params['wih1b']), Hp)], axis=0).astype(bf16)   # (2Hp, 4Hp)
    whh1 = pad_rows(pad_gate_cols(params['whh1']), Hp).astype(bf16)
    b1 = pad_gate_cols(params['b1'])                                           # (1, 4Hp) f32
    wlin = jnp.pad(params['wlin'], ((0, Hp - H), (0, Opad - O))).astype(bf16)  # (Hp, Opad)
    blin = jnp.pad(params['blin'], ((0, 0), (0, Opad - O)))                    # (1, Opad) f32

    weights = (wih0, whh0f, whh0b, b0, wih1, whh1, b1, wlin, blin)
    weight_bytes = sum(int(w.size) * w.dtype.itemsize for w in weights)

    # ---- VMEM-aware batch tile (double-buffered I/O + weights + scratch). ----
    def tile_bytes(bt):
        io = 4 * (T * bt * E3p + bt * Opad)
        scratch = 4 * T * bt * (2 * G4 + 2 * Hp + G4)
        return 2 * (weight_bytes + io) + scratch

    vmem_budget = max(16 << 20, _vmem_capacity_bytes() - (8 << 20))
    b8 = _round_up(B, 8)
    B_TILE = min(b8, 64)
    while B_TILE > 8 and tile_bytes(B_TILE) > vmem_budget:
        B_TILE -= 8
    # Prefer >= 2 grid steps when the batch allows it: shards across the second
    # TensorCore on v7x / megacore parts; ~one grid-step overhead elsewhere.
    if b8 >= 16 and b8 // B_TILE < 2:
        B_TILE = max(8, _round_up(b8 // 2, 8))
    Bpad = _round_up(b8, B_TILE)
    nb = Bpad // B_TILE

    vmem_limit = int(min(vmem_budget,
                         max(16 << 20, tile_bytes(B_TILE) + (8 << 20))))

    x_p = jnp.pad(x, ((0, 0), (0, Bpad - B), (0, E3p - E3)))     # (T, Bpad, E3p)

    def full_spec(a):
        nd = a.ndim
        return pl.BlockSpec(a.shape, lambda b, nd=nd: (0,) * nd)

    out_p = pl.pallas_call(
        bilstm2vec_kernel,
        out_shape=jax.ShapeDtypeStruct((Bpad, Opad), jnp.float32),
        grid=(nb,),
        in_specs=[pl.BlockSpec((T, B_TILE, E3p), lambda b: (0, b, 0))]
                 + [full_spec(w) for w in weights],
        out_specs=pl.BlockSpec((B_TILE, Opad), lambda b: (b, 0)),
        scratch_shapes=[
            pltpu.VMEM((T * B_TILE, 2 * G4), jnp.float32),  # fused layer-0 gates (fwd|bwd)
            pltpu.VMEM((T * B_TILE, 2 * Hp), jnp.float32),  # fused layer-0 outputs (fwd|bwd)
            pltpu.VMEM((T * B_TILE, G4), jnp.float32),      # layer-1 input gates
        ],
        compiler_params=pltpu.CompilerParams(
            dimension_semantics=("parallel",),
            vmem_limit_bytes=vmem_limit),
    )(x_p, *weights)

    return out_p[:B, :O]


def reference_forward(params, starts, paths, ends, matmul_dtype=jnp.float32):
    """Pure-JAX reference with identical semantics (for validation).

    matmul_dtype=jnp.bfloat16 mirrors the kernel's bf16-operand / f32-accum
    matmuls for a tight structural check; float32 gives the exact math.
    """
    def mm(a, b):
        return jnp.dot(a.astype(matmul_dtype), b.astype(matmul_dtype),
                       preferred_element_type=jnp.float32)

    es = params['node_emb'][starts]
    ep = params['path_emb'][paths]
    ee = params['node_emb'][ends]
    x = jnp.transpose(jnp.concatenate([es, ep, ee], axis=2), (1, 0, 2))
    x = x.astype(jnp.float32)
    T, B, _ = x.shape
    H = params['whh0f'].shape[0]

    def cell(x_t, h, c, wih, whh, b):
        g = mm(x_t, wih) + mm(h, whh) + b
        i = jax.nn.sigmoid(g[:, :H])
        f = jax.nn.sigmoid(g[:, H:2 * H])
        gg = jnp.tanh(g[:, 2 * H:3 * H])
        o = jax.nn.sigmoid(g[:, 3 * H:])
        c2 = f * c + i * gg
        return o * jnp.tanh(c2), c2

    h = c0 = jnp.zeros((B, H), jnp.float32)
    l0f = []
    for t in range(T):
        h, c0 = cell(x[t], h, c0, params['wih0f'], params['whh0f'], params['b0f'])
        l0f.append(h)
    h = c0 = jnp.zeros((B, H), jnp.float32)
    l0b = [None] * T
    for t in range(T - 1, -1, -1):
        h, c0 = cell(x[t], h, c0, params['wih0b'], params['whh0b'], params['b0b'])
        l0b[t] = h
    wih1 = jnp.concatenate([params['wih1f'], params['wih1b']], axis=0)
    h = c0 = jnp.zeros((B, H), jnp.float32)
    for t in range(T - 1, -1, -1):
        xt = jnp.concatenate([l0f[t], l0b[t]], axis=-1)
        h, c0 = cell(xt, h, c0, wih1, params['whh1'], params['b1'])
    pooled = jnp.tanh(h + c0)
    return mm(pooled, params['wlin']) + params['blin']


def init_params(key, nodes_dim, paths_dim, embed_dim, output_dim):
    E = embed_dim
    H = 3 * E
    keys = jax.random.split(key, 16)

    def u(k, shape, scale):
        return jax.random.uniform(k, shape, jnp.float32, -scale, scale)

    s = 1.0 / float(jnp.sqrt(jnp.float32(H)))
    node_emb = jax.random.normal(keys[0], (nodes_dim, E), jnp.float32)
    node_emb = node_emb.at[1].set(0.0)            # padding_idx=1 -> zero row
    path_emb = jax.random.normal(keys[1], (paths_dim, E), jnp.float32)

    return dict(
        node_emb=node_emb, path_emb=path_emb,
        # layer 0 forward direction (bias = b_ih + b_hh folded into one)
        wih0f=u(keys[2], (3 * E, 4 * H), s), whh0f=u(keys[3], (H, 4 * H), s),
        b0f=u(keys[4], (1, 4 * H), s),
        # layer 0 backward direction
        wih0b=u(keys[5], (3 * E, 4 * H), s), whh0b=u(keys[6], (H, 4 * H), s),
        b0b=u(keys[7], (1, 4 * H), s),
        # layer 1 backward direction; input weight split into fwd/bwd halves
        wih1f=u(keys[8], (H, 4 * H), s), wih1b=u(keys[9], (H, 4 * H), s),
        whh1=u(keys[10], (H, 4 * H), s), b1=u(keys[11], (1, 4 * H), s),
        # final linear: Linear(3E, output_dim)
        wlin=u(keys[12], (H, output_dim), s), blin=u(keys[13], (1, output_dim), s),
    )


if __name__ == "__main__":
    nodes_dim, paths_dim, embed_dim, output_dim = 50, 40, 32, 10
    B, T = 2, 8

    key = jax.random.PRNGKey(0)
    kp, ks, kq, ke = jax.random.split(key, 4)
    params = init_params(kp, nodes_dim, paths_dim, embed_dim, output_dim)

    starts = jax.random.randint(ks, (B, T), 0, nodes_dim, dtype=jnp.int32)
    paths = jax.random.randint(kq, (B, T), 0, paths_dim, dtype=jnp.int32)
    ends = jax.random.randint(ke, (B, T), 0, nodes_dim, dtype=jnp.int32)
    length = [T, T]  # unused by the forward pass (matches the PyTorch module)

    out = bilstm2vec_forward(params, starts, paths, ends)
    out = jax.block_until_ready(out)
    assert out.shape == (B, output_dim)

    # Structural check vs. a reference using the same bf16-operand matmuls.
    ref_bf16 = reference_forward(params, starts, paths, ends,
                                 matmul_dtype=jnp.bfloat16)
    assert jnp.allclose(out, ref_bf16, rtol=2e-3, atol=2e-3), \
        "mismatch vs bf16-matched reference"

    # Sanity check vs. exact f32 math (bounded bf16-matmul drift only).
    ref_f32 = reference_forward(params, starts, paths, ends,
                                matmul_dtype=jnp.float32)
    assert float(jnp.max(jnp.abs(out - ref_f32))) < 1e-1, \
        "excess drift vs f32 reference"

    print("KERNEL_OK")
</pallas_src>

<mosaic_0001>
module attributes {stable_mosaic.version = 11 : i64} {
  func.func @bilstm2vec_kernel(%arg0: i32, %arg1: memref<8x8x128xf32, #tpu.memory_space<vmem>>, %arg2: memref<128x1024xbf16, #tpu.memory_space<vmem>>, %arg3: memref<128x512xbf16, #tpu.memory_space<vmem>>, %arg4: memref<128x512xbf16, #tpu.memory_space<vmem>>, %arg5: memref<1x1024xf32, #tpu.memory_space<vmem>>, %arg6: memref<256x512xbf16, #tpu.memory_space<vmem>>, %arg7: memref<128x512xbf16, #tpu.memory_space<vmem>>, %arg8: memref<1x512xf32, #tpu.memory_space<vmem>>, %arg9: memref<128x128xbf16, #tpu.memory_space<vmem>>, %arg10: memref<1x128xf32, #tpu.memory_space<vmem>>, %arg11: memref<8x128xf32, #tpu.memory_space<vmem>>, %arg12: memref<64x1024xf32, #tpu.memory_space<vmem>>, %arg13: memref<64x256xf32, #tpu.memory_space<vmem>>, %arg14: memref<64x512xf32, #tpu.memory_space<vmem>>) attributes {dimension_semantics = [#tpu.dimension_semantics<parallel>], iteration_bounds = array<i64: 1>, scalar_prefetch = 0 : i64, scratch_operands = 3 : i64, tpu.core_type = #tpu.core_type<tc>, window_params = [{transform_indices = @transform_0, window_bounds = array<i64: 8, 8, 128>}, {pipeline_mode = #tpu.pipeline_mode<synchronous>, transform_indices = @transform_1, window_bounds = array<i64: 128, 1024>}, {pipeline_mode = #tpu.pipeline_mode<synchronous>, transform_indices = @transform_2, window_bounds = array<i64: 128, 512>}, {pipeline_mode = #tpu.pipeline_mode<synchronous>, transform_indices = @transform_3, window_bounds = array<i64: 128, 512>}, {pipeline_mode = #tpu.pipeline_mode<synchronous>, transform_indices = @transform_4, window_bounds = array<i64: 1, 1024>}, {pipeline_mode = #tpu.pipeline_mode<synchronous>, transform_indices = @transform_5, window_bounds = array<i64: 256, 512>}, {pipeline_mode = #tpu.pipeline_mode<synchronous>, transform_indices = @transform_6, window_bounds = array<i64: 128, 512>}, {pipeline_mode = #tpu.pipeline_mode<synchronous>, transform_indices = @transform_7, window_bounds = array<i64: 1, 512>}, {pipeline_mode = #tpu.pipeline_mode<synchronous>, transform_indices = @transform_8, window_bounds = array<i64: 128, 128>}, {pipeline_mode = #tpu.pipeline_mode<synchronous>, transform_indices = @transform_9, window_bounds = array<i64: 1, 128>}, {transform_indices = @transform_10, window_bounds = array<i64: 8, 128>}]} {
    %c0 = arith.constant 0 : index
    %c0_0 = arith.constant 0 : index
    %c0_1 = arith.constant 0 : index
    %0 = vector.load %arg1[%c0, %c0_0, %c0_1] : memref<8x8x128xf32, #tpu.memory_space<vmem>>, vector<8x8x128xf32>
    %1 = vector.shape_cast %0 : vector<8x8x128xf32> to vector<64x128xf32>
    %2 = arith.truncf %1 : vector<64x128xf32> to vector<64x128xbf16>
    %c0_2 = arith.constant 0 : index
    %c0_3 = arith.constant 0 : index
    %3 = vector.load %arg2[%c0_2, %c0_3] : memref<128x1024xbf16, #tpu.memory_space<vmem>>, vector<128x1024xbf16>
    %cst = arith.constant dense<0.000000e+00> : vector<64x1024xf32>
    %4 = tpu.matmul %2, %3, %cst {dimension_numbers = #tpu.dot_dimension_numbers<[1], [0], [0], [1], [0, 0, 1, 1], [], []>} : vector<64x128xbf16>, vector<128x1024xbf16>, vector<64x1024xf32> -> vector<64x1024xf32>
    %c0_4 = arith.constant 0 : index
    %c0_5 = arith.constant 0 : index
    %5 = vector.load %arg5[%c0_4, %c0_5] : memref<1x1024xf32, #tpu.memory_space<vmem>>, vector<1x1024xf32>
    %6 = vector.broadcast %5 : vector<1x1024xf32> to vector<64x1024xf32>
    %7 = arith.addf %4, %6 : vector<64x1024xf32>
    %c0_6 = arith.constant 0 : index
    %c0_7 = arith.constant 0 : index
    %8 = vector.load %arg12[%c0_6, %c0_7] : memref<64x1024xf32, #tpu.memory_space<vmem>>, vector<64x1024xf32>
    tpu.vector_store %arg12[%c0_6, %c0_7], %7 {strides = array<i32>} : memref<64x1024xf32, #tpu.memory_space<vmem>>, vector<64x1024xf32>,
    %cst_8 = arith.constant 0.000000e+00 : f32
    %9 = vector.broadcast %cst_8 : f32 to vector<8x128xf32>
    %c0_i32 = arith.constant 0 : i32
    %c8_i32 = arith.constant 8 : i32
    %10 = arith.muli %c0_i32, %c8_i32 : i32
    %11 = tpu.assume_multiple %10, 8 : i32
    %c7_i32 = arith.constant 7 : i32
    %12 = arith.subi %c7_i32, %c0_i32 : i32
    %c8_i32_9 = arith.constant 8 : i32
    %13 = arith.muli %12, %c8_i32_9 : i32
    %14 = tpu.assume_multiple %13, 8 : i32
    %15 = arith.index_cast %11 : i32 to index
    %c0_10 = arith.constant 0 : index
    %16 = vector.load %arg12[%15, %c0_10] : memref<64x1024xf32, #tpu.memory_space<vmem>>, vector<8x512xf32>
    %17 = arith.truncf %9 : vector<8x128xf32> to vector<8x128xbf16>
    %c0_11 = arith.constant 0 : index
    %c0_12 = arith.constant 0 : index
    %18 = vector.load %arg3[%c0_11, %c0_12] : memref<128x512xbf16, #tpu.memory_space<vmem>>, vector<128x512xbf16>
    %cst_13 = arith.constant dense<0.000000e+00> : vector<8x512xf32>
    %19 = tpu.matmul %17, %18, %cst_13 {dimension_numbers = #tpu.dot_dimension_numbers<[1], [0], [0], [1], [0, 0, 1, 1], [], []>} : vector<8x128xbf16>, vector<128x512xbf16>, vector<8x512xf32> -> vector<8x512xf32>
    %20 = arith.addf %16, %19 : vector<8x512xf32>
    %21 = arith.index_cast %14 : i32 to index
    %c512 = arith.constant 512 : index
    %22 = vector.load %arg12[%21, %c512] : memref<64x1024xf32, #tpu.memory_space<vmem>>, vector<8x512xf32>
    %23 = arith.truncf %9 : vector<8x128xf32> to vector<8x128xbf16>
    %c0_14 = arith.constant 0 : index
    %c0_15 = arith.constant 0 : index
    %24 = vector.load %arg4[%c0_14, %c0_15] : memref<128x512xbf16, #tpu.memory_space<vmem>>, vector<128x512xbf16>
    %cst_16 = arith.constant dense<0.000000e+00> : vector<8x512xf32>
    %25 = tpu.matmul %23, %24, %cst_16 {dimension_numbers = #tpu.dot_dimension_numbers<[1], [0], [0], [1], [0, 0, 1, 1], [], []>} : vector<8x128xbf16>, vector<128x512xbf16>, vector<8x512xf32> -> vector<8x512xf32>
    %26 = arith.addf %22, %25 : vector<8x512xf32>
    %27 = vector.extract_strided_slice %20 {offsets = [0, 0], sizes = [8, 384], strides = [1, 1]} : vector<8x512xf32> to vector<8x384xf32>
    %28 = arith.negf %27 : vector<8x384xf32>
    %29 = math.exp %28 : vector<8x384xf32>
    %cst_17 = arith.constant 1.000000e+00 : f32
    %30 = vector.broadcast %cst_17 : f32 to vector<8x384xf32>
    %31 = arith.addf %30, %29 : vector<8x384xf32>
    %32 = arith.divf %30, %31 : vector<8x384xf32>
    %33 = vector.extract_strided_slice %20 {offsets = [0, 384], sizes = [8, 128], strides = [1, 1]} : vector<8x512xf32> to vector<8x128xf32>
    %34 = math.tanh %33 : vector<8x128xf32>
    %35 = vector.extract_strided_slice %32 {offsets = [0, 0], sizes = [8, 128], strides = [1, 1]} : vector<8x384xf32> to vector<8x128xf32>
    %36 = vector.extract_strided_slice %32 {offsets = [0, 128], sizes = [8, 128], strides = [1, 1]} : vector<8x384xf32> to vector<8x128xf32>
    %37 = vector.extract_strided_slice %32 {offsets = [0, 256], sizes = [8, 128], strides = [1, 1]} : vector<8x384xf32> to vector<8x128xf32>
    %38 = arith.mulf %36, %9 : vector<8x128xf32>
    %39 = arith.mulf %35, %34 : vector<8x128xf32>
    %40 = arith.addf %38, %39 : vector<8x128xf32>
    %41 = math.tanh %40 : vector<8x128xf32>
    %42 = arith.mulf %37, %41 : vector<8x128xf32>
    %43 = vector.extract_strided_slice %26 {offsets = [0, 0], sizes = [8, 384], strides = [1, 1]} : vector<8x512xf32> to vector<8x384xf32>
    %44 = arith.negf %43 : vector<8x384xf32>
    %45 = math.exp %44 : vector<8x384xf32>
    %cst_18 = arith.constant 1.000000e+00 : f32
    %46 = vector.broadcast %cst_18 : f32 to vector<8x384xf32>
    %47 = arith.addf %46, %45 : vector<8x384xf32>
    %48 = arith.divf %46, %47 : vector<8x384xf32>
    %49 = vector.extract_strided_slice %26 {offsets = [0, 384], sizes = [8, 128], strides = [1, 1]} : vector<8x512xf32> to vector<8x128xf32>
    %50 = math.tanh %49 : vector<8x128xf32>
    %51 = vector.extract_strided_slice %48 {offsets = [0, 0], sizes = [8, 128], strides = [1, 1]} : vector<8x384xf32> to vector<8x128xf32>
    %52 = vector.extract_strided_slice %48 {offsets = [0, 128], sizes = [8, 128], strides = [1, 1]} : vector<8x384xf32> to vector<8x128xf32>
    %53 = vector.extract_strided_slice %48 {offsets = [0, 256], sizes = [8, 128], strides = [1, 1]} : vector<8x384xf32> to vector<8x128xf32>
    %54 = arith.mulf %52, %9 : vector<8x128xf32>
    %55 = arith.mulf %51, %50 : vector<8x128xf32>
    %56 = arith.addf %54, %55 : vector<8x128xf32>
    %57 = math.tanh %56 : vector<8x128xf32>
    %58 = arith.mulf %53, %57 : vector<8x128xf32>
    %59 = arith.index_cast %11 : i32 to index
    %c0_19 = arith.constant 0 : index
    %60 = vector.load %arg13[%59, %c0_19] : memref<64x256xf32, #tpu.memory_space<vmem>>, vector<8x128xf32>
    tpu.vector_store %arg13[%59, %c0_19], %42 {strides = array<i32>} : memref<64x256xf32, #tpu.memory_space<vmem>>, vector<8x128xf32>,
    %61 = arith.index_cast %14 : i32 to index
    %c128 = arith.constant 128 : index
    %62 = vector.load %arg13[%61, %c128] : memref<64x256xf32, #tpu.memory_space<vmem>>, vector<8x128xf32>
    tpu.vector_store %arg13[%61, %c128], %58 {strides = array<i32>} : memref<64x256xf32, #tpu.memory_space<vmem>>, vector<8x128xf32>,
    %c1_i32 = arith.constant 1 : i32
    %c8_i32_20 = arith.constant 8 : i32
    %63 = arith.muli %c1_i32, %c8_i32_20 : i32
    %64 = tpu.assume_multiple %63, 8 : i32
    %c7_i32_21 = arith.constant 7 : i32
    %65 = arith.subi %c7_i32_21, %c1_i32 : i32
    %c8_i32_22 = arith.constant 8 : i32
    %66 = arith.muli %65, %c8_i32_22 : i32
    %67 = tpu.assume_multiple %66, 8 : i32
    %68 = arith.index_cast %64 : i32 to index
    %c0_23 = arith.constant 0 : index
    %69 = vector.load %arg12[%68, %c0_23] : memref<64x1024xf32, #tpu.memory_space<vmem>>, vector<8x512xf32>
    %70 = arith.truncf %42 : vector<8x128xf32> to vector<8x128xbf16>
    %c0_24 = arith.constant 0 : index
    %c0_25 = arith.constant 0 : index
    %71 = vector.load %arg3[%c0_24, %c0_25] : memref<128x512xbf16, #tpu.memory_space<vmem>>, vector<128x512xbf16>
    %cst_26 = arith.constant dense<0.000000e+00> : vector<8x512xf32>
    %72 = tpu.matmul %70, %71, %cst_26 {dimension_numbers = #tpu.dot_dimension_numbers<[1], [0], [0], [1], [0, 0, 1, 1], [], []>} : vector<8x128xbf16>, vector<128x512xbf16>, vector<8x512xf32> -> vector<8x512xf32>
    %73 = arith.addf %69, %72 : vector<8x512xf32>
    %74 = arith.index_cast %67 : i32 to index
    %c512_27 = arith.constant 512 : index
    %75 = vector.load %arg12[%74, %c512_27] : memref<64x1024xf32, #tpu.memory_space<vmem>>, vector<8x512xf32>
    %76 = arith.truncf %58 : vector<8x128xf32> to vector<8x128xbf16>
    %c0_28 = arith.constant 0 : index
    %c0_29 = arith.constant 0 : index
    %77 = vector.load %arg4[%c0_28, %c0_29] : memref<128x512xbf16, #tpu.memory_space<vmem>>, vector<128x512xbf16>
    %cst_30 = arith.constant dense<0.000000e+00> : vector<8x512xf32>
    %78 = tpu.matmul %76, %77, %cst_30 {dimension_numbers = #tpu.dot_dimension_numbers<[1], [0], [0], [1], [0, 0, 1, 1], [], []>} : vector<8x128xbf16>, vector<128x512xbf16>, vector<8x512xf32> -> vector<8x512xf32>
    %79 = arith.addf %75, %78 : vector<8x512xf32>
    %80 = vector.extract_strided_slice %73 {offsets = [0, 0], sizes = [8, 384], strides = [1, 1]} : vector<8x512xf32> to vector<8x384xf32>
    %81 = arith.negf %80 : vector<8x384xf32>
    %82 = math.exp %81 : vector<8x384xf32>
    %cst_31 = arith.constant 1.000000e+00 : f32
    %83 = vector.broadcast %cst_31 : f32 to vector<8x384xf32>
    %84 = arith.addf %83, %82 : vector<8x384xf32>
    %85 = arith.divf %83, %84 : vector<8x384xf32>
    %86 = vector.extract_strided_slice %73 {offsets = [0, 384], sizes = [8, 128], strides = [1, 1]} : vector<8x512xf32> to vector<8x128xf32>
    %87 = math.tanh %86 : vector<8x128xf32>
    %88 = vector.extract_strided_slice %85 {offsets = [0, 0], sizes = [8, 128], strides = [1, 1]} : vector<8x384xf32> to vector<8x128xf32>
    %89 = vector.extract_strided_slice %85 {offsets = [0, 128], sizes = [8, 128], strides = [1, 1]} : vector<8x384xf32> to vector<8x128xf32>
    %90 = vector.extract_strided_slice %85 {offsets = [0, 256], sizes = [8, 128], strides = [1, 1]} : vector<8x384xf32> to vector<8x128xf32>
    %91 = arith.mulf %89, %40 : vector<8x128xf32>
    %92 = arith.mulf %88, %87 : vector<8x128xf32>
    %93 = arith.addf %91, %92 : vector<8x128xf32>
    %94 = math.tanh %93 : vector<8x128xf32>
    %95 = arith.mulf %90, %94 : vector<8x128xf32>
    %96 = vector.extract_strided_slice %79 {offsets = [0, 0], sizes = [8, 384], strides = [1, 1]} : vector<8x512xf32> to vector<8x384xf32>
    %97 = arith.negf %96 : vector<8x384xf32>
    %98 = math.exp %97 : vector<8x384xf32>
    %cst_32 = arith.constant 1.000000e+00 : f32
    %99 = vector.broadcast %cst_32 : f32 to vector<8x384xf32>
    %100 = arith.addf %99, %98 : vector<8x384xf32>
    %101 = arith.divf %99, %100 : vector<8x384xf32>
    %102 = vector.extract_strided_slice %79 {offsets = [0, 384], sizes = [8, 128], strides = [1, 1]} : vector<8x512xf32> to vector<8x128xf32>
    %103 = math.tanh %102 : vector<8x128xf32>
    %104 = vector.extract_strided_slice %101 {offsets = [0, 0], sizes = [8, 128], strides = [1, 1]} : vector<8x384xf32> to vector<8x128xf32>
    %105 = vector.extract_strided_slice %101 {offsets = [0, 128], sizes = [8, 128], strides = [1, 1]} : vector<8x384xf32> to vector<8x128xf32>
    %106 = vector.extract_strided_slice %101 {offsets = [0, 256], sizes = [8, 128], strides = [1, 1]} : vector<8x384xf32> to vector<8x128xf32>
    %107 = arith.mulf %105, %56 : vector<8x128xf32>
    %108 = arith.mulf %104, %103 : vector<8x128xf32>
    %109 = arith.addf %107, %108 : vector<8x128xf32>
    %110 = math.tanh %109 : vector<8x128xf32>
    %111 = arith.mulf %106, %110 : vector<8x128xf32>
    %112 = arith.index_cast %64 : i32 to index
    %c0_33 = arith.constant 0 : index
    %113 = vector.load %arg13[%112, %c0_33] : memref<64x256xf32, #tpu.memory_space<vmem>>, vector<8x128xf32>
    tpu.vector_store %arg13[%112, %c0_33], %95 {strides = array<i32>} : memref<64x256xf32, #tpu.memory_space<vmem>>, vector<8x128xf32>,
    %114 = arith.index_cast %67 : i32 to index
    %c128_34 = arith.constant 128 : index
    %115 = vector.load %arg13[%114, %c128_34] : memref<64x256xf32, #tpu.memory_space<vmem>>, vector<8x128xf32>
    tpu.vector_store %arg13[%114, %c128_34], %111 {strides = array<i32>} : memref<64x256xf32, #tpu.memory_space<vmem>>, vector<8x128xf32>,
    %c2_i32 = arith.constant 2 : i32
    %c8_i32_35 = arith.constant 8 : i32
    %116 = arith.muli %c2_i32, %c8_i32_35 : i32
    %117 = tpu.assume_multiple %116, 8 : i32
    %c7_i32_36 = arith.constant 7 : i32
    %118 = arith.subi %c7_i32_36, %c2_i32 : i32
    %c8_i32_37 = arith.constant 8 : i32
    %119 = arith.muli %118, %c8_i32_37 : i32
    %120 = tpu.assume_multiple %119, 8 : i32
    %121 = arith.index_cast %117 : i32 to index
    %c0_38 = arith.constant 0 : index
    %122 = vector.load %arg12[%121, %c0_38] : memref<64x1024xf32, #tpu.memory_space<vmem>>, vector<8x512xf32>
    %123 = arith.truncf %95 : vector<8x128xf32> to vector<8x128xbf16>
    %c0_39 = arith.constant 0 : index
    %c0_40 = arith.constant 0 : index
    %124 = vector.load %arg3[%c0_39, %c0_40] : memref<128x512xbf16, #tpu.memory_space<vmem>>, vector<128x512xbf16>
    %cst_41 = arith.constant dense<0.000000e+00> : vector<8x512xf32>
    %125 = tpu.matmul %123, %124, %cst_41 {dimension_numbers = #tpu.dot_dimension_numbers<[1], [0], [0], [1], [0, 0, 1, 1], [], []>} : vector<8x128xbf16>, vector<128x512xbf16>, vector<8x512xf32> -> vector<8x512xf32>
    %126 = arith.addf %122, %125 : vector<8x512xf32>
    %127 = arith.index_cast %120 : i32 to index
    %c512_42 = arith.constant 512 : index
    %128 = vector.load %arg12[%127, %c512_42] : memref<64x1024xf32, #tpu.memory_space<vmem>>, vector<8x512xf32>
    %129 = arith.truncf %111 : vector<8x128xf32> to vector<8x128xbf16>
    %c0_43 = arith.constant 0 : index
    %c0_44 = arith.constant 0 : index
    %130 = vector.load %arg4[%c0_43, %c0_44] : memref<128x512xbf16, #tpu.memory_space<vmem>>, vector<128x512xbf16>
    %cst_45 = arith.constant dense<0.000000e+00> : vector<8x512xf32>
    %131 = tpu.matmul %129, %130, %cst_45 {dimension_numbers = #tpu.dot_dimension_numbers<[1], [0], [0], [1], [0, 0, 1, 1], [], []>} : vector<8x128xbf16>, vector<128x512xbf16>, vector<8x512xf32> -> vector<8x512xf32>
    %132 = arith.addf %128, %131 : vector<8x512xf32>
    %133 = vector.extract_strided_slice %126 {offsets = [0, 0], sizes = [8, 384], strides = [1, 1]} : vector<8x512xf32> to vector<8x384xf32>
    %134 = arith.negf %133 : vector<8x384xf32>
    %135 = math.exp %134 : vector<8x384xf32>
    %cst_46 = arith.constant 1.000000e+00 : f32
    %136 = vector.broadcast %cst_46 : f32 to vector<8x384xf32>
    %137 = arith.addf %136, %135 : vector<8x384xf32>
    %138 = arith.divf %136, %137 : vector<8x384xf32>
    %139 = vector.extract_strided_slice %126 {offsets = [0, 384], sizes = [8, 128], strides = [1, 1]} : vector<8x512xf32> to vector<8x128xf32>
    %140 = math.tanh %139 : vector<8x128xf32>
    %141 = vector.extract_strided_slice %138 {offsets = [0, 0], sizes = [8, 128], strides = [1, 1]} : vector<8x384xf32> to vector<8x128xf32>
    %142 = vector.extract_strided_slice %138 {offsets = [0, 128], sizes = [8, 128], strides = [1, 1]} : vector<8x384xf32> to vector<8x128xf32>
    %143 = vector.extract_strided_slice %138 {offsets = [0, 256], sizes = [8, 128], strides = [1, 1]} : vector<8x384xf32> to vector<8x128xf32>
    %144 = arith.mulf %142, %93 : vector<8x128xf32>
    %145 = arith.mulf %141, %140 : vector<8x128xf32>
    %146 = arith.addf %144, %145 : vector<8x128xf32>
    %147 = math.tanh %146 : vector<8x128xf32>
    %148 = arith.mulf %143, %147 : vector<8x128xf32>
    %149 = vector.extract_strided_slice %132 {offsets = [0, 0], sizes = [8, 384], strides = [1, 1]} : vector<8x512xf32> to vector<8x384xf32>
    %150 = arith.negf %149 : vector<8x384xf32>
    %151 = math.exp %150 : vector<8x384xf32>
    %cst_47 = arith.constant 1.000000e+00 : f32
    %152 = vector.broadcast %cst_47 : f32 to vector<8x384xf32>
    %153 = arith.addf %152, %151 : vector<8x384xf32>
    %154 = arith.divf %152, %153 : vector<8x384xf32>
    %155 = vector.extract_strided_slice %132 {offsets = [0, 384], sizes = [8, 128], strides = [1, 1]} : vector<8x512xf32> to vector<8x128xf32>
    %156 = math.tanh %155 : vector<8x128xf32>
    %157 = vector.extract_strided_slice %154 {offsets = [0, 0], sizes = [8, 128], strides = [1, 1]} : vector<8x384xf32> to vector<8x128xf32>
    %158 = vector.extract_strided_slice %154 {offsets = [0, 128], sizes = [8, 128], strides = [1, 1]} : vector<8x384xf32> to vector<8x128xf32>
    %159 = vector.extract_strided_slice %154 {offsets = [0, 256], sizes = [8, 128], strides = [1, 1]} : vector<8x384xf32> to vector<8x128xf32>
    %160 = arith.mulf %158, %109 : vector<8x128xf32>
    %161 = arith.mulf %157, %156 : vector<8x128xf32>
    %162 = arith.addf %160, %161 : vector<8x128xf32>
    %163 = math.tanh %162 : vector<8x128xf32>
    %164 = arith.mulf %159, %163 : vector<8x128xf32>
    %165 = arith.index_cast %117 : i32 to index
    %c0_48 = arith.constant 0 : index
    %166 = vector.load %arg13[%165, %c0_48] : memref<64x256xf32, #tpu.memory_space<vmem>>, vector<8x128xf32>
    tpu.vector_store %arg13[%165, %c0_48], %148 {strides = array<i32>} : memref<64x256xf32, #tpu.memory_space<vmem>>, vector<8x128xf32>,
    %167 = arith.index_cast %120 : i32 to index
    %c128_49 = arith.constant 128 : index
    %168 = vector.load %arg13[%167, %c128_49] : memref<64x256xf32, #tpu.memory_space<vmem>>, vector<8x128xf32>
    tpu.vector_store %arg13[%167, %c128_49], %164 {strides = array<i32>} : memref<64x256xf32, #tpu.memory_space<vmem>>, vector<8x128xf32>,
    %c3_i32 = arith.constant 3 : i32
    %c8_i32_50 = arith.constant 8 : i32
    %169 = arith.muli %c3_i32, %c8_i32_50 : i32
    %170 = tpu.assume_multiple %169, 8 : i32
    %c7_i32_51 = arith.constant 7 : i32
    %171 = arith.subi %c7_i32_51, %c3_i32 : i32
    %c8_i32_52 = arith.constant 8 : i32
    %172 = arith.muli %171, %c8_i32_52 : i32
    %173 = tpu.assume_multiple %172, 8 : i32
    %174 = arith.index_cast %170 : i32 to index
    %c0_53 = arith.constant 0 : index
    %175 = vector.load %arg12[%174, %c0_53] : memref<64x1024xf32, #tpu.memory_space<vmem>>, vector<8x512xf32>
    %176 = arith.truncf %148 : vector<8x128xf32> to vector<8x128xbf16>
    %c0_54 = arith.constant 0 : index
    %c0_55 = arith.constant 0 : index
    %177 = vector.load %arg3[%c0_54, %c0_55] : memref<128x512xbf16, #tpu.memory_space<vmem>>, vector<128x512xbf16>
    %cst_56 = arith.constant dense<0.000000e+00> : vector<8x512xf32>
    %178 = tpu.matmul %176, %177, %cst_56 {dimension_numbers = #tpu.dot_dimension_numbers<[1], [0], [0], [1], [0, 0, 1, 1], [], []>} : vector<8x128xbf16>, vector<128x512xbf16>, vector<8x512xf32> -> vector<8x512xf32>
    %179 = arith.addf %175, %178 : vector<8x512xf32>
    %180 = arith.index_cast %173 : i32 to index
    %c512_57 = arith.constant 512 : index
    %181 = vector.load %arg12[%180, %c512_57] : memref<64x1024xf32, #tpu.memory_space<vmem>>, vector<8x512xf32>
    %182 = arith.truncf %164 : vector<8x128xf32> to vector<8x128xbf16>
    %c0_58 = arith.constant 0 : index
    %c0_59 = arith.constant 0 : index
    %183 = vector.load %arg4[%c0_58, %c0_59] : memref<128x512xbf16, #tpu.memory_space<vmem>>, vector<128x512xbf16>
    %cst_60 = arith.constant dense<0.000000e+00> : vector<8x512xf32>
    %184 = tpu.matmul %182, %183, %cst_60 {dimension_numbers = #tpu.dot_dimension_numbers<[1], [0], [0], [1], [0, 0, 1, 1], [], []>} : vector<8x128xbf16>, vector<128x512xbf16>, vector<8x512xf32> -> vector<8x512xf32>
    %185 = arith.addf %181, %184 : vector<8x512xf32>
    %186 = vector.extract_strided_slice %179 {offsets = [0, 0], sizes = [8, 384], strides = [1, 1]} : vector<8x512xf32> to vector<8x384xf32>
    %187 = arith.negf %186 : vector<8x384xf32>
    %188 = math.exp %187 : vector<8x384xf32>
    %cst_61 = arith.constant 1.000000e+00 : f32
    %189 = vector.broadcast %cst_61 : f32 to vector<8x384xf32>
    %190 = arith.addf %189, %188 : vector<8x384xf32>
    %191 = arith.divf %189, %190 : vector<8x384xf32>
    %192 = vector.extract_strided_slice %179 {offsets = [0, 384], sizes = [8, 128], strides = [1, 1]} : vector<8x512xf32> to vector<8x128xf32>
    %193 = math.tanh %192 : vector<8x128xf32>
    %194 = vector.extract_strided_slice %191 {offsets = [0, 0], sizes = [8, 128], strides = [1, 1]} : vector<8x384xf32> to vector<8x128xf32>
    %195 = vector.extract_strided_slice %191 {offsets = [0, 128], sizes = [8, 128], strides = [1, 1]} : vector<8x384xf32> to vector<8x128xf32>
    %196 = vector.extract_strided_slice %191 {offsets = [0, 256], sizes = [8, 128], strides = [1, 1]} : vector<8x384xf32> to vector<8x128xf32>
    %197 = arith.mulf %195, %146 : vector<8x128xf32>
    %198 = arith.mulf %194, %193 : vector<8x128xf32>
    %199 = arith.addf %197, %198 : vector<8x128xf32>
    %200 = math.tanh %199 : vector<8x128xf32>
    %201 = arith.mulf %196, %200 : vector<8x128xf32>
    %202 = vector.extract_strided_slice %185 {offsets = [0, 0], sizes = [8, 384], strides = [1, 1]} : vector<8x512xf32> to vector<8x384xf32>
    %203 = arith.negf %202 : vector<8x384xf32>
    %204 = math.exp %203 : vector<8x384xf32>
    %cst_62 = arith.constant 1.000000e+00 : f32
    %205 = vector.broadcast %cst_62 : f32 to vector<8x384xf32>
    %206 = arith.addf %205, %204 : vector<8x384xf32>
    %207 = arith.divf %205, %206 : vector<8x384xf32>
    %208 = vector.extract_strided_slice %185 {offsets = [0, 384], sizes = [8, 128], strides = [1, 1]} : vector<8x512xf32> to vector<8x128xf32>
    %209 = math.tanh %208 : vector<8x128xf32>
    %210 = vector.extract_strided_slice %207 {offsets = [0, 0], sizes = [8, 128], strides = [1, 1]} : vector<8x384xf32> to vector<8x128xf32>
    %211 = vector.extract_strided_slice %207 {offsets = [0, 128], sizes = [8, 128], strides = [1, 1]} : vector<8x384xf32> to vector<8x128xf32>
    %212 = vector.extract_strided_slice %207 {offsets = [0, 256], sizes = [8, 128], strides = [1, 1]} : vector<8x384xf32> to vector<8x128xf32>
    %213 = arith.mulf %211, %162 : vector<8x128xf32>
    %214 = arith.mulf %210, %209 : vector<8x128xf32>
    %215 = arith.addf %213, %214 : vector<8x128xf32>
    %216 = math.tanh %215 : vector<8x128xf32>
    %217 = arith.mulf %212, %216 : vector<8x128xf32>
    %218 = arith.index_cast %170 : i32 to index
    %c0_63 = arith.constant 0 : index
    %219 = vector.load %arg13[%218, %c0_63] : memref<64x256xf32, #tpu.memory_space<vmem>>, vector<8x128xf32>
    tpu.vector_store %arg13[%218, %c0_63], %201 {strides = array<i32>} : memref<64x256xf32, #tpu.memory_space<vmem>>, vector<8x128xf32>,
    %220 = arith.index_cast %173 : i32 to index
    %c128_64 = arith.constant 128 : index
    %221 = vector.load %arg13[%220, %c128_64] : memref<64x256xf32, #tpu.memory_space<vmem>>, vector<8x128xf32>
    tpu.vector_store %arg13[%220, %c128_64], %217 {strides = array<i32>} : memref<64x256xf32, #tpu.memory_space<vmem>>, vector<8x128xf32>,
    %c4_i32 = arith.constant 4 : i32
    %c8_i32_65 = arith.constant 8 : i32
    %222 = arith.muli %c4_i32, %c8_i32_65 : i32
    %223 = tpu.assume_multiple %222, 8 : i32
    %c7_i32_66 = arith.constant 7 : i32
    %224 = arith.subi %c7_i32_66, %c4_i32 : i32
    %c8_i32_67 = arith.constant 8 : i32
    %225 = arith.muli %224, %c8_i32_67 : i32
    %226 = tpu.assume_multiple %225, 8 : i32
    %227 = arith.index_cast %223 : i32 to index
    %c0_68 = arith.constant 0 : index
    %228 = vector.load %arg12[%227, %c0_68] : memref<64x1024xf32, #tpu.memory_space<vmem>>, vector<8x512xf32>
    %229 = arith.truncf %201 : vector<8x128xf32> to vector<8x128xbf16>
    %c0_69 = arith.constant 0 : index
    %c0_70 = arith.constant 0 : index
    %230 = vector.load %arg3[%c0_69, %c0_70] : memref<128x512xbf16, #tpu.memory_space<vmem>>, vector<128x512xbf16>
    %cst_71 = arith.constant dense<0.000000e+00> : vector<8x512xf32>
    %231 = tpu.matmul %229, %230, %cst_71 {dimension_numbers = #tpu.dot_dimension_numbers<[1], [0], [0], [1], [0, 0, 1, 1], [], []>} : vector<8x128xbf16>, vector<128x512xbf16>, vector<8x512xf32> -> vector<8x512xf32>
    %232 = arith.addf %228, %231 : vector<8x512xf32>
    %233 = arith.index_cast %226 : i32 to index
    %c512_72 = arith.constant 512 : index
    %234 = vector.load %arg12[%233, %c512_72] : memref<64x1024xf32, #tpu.memory_space<vmem>>, vector<8x512xf32>
    %235 = arith.truncf %217 : vector<8x128xf32> to vector<8x128xbf16>
    %c0_73 = arith.constant 0 : index
    %c0_74 = arith.constant 0 : index
    %236 = vector.load %arg4[%c0_73, %c0_74] : memref<128x512xbf16, #tpu.memory_space<vmem>>, vector<128x512xbf16>
    %cst_75 = arith.constant dense<0.000000e+00> : vector<8x512xf32>
    %237 = tpu.matmul %235, %236, %cst_75 {dimension_numbers = #tpu.dot_dimension_numbers<[1], [0], [0], [1], [0, 0, 1, 1], [], []>} : vector<8x128xbf16>, vector<128x512xbf16>, vector<8x512xf32> -> vector<8x512xf32>
    %238 = arith.addf %234, %237 : vector<8x512xf32>
    %239 = vector.extract_strided_slice %232 {offsets = [0, 0], sizes = [8, 384], strides = [1, 1]} : vector<8x512xf32> to vector<8x384xf32>
    %240 = arith.negf %239 : vector<8x384xf32>
    %241 = math.exp %240 : vector<8x384xf32>
    %cst_76 = arith.constant 1.000000e+00 : f32
    %242 = vector.broadcast %cst_76 : f32 to vector<8x384xf32>
    %243 = arith.addf %242, %241 : vector<8x384xf32>
    %244 = arith.divf %242, %243 : vector<8x384xf32>
    %245 = vector.extract_strided_slice %232 {offsets = [0, 384], sizes = [8, 128], strides = [1, 1]} : vector<8x512xf32> to vector<8x128xf32>
    %246 = math.tanh %245 : vector<8x128xf32>
    %247 = vector.extract_strided_slice %244 {offsets = [0, 0], sizes = [8, 128], strides = [1, 1]} : vector<8x384xf32> to vector<8x128xf32>
    %248 = vector.extract_strided_slice %244 {offsets = [0, 128], sizes = [8, 128], strides = [1, 1]} : vector<8x384xf32> to vector<8x128xf32>
    %249 = vector.extract_strided_slice %244 {offsets = [0, 256], sizes = [8, 128], strides = [1, 1]} : vector<8x384xf32> to vector<8x128xf32>
    %250 = arith.mulf %248, %199 : vector<8x128xf32>
    %251 = arith.mulf %247, %246 : vector<8x128xf32>
    %252 = arith.addf %250, %251 : vector<8x128xf32>
    %253 = math.tanh %252 : vector<8x128xf32>
    %254 = arith.mulf %249, %253 : vector<8x128xf32>
    %255 = vector.extract_strided_slice %238 {offsets = [0, 0], sizes = [8, 384], strides = [1, 1]} : vector<8x512xf32> to vector<8x384xf32>
    %256 = arith.negf %255 : vector<8x384xf32>
    %257 = math.exp %256 : vector<8x384xf32>
    %cst_77 = arith.constant 1.000000e+00 : f32
    %258 = vector.broadcast %cst_77 : f32 to vector<8x384xf32>
    %259 = arith.addf %258, %257 : vector<8x384xf32>
    %260 = arith.divf %258, %259 : vector<8x384xf32>
    %261 = vector.extract_strided_slice %238 {offsets = [0, 384], sizes = [8, 128], strides = [1, 1]} : vector<8x512xf32> to vector<8x128xf32>
    %262 = math.tanh %261 : vector<8x128xf32>
    %263 = vector.extract_strided_slice %260 {offsets = [0, 0], sizes = [8, 128], strides = [1, 1]} : vector<8x384xf32> to vector<8x128xf32>
    %264 = vector.extract_strided_slice %260 {offsets = [0, 128], sizes = [8, 128], strides = [1, 1]} : vector<8x384xf32> to vector<8x128xf32>
    %265 = vector.extract_strided_slice %260 {offsets = [0, 256], sizes = [8, 128], strides = [1, 1]} : vector<8x384xf32> to vector<8x128xf32>
    %266 = arith.mulf %264, %215 : vector<8x128xf32>
    %267 = arith.mulf %263, %262 : vector<8x128xf32>
    %268 = arith.addf %266, %267 : vector<8x128xf32>
    %269 = math.tanh %268 : vector<8x128xf32>
    %270 = arith.mulf %265, %269 : vector<8x128xf32>
    %271 = arith.index_cast %223 : i32 to index
    %c0_78 = arith.constant 0 : index
    %272 = vector.load %arg13[%271, %c0_78] : memref<64x256xf32, #tpu.memory_space<vmem>>, vector<8x128xf32>
    tpu.vector_store %arg13[%271, %c0_78], %254 {strides = array<i32>} : memref<64x256xf32, #tpu.memory_space<vmem>>, vector<8x128xf32>,
    %273 = arith.index_cast %226 : i32 to index
    %c128_79 = arith.constant 128 : index
    %274 = vector.load %arg13[%273, %c128_79] : memref<64x256xf32, #tpu.memory_space<vmem>>, vector<8x128xf32>
    tpu.vector_store %arg13[%273, %c128_79], %270 {strides = array<i32>} : memref<64x256xf32, #tpu.memory_space<vmem>>, vector<8x128xf32>,
    %c5_i32 = arith.constant 5 : i32
    %c8_i32_80 = arith.constant 8 : i32
    %275 = arith.muli %c5_i32, %c8_i32_80 : i32
    %276 = tpu.assume_multiple %275, 8 : i32
    %c7_i32_81 = arith.constant 7 : i32
    %277 = arith.subi %c7_i32_81, %c5_i32 : i32
    %c8_i32_82 = arith.constant 8 : i32
    %278 = arith.muli %277, %c8_i32_82 : i32
    %279 = tpu.assume_multiple %278, 8 : i32
    %280 = arith.index_cast %276 : i32 to index
    %c0_83 = arith.constant 0 : index
    %281 = vector.load %arg12[%280, %c0_83] : memref<64x1024xf32, #tpu.memory_space<vmem>>, vector<8x512xf32>
    %282 = arith.truncf %254 : vector<8x128xf32> to vector<8x128xbf16>
    %c0_84 = arith.constant 0 : index
    %c0_85 = arith.constant 0 : index
    %283 = vector.load %arg3[%c0_84, %c0_85] : memref<128x512xbf16, #tpu.memory_space<vmem>>, vector<128x512xbf16>
    %cst_86 = arith.constant dense<0.000000e+00> : vector<8x512xf32>
    %284 = tpu.matmul %282, %283, %cst_86 {dimension_numbers = #tpu.dot_dimension_numbers<[1], [0], [0], [1], [0, 0, 1, 1], [], []>} : vector<8x128xbf16>, vector<128x512xbf16>, vector<8x512xf32> -> vector<8x512xf32>
    %285 = arith.addf %281, %284 : vector<8x512xf32>
    %286 = arith.index_cast %279 : i32 to index
    %c512_87 = arith.constant 512 : index
    %287 = vector.load %arg12[%286, %c512_87] : memref<64x1024xf32, #tpu.memory_space<vmem>>, vector<8x512xf32>
    %288 = arith.truncf %270 : vector<8x128xf32> to vector<8x128xbf16>
    %c0_88 = arith.constant 0 : index
    %c0_89 = arith.constant 0 : index
    %289 = vector.load %arg4[%c0_88, %c0_89] : memref<128x512xbf16, #tpu.memory_space<vmem>>, vector<128x512xbf16>
    %cst_90 = arith.constant dense<0.000000e+00> : vector<8x512xf32>
    %290 = tpu.matmul %288, %289, %cst_90 {dimension_numbers = #tpu.dot_dimension_numbers<[1], [0], [0], [1], [0, 0, 1, 1], [], []>} : vector<8x128xbf16>, vector<128x512xbf16>, vector<8x512xf32> -> vector<8x512xf32>
    %291 = arith.addf %287, %290 : vector<8x512xf32>
    %292 = vector.extract_strided_slice %285 {offsets = [0, 0], sizes = [8, 384], strides = [1, 1]} : vector<8x512xf32> to vector<8x384xf32>
    %293 = arith.negf %292 : vector<8x384xf32>
    %294 = math.exp %293 : vector<8x384xf32>
    %cst_91 = arith.constant 1.000000e+00 : f32
    %295 = vector.broadcast %cst_91 : f32 to vector<8x384xf32>
    %296 = arith.addf %295, %294 : vector<8x384xf32>
    %297 = arith.divf %295, %296 : vector<8x384xf32>
    %298 = vector.extract_strided_slice %285 {offsets = [0, 384], sizes = [8, 128], strides = [1, 1]} : vector<8x512xf32> to vector<8x128xf32>
    %299 = math.tanh %298 : vector<8x128xf32>
    %300 = vector.extract_strided_slice %297 {offsets = [0, 0], sizes = [8, 128], strides = [1, 1]} : vector<8x384xf32> to vector<8x128xf32>
    %301 = vector.extract_strided_slice %297 {offsets = [0, 128], sizes = [8, 128], strides = [1, 1]} : vector<8x384xf32> to vector<8x128xf32>
    %302 = vector.extract_strided_slice %297 {offsets = [0, 256], sizes = [8, 128], strides = [1, 1]} : vector<8x384xf32> to vector<8x128xf32>
    %303 = arith.mulf %301, %252 : vector<8x128xf32>
    %304 = arith.mulf %300, %299 : vector<8x128xf32>
    %305 = arith.addf %303, %304 : vector<8x128xf32>
    %306 = math.tanh %305 : vector<8x128xf32>
    %307 = arith.mulf %302, %306 : vector<8x128xf32>
    %308 = vector.extract_strided_slice %291 {offsets = [0, 0], sizes = [8, 384], strides = [1, 1]} : vector<8x512xf32> to vector<8x384xf32>
    %309 = arith.negf %308 : vector<8x384xf32>
    %310 = math.exp %309 : vector<8x384xf32>
    %cst_92 = arith.constant 1.000000e+00 : f32
    %311 = vector.broadcast %cst_92 : f32 to vector<8x384xf32>
    %312 = arith.addf %311, %310 : vector<8x384xf32>
    %313 = arith.divf %311, %312 : vector<8x384xf32>
    %314 = vector.extract_strided_slice %291 {offsets = [0, 384], sizes = [8, 128], strides = [1, 1]} : vector<8x512xf32> to vector<8x128xf32>
    %315 = math.tanh %314 : vector<8x128xf32>
    %316 = vector.extract_strided_slice %313 {offsets = [0, 0], sizes = [8, 128], strides = [1, 1]} : vector<8x384xf32> to vector<8x128xf32>
    %317 = vector.extract_strided_slice %313 {offsets = [0, 128], sizes = [8, 128], strides = [1, 1]} : vector<8x384xf32> to vector<8x128xf32>
    %318 = vector.extract_strided_slice %313 {offsets = [0, 256], sizes = [8, 128], strides = [1, 1]} : vector<8x384xf32> to vector<8x128xf32>
    %319 = arith.mulf %317, %268 : vector<8x128xf32>
    %320 = arith.mulf %316, %315 : vector<8x128xf32>
    %321 = arith.addf %319, %320 : vector<8x128xf32>
    %322 = math.tanh %321 : vector<8x128xf32>
    %323 = arith.mulf %318, %322 : vector<8x128xf32>
    %324 = arith.index_cast %276 : i32 to index
    %c0_93 = arith.constant 0 : index
    %325 = vector.load %arg13[%324, %c0_93] : memref<64x256xf32, #tpu.memory_space<vmem>>, vector<8x128xf32>
    tpu.vector_store %arg13[%324, %c0_93], %307 {strides = array<i32>} : memref<64x256xf32, #tpu.memory_space<vmem>>, vector<8x128xf32>,
    %326 = arith.index_cast %279 : i32 to index
    %c128_94 = arith.constant 128 : index
    %327 = vector.load %arg13[%326, %c128_94] : memref<64x256xf32, #tpu.memory_space<vmem>>, vector<8x128xf32>
    tpu.vector_store %arg13[%326, %c128_94], %323 {strides = array<i32>} : memref<64x256xf32, #tpu.memory_space<vmem>>, vector<8x128xf32>,
    %c6_i32 = arith.constant 6 : i32
    %c8_i32_95 = arith.constant 8 : i32
    %328 = arith.muli %c6_i32, %c8_i32_95 : i32
    %329 = tpu.assume_multiple %328, 8 : i32
    %c7_i32_96 = arith.constant 7 : i32
    %330 = arith.subi %c7_i32_96, %c6_i32 : i32
    %c8_i32_97 = arith.constant 8 : i32
    %331 = arith.muli %330, %c8_i32_97 : i32
    %332 = tpu.assume_multiple %331, 8 : i32
    %333 = arith.index_cast %329 : i32 to index
    %c0_98 = arith.constant 0 : index
    %334 = vector.load %arg12[%333, %c0_98] : memref<64x1024xf32, #tpu.memory_space<vmem>>, vector<8x512xf32>
    %335 = arith.truncf %307 : vector<8x128xf32> to vector<8x128xbf16>
    %c0_99 = arith.constant 0 : index
    %c0_100 = arith.constant 0 : index
    %336 = vector.load %arg3[%c0_99, %c0_100] : memref<128x512xbf16, #tpu.memory_space<vmem>>, vector<128x512xbf16>
    %cst_101 = arith.constant dense<0.000000e+00> : vector<8x512xf32>
    %337 = tpu.matmul %335, %336, %cst_101 {dimension_numbers = #tpu.dot_dimension_numbers<[1], [0], [0], [1], [0, 0, 1, 1], [], []>} : vector<8x128xbf16>, vector<128x512xbf16>, vector<8x512xf32> -> vector<8x512xf32>
    %338 = arith.addf %334, %337 : vector<8x512xf32>
    %339 = arith.index_cast %332 : i32 to index
    %c512_102 = arith.constant 512 : index
    %340 = vector.load %arg12[%339, %c512_102] : memref<64x1024xf32, #tpu.memory_space<vmem>>, vector<8x512xf32>
    %341 = arith.truncf %323 : vector<8x128xf32> to vector<8x128xbf16>
    %c0_103 = arith.constant 0 : index
    %c0_104 = arith.constant 0 : index
    %342 = vector.load %arg4[%c0_103, %c0_104] : memref<128x512xbf16, #tpu.memory_space<vmem>>, vector<128x512xbf16>
    %cst_105 = arith.constant dense<0.000000e+00> : vector<8x512xf32>
    %343 = tpu.matmul %341, %342, %cst_105 {dimension_numbers = #tpu.dot_dimension_numbers<[1], [0], [0], [1], [0, 0, 1, 1], [], []>} : vector<8x128xbf16>, vector<128x512xbf16>, vector<8x512xf32> -> vector<8x512xf32>
    %344 = arith.addf %340, %343 : vector<8x512xf32>
    %345 = vector.extract_strided_slice %338 {offsets = [0, 0], sizes = [8, 384], strides = [1, 1]} : vector<8x512xf32> to vector<8x384xf32>
    %346 = arith.negf %345 : vector<8x384xf32>
    %347 = math.exp %346 : vector<8x384xf32>
    %cst_106 = arith.constant 1.000000e+00 : f32
    %348 = vector.broadcast %cst_106 : f32 to vector<8x384xf32>
    %349 = arith.addf %348, %347 : vector<8x384xf32>
    %350 = arith.divf %348, %349 : vector<8x384xf32>
    %351 = vector.extract_strided_slice %338 {offsets = [0, 384], sizes = [8, 128], strides = [1, 1]} : vector<8x512xf32> to vector<8x128xf32>
    %352 = math.tanh %351 : vector<8x128xf32>
    %353 = vector.extract_strided_slice %350 {offsets = [0, 0], sizes = [8, 128], strides = [1, 1]} : vector<8x384xf32> to vector<8x128xf32>
    %354 = vector.extract_strided_slice %350 {offsets = [0, 128], sizes = [8, 128], strides = [1, 1]} : vector<8x384xf32> to vector<8x128xf32>
    %355 = vector.extract_strided_slice %350 {offsets = [0, 256], sizes = [8, 128], strides = [1, 1]} : vector<8x384xf32> to vector<8x128xf32>
    %356 = arith.mulf %354, %305 : vector<8x128xf32>
    %357 = arith.mulf %353, %352 : vector<8x128xf32>
    %358 = arith.addf %356, %357 : vector<8x128xf32>
    %359 = math.tanh %358 : vector<8x128xf32>
    %360 = arith.mulf %355, %359 : vector<8x128xf32>
    %361 = vector.extract_strided_slice %344 {offsets = [0, 0], sizes = [8, 384], strides = [1, 1]} : vector<8x512xf32> to vector<8x384xf32>
    %362 = arith.negf %361 : vector<8x384xf32>
    %363 = math.exp %362 : vector<8x384xf32>
    %cst_107 = arith.constant 1.000000e+00 : f32
    %364 = vector.broadcast %cst_107 : f32 to vector<8x384xf32>
    %365 = arith.addf %364, %363 : vector<8x384xf32>
    %366 = arith.divf %364, %365 : vector<8x384xf32>
    %367 = vector.extract_strided_slice %344 {offsets = [0, 384], sizes = [8, 128], strides = [1, 1]} : vector<8x512xf32> to vector<8x128xf32>
    %368 = math.tanh %367 : vector<8x128xf32>
    %369 = vector.extract_strided_slice %366 {offsets = [0, 0], sizes = [8, 128], strides = [1, 1]} : vector<8x384xf32> to vector<8x128xf32>
    %370 = vector.extract_strided_slice %366 {offsets = [0, 128], sizes = [8, 128], strides = [1, 1]} : vector<8x384xf32> to vector<8x128xf32>
    %371 = vector.extract_strided_slice %366 {offsets = [0, 256], sizes = [8, 128], strides = [1, 1]} : vector<8x384xf32> to vector<8x128xf32>
    %372 = arith.mulf %370, %321 : vector<8x128xf32>
    %373 = arith.mulf %369, %368 : vector<8x128xf32>
    %374 = arith.addf %372, %373 : vector<8x128xf32>
    %375 = math.tanh %374 : vector<8x128xf32>
    %376 = arith.mulf %371, %375 : vector<8x128xf32>
    %377 = arith.index_cast %329 : i32 to index
    %c0_108 = arith.constant 0 : index
    %378 = vector.load %arg13[%377, %c0_108] : memref<64x256xf32, #tpu.memory_space<vmem>>, vector<8x128xf32>
    tpu.vector_store %arg13[%377, %c0_108], %360 {strides = array<i32>} : memref<64x256xf32, #tpu.memory_space<vmem>>, vector<8x128xf32>,
    %379 = arith.index_cast %332 : i32 to index
    %c128_109 = arith.constant 128 : index
    %380 = vector.load %arg13[%379, %c128_109] : memref<64x256xf32, #tpu.memory_space<vmem>>, vector<8x128xf32>
    tpu.vector_store %arg13[%379, %c128_109], %376 {strides = array<i32>} : memref<64x256xf32, #tpu.memory_space<vmem>>, vector<8x128xf32>,
    %c7_i32_110 = arith.constant 7 : i32
    %c8_i32_111 = arith.constant 8 : i32
    %381 = arith.muli %c7_i32_110, %c8_i32_111 : i32
    %382 = tpu.assume_multiple %381, 8 : i32
    %c7_i32_112 = arith.constant 7 : i32
    %383 = arith.subi %c7_i32_112, %c7_i32_110 : i32
    %c8_i32_113 = arith.constant 8 : i32
    %384 = arith.muli %383, %c8_i32_113 : i32
    %385 = tpu.assume_multiple %384, 8 : i32
    %386 = arith.index_cast %382 : i32 to index
    %c0_114 = arith.constant 0 : index
    %387 = vector.load %arg12[%386, %c0_114] : memref<64x1024xf32, #tpu.memory_space<vmem>>, vector<8x512xf32>
    %388 = arith.truncf %360 : vector<8x128xf32> to vector<8x128xbf16>
    %c0_115 = arith.constant 0 : index
    %c0_116 = arith.constant 0 : index
    %389 = vector.load %arg3[%c0_115, %c0_116] : memref<128x512xbf16, #tpu.memory_space<vmem>>, vector<128x512xbf16>
    %cst_117 = arith.constant dense<0.000000e+00> : vector<8x512xf32>
    %390 = tpu.matmul %388, %389, %cst_117 {dimension_numbers = #tpu.dot_dimension_numbers<[1], [0], [0], [1], [0, 0, 1, 1], [], []>} : vector<8x128xbf16>, vector<128x512xbf16>, vector<8x512xf32> -> vector<8x512xf32>
    %391 = arith.addf %387, %390 : vector<8x512xf32>
    %392 = arith.index_cast %385 : i32 to index
    %c512_118 = arith.constant 512 : index
    %393 = vector.load %arg12[%392, %c512_118] : memref<64x1024xf32, #tpu.memory_space<vmem>>, vector<8x512xf32>
    %394 = arith.truncf %376 : vector<8x128xf32> to vector<8x128xbf16>
    %c0_119 = arith.constant 0 : index
    %c0_120 = arith.constant 0 : index
    %395 = vector.load %arg4[%c0_119, %c0_120] : memref<128x512xbf16, #tpu.memory_space<vmem>>, vector<128x512xbf16>
    %cst_121 = arith.constant dense<0.000000e+00> : vector<8x512xf32>
    %396 = tpu.matmul %394, %395, %cst_121 {dimension_numbers = #tpu.dot_dimension_numbers<[1], [0], [0], [1], [0, 0, 1, 1], [], []>} : vector<8x128xbf16>, vector<128x512xbf16>, vector<8x512xf32> -> vector<8x512xf32>
    %397 = arith.addf %393, %396 : vector<8x512xf32>
    %398 = vector.extract_strided_slice %391 {offsets = [0, 0], sizes = [8, 384], strides = [1, 1]} : vector<8x512xf32> to vector<8x384xf32>
    %399 = arith.negf %398 : vector<8x384xf32>
    %400 = math.exp %399 : vector<8x384xf32>
    %cst_122 = arith.constant 1.000000e+00 : f32
    %401 = vector.broadcast %cst_122 : f32 to vector<8x384xf32>
    %402 = arith.addf %401, %400 : vector<8x384xf32>
    %403 = arith.divf %401, %402 : vector<8x384xf32>
    %404 = vector.extract_strided_slice %391 {offsets = [0, 384], sizes = [8, 128], strides = [1, 1]} : vector<8x512xf32> to vector<8x128xf32>
    %405 = math.tanh %404 : vector<8x128xf32>
    %406 = vector.extract_strided_slice %403 {offsets = [0, 0], sizes = [8, 128], strides = [1, 1]} : vector<8x384xf32> to vector<8x128xf32>
    %407 = vector.extract_strided_slice %403 {offsets = [0, 128], sizes = [8, 128], strides = [1, 1]} : vector<8x384xf32> to vector<8x128xf32>
    %408 = vector.extract_strided_slice %403 {offsets = [0, 256], sizes = [8, 128], strides = [1, 1]} : vector<8x384xf32> to vector<8x128xf32>
    %409 = arith.mulf %407, %358 : vector<8x128xf32>
    %410 = arith.mulf %406, %405 : vector<8x128xf32>
    %411 = arith.addf %409, %410 : vector<8x128xf32>
    %412 = math.tanh %411 : vector<8x128xf32>
    %413 = arith.mulf %408, %412 : vector<8x128xf32>
    %414 = vector.extract_strided_slice %397 {offsets = [0, 0], sizes = [8, 384], strides = [1, 1]} : vector<8x512xf32> to vector<8x384xf32>
    %415 = arith.negf %414 : vector<8x384xf32>
    %416 = math.exp %415 : vector<8x384xf32>
    %cst_123 = arith.constant 1.000000e+00 : f32
    %417 = vector.broadcast %cst_123 : f32 to vector<8x384xf32>
    %418 = arith.addf %417, %416 : vector<8x384xf32>
    %419 = arith.divf %417, %418 : vector<8x384xf32>
    %420 = vector.extract_strided_slice %397 {offsets = [0, 384], sizes = [8, 128], strides = [1, 1]} : vector<8x512xf32> to vector<8x128xf32>
    %421 = math.tanh %420 : vector<8x128xf32>
    %422 = vector.extract_strided_slice %419 {offsets = [0, 0], sizes = [8, 128], strides = [1, 1]} : vector<8x384xf32> to vector<8x128xf32>
    %423 = vector.extract_strided_slice %419 {offsets = [0, 128], sizes = [8, 128], strides = [1, 1]} : vector<8x384xf32> to vector<8x128xf32>
    %424 = vector.extract_strided_slice %419 {offsets = [0, 256], sizes = [8, 128], strides = [1, 1]} : vector<8x384xf32> to vector<8x128xf32>
    %425 = arith.mulf %423, %374 : vector<8x128xf32>
    %426 = arith.mulf %422, %421 : vector<8x128xf32>
    %427 = arith.addf %425, %426 : vector<8x128xf32>
    %428 = math.tanh %427 : vector<8x128xf32>
    %429 = arith.mulf %424, %428 : vector<8x128xf32>
    %430 = arith.index_cast %382 : i32 to index
    %c0_124 = arith.constant 0 : index
    %431 = vector.load %arg13[%430, %c0_124] : memref<64x256xf32, #tpu.memory_space<vmem>>, vector<8x128xf32>
    tpu.vector_store %arg13[%430, %c0_124], %413 {strides = array<i32>} : memref<64x256xf32, #tpu.memory_space<vmem>>, vector<8x128xf32>,
    %432 = arith.index_cast %385 : i32 to index
    %c128_125 = arith.constant 128 : index
    %433 = vector.load %arg13[%432, %c128_125] : memref<64x256xf32, #tpu.memory_space<vmem>>, vector<8x128xf32>
    tpu.vector_store %arg13[%432, %c128_125], %429 {strides = array<i32>} : memref<64x256xf32, #tpu.memory_space<vmem>>, vector<8x128xf32>,
    %c8_i32_126 = arith.constant 8 : i32
    %c0_127 = arith.constant 0 : index
    %c0_128 = arith.constant 0 : index
    %434 = vector.load %arg13[%c0_127, %c0_128] : memref<64x256xf32, #tpu.memory_space<vmem>>, vector<64x256xf32>
    %435 = arith.truncf %434 : vector<64x256xf32> to vector<64x256xbf16>
    %c0_129 = arith.constant 0 : index
    %c0_130 = arith.constant 0 : index
    %436 = vector.load %arg6[%c0_129, %c0_130] : memref<256x512xbf16, #tpu.memory_space<vmem>>, vector<256x512xbf16>
    %cst_131 = arith.constant dense<0.000000e+00> : vector<64x512xf32>
    %437 = tpu.matmul %435, %436, %cst_131 {dimension_numbers = #tpu.dot_dimension_numbers<[1], [0], [0], [1], [0, 0, 1, 1], [], []>} : vector<64x256xbf16>, vector<256x512xbf16>, vector<64x512xf32> -> vector<64x512xf32>
    %c0_132 = arith.constant 0 : index
    %c0_133 = arith.constant 0 : index
    %438 = vector.load %arg8[%c0_132, %c0_133] : memref<1x512xf32, #tpu.memory_space<vmem>>, vector<1x512xf32>
    %439 = vector.broadcast %438 : vector<1x512xf32> to vector<64x512xf32>
    %440 = arith.addf %437, %439 : vector<64x512xf32>
    %c0_134 = arith.constant 0 : index
    %c0_135 = arith.constant 0 : index
    %441 = vector.load %arg14[%c0_134, %c0_135] : memref<64x512xf32, #tpu.memory_space<vmem>>, vector<64x512xf32>
    tpu.vector_store %arg14[%c0_134, %c0_135], %440 {strides = array<i32>} : memref<64x512xf32, #tpu.memory_space<vmem>>, vector<64x512xf32>,
    %c0_i32_136 = arith.constant 0 : i32
    %c7_i32_137 = arith.constant 7 : i32
    %442 = arith.subi %c7_i32_137, %c0_i32_136 : i32
    %c8_i32_138 = arith.constant 8 : i32
    %443 = arith.muli %442, %c8_i32_138 : i32
    %444 = tpu.assume_multiple %443, 8 : i32
    %445 = arith.index_cast %444 : i32 to index
    %c0_139 = arith.constant 0 : index
    %446 = vector.load %arg14[%445, %c0_139] : memref<64x512xf32, #tpu.memory_space<vmem>>, vector<8x512xf32>
    %447 = arith.truncf %9 : vector<8x128xf32> to vector<8x128xbf16>
    %c0_140 = arith.constant 0 : index
    %c0_141 = arith.constant 0 : index
    %448 = vector.load %arg7[%c0_140, %c0_141] : memref<128x512xbf16, #tpu.memory_space<vmem>>, vector<128x512xbf16>
    %cst_142 = arith.constant dense<0.000000e+00> : vector<8x512xf32>
    %449 = tpu.matmul %447, %448, %cst_142 {dimension_numbers = #tpu.dot_dimension_numbers<[1], [0], [0], [1], [0, 0, 1, 1], [], []>} : vector<8x128xbf16>, vector<128x512xbf16>, vector<8x512xf32> -> vector<8x512xf32>
    %450 = arith.addf %446, %449 : vector<8x512xf32>
    %451 = vector.extract_strided_slice %450 {offsets = [0, 0], sizes = [8, 384], strides = [1, 1]} : vector<8x512xf32> to vector<8x384xf32>
    %452 = arith.negf %451 : vector<8x384xf32>
    %453 = math.exp %452 : vector<8x384xf32>
    %cst_143 = arith.constant 1.000000e+00 : f32
    %454 = vector.broadcast %cst_143 : f32 to vector<8x384xf32>
    %455 = arith.addf %454, %453 : vector<8x384xf32>
    %456 = arith.divf %454, %455 : vector<8x384xf32>
    %457 = vector.extract_strided_slice %450 {offsets = [0, 384], sizes = [8, 128], strides = [1, 1]} : vector<8x512xf32> to vector<8x128xf32>
    %458 = math.tanh %457 : vector<8x128xf32>
    %459 = vector.extract_strided_slice %456 {offsets = [0, 0], sizes = [8, 128], strides = [1, 1]} : vector<8x384xf32> to vector<8x128xf32>
    %460 = vector.extract_strided_slice %456 {offsets = [0, 128], sizes = [8, 128], strides = [1, 1]} : vector<8x384xf32> to vector<8x128xf32>
    %461 = vector.extract_strided_slice %456 {offsets = [0, 256], sizes = [8, 128], strides = [1, 1]} : vector<8x384xf32> to vector<8x128xf32>
    %462 = arith.mulf %460, %9 : vector<8x128xf32>
    %463 = arith.mulf %459, %458 : vector<8x128xf32>
    %464 = arith.addf %462, %463 : vector<8x128xf32>
    %465 = math.tanh %464 : vector<8x128xf32>
    %466 = arith.mulf %461, %465 : vector<8x128xf32>
    %c1_i32_144 = arith.constant 1 : i32
    %c7_i32_145 = arith.constant 7 : i32
    %467 = arith.subi %c7_i32_145, %c1_i32_144 : i32
    %c8_i32_146 = arith.constant 8 : i32
    %468 = arith.muli %467, %c8_i32_146 : i32
    %469 = tpu.assume_multiple %468, 8 : i32
    %470 = arith.index_cast %469 : i32 to index
    %c0_147 = arith.constant 0 : index
    %471 = vector.load %arg14[%470, %c0_147] : memref<64x512xf32, #tpu.memory_space<vmem>>, vector<8x512xf32>
    %472 = arith.truncf %466 : vector<8x128xf32> to vector<8x128xbf16>
    %c0_148 = arith.constant 0 : index
    %c0_149 = arith.constant 0 : index
    %473 = vector.load %arg7[%c0_148, %c0_149] : memref<128x512xbf16, #tpu.memory_space<vmem>>, vector<128x512xbf16>
    %cst_150 = arith.constant dense<0.000000e+00> : vector<8x512xf32>
    %474 = tpu.matmul %472, %473, %cst_150 {dimension_numbers = #tpu.dot_dimension_numbers<[1], [0], [0], [1], [0, 0, 1, 1], [], []>} : vector<8x128xbf16>, vector<128x512xbf16>, vector<8x512xf32> -> vector<8x512xf32>
    %475 = arith.addf %471, %474 : vector<8x512xf32>
    %476 = vector.extract_strided_slice %475 {offsets = [0, 0], sizes = [8, 384], strides = [1, 1]} : vector<8x512xf32> to vector<8x384xf32>
    %477 = arith.negf %476 : vector<8x384xf32>
    %478 = math.exp %477 : vector<8x384xf32>
    %cst_151 = arith.constant 1.000000e+00 : f32
    %479 = vector.broadcast %cst_151 : f32 to vector<8x384xf32>
    %480 = arith.addf %479, %478 : vector<8x384xf32>
    %481 = arith.divf %479, %480 : vector<8x384xf32>
    %482 = vector.extract_strided_slice %475 {offsets = [0, 384], sizes = [8, 128], strides = [1, 1]} : vector<8x512xf32> to vector<8x128xf32>
    %483 = math.tanh %482 : vector<8x128xf32>
    %484 = vector.extract_strided_slice %481 {offsets = [0, 0], sizes = [8, 128], strides = [1, 1]} : vector<8x384xf32> to vector<8x128xf32>
    %485 = vector.extract_strided_slice %481 {offsets = [0, 128], sizes = [8, 128], strides = [1, 1]} : vector<8x384xf32> to vector<8x128xf32>
    %486 = vector.extract_strided_slice %481 {offsets = [0, 256], sizes = [8, 128], strides = [1, 1]} : vector<8x384xf32> to vector<8x128xf32>
    %487 = arith.mulf %485, %464 : vector<8x128xf32>
    %488 = arith.mulf %484, %483 : vector<8x128xf32>
    %489 = arith.addf %487, %488 : vector<8x128xf32>
    %490 = math.tanh %489 : vector<8x128xf32>
    %491 = arith.mulf %486, %490 : vector<8x128xf32>
    %c2_i32_152 = arith.constant 2 : i32
    %c7_i32_153 = arith.constant 7 : i32
    %492 = arith.subi %c7_i32_153, %c2_i32_152 : i32
    %c8_i32_154 = arith.constant 8 : i32
    %493 = arith.muli %492, %c8_i32_154 : i32
    %494 = tpu.assume_multiple %493, 8 : i32
    %495 = arith.index_cast %494 : i32 to index
    %c0_155 = arith.constant 0 : index
    %496 = vector.load %arg14[%495, %c0_155] : memref<64x512xf32, #tpu.memory_space<vmem>>, vector<8x512xf32>
    %497 = arith.truncf %491 : vector<8x128xf32> to vector<8x128xbf16>
    %c0_156 = arith.constant 0 : index
    %c0_157 = arith.constant 0 : index
    %498 = vector.load %arg7[%c0_156, %c0_157] : memref<128x512xbf16, #tpu.memory_space<vmem>>, vector<128x512xbf16>
    %cst_158 = arith.constant dense<0.000000e+00> : vector<8x512xf32>
    %499 = tpu.matmul %497, %498, %cst_158 {dimension_numbers = #tpu.dot_dimension_numbers<[1], [0], [0], [1], [0, 0, 1, 1], [], []>} : vector<8x128xbf16>, vector<128x512xbf16>, vector<8x512xf32> -> vector<8x512xf32>
    %500 = arith.addf %496, %499 : vector<8x512xf32>
    %501 = vector.extract_strided_slice %500 {offsets = [0, 0], sizes = [8, 384], strides = [1, 1]} : vector<8x512xf32> to vector<8x384xf32>
    %502 = arith.negf %501 : vector<8x384xf32>
    %503 = math.exp %502 : vector<8x384xf32>
    %cst_159 = arith.constant 1.000000e+00 : f32
    %504 = vector.broadcast %cst_159 : f32 to vector<8x384xf32>
    %505 = arith.addf %504, %503 : vector<8x384xf32>
    %506 = arith.divf %504, %505 : vector<8x384xf32>
    %507 = vector.extract_strided_slice %500 {offsets = [0, 384], sizes = [8, 128], strides = [1, 1]} : vector<8x512xf32> to vector<8x128xf32>
    %508 = math.tanh %507 : vector<8x128xf32>
    %509 = vector.extract_strided_slice %506 {offsets = [0, 0], sizes = [8, 128], strides = [1, 1]} : vector<8x384xf32> to vector<8x128xf32>
    %510 = vector.extract_strided_slice %506 {offsets = [0, 128], sizes = [8, 128], strides = [1, 1]} : vector<8x384xf32> to vector<8x128xf32>
    %511 = vector.extract_strided_slice %506 {offsets = [0, 256], sizes = [8, 128], strides = [1, 1]} : vector<8x384xf32> to vector<8x128xf32>
    %512 = arith.mulf %510, %489 : vector<8x128xf32>
    %513 = arith.mulf %509, %508 : vector<8x128xf32>
    %514 = arith.addf %512, %513 : vector<8x128xf32>
    %515 = math.tanh %514 : vector<8x128xf32>
    %516 = arith.mulf %511, %515 : vector<8x128xf32>
    %c3_i32_160 = arith.constant 3 : i32
    %c7_i32_161 = arith.constant 7 : i32
    %517 = arith.subi %c7_i32_161, %c3_i32_160 : i32
    %c8_i32_162 = arith.constant 8 : i32
    %518 = arith.muli %517, %c8_i32_162 : i32
    %519 = tpu.assume_multiple %518, 8 : i32
    %520 = arith.index_cast %519 : i32 to index
    %c0_163 = arith.constant 0 : index
    %521 = vector.load %arg14[%520, %c0_163] : memref<64x512xf32, #tpu.memory_space<vmem>>, vector<8x512xf32>
    %522 = arith.truncf %516 : vector<8x128xf32> to vector<8x128xbf16>
    %c0_164 = arith.constant 0 : index
    %c0_165 = arith.constant 0 : index
    %523 = vector.load %arg7[%c0_164, %c0_165] : memref<128x512xbf16, #tpu.memory_space<vmem>>, vector<128x512xbf16>
    %cst_166 = arith.constant dense<0.000000e+00> : vector<8x512xf32>
    %524 = tpu.matmul %522, %523, %cst_166 {dimension_numbers = #tpu.dot_dimension_numbers<[1], [0], [0], [1], [0, 0, 1, 1], [], []>} : vector<8x128xbf16>, vector<128x512xbf16>, vector<8x512xf32> -> vector<8x512xf32>
    %525 = arith.addf %521, %524 : vector<8x512xf32>
    %526 = vector.extract_strided_slice %525 {offsets = [0, 0], sizes = [8, 384], strides = [1, 1]} : vector<8x512xf32> to vector<8x384xf32>
    %527 = arith.negf %526 : vector<8x384xf32>
    %528 = math.exp %527 : vector<8x384xf32>
    %cst_167 = arith.constant 1.000000e+00 : f32
    %529 = vector.broadcast %cst_167 : f32 to vector<8x384xf32>
    %530 = arith.addf %529, %528 : vector<8x384xf32>
    %531 = arith.divf %529, %530 : vector<8x384xf32>
    %532 = vector.extract_strided_slice %525 {offsets = [0, 384], sizes = [8, 128], strides = [1, 1]} : vector<8x512xf32> to vector<8x128xf32>
    %533 = math.tanh %532 : vector<8x128xf32>
    %534 = vector.extract_strided_slice %531 {offsets = [0, 0], sizes = [8, 128], strides = [1, 1]} : vector<8x384xf32> to vector<8x128xf32>
    %535 = vector.extract_strided_slice %531 {offsets = [0, 128], sizes = [8, 128], strides = [1, 1]} : vector<8x384xf32> to vector<8x128xf32>
    %536 = vector.extract_strided_slice %531 {offsets = [0, 256], sizes = [8, 128], strides = [1, 1]} : vector<8x384xf32> to vector<8x128xf32>
    %537 = arith.mulf %535, %514 : vector<8x128xf32>
    %538 = arith.mulf %534, %533 : vector<8x128xf32>
    %539 = arith.addf %537, %538 : vector<8x128xf32>
    %540 = math.tanh %539 : vector<8x128xf32>
    %541 = arith.mulf %536, %540 : vector<8x128xf32>
    %c4_i32_168 = arith.constant 4 : i32
    %c7_i32_169 = arith.constant 7 : i32
    %542 = arith.subi %c7_i32_169, %c4_i32_168 : i32
    %c8_i32_170 = arith.constant 8 : i32
    %543 = arith.muli %542, %c8_i32_170 : i32
    %544 = tpu.assume_multiple %543, 8 : i32
    %545 = arith.index_cast %544 : i32 to index
    %c0_171 = arith.constant 0 : index
    %546 = vector.load %arg14[%545, %c0_171] : memref<64x512xf32, #tpu.memory_space<vmem>>, vector<8x512xf32>
    %547 = arith.truncf %541 : vector<8x128xf32> to vector<8x128xbf16>
    %c0_172 = arith.constant 0 : index
    %c0_173 = arith.constant 0 : index
    %548 = vector.load %arg7[%c0_172, %c0_173] : memref<128x512xbf16, #tpu.memory_space<vmem>>, vector<128x512xbf16>
    %cst_174 = arith.constant dense<0.000000e+00> : vector<8x512xf32>
    %549 = tpu.matmul %547, %548, %cst_174 {dimension_numbers = #tpu.dot_dimension_numbers<[1], [0], [0], [1], [0, 0, 1, 1], [], []>} : vector<8x128xbf16>, vector<128x512xbf16>, vector<8x512xf32> -> vector<8x512xf32>
    %550 = arith.addf %546, %549 : vector<8x512xf32>
    %551 = vector.extract_strided_slice %550 {offsets = [0, 0], sizes = [8, 384], strides = [1, 1]} : vector<8x512xf32> to vector<8x384xf32>
    %552 = arith.negf %551 : vector<8x384xf32>
    %553 = math.exp %552 : vector<8x384xf32>
    %cst_175 = arith.constant 1.000000e+00 : f32
    %554 = vector.broadcast %cst_175 : f32 to vector<8x384xf32>
    %555 = arith.addf %554, %553 : vector<8x384xf32>
    %556 = arith.divf %554, %555 : vector<8x384xf32>
    %557 = vector.extract_strided_slice %550 {offsets = [0, 384], sizes = [8, 128], strides = [1, 1]} : vector<8x512xf32> to vector<8x128xf32>
    %558 = math.tanh %557 : vector<8x128xf32>
    %559 = vector.extract_strided_slice %556 {offsets = [0, 0], sizes = [8, 128], strides = [1, 1]} : vector<8x384xf32> to vector<8x128xf32>
    %560 = vector.extract_strided_slice %556 {offsets = [0, 128], sizes = [8, 128], strides = [1, 1]} : vector<8x384xf32> to vector<8x128xf32>
    %561 = vector.extract_strided_slice %556 {offsets = [0, 256], sizes = [8, 128], strides = [1, 1]} : vector<8x384xf32> to vector<8x128xf32>
    %562 = arith.mulf %560, %539 : vector<8x128xf32>
    %563 = arith.mulf %559, %558 : vector<8x128xf32>
    %564 = arith.addf %562, %563 : vector<8x128xf32>
    %565 = math.tanh %564 : vector<8x128xf32>
    %566 = arith.mulf %561, %565 : vector<8x128xf32>
    %c5_i32_176 = arith.constant 5 : i32
    %c7_i32_177 = arith.constant 7 : i32
    %567 = arith.subi %c7_i32_177, %c5_i32_176 : i32
    %c8_i32_178 = arith.constant 8 : i32
    %568 = arith.muli %567, %c8_i32_178 : i32
    %569 = tpu.assume_multiple %568, 8 : i32
    %570 = arith.index_cast %569 : i32 to index
    %c0_179 = arith.constant 0 : index
    %571 = vector.load %arg14[%570, %c0_179] : memref<64x512xf32, #tpu.memory_space<vmem>>, vector<8x512xf32>
    %572 = arith.truncf %566 : vector<8x128xf32> to vector<8x128xbf16>
    %c0_180 = arith.constant 0 : index
    %c0_181 = arith.constant 0 : index
    %573 = vector.load %arg7[%c0_180, %c0_181] : memref<128x512xbf16, #tpu.memory_space<vmem>>, vector<128x512xbf16>
    %cst_182 = arith.constant dense<0.000000e+00> : vector<8x512xf32>
    %574 = tpu.matmul %572, %573, %cst_182 {dimension_numbers = #tpu.dot_dimension_numbers<[1], [0], [0], [1], [0, 0, 1, 1], [], []>} : vector<8x128xbf16>, vector<128x512xbf16>, vector<8x512xf32> -> vector<8x512xf32>
    %575 = arith.addf %571, %574 : vector<8x512xf32>
    %576 = vector.extract_strided_slice %575 {offsets = [0, 0], sizes = [8, 384], strides = [1, 1]} : vector<8x512xf32> to vector<8x384xf32>
    %577 = arith.negf %576 : vector<8x384xf32>
    %578 = math.exp %577 : vector<8x384xf32>
    %cst_183 = arith.constant 1.000000e+00 : f32
    %579 = vector.broadcast %cst_183 : f32 to vector<8x384xf32>
    %580 = arith.addf %579, %578 : vector<8x384xf32>
    %581 = arith.divf %579, %580 : vector<8x384xf32>
    %582 = vector.extract_strided_slice %575 {offsets = [0, 384], sizes = [8, 128], strides = [1, 1]} : vector<8x512xf32> to vector<8x128xf32>
    %583 = math.tanh %582 : vector<8x128xf32>
    %584 = vector.extract_strided_slice %581 {offsets = [0, 0], sizes = [8, 128], strides = [1, 1]} : vector<8x384xf32> to vector<8x128xf32>
    %585 = vector.extract_strided_slice %581 {offsets = [0, 128], sizes = [8, 128], strides = [1, 1]} : vector<8x384xf32> to vector<8x128xf32>
    %586 = vector.extract_strided_slice %581 {offsets = [0, 256], sizes = [8, 128], strides = [1, 1]} : vector<8x384xf32> to vector<8x128xf32>
    %587 = arith.mulf %585, %564 : vector<8x128xf32>
    %588 = arith.mulf %584, %583 : vector<8x128xf32>
    %589 = arith.addf %587, %588 : vector<8x128xf32>
    %590 = math.tanh %589 : vector<8x128xf32>
    %591 = arith.mulf %586, %590 : vector<8x128xf32>
    %c6_i32_184 = arith.constant 6 : i32
    %c7_i32_185 = arith.constant 7 : i32
    %592 = arith.subi %c7_i32_185, %c6_i32_184 : i32
    %c8_i32_186 = arith.constant 8 : i32
    %593 = arith.muli %592, %c8_i32_186 : i32
    %594 = tpu.assume_multiple %593, 8 : i32
    %595 = arith.index_cast %594 : i32 to index
    %c0_187 = arith.constant 0 : index
    %596 = vector.load %arg14[%595, %c0_187] : memref<64x512xf32, #tpu.memory_space<vmem>>, vector<8x512xf32>
    %597 = arith.truncf %591 : vector<8x128xf32> to vector<8x128xbf16>
    %c0_188 = arith.constant 0 : index
    %c0_189 = arith.constant 0 : index
    %598 = vector.load %arg7[%c0_188, %c0_189] : memref<128x512xbf16, #tpu.memory_space<vmem>>, vector<128x512xbf16>
    %cst_190 = arith.constant dense<0.000000e+00> : vector<8x512xf32>
    %599 = tpu.matmul %597, %598, %cst_190 {dimension_numbers = #tpu.dot_dimension_numbers<[1], [0], [0], [1], [0, 0, 1, 1], [], []>} : vector<8x128xbf16>, vector<128x512xbf16>, vector<8x512xf32> -> vector<8x512xf32>
    %600 = arith.addf %596, %599 : vector<8x512xf32>
    %601 = vector.extract_strided_slice %600 {offsets = [0, 0], sizes = [8, 384], strides = [1, 1]} : vector<8x512xf32> to vector<8x384xf32>
    %602 = arith.negf %601 : vector<8x384xf32>
    %603 = math.exp %602 : vector<8x384xf32>
    %cst_191 = arith.constant 1.000000e+00 : f32
    %604 = vector.broadcast %cst_191 : f32 to vector<8x384xf32>
    %605 = arith.addf %604, %603 : vector<8x384xf32>
    %606 = arith.divf %604, %605 : vector<8x384xf32>
    %607 = vector.extract_strided_slice %600 {offsets = [0, 384], sizes = [8, 128], strides = [1, 1]} : vector<8x512xf32> to vector<8x128xf32>
    %608 = math.tanh %607 : vector<8x128xf32>
    %609 = vector.extract_strided_slice %606 {offsets = [0, 0], sizes = [8, 128], strides = [1, 1]} : vector<8x384xf32> to vector<8x128xf32>
    %610 = vector.extract_strided_slice %606 {offsets = [0, 128], sizes = [8, 128], strides = [1, 1]} : vector<8x384xf32> to vector<8x128xf32>
    %611 = vector.extract_strided_slice %606 {offsets = [0, 256], sizes = [8, 128], strides = [1, 1]} : vector<8x384xf32> to vector<8x128xf32>
    %612 = arith.mulf %610, %589 : vector<8x128xf32>
    %613 = arith.mulf %609, %608 : vector<8x128xf32>
    %614 = arith.addf %612, %613 : vector<8x128xf32>
    %615 = math.tanh %614 : vector<8x128xf32>
    %616 = arith.mulf %611, %615 : vector<8x128xf32>
    %c7_i32_192 = arith.constant 7 : i32
    %c7_i32_193 = arith.constant 7 : i32
    %617 = arith.subi %c7_i32_193, %c7_i32_192 : i32
    %c8_i32_194 = arith.constant 8 : i32
    %618 = arith.muli %617, %c8_i32_194 : i32
    %619 = tpu.assume_multiple %618, 8 : i32
    %620 = arith.index_cast %619 : i32 to index
    %c0_195 = arith.constant 0 : index
    %621 = vector.load %arg14[%620, %c0_195] : memref<64x512xf32, #tpu.memory_space<vmem>>, vector<8x512xf32>
    %622 = arith.truncf %616 : vector<8x128xf32> to vector<8x128xbf16>
    %c0_196 = arith.constant 0 : index
    %c0_197 = arith.constant 0 : index
    %623 = vector.load %arg7[%c0_196, %c0_197] : memref<128x512xbf16, #tpu.memory_space<vmem>>, vector<128x512xbf16>
    %cst_198 = arith.constant dense<0.000000e+00> : vector<8x512xf32>
    %624 = tpu.matmul %622, %623, %cst_198 {dimension_numbers = #tpu.dot_dimension_numbers<[1], [0], [0], [1], [0, 0, 1, 1], [], []>} : vector<8x128xbf16>, vector<128x512xbf16>, vector<8x512xf32> -> vector<8x512xf32>
    %625 = arith.addf %621, %624 : vector<8x512xf32>
    %626 = vector.extract_strided_slice %625 {offsets = [0, 0], sizes = [8, 384], strides = [1, 1]} : vector<8x512xf32> to vector<8x384xf32>
    %627 = arith.negf %626 : vector<8x384xf32>
    %628 = math.exp %627 : vector<8x384xf32>
    %cst_199 = arith.constant 1.000000e+00 : f32
    %629 = vector.broadcast %cst_199 : f32 to vector<8x384xf32>
    %630 = arith.addf %629, %628 : vector<8x384xf32>
    %631 = arith.divf %629, %630 : vector<8x384xf32>
    %632 = vector.extract_strided_slice %625 {offsets = [0, 384], sizes = [8, 128], strides = [1, 1]} : vector<8x512xf32> to vector<8x128xf32>
    %633 = math.tanh %632 : vector<8x128xf32>
    %634 = vector.extract_strided_slice %631 {offsets = [0, 0], sizes = [8, 128], strides = [1, 1]} : vector<8x384xf32> to vector<8x128xf32>
    %635 = vector.extract_strided_slice %631 {offsets = [0, 128], sizes = [8, 128], strides = [1, 1]} : vector<8x384xf32> to vector<8x128xf32>
    %636 = vector.extract_strided_slice %631 {offsets = [0, 256], sizes = [8, 128], strides = [1, 1]} : vector<8x384xf32> to vector<8x128xf32>
    %637 = arith.mulf %635, %614 : vector<8x128xf32>
    %638 = arith.mulf %634, %633 : vector<8x128xf32>
    %639 = arith.addf %637, %638 : vector<8x128xf32>
    %640 = math.tanh %639 : vector<8x128xf32>
    %641 = arith.mulf %636, %640 : vector<8x128xf32>
    %c8_i32_200 = arith.constant 8 : i32
    %642 = arith.addf %641, %639 : vector<8x128xf32>
    %643 = math.tanh %642 : vector<8x128xf32>
    %644 = arith.truncf %643 : vector<8x128xf32> to vector<8x128xbf16>
    %c0_201 = arith.constant 0 : index
    %c0_202 = arith.constant 0 : index
    %645 = vector.load %arg9[%c0_201, %c0_202] : memref<128x128xbf16, #tpu.memory_space<vmem>>, vector<128x128xbf16>
    %cst_203 = arith.constant dense<0.000000e+00> : vector<8x128xf32>
    %646 = tpu.matmul %644, %645, %cst_203 {dimension_numbers = #tpu.dot_dimension_numbers<[1], [0], [0], [1], [0, 0, 1, 1], [], []>} : vector<8x128xbf16>, vector<128x128xbf16>, vector<8x128xf32> -> vector<8x128xf32>
    %c0_204 = arith.constant 0 : index
    %c0_205 = arith.constant 0 : index
    %647 = vector.load %arg10[%c0_204, %c0_205] : memref<1x128xf32, #tpu.memory_space<vmem>>, vector<1x128xf32>
    %648 = vector.broadcast %647 : vector<1x128xf32> to vector<8x128xf32>
    %649 = arith.addf %646, %648 : vector<8x128xf32>
    %c0_206 = arith.constant 0 : index
    %c0_207 = arith.constant 0 : index
    %650 = vector.load %arg11[%c0_206, %c0_207] : memref<8x128xf32, #tpu.memory_space<vmem>>, vector<8x128xf32>
    tpu.vector_store %arg11[%c0_206, %c0_207], %649 {strides = array<i32>} : memref<8x128xf32, #tpu.memory_space<vmem>>, vector<8x128xf32>,
    return
  }
  func.func @transform_0(%arg0: i32) -> (i32, i32, i32) {
    %c0_i32 = arith.constant 0 : i32
    %c0_i32_0 = arith.constant 0 : i32
    %c0_i32_1 = arith.constant 0 : i32
    return %c0_i32, %arg0, %c0_i32_0 : i32, i32, i32
  }
  func.func @transform_1(%arg0: i32) -> (i32, i32) {
    %c0_i32 = arith.constant 0 : i32
    %c0_i32_0 = arith.constant 0 : i32
    %c0_i32_1 = arith.constant 0 : i32
    return %c0_i32, %c0_i32_0 : i32, i32
  }
  func.func @transform_2(%arg0: i32) -> (i32, i32) {
    %c0_i32 = arith.constant 0 : i32
    %c0_i32_0 = arith.constant 0 : i32
    %c0_i32_1 = arith.constant 0 : i32
    return %c0_i32, %c0_i32_0 : i32, i32
  }
  func.func @transform_3(%arg0: i32) -> (i32, i32) {
    %c0_i32 = arith.constant 0 : i32
    %c0_i32_0 = arith.constant 0 : i32
    %c0_i32_1 = arith.constant 0 : i32
    return %c0_i32, %c0_i32_0 : i32, i32
  }
  func.func @transform_4(%arg0: i32) -> (i32, i32) {
    %c0_i32 = arith.constant 0 : i32
    %c0_i32_0 = arith.constant 0 : i32
    %c0_i32_1 = arith.constant 0 : i32
    return %c0_i32, %c0_i32_0 : i32, i32
  }
  func.func @transform_5(%arg0: i32) -> (i32, i32) {
    %c0_i32 = arith.constant 0 : i32
    %c0_i32_0 = arith.constant 0 : i32
    %c0_i32_1 = arith.constant 0 : i32
    return %c0_i32, %c0_i32_0 : i32, i32
  }
  func.func @transform_6(%arg0: i32) -> (i32, i32) {
    %c0_i32 = arith.constant 0 : i32
    %c0_i32_0 = arith.constant 0 : i32
    %c0_i32_1 = arith.constant 0 : i32
    return %c0_i32, %c0_i32_0 : i32, i32
  }
  func.func @transform_7(%arg0: i32) -> (i32, i32) {
    %c0_i32 = arith.constant 0 : i32
    %c0_i32_0 = arith.constant 0 : i32
    %c0_i32_1 = arith.constant 0 : i32
    return %c0_i32, %c0_i32_0 : i32, i32
  }
  func.func @transform_8(%arg0: i32) -> (i32, i32) {
    %c0_i32 = arith.constant 0 : i32
    %c0_i32_0 = arith.constant 0 : i32
    %c0_i32_1 = arith.constant 0 : i32
    return %c0_i32, %c0_i32_0 : i32, i32
  }
  func.func @transform_9(%arg0: i32) -> (i32, i32) {
    %c0_i32 = arith.constant 0 : i32
    %c0_i32_0 = arith.constant 0 : i32
    %c0_i32_1 = arith.constant 0 : i32
    return %c0_i32, %c0_i32_0 : i32, i32
  }
  func.func @transform_10(%arg0: i32) -> (i32, i32) {
    %c0_i32 = arith.constant 0 : i32
    %c0_i32_0 = arith.constant 0 : i32
    return %arg0, %c0_i32 : i32, i32
  }
}

</mosaic_0001>

<llo_original>
// kernel: bilstm2vec_forward.1
$region0: #{bilstm2vec_forward.1}
  #allocation0 [shape = 'u32[]', space=smem, size = 0x4, offset = 0x4, fixed_abs, tag = 'smem constant byte address 0x4 - core index']
  #allocation1 [shape = 'u32[144,128]{1,0:T(1,128)}', space=vmem, size = 0x12000, scoped, tag = 'internal scratch']
  #allocation2 [shape = 'f32[64,1024]{1,0:T(8,128)}', space=vmem, size = 0x40000, scoped, tag = 'scratch operand']
  #allocation3 [shape = 'f32[64,256]{1,0:T(8,128)}', space=vmem, size = 0x10000, scoped, tag = 'scratch operand']
  #allocation4 [shape = 'f32[64,512]{1,0:T(8,128)}', space=vmem, size = 0x20000, scoped, tag = 'scratch operand']
  %s0 = inlined_call_operand.vmem [shape: f32[8,8,128], index: 0, kind: input, shape index: {}]
  %s1 = inlined_call_operand.vmem [shape: bf16[128,1024], index: 1, kind: input, shape index: {}]
  %s2 = inlined_call_operand.vmem [shape: bf16[128,512], index: 2, kind: input, shape index: {}]
  %s3 = inlined_call_operand.vmem [shape: bf16[128,512], index: 3, kind: input, shape index: {}]
  %s4 = inlined_call_operand.vmem [shape: f32[1,1024], index: 4, kind: input, shape index: {}]
  %s5 = inlined_call_operand.vmem [shape: bf16[256,512], index: 5, kind: input, shape index: {}]
  %s6 = inlined_call_operand.vmem [shape: bf16[128,512], index: 6, kind: input, shape index: {}]
  %s7 = inlined_call_operand.vmem [shape: f32[1,512], index: 7, kind: input, shape index: {}]
  %s8 = inlined_call_operand.vmem [shape: bf16[128,128], index: 8, kind: input, shape index: {}]
  %s9 = inlined_call_operand.vmem [shape: f32[1,128], index: 9, kind: input, shape index: {}]
  %s10 = inlined_call_operand.vmem [shape: f32[8,128], index: 10, kind: output, shape index: {}]
  %s11 = sld [smem:[#allocation0]]
  $region50: #{bilstm2vec_forward.1} parent=0
    _
  %s13 = ssub.s32 1, %s11
  %s14 = scalar_select 0, %s13, %s11
  // Predicated region
  $region2: #{bilstm2vec_forward.1} parent=0 // pred_check
    _
  $region3: #{bilstm2vec_forward.1} parent=0 // pred_check_branch
    %16 = sbr.rel (0) target = $region5
  $region4: #{bilstm2vec_forward.1} parent=0 // pred_region
    _
  $region5: #{bilstm2vec_forward.1} parent=0 // pred_fallthru
    _
  // Predicated region
  $region6: #{bilstm2vec_forward.1} parent=0 // pred_check
    _
  $region7: #{bilstm2vec_forward.1} parent=0 // pred_check_branch
    %18 = sbr.rel (0) target = $region9
  $region8: #{bilstm2vec_forward.1} parent=0 // pred_region
    _
  $region9: #{bilstm2vec_forward.1} parent=0 // pred_fallthru
    _
  // Predicated region
  $region10: #{bilstm2vec_forward.1} parent=0 // pred_check
    _
  $region11: #{bilstm2vec_forward.1} parent=0 // pred_check_branch
    %20 = sbr.rel (0) target = $region13
  $region12: #{bilstm2vec_forward.1} parent=0 // pred_region
    _
  $region13: #{bilstm2vec_forward.1} parent=0 // pred_fallthru
    _
  // Predicated region
  $region14: #{bilstm2vec_forward.1} parent=0 // pred_check
    _
  $region15: #{bilstm2vec_forward.1} parent=0 // pred_check_branch
    %22 = sbr.rel (0) target = $region17
  $region16: #{bilstm2vec_forward.1} parent=0 // pred_region
    _
  $region17: #{bilstm2vec_forward.1} parent=0 // pred_fallthru
    _
  // Predicated region
  $region18: #{bilstm2vec_forward.1} parent=0 // pred_check
    _
  $region19: #{bilstm2vec_forward.1} parent=0 // pred_check_branch
    %24 = sbr.rel (0) target = $region21
  $region20: #{bilstm2vec_forward.1} parent=0 // pred_region
    _
  $region21: #{bilstm2vec_forward.1} parent=0 // pred_fallthru
    _
  // Predicated region
  $region22: #{bilstm2vec_forward.1} parent=0 // pred_check
    _
  $region23: #{bilstm2vec_forward.1} parent=0 // pred_check_branch
    %26 = sbr.rel (0) target = $region25
  $region24: #{bilstm2vec_forward.1} parent=0 // pred_region
    _
  $region25: #{bilstm2vec_forward.1} parent=0 // pred_fallthru
    _
  // Predicated region
  $region26: #{bilstm2vec_forward.1} parent=0 // pred_check
    _
  $region27: #{bilstm2vec_forward.1} parent=0 // pred_check_branch
    %28 = sbr.rel (0) target = $region29
  $region28: #{bilstm2vec_forward.1} parent=0 // pred_region
    _
  $region29: #{bilstm2vec_forward.1} parent=0 // pred_fallthru
    _
  // Predicated region
  $region30: #{bilstm2vec_forward.1} parent=0 // pred_check
    _
  $region31: #{bilstm2vec_forward.1} parent=0 // pred_check_branch
    %30 = sbr.rel (0) target = $region33
  $region32: #{bilstm2vec_forward.1} parent=0 // pred_region
    _
  $region33: #{bilstm2vec_forward.1} parent=0 // pred_fallthru
    _
  // Predicated region
  $region34: #{bilstm2vec_forward.1} parent=0 // pred_check
    _
  $region35: #{bilstm2vec_forward.1} parent=0 // pred_check_branch
    %32 = sbr.rel (0) target = $region37
  $region36: #{bilstm2vec_forward.1} parent=0 // pred_region
    _
  $region37: #{bilstm2vec_forward.1} parent=0 // pred_fallthru
    _
  // Predicated region
  $region38: #{bilstm2vec_forward.1} parent=0 // pred_check
    _
  $region39: #{bilstm2vec_forward.1} parent=0 // pred_check_branch
    %34 = sbr.rel (0) target = $region41
  $region40: #{bilstm2vec_forward.1} parent=0 // pred_region
    _
  $region41: #{bilstm2vec_forward.1} parent=0 // pred_fallthru
    _
  %v36 = vld [vmem:[%s0] sm:$0xff]
  %v37 = vld [vmem:[%s0 + $0x8] sm:$0xff]
  %v38 = vld [vmem:[%s0 + $0x10] sm:$0xff]
  %v39 = vld [vmem:[%s0 + $0x18] sm:$0xff]
  %v40 = vld [vmem:[%s0 + $0x20] sm:$0xff]
  %v41 = vld [vmem:[%s0 + $0x28] sm:$0xff]
  %v42 = vld [vmem:[%s0 + $0x30] sm:$0xff]
  %v43 = vld [vmem:[%s0 + $0x38] sm:$0xff]
  %v44 = vpack.c.bf16 %v37, %v36
  %v45 = vpack.c.bf16 %v39, %v38
  %v46 = vpack.c.bf16 %v41, %v40
  %v47 = vpack.c.bf16 %v43, %v42
  %v48 = vld [vmem:[%s1] sm:$0xff]
  %v49 = vld [vmem:[%s1 + $0x8] sm:$0xff]
  %v50 = vld [vmem:[%s1 + $0x10] sm:$0xff]
  %v51 = vld [vmem:[%s1 + $0x18] sm:$0xff]
  %v52 = vld [vmem:[%s1 + $0x20] sm:$0xff]
  %v53 = vld [vmem:[%s1 + $0x28] sm:$0xff]
  %v54 = vld [vmem:[%s1 + $0x30] sm:$0xff]
  %v55 = vld [vmem:[%s1 + $0x38] sm:$0xff]
  %v56 = vld [vmem:[%s1 + $0x40] sm:$0xff]
  %v57 = vld [vmem:[%s1 + $0x48] sm:$0xff]
  %v58 = vld [vmem:[%s1 + $0x50] sm:$0xff]
  %v59 = vld [vmem:[%s1 + $0x58] sm:$0xff]
  %v60 = vld [vmem:[%s1 + $0x60] sm:$0xff]
  %v61 = vld [vmem:[%s1 + $0x68] sm:$0xff]
  %v62 = vld [vmem:[%s1 + $0x70] sm:$0xff]
  %v63 = vld [vmem:[%s1 + $0x78] sm:$0xff]
  %v64 = vld [vmem:[%s1 + $0x80] sm:$0xff]
  %v65 = vld [vmem:[%s1 + $0x88] sm:$0xff]
  %v66 = vld [vmem:[%s1 + $0x90] sm:$0xff]
  %v67 = vld [vmem:[%s1 + $0x98] sm:$0xff]
  %v68 = vld [vmem:[%s1 + $0xa0] sm:$0xff]
  %v69 = vld [vmem:[%s1 + $0xa8] sm:$0xff]
  %v70 = vld [vmem:[%s1 + $0xb0] sm:$0xff]
  %v71 = vld [vmem:[%s1 + $0xb8] sm:$0xff]
  %v72 = vld [vmem:[%s1 + $0xc0] sm:$0xff]
  %v73 = vld [vmem:[%s1 + $0xc8] sm:$0xff]
  %v74 = vld [vmem:[%s1 + $0xd0] sm:$0xff]
  %v75 = vld [vmem:[%s1 + $0xd8] sm:$0xff]
  %v76 = vld [vmem:[%s1 + $0xe0] sm:$0xff]
  %v77 = vld [vmem:[%s1 + $0xe8] sm:$0xff]
  %v78 = vld [vmem:[%s1 + $0xf0] sm:$0xff]
  %v79 = vld [vmem:[%s1 + $0xf8] sm:$0xff]
  %v80 = vld [vmem:[%s1 + $0x100] sm:$0xff]
  %v81 = vld [vmem:[%s1 + $0x108] sm:$0xff]
  %v82 = vld [vmem:[%s1 + $0x110] sm:$0xff]
  %v83 = vld [vmem:[%s1 + $0x118] sm:$0xff]
  %v84 = vld [vmem:[%s1 + $0x120] sm:$0xff]
  %v85 = vld [vmem:[%s1 + $0x128] sm:$0xff]
  %v86 = vld [vmem:[%s1 + $0x130] sm:$0xff]
  %v87 = vld [vmem:[%s1 + $0x138] sm:$0xff]
  %v88 = vld [vmem:[%s1 + $0x140] sm:$0xff]
  %v89 = vld [vmem:[%s1 + $0x148] sm:$0xff]
  %v90 = vld [vmem:[%s1 + $0x150] sm:$0xff]
  %v91 = vld [vmem:[%s1 + $0x158] sm:$0xff]
  %v92 = vld [vmem:[%s1 + $0x160] sm:$0xff]
  %v93 = vld [vmem:[%s1 + $0x168] sm:$0xff]
  %v94 = vld [vmem:[%s1 + $0x170] sm:$0xff]
  %v95 = vld [vmem:[%s1 + $0x178] sm:$0xff]
  %v96 = vld [vmem:[%s1 + $0x180] sm:$0xff]
  %v97 = vld [vmem:[%s1 + $0x188] sm:$0xff]
  %v98 = vld [vmem:[%s1 + $0x190] sm:$0xff]
  %v99 = vld [vmem:[%s1 + $0x198] sm:$0xff]
  %v100 = vld [vmem:[%s1 + $0x1a0] sm:$0xff]
  %v101 = vld [vmem:[%s1 + $0x1a8] sm:$0xff]
  %v102 = vld [vmem:[%s1 + $0x1b0] sm:$0xff]
  %v103 = vld [vmem:[%s1 + $0x1b8] sm:$0xff]
  %v104 = vld [vmem:[%s1 + $0x1c0] sm:$0xff]
  %v105 = vld [vmem:[%s1 + $0x1c8] sm:$0xff]
  %v106 = vld [vmem:[%s1 + $0x1d0] sm:$0xff]
  %v107 = vld [vmem:[%s1 + $0x1d8] sm:$0xff]
  %v108 = vld [vmem:[%s1 + $0x1e0] sm:$0xff]
  %v109 = vld [vmem:[%s1 + $0x1e8] sm:$0xff]
  %v110 = vld [vmem:[%s1 + $0x1f0] sm:$0xff]
  %v111 = vld [vmem:[%s1 + $0x1f8] sm:$0xff]
  %v112 = vld [vmem:[%s4] sm:$0xff]
  %v114 = vlaneseq
  %v115 = vshrl.u32 %v114, 7
  %v116 = vsub.s32 0, %v115
  %v117 = vrot.slane %v112, %v116
  %v118 = vlaneseq
  %v119 = vshrl.u32 %v118, 7
  %v120 = vsub.s32 1, %v119
  %v121 = vrot.slane %v112, %v120
  %v122 = vlaneseq
  %v123 = vshrl.u32 %v122, 7
  %v124 = vsub.s32 2, %v123
  %v125 = vrot.slane %v112, %v124
  %v126 = vlaneseq
  %v127 = vshrl.u32 %v126, 7
  %v128 = vsub.s32 3, %v127
  %v129 = vrot.slane %v112, %v128
  %v130 = vlaneseq
  %v131 = vshrl.u32 %v130, 7
  %v132 = vsub.s32 4, %v131
  %v133 = vrot.slane %v112, %v132
  %v134 = vlaneseq
  %v135 = vshrl.u32 %v134, 7
  %v136 = vsub.s32 5, %v135
  %v137 = vrot.slane %v112, %v136
  %v138 = vlaneseq
  %v139 = vshrl.u32 %v138, 7
  %v140 = vsub.s32 6, %v139
  %v141 = vrot.slane %v112, %v140
  %v142 = vlaneseq
  %v143 = vshrl.u32 %v142, 7
  %v144 = vsub.s32 7, %v143
  %v145 = vrot.slane %v112, %v144
  %v218 = vunpack.c.l.b16 %v48
  %v219 = vunpack.c.h.b16 %v48
  %v220 = vunpack.c.l.b16 %v49
  %v221 = vunpack.c.h.b16 %v49
  %v222 = vunpack.c.l.b16 %v50
  %v223 = vunpack.c.h.b16 %v50
  %v224 = vunpack.c.l.b16 %v51
  %v225 = vunpack.c.h.b16 %v51
  %v226 = vunpack.c.l.b16 %v52
  %v227 = vunpack.c.h.b16 %v52
  %v228 = vunpack.c.l.b16 %v53
  %v229 = vunpack.c.h.b16 %v53
  %v230 = vunpack.c.l.b16 %v54
  %v231 = vunpack.c.h.b16 %v54
  %v232 = vunpack.c.l.b16 %v55
  %v233 = vunpack.c.h.b16 %v55
  %v234 = vunpack.c.l.b16 %v56
  %v235 = vunpack.c.h.b16 %v56
  %v236 = vunpack.c.l.b16 %v57
  %v237 = vunpack.c.h.b16 %v57
  %v238 = vunpack.c.l.b16 %v58
  %v239 = vunpack.c.h.b16 %v58
  %v240 = vunpack.c.l.b16 %v59
  %v241 = vunpack.c.h.b16 %v59
  %v242 = vunpack.c.l.b16 %v60
  %v243 = vunpack.c.h.b16 %v60
  %v244 = vunpack.c.l.b16 %v61
  %v245 = vunpack.c.h.b16 %v61
  %v246 = vunpack.c.l.b16 %v62
  %v247 = vunpack.c.h.b16 %v62
  %v248 = vunpack.c.l.b16 %v63
  %v249 = vunpack.c.h.b16 %v63
  %v250 = vunpack.c.l.b16 %v64
  %v251 = vunpack.c.h.b16 %v64
  %v252 = vunpack.c.l.b16 %v65
  %v253 = vunpack.c.h.b16 %v65
  %v254 = vunpack.c.l.b16 %v66
  %v255 = vunpack.c.h.b16 %v66
  %v256 = vunpack.c.l.b16 %v67
  %v257 = vunpack.c.h.b16 %v67
  %v258 = vunpack.c.l.b16 %v68
  %v259 = vunpack.c.h.b16 %v68
  %v260 = vunpack.c.l.b16 %v69
  %v261 = vunpack.c.h.b16 %v69
  %v262 = vunpack.c.l.b16 %v70
  %v263 = vunpack.c.h.b16 %v70
  %v264 = vunpack.c.l.b16 %v71
  %v265 = vunpack.c.h.b16 %v71
  %v266 = vunpack.c.l.b16 %v72
  %v267 = vunpack.c.h.b16 %v72
  %v268 = vunpack.c.l.b16 %v73
  %v269 = vunpack.c.h.b16 %v73
  %v270 = vunpack.c.l.b16 %v74
  %v271 = vunpack.c.h.b16 %v74
  %v272 = vunpack.c.l.b16 %v75
  %v273 = vunpack.c.h.b16 %v75
  %v274 = vunpack.c.l.b16 %v76
  %v275 = vunpack.c.h.b16 %v76
  %v276 = vunpack.c.l.b16 %v77
  %v277 = vunpack.c.h.b16 %v77
  %v278 = vunpack.c.l.b16 %v78
  %v279 = vunpack.c.h.b16 %v78
  %v280 = vunpack.c.l.b16 %v79
  %v281 = vunpack.c.h.b16 %v79
  %v282 = vunpack.c.l.b16 %v80
  %v283 = vunpack.c.h.b16 %v80
  %v284 = vunpack.c.l.b16 %v81
  %v285 = vunpack.c.h.b16 %v81
  %v286 = vunpack.c.l.b16 %v82
  %v287 = vunpack.c.h.b16 %v82
  %v288 = vunpack.c.l.b16 %v83
  %v289 = vunpack.c.h.b16 %v83
  %v290 = vunpack.c.l.b16 %v84
  %v291 = vunpack.c.h.b16 %v84
  %v292 = vunpack.c.l.b16 %v85
  %v293 = vunpack.c.h.b16 %v85
  %v294 = vunpack.c.l.b16 %v86
  %v295 = vunpack.c.h.b16 %v86
  %v296 = vunpack.c.l.b16 %v87
  %v297 = vunpack.c.h.b16 %v87
  %v298 = vunpack.c.l.b16 %v88
  %v299 = vunpack.c.h.b16 %v88
  %v300 = vunpack.c.l.b16 %v89
  %v301 = vunpack.c.h.b16 %v89
  %v302 = vunpack.c.l.b16 %v90
  %v303 = vunpack.c.h.b16 %v90
  %v304 = vunpack.c.l.b16 %v91
  %v305 = vunpack.c.h.b16 %v91
  %v306 = vunpack.c.l.b16 %v92
  %v307 = vunpack.c.h.b16 %v92
  %v308 = vunpack.c.l.b16 %v93
  %v309 = vunpack.c.h.b16 %v93
  %v310 = vunpack.c.l.b16 %v94
  %v311 = vunpack.c.h.b16 %v94
  %v312 = vunpack.c.l.b16 %v95
  %v313 = vunpack.c.h.b16 %v95
  %v314 = vunpack.c.l.b16 %v96
  %v315 = vunpack.c.h.b16 %v96
  %v316 = vunpack.c.l.b16 %v97
  %v317 = vunpack.c.h.b16 %v97
  %v318 = vunpack.c.l.b16 %v98
  %v319 = vunpack.c.h.b16 %v98
  %v320 = vunpack.c.l.b16 %v99
  %v321 = vunpack.c.h.b16 %v99
  %v322 = vunpack.c.l.b16 %v100
  %v323 = vunpack.c.h.b16 %v100
  %v324 = vunpack.c.l.b16 %v101
  %v325 = vunpack.c.h.b16 %v101
  %v326 = vunpack.c.l.b16 %v102
  %v327 = vunpack.c.h.b16 %v102
  %v328 = vunpack.c.l.b16 %v103
  %v329 = vunpack.c.h.b16 %v103
  %v330 = vunpack.c.l.b16 %v104
  %v331 = vunpack.c.h.b16 %v104
  %v332 = vunpack.c.l.b16 %v105
  %v333 = vunpack.c.h.b16 %v105
  %v334 = vunpack.c.l.b16 %v106
  %v335 = vunpack.c.h.b16 %v106
  %v336 = vunpack.c.l.b16 %v107
  %v337 = vunpack.c.h.b16 %v107
  %v338 = vunpack.c.l.b16 %v108
  %v339 = vunpack.c.h.b16 %v108
  %v340 = vunpack.c.l.b16 %v109
  %v341 = vunpack.c.h.b16 %v109
  %v342 = vunpack.c.l.b16 %v110
  %v343 = vunpack.c.h.b16 %v110
  %v344 = vunpack.c.l.b16 %v111
  %v345 = vunpack.c.h.b16 %v111
  %v346 = vpack.c.b16 %v226, %v218
  %v347 = vpack.c.b16 %v227, %v219
  %v348 = vpack.c.b16 %v228, %v220
  %v349 = vpack.c.b16 %v229, %v221
  %v350 = vpack.c.b16 %v230, %v222
  %v351 = vpack.c.b16 %v231, %v223
  %v352 = vpack.c.b16 %v232, %v224
  %v353 = vpack.c.b16 %v233, %v225
  %v354 = vpack.c.b16 %v242, %v234
  %v355 = vpack.c.b16 %v243, %v235
  %v356 = vpack.c.b16 %v244, %v236
  %v357 = vpack.c.b16 %v245, %v237
  %v358 = vpack.c.b16 %v246, %v238
  %v359 = vpack.c.b16 %v247, %v239
  %v360 = vpack.c.b16 %v248, %v240
  %v361 = vpack.c.b16 %v249, %v241
  %v362 = vpack.c.b16 %v258, %v250
  %v363 = vpack.c.b16 %v259, %v251
  %v364 = vpack.c.b16 %v260, %v252
  %v365 = vpack.c.b16 %v261, %v253
  %v366 = vpack.c.b16 %v262, %v254
  %v367 = vpack.c.b16 %v263, %v255
  %v368 = vpack.c.b16 %v264, %v256
  %v369 = vpack.c.b16 %v265, %v257
  %v370 = vpack.c.b16 %v274, %v266
  %v371 = vpack.c.b16 %v275, %v267
  %v372 = vpack.c.b16 %v276, %v268
  %v373 = vpack.c.b16 %v277, %v269
  %v374 = vpack.c.b16 %v278, %v270
  %v375 = vpack.c.b16 %v279, %v271
  %v376 = vpack.c.b16 %v280, %v272
  %v377 = vpack.c.b16 %v281, %v273
  %v378 = vpack.c.b16 %v290, %v282
  %v379 = vpack.c.b16 %v291, %v283
  %v380 = vpack.c.b16 %v292, %v284
  %v381 = vpack.c.b16 %v293, %v285
  %v382 = vpack.c.b16 %v294, %v286
  %v383 = vpack.c.b16 %v295, %v287
  %v384 = vpack.c.b16 %v296, %v288
  %v385 = vpack.c.b16 %v297, %v289
  %v386 = vpack.c.b16 %v306, %v298
  %v387 = vpack.c.b16 %v307, %v299
  %v388 = vpack.c.b16 %v308, %v300
  %v389 = vpack.c.b16 %v309, %v301
  %v390 = vpack.c.b16 %v310, %v302
  %v391 = vpack.c.b16 %v311, %v303
  %v392 = vpack.c.b16 %v312, %v304
  %v393 = vpack.c.b16 %v313, %v305
  %v394 = vpack.c.b16 %v322, %v314
  %v395 = vpack.c.b16 %v323, %v315
  %v396 = vpack.c.b16 %v324, %v316
  %v397 = vpack.c.b16 %v325, %v317
  %v398 = vpack.c.b16 %v326, %v318
  %v399 = vpack.c.b16 %v327, %v319
  %v400 = vpack.c.b16 %v328, %v320
  %v401 = vpack.c.b16 %v329, %v321
  %v402 = vpack.c.b16 %v338, %v330
  %v403 = vpack.c.b16 %v339, %v331
  %v404 = vpack.c.b16 %v340, %v332
  %v405 = vpack.c.b16 %v341, %v333
  %v406 = vpack.c.b16 %v342, %v334
  %v407 = vpack.c.b16 %v343, %v335
  %v408 = vpack.c.b16 %v344, %v336
  %v409 = vpack.c.b16 %v345, %v337
  %474 = vmatprep.subr.bf16.mxu0 %v403
  %475 = vmatpush1.bf16.msra.mxu0 %v402
  %476 = vmatprep.subr.bf16.mxu0 %v395
  %477 = vmatpush1.bf16.msra.mxu0 %v394
  %478 = vmatprep.subr.bf16.mxu0 %v387
  %479 = vmatpush1.bf16.msra.mxu0 %v386
  %480 = vmatprep.subr.bf16.mxu0 %v379
  %481 = vmatpush1.bf16.msra.mxu0 %v378
  %482 = vmatprep.subr.bf16.mxu0 %v371
  %483 = vmatpush1.bf16.msra.mxu0 %v370
  %484 = vmatprep.subr.bf16.mxu0 %v363
  %485 = vmatpush1.bf16.msra.mxu0 %v362
  %486 = vmatprep.subr.bf16.mxu0 %v355
  %487 = vmatpush1.bf16.msra.mxu0 %v354
  %488 = vmatprep.subr.bf16.mxu0 %v347
  %489 = vmatpush1.bf16.msra.mxu0 %v346
  %490 = vmatprep.subr.bf16.mxu0 0
  %491 = vmatpush2.bf16.msra.mxu0 0
  %492 = vmatprep.subr.bf16.mxu0 0
  %493 = vmatpush2.bf16.msra.mxu0 0
  %494 = vmatprep.subr.bf16.mxu0 0
  %495 = vmatpush2.bf16.msra.mxu0 0
  %496 = vmatprep.subr.bf16.mxu0 0
  %497 = vmatpush2.bf16.msra.mxu0 0
  %498 = vmatprep.subr.bf16.mxu0 0
  %499 = vmatpush2.bf16.msra.mxu0 0
  %500 = vmatprep.subr.bf16.mxu0 0
  %501 = vmatpush2.bf16.msra.mxu0 0
  %502 = vmatprep.subr.bf16.mxu0 0
  %503 = vmatpush2.bf16.msra.mxu0 0
  %504 = vmatprep.subr.bf16.mxu0 0
  %505 = vmatpush2.bf16.msra.mxu0 0
  %506 = vmatprep.mubr.bf16.mxu0 0
  %507 = vmatmul.mubr.bf16.gmra.mxu0 %v44
  %v508 = vpop.f32.mrf.mxu0
  %v509 = vadd.f32 %v117, %v508
  %v510 = vpop.f32.mrf.mxu0
  %v511 = vadd.f32 %v121, %v510
  %v512 = vpop.f32.mrf.mxu0
  %v513 = vadd.f32 %v117, %v512
  %v514 = vpop.f32.mrf.mxu0
  %v515 = vadd.f32 %v121, %v514
  %516 = vmatprep.mubr.bf16.mxu0 0
  %517 = vmatmul.mubr.bf16.gmra.mxu0 %v45
  %v518 = vpop.f32.mrf.mxu0
  %v519 = vadd.f32 %v117, %v518
  %v520 = vpop.f32.mrf.mxu0
  %v521 = vadd.f32 %v121, %v520
  %v522 = vpop.f32.mrf.mxu0
  %v523 = vadd.f32 %v117, %v522
  %v524 = vpop.f32.mrf.mxu0
  %v525 = vadd.f32 %v121, %v524
  %526 = vmatprep.mubr.bf16.mxu0 0
  %527 = vmatmul.mubr.bf16.gmra.mxu0 %v46
  %v528 = vpop.f32.mrf.mxu0
  %v529 = vadd.f32 %v117, %v528
  %v530 = vpop.f32.mrf.mxu0
  %v531 = vadd.f32 %v121, %v530
  %v532 = vpop.f32.mrf.mxu0
  %v533 = vadd.f32 %v117, %v532
  %v534 = vpop.f32.mrf.mxu0
  %v535 = vadd.f32 %v121, %v534
  %536 = vmatprep.mubr.bf16.mxu0 0
  %537 = vmatmul.mubr.bf16.gmra.mxu0 %v47
  %v538 = vpop.f32.mrf.mxu0
  %v539 = vadd.f32 %v117, %v538
  %v540 = vpop.f32.mrf.mxu0
  %v541 = vadd.f32 %v121, %v540
  %v542 = vpop.f32.mrf.mxu0
  %v543 = vadd.f32 %v117, %v542
  %v544 = vpop.f32.mrf.mxu0
  %v545 = vadd.f32 %v121, %v544
  %546 = vdwg.mxu0
  %547 = vmatprep.subr.bf16.mxu0 %v405
  %548 = vmatpush1.bf16.msra.mxu0 %v404
  %549 = vmatprep.subr.bf16.mxu0 %v397
  %550 = vmatpush1.bf16.msra.mxu0 %v396
  %551 = vmatprep.subr.bf16.mxu0 %v389
  %552 = vmatpush1.bf16.msra.mxu0 %v388
  %553 = vmatprep.subr.bf16.mxu0 %v381
  %554 = vmatpush1.bf16.msra.mxu0 %v380
  %555 = vmatprep.subr.bf16.mxu0 %v373
  %556 = vmatpush1.bf16.msra.mxu0 %v372
  %557 = vmatprep.subr.bf16.mxu0 %v365
  %558 = vmatpush1.bf16.msra.mxu0 %v364
  %559 = vmatprep.subr.bf16.mxu0 %v357
  %560 = vmatpush1.bf16.msra.mxu0 %v356
  %561 = vmatprep.subr.bf16.mxu0 %v349
  %562 = vmatpush1.bf16.msra.mxu0 %v348
  %563 = vmatprep.subr.bf16.mxu0 0
  %564 = vmatpush2.bf16.msra.mxu0 0
  %565 = vmatprep.subr.bf16.mxu0 0
  %566 = vmatpush2.bf16.msra.mxu0 0
  %567 = vmatprep.subr.bf16.mxu0 0
  %568 = vmatpush2.bf16.msra.mxu0 0
  %569 = vmatprep.subr.bf16.mxu0 0
  %570 = vmatpush2.bf16.msra.mxu0 0
  %571 = vmatprep.subr.bf16.mxu0 0
  %572 = vmatpush2.bf16.msra.mxu0 0
  %573 = vmatprep.subr.bf16.mxu0 0
  %574 = vmatpush2.bf16.msra.mxu0 0
  %575 = vmatprep.subr.bf16.mxu0 0
  %576 = vmatpush2.bf16.msra.mxu0 0
  %577 = vmatprep.subr.bf16.mxu0 0
  %578 = vmatpush2.bf16.msra.mxu0 0
  %579 = vmatprep.mubr.bf16.mxu0 0
  %580 = vmatmul.mubr.bf16.gmra.mxu0 %v44
  %v581 = vpop.f32.mrf.mxu0
  %v582 = vadd.f32 %v125, %v581
  %v583 = vpop.f32.mrf.mxu0
  %v584 = vadd.f32 %v129, %v583
  %v585 = vpop.f32.mrf.mxu0
  %v586 = vadd.f32 %v125, %v585
  %v587 = vpop.f32.mrf.mxu0
  %v588 = vadd.f32 %v129, %v587
  %589 = vmatprep.mubr.bf16.mxu0 0
  %590 = vmatmul.mubr.bf16.gmra.mxu0 %v45
  %v591 = vpop.f32.mrf.mxu0
  %v592 = vadd.f32 %v125, %v591
  %v593 = vpop.f32.mrf.mxu0
  %v594 = vadd.f32 %v129, %v593
  %v595 = vpop.f32.mrf.mxu0
  %v596 = vadd.f32 %v125, %v595
  %v597 = vpop.f32.mrf.mxu0
  %v598 = vadd.f32 %v129, %v597
  %599 = vmatprep.mubr.bf16.mxu0 0
  %600 = vmatmul.mubr.bf16.gmra.mxu0 %v46
  %v601 = vpop.f32.mrf.mxu0
  %v602 = vadd.f32 %v125, %v601
  %v603 = vpop.f32.mrf.mxu0
  %v604 = vadd.f32 %v129, %v603
  %v605 = vpop.f32.mrf.mxu0
  %v606 = vadd.f32 %v125, %v605
  %v607 = vpop.f32.mrf.mxu0
  %v608 = vadd.f32 %v129, %v607
  %609 = vmatprep.mubr.bf16.mxu0 0
  %610 = vmatmul.mubr.bf16.gmra.mxu0 %v47
  %v611 = vpop.f32.mrf.mxu0
  %v612 = vadd.f32 %v125, %v611
  %v613 = vpop.f32.mrf.mxu0
  %v614 = vadd.f32 %v129, %v613
  %v615 = vpop.f32.mrf.mxu0
  %v616 = vadd.f32 %v125, %v615
  %v617 = vpop.f32.mrf.mxu0
  %v618 = vadd.f32 %v129, %v617
  %619 = vdwg.mxu0
  %620 = vmatprep.subr.bf16.mxu0 %v407
  %621 = vmatpush1.bf16.msra.mxu0 %v406
  %622 = vmatprep.subr.bf16.mxu0 %v399
  %623 = vmatpush1.bf16.msra.mxu0 %v398
  %624 = vmatprep.subr.bf16.mxu0 %v391
  %625 = vmatpush1.bf16.msra.mxu0 %v390
  %626 = vmatprep.subr.bf16.mxu0 %v383
  %627 = vmatpush1.bf16.msra.mxu0 %v382
  %628 = vmatprep.subr.bf16.mxu0 %v375
  %629 = vmatpush1.bf16.msra.mxu0 %v374
  %630 = vmatprep.subr.bf16.mxu0 %v367
  %631 = vmatpush1.bf16.msra.mxu0 %v366
  %632 = vmatprep.subr.bf16.mxu0 %v359
  %633 = vmatpush1.bf16.msra.mxu0 %v358
  %634 = vmatprep.subr.bf16.mxu0 %v351
  %635 = vmatpush1.bf16.msra.mxu0 %v350
  %636 = vmatprep.subr.bf16.mxu0 0
  %637 = vmatpush2.bf16.msra.mxu0 0
  %638 = vmatprep.subr.bf16.mxu0 0
  %639 = vmatpush2.bf16.msra.mxu0 0
  %640 = vmatprep.subr.bf16.mxu0 0
  %641 = vmatpush2.bf16.msra.mxu0 0
  %642 = vmatprep.subr.bf16.mxu0 0
  %643 = vmatpush2.bf16.msra.mxu0 0
  %644 = vmatprep.subr.bf16.mxu0 0
  %645 = vmatpush2.bf16.msra.mxu0 0
  %646 = vmatprep.subr.bf16.mxu0 0
  %647 = vmatpush2.bf16.msra.mxu0 0
  %648 = vmatprep.subr.bf16.mxu0 0
  %649 = vmatpush2.bf16.msra.mxu0 0
  %650 = vmatprep.subr.bf16.mxu0 0
  %651 = vmatpush2.bf16.msra.mxu0 0
  %652 = vmatprep.mubr.bf16.mxu0 0
  %653 = vmatmul.mubr.bf16.gmra.mxu0 %v44
  %v654 = vpop.f32.mrf.mxu0
  %v655 = vadd.f32 %v133, %v654
  %v656 = vpop.f32.mrf.mxu0
  %v657 = vadd.f32 %v137, %v656
  %v658 = vpop.f32.mrf.mxu0
  %v659 = vadd.f32 %v133, %v658
  %v660 = vpop.f32.mrf.mxu0
  %v661 = vadd.f32 %v137, %v660
  %662 = vmatprep.mubr.bf16.mxu0 0
  %663 = vmatmul.mubr.bf16.gmra.mxu0 %v45
  %v664 = vpop.f32.mrf.mxu0
  %v665 = vadd.f32 %v133, %v664
  %v666 = vpop.f32.mrf.mxu0
  %v667 = vadd.f32 %v137, %v666
  %v668 = vpop.f32.mrf.mxu0
  %v669 = vadd.f32 %v133, %v668
  %v670 = vpop.f32.mrf.mxu0
  %v671 = vadd.f32 %v137, %v670
  %672 = vmatprep.mubr.bf16.mxu0 0
  %673 = vmatmul.mubr.bf16.gmra.mxu0 %v46
  %v674 = vpop.f32.mrf.mxu0
  %v675 = vadd.f32 %v133, %v674
  %v676 = vpop.f32.mrf.mxu0
  %v677 = vadd.f32 %v137, %v676
  %v678 = vpop.f32.mrf.mxu0
  %v679 = vadd.f32 %v133, %v678
  %v680 = vpop.f32.mrf.mxu0
  %v681 = vadd.f32 %v137, %v680
  %682 = vmatprep.mubr.bf16.mxu0 0
  %683 = vmatmul.mubr.bf16.gmra.mxu0 %v47
  %v684 = vpop.f32.mrf.mxu0
  %v685 = vadd.f32 %v133, %v684
  %v686 = vpop.f32.mrf.mxu0
  %v687 = vadd.f32 %v137, %v686
  %v688 = vpop.f32.mrf.mxu0
  %v689 = vadd.f32 %v133, %v688
  %v690 = vpop.f32.mrf.mxu0
  %v691 = vadd.f32 %v137, %v690
  %692 = vdwg.mxu0
  %693 = vmatprep.subr.bf16.mxu0 %v409
  %694 = vmatpush1.bf16.msra.mxu0 %v408
  %695 = vmatprep.subr.bf16.mxu0 %v401
  %696 = vmatpush1.bf16.msra.mxu0 %v400
  %697 = vmatprep.subr.bf16.mxu0 %v393
  %698 = vmatpush1.bf16.msra.mxu0 %v392
  %699 = vmatprep.subr.bf16.mxu0 %v385
  %700 = vmatpush1.bf16.msra.mxu0 %v384
  %701 = vmatprep.subr.bf16.mxu0 %v377
  %702 = vmatpush1.bf16.msra.mxu0 %v376
  %703 = vmatprep.subr.bf16.mxu0 %v369
  %704 = vmatpush1.bf16.msra.mxu0 %v368
  %705 = vmatprep.subr.bf16.mxu0 %v361
  %706 = vmatpush1.bf16.msra.mxu0 %v360
  %707 = vmatprep.subr.bf16.mxu0 %v353
  %708 = vmatpush1.bf16.msra.mxu0 %v352
  %709 = vmatprep.subr.bf16.mxu0 0
  %710 = vmatpush2.bf16.msra.mxu0 0
  %711 = vmatprep.subr.bf16.mxu0 0
  %712 = vmatpush2.bf16.msra.mxu0 0
  %713 = vmatprep.subr.bf16.mxu0 0
  %714 = vmatpush2.bf16.msra.mxu0 0
  %715 = vmatprep.subr.bf16.mxu0 0
  %716 = vmatpush2.bf16.msra.mxu0 0
  %717 = vmatprep.subr.bf16.mxu0 0
  %718 = vmatpush2.bf16.msra.mxu0 0
  %719 = vmatprep.subr.bf16.mxu0 0
  %720 = vmatpush2.bf16.msra.mxu0 0
  %721 = vmatprep.subr.bf16.mxu0 0
  %722 = vmatpush2.bf16.msra.mxu0 0
  %723 = vmatprep.subr.bf16.mxu0 0
  %724 = vmatpush2.bf16.msra.mxu0 0
  %725 = vmatprep.mubr.bf16.mxu0 0
  %726 = vmatmul.mubr.bf16.gmra.mxu0 %v44
  %v727 = vpop.f32.mrf.mxu0
  %v728 = vadd.f32 %v141, %v727
  %v729 = vpop.f32.mrf.mxu0
  %v730 = vadd.f32 %v145, %v729
  %v731 = vpop.f32.mrf.mxu0
  %v732 = vadd.f32 %v141, %v731
  %v733 = vpop.f32.mrf.mxu0
  %v734 = vadd.f32 %v145, %v733
  %735 = vmatprep.mubr.bf16.mxu0 0
  %736 = vmatmul.mubr.bf16.gmra.mxu0 %v45
  %v737 = vpop.f32.mrf.mxu0
  %v738 = vadd.f32 %v141, %v737
  %v739 = vpop.f32.mrf.mxu0
  %v740 = vadd.f32 %v145, %v739
  %v741 = vpop.f32.mrf.mxu0
  %v742 = vadd.f32 %v141, %v741
  %v743 = vpop.f32.mrf.mxu0
  %v744 = vadd.f32 %v145, %v743
  %745 = vmatprep.mubr.bf16.mxu0 0
  %746 = vmatmul.mubr.bf16.gmra.mxu0 %v46
  %v747 = vpop.f32.mrf.mxu0
  %v748 = vadd.f32 %v141, %v747
  %v749 = vpop.f32.mrf.mxu0
  %v750 = vadd.f32 %v145, %v749
  %v751 = vpop.f32.mrf.mxu0
  %v752 = vadd.f32 %v141, %v751
  %v753 = vpop.f32.mrf.mxu0
  %v754 = vadd.f32 %v145, %v753
  %755 = vmatprep.mubr.bf16.mxu0 0
  %756 = vmatmul.mubr.bf16.gmra.mxu0 %v47
  %v757 = vpop.f32.mrf.mxu0
  %v758 = vadd.f32 %v141, %v757
  %v759 = vpop.f32.mrf.mxu0
  %v760 = vadd.f32 %v145, %v759
  %v761 = vpop.f32.mrf.mxu0
  %v762 = vadd.f32 %v141, %v761
  %v763 = vpop.f32.mrf.mxu0
  %v764 = vadd.f32 %v145, %v763
  %765 = vdwg.mxu0
  %766 = vst [vmem:[#allocation2] sm:$0xff] %v509
  %767 = vst [vmem:[#allocation2 + $0x8] sm:$0xff] %v511
  %768 = vst [vmem:[#allocation2 + $0x10] sm:$0xff] %v582
  %769 = vst [vmem:[#allocation2 + $0x18] sm:$0xff] %v584
  %770 = vst [vmem:[#allocation2 + $0x20] sm:$0xff] %v655
  %771 = vst [vmem:[#allocation2 + $0x28] sm:$0xff] %v657
  %772 = vst [vmem:[#allocation2 + $0x30] sm:$0xff] %v728
  %773 = vst [vmem:[#allocation2 + $0x38] sm:$0xff] %v730
  %774 = vst [vmem:[#allocation2 + $0x40] sm:$0xff] %v513
  %775 = vst [vmem:[#allocation2 + $0x48] sm:$0xff] %v515
  %776 = vst [vmem:[#allocation2 + $0x50] sm:$0xff] %v586
  %777 = vst [vmem:[#allocation2 + $0x58] sm:$0xff] %v588
  %778 = vst [vmem:[#allocation2 + $0x60] sm:$0xff] %v659
  %779 = vst [vmem:[#allocation2 + $0x68] sm:$0xff] %v661
  %780 = vst [vmem:[#allocation2 + $0x70] sm:$0xff] %v732
  %781 = vst [vmem:[#allocation2 + $0x78] sm:$0xff] %v734
  %782 = vst [vmem:[#allocation2 + $0x80] sm:$0xff] %v519
  %783 = vst [vmem:[#allocation2 + $0x88] sm:$0xff] %v521
  %784 = vst [vmem:[#allocation2 + $0x90] sm:$0xff] %v592
  %785 = vst [vmem:[#allocation2 + $0x98] sm:$0xff] %v594
  %786 = vst [vmem:[#allocation2 + $0xa0] sm:$0xff] %v665
  %787 = vst [vmem:[#allocation2 + $0xa8] sm:$0xff] %v667
  %788 = vst [vmem:[#allocation2 + $0xb0] sm:$0xff] %v738
  %789 = vst [vmem:[#allocation2 + $0xb8] sm:$0xff] %v740
  %790 = vst [vmem:[#allocation2 + $0xc0] sm:$0xff] %v523
  %791 = vst [vmem:[#allocation2 + $0xc8] sm:$0xff] %v525
  %792 = vst [vmem:[#allocation2 + $0xd0] sm:$0xff] %v596
  %793 = vst [vmem:[#allocation2 + $0xd8] sm:$0xff] %v598
  %794 = vst [vmem:[#allocation2 + $0xe0] sm:$0xff] %v669
  %795 = vst [vmem:[#allocation2 + $0xe8] sm:$0xff] %v671
  %796 = vst [vmem:[#allocation2 + $0xf0] sm:$0xff] %v742
  %797 = vst [vmem:[#allocation2 + $0xf8] sm:$0xff] %v744
  %798 = vst [vmem:[#allocation2 + $0x100] sm:$0xff] %v529
  %799 = vst [vmem:[#allocation2 + $0x108] sm:$0xff] %v531
  %800 = vst [vmem:[#allocation2 + $0x110] sm:$0xff] %v602
  %801 = vst [vmem:[#allocation2 + $0x118] sm:$0xff] %v604
  %802 = vst [vmem:[#allocation2 + $0x120] sm:$0xff] %v675
  %803 = vst [vmem:[#allocation2 + $0x128] sm:$0xff] %v677
  %804 = vst [vmem:[#allocation2 + $0x130] sm:$0xff] %v748
  %805 = vst [vmem:[#allocation2 + $0x138] sm:$0xff] %v750
  %806 = vst [vmem:[#allocation2 + $0x140] sm:$0xff] %v533
  %807 = vst [vmem:[#allocation2 + $0x148] sm:$0xff] %v535
  %808 = vst [vmem:[#allocation2 + $0x150] sm:$0xff] %v606
  %809 = vst [vmem:[#allocation2 + $0x158] sm:$0xff] %v608
  %810 = vst [vmem:[#allocation2 + $0x160] sm:$0xff] %v679
  %811 = vst [vmem:[#allocation2 + $0x168] sm:$0xff] %v681
  %812 = vst [vmem:[#allocation2 + $0x170] sm:$0xff] %v752
  %813 = vst [vmem:[#allocation2 + $0x178] sm:$0xff] %v754
  %814 = vst [vmem:[#allocation2 + $0x180] sm:$0xff] %v539
  %815 = vst [vmem:[#allocation2 + $0x188] sm:$0xff] %v541
  %816 = vst [vmem:[#allocation2 + $0x190] sm:$0xff] %v612
  %817 = vst [vmem:[#allocation2 + $0x198] sm:$0xff] %v614
  %818 = vst [vmem:[#allocation2 + $0x1a0] sm:$0xff] %v685
  %819 = vst [vmem:[#allocation2 + $0x1a8] sm:$0xff] %v687
  %820 = vst [vmem:[#allocation2 + $0x1b0] sm:$0xff] %v758
  %821 = vst [vmem:[#allocation2 + $0x1b8] sm:$0xff] %v760
  %822 = vst [vmem:[#allocation2 + $0x1c0] sm:$0xff] %v543
  %823 = vst [vmem:[#allocation2 + $0x1c8] sm:$0xff] %v545
  %824 = vst [vmem:[#allocation2 + $0x1d0] sm:$0xff] %v616
  %825 = vst [vmem:[#allocation2 + $0x1d8] sm:$0xff] %v618
  %826 = vst [vmem:[#allocation2 + $0x1e0] sm:$0xff] %v689
  %827 = vst [vmem:[#allocation2 + $0x1e8] sm:$0xff] %v691
  %828 = vst [vmem:[#allocation2 + $0x1f0] sm:$0xff] %v762
  %829 = vst [vmem:[#allocation2 + $0x1f8] sm:$0xff] %v764
  %s830 = smul.u32 0, 8
  %s831 = smul.addr %s830, 8
  %s832 = scalar_lea.vmem [#allocation2], %s831
  %v833 = vld [vmem:[%s832] sm:$0xff]
  %v834 = vld [vmem:[%s832 + $0x8] sm:$0xff]
  %v835 = vld [vmem:[%s832 + $0x10] sm:$0xff]
  %v836 = vld [vmem:[%s832 + $0x18] sm:$0xff]
  %v837 = vld [vmem:[%s2] sm:$0xff]
  %v838 = vld [vmem:[%s2 + $0x8] sm:$0xff]
  %v839 = vld [vmem:[%s2 + $0x10] sm:$0xff]
  %v840 = vld [vmem:[%s2 + $0x18] sm:$0xff]
  %v841 = vld [vmem:[%s2 + $0x20] sm:$0xff]
  %v842 = vld [vmem:[%s2 + $0x28] sm:$0xff]
  %v843 = vld [vmem:[%s2 + $0x30] sm:$0xff]
  %v844 = vld [vmem:[%s2 + $0x38] sm:$0xff]
  %v845 = vld [vmem:[%s2 + $0x40] sm:$0xff]
  %v846 = vld [vmem:[%s2 + $0x48] sm:$0xff]
  %v847 = vld [vmem:[%s2 + $0x50] sm:$0xff]
  %v848 = vld [vmem:[%s2 + $0x58] sm:$0xff]
  %v849 = vld [vmem:[%s2 + $0x60] sm:$0xff]
  %v850 = vld [vmem:[%s2 + $0x68] sm:$0xff]
  %v851 = vld [vmem:[%s2 + $0x70] sm:$0xff]
  %v852 = vld [vmem:[%s2 + $0x78] sm:$0xff]
  %v853 = vld [vmem:[%s2 + $0x80] sm:$0xff]
  %v854 = vld [vmem:[%s2 + $0x88] sm:$0xff]
  %v855 = vld [vmem:[%s2 + $0x90] sm:$0xff]
  %v856 = vld [vmem:[%s2 + $0x98] sm:$0xff]
  %v857 = vld [vmem:[%s2 + $0xa0] sm:$0xff]
  %v858 = vld [vmem:[%s2 + $0xa8] sm:$0xff]
  %v859 = vld [vmem:[%s2 + $0xb0] sm:$0xff]
  %v860 = vld [vmem:[%s2 + $0xb8] sm:$0xff]
  %v861 = vld [vmem:[%s2 + $0xc0] sm:$0xff]
  %v862 = vld [vmem:[%s2 + $0xc8] sm:$0xff]
  %v863 = vld [vmem:[%s2 + $0xd0] sm:$0xff]
  %v864 = vld [vmem:[%s2 + $0xd8] sm:$0xff]
  %v865 = vld [vmem:[%s2 + $0xe0] sm:$0xff]
  %v866 = vld [vmem:[%s2 + $0xe8] sm:$0xff]
  %v867 = vld [vmem:[%s2 + $0xf0] sm:$0xff]
  %v868 = vld [vmem:[%s2 + $0xf8] sm:$0xff]
  %v901 = vunpack.c.l.b16 %v837
  %v902 = vunpack.c.h.b16 %v837
  %v903 = vunpack.c.l.b16 %v838
  %v904 = vunpack.c.h.b16 %v838
  %v905 = vunpack.c.l.b16 %v839
  %v906 = vunpack.c.h.b16 %v839
  %v907 = vunpack.c.l.b16 %v840
  %v908 = vunpack.c.h.b16 %v840
  %v909 = vunpack.c.l.b16 %v841
  %v910 = vunpack.c.h.b16 %v841
  %v911 = vunpack.c.l.b16 %v842
  %v912 = vunpack.c.h.b16 %v842
  %v913 = vunpack.c.l.b16 %v843
  %v914 = vunpack.c.h.b16 %v843
  %v915 = vunpack.c.l.b16 %v844
  %v916 = vunpack.c.h.b16 %v844
  %v917 = vunpack.c.l.b16 %v845
  %v918 = vunpack.c.h.b16 %v845
  %v919 = vunpack.c.l.b16 %v846
  %v920 = vunpack.c.h.b16 %v846
  %v921 = vunpack.c.l.b16 %v847
  %v922 = vunpack.c.h.b16 %v847
  %v923 = vunpack.c.l.b16 %v848
  %v924 = vunpack.c.h.b16 %v848
  %v925 = vunpack.c.l.b16 %v849
  %v926 = vunpack.c.h.b16 %v849
  %v927 = vunpack.c.l.b16 %v850
  %v928 = vunpack.c.h.b16 %v850
  %v929 = vunpack.c.l.b16 %v851
  %v930 = vunpack.c.h.b16 %v851
  %v931 = vunpack.c.l.b16 %v852
  %v932 = vunpack.c.h.b16 %v852
  %v933 = vunpack.c.l.b16 %v853
  %v934 = vunpack.c.h.b16 %v853
  %v935 = vunpack.c.l.b16 %v854
  %v936 = vunpack.c.h.b16 %v854
  %v937 = vunpack.c.l.b16 %v855
  %v938 = vunpack.c.h.b16 %v855
  %v939 = vunpack.c.l.b16 %v856
  %v940 = vunpack.c.h.b16 %v856
  %v941 = vunpack.c.l.b16 %v857
  %v942 = vunpack.c.h.b16 %v857
  %v943 = vunpack.c.l.b16 %v858
  %v944 = vunpack.c.h.b16 %v858
  %v945 = vunpack.c.l.b16 %v859
  %v946 = vunpack.c.h.b16 %v859
  %v947 = vunpack.c.l.b16 %v860
  %v948 = vunpack.c.h.b16 %v860
  %v949 = vunpack.c.l.b16 %v861
  %v950 = vunpack.c.h.b16 %v861
  %v951 = vunpack.c.l.b16 %v862
  %v952 = vunpack.c.h.b16 %v862
  %v953 = vunpack.c.l.b16 %v863
  %v954 = vunpack.c.h.b16 %v863
  %v955 = vunpack.c.l.b16 %v864
  %v956 = vunpack.c.h.b16 %v864
  %v957 = vunpack.c.l.b16 %v865
  %v958 = vunpack.c.h.b16 %v865
  %v959 = vunpack.c.l.b16 %v866
  %v960 = vunpack.c.h.b16 %v866
  %v961 = vunpack.c.l.b16 %v867
  %v962 = vunpack.c.h.b16 %v867
  %v963 = vunpack.c.l.b16 %v868
  %v964 = vunpack.c.h.b16 %v868
  %v965 = vpack.c.b16 %v905, %v901
  %v966 = vpack.c.b16 %v906, %v902
  %v967 = vpack.c.b16 %v907, %v903
  %v968 = vpack.c.b16 %v908, %v904
  %v969 = vpack.c.b16 %v913, %v909
  %v970 = vpack.c.b16 %v914, %v910
  %v971 = vpack.c.b16 %v915, %v911
  %v972 = vpack.c.b16 %v916, %v912
  %v973 = vpack.c.b16 %v921, %v917
  %v974 = vpack.c.b16 %v922, %v918
  %v975 = vpack.c.b16 %v923, %v919
  %v976 = vpack.c.b16 %v924, %v920
  %v977 = vpack.c.b16 %v929, %v925
  %v978 = vpack.c.b16 %v930, %v926
  %v979 = vpack.c.b16 %v931, %v927
  %v980 = vpack.c.b16 %v932, %v928
  %v981 = vpack.c.b16 %v937, %v933
  %v982 = vpack.c.b16 %v938, %v934
  %v983 = vpack.c.b16 %v939, %v935
  %v984 = vpack.c.b16 %v940, %v936
  %v985 = vpack.c.b16 %v945, %v941
  %v986 = vpack.c.b16 %v946, %v942
  %v987 = vpack.c.b16 %v947, %v943
  %v988 = vpack.c.b16 %v948, %v944
  %v989 = vpack.c.b16 %v953, %v949
  %v990 = vpack.c.b16 %v954, %v950
  %v991 = vpack.c.b16 %v955, %v951
  %v992 = vpack.c.b16 %v956, %v952
  %v993 = vpack.c.b16 %v961, %v957
  %v994 = vpack.c.b16 %v962, %v958
  %v995 = vpack.c.b16 %v963, %v959
  %v996 = vpack.c.b16 %v964, %v960
  %1029 = vmatprep.subr.bf16.mxu0 %v994
  %1030 = vmatpush1.bf16.msra.mxu0 %v993
  %1031 = vmatprep.subr.bf16.mxu0 %v990
  %1032 = vmatpush1.bf16.msra.mxu0 %v989
  %1033 = vmatprep.subr.bf16.mxu0 %v986
  %1034 = vmatpush1.bf16.msra.mxu0 %v985
  %1035 = vmatprep.subr.bf16.mxu0 %v982
  %1036 = vmatpush1.bf16.msra.mxu0 %v981
  %1037 = vmatprep.subr.bf16.mxu0 %v978
  %1038 = vmatpush1.bf16.msra.mxu0 %v977
  %1039 = vmatprep.subr.bf16.mxu0 %v974
  %1040 = vmatpush1.bf16.msra.mxu0 %v973
  %1041 = vmatprep.subr.bf16.mxu0 %v970
  %1042 = vmatpush1.bf16.msra.mxu0 %v969
  %1043 = vmatprep.subr.bf16.mxu0 %v966
  %1044 = vmatpush1.bf16.msra.mxu0 %v965
  %1045 = vmatprep.subr.bf16.mxu0 0
  %1046 = vmatpush2.bf16.msra.mxu0 0
  %1047 = vmatprep.subr.bf16.mxu0 0
  %1048 = vmatpush2.bf16.msra.mxu0 0
  %1049 = vmatprep.subr.bf16.mxu0 0
  %1050 = vmatpush2.bf16.msra.mxu0 0
  %1051 = vmatprep.subr.bf16.mxu0 0
  %1052 = vmatpush2.bf16.msra.mxu0 0
  %1053 = vmatprep.subr.bf16.mxu0 0
  %1054 = vmatpush2.bf16.msra.mxu0 0
  %1055 = vmatprep.subr.bf16.mxu0 0
  %1056 = vmatpush2.bf16.msra.mxu0 0
  %1057 = vmatprep.subr.bf16.mxu0 0
  %1058 = vmatpush2.bf16.msra.mxu0 0
  %1059 = vmatprep.subr.bf16.mxu0 0
  %1060 = vmatpush2.bf16.msra.mxu0 0
  %1061 = vmatprep.mubr.bf16.mxu0 0
  %1062 = vmatmul.mubr.bf16.gmra.mxu0 0
  %v1063 = vpop.f32.mrf.mxu0
  %v1064 = vadd.f32 0.0, %v1063
  %v1065 = vpop.f32.mrf.mxu0
  %v1066 = vadd.f32 0.0, %v1065
  %v1067 = vpop.f32.mrf.mxu0
  %v1068 = vpop.f32.mrf.mxu0
  %1069 = vdwg.mxu0
  %1070 = vmatprep.subr.bf16.mxu0 %v996
  %1071 = vmatpush1.bf16.msra.mxu0 %v995
  %1072 = vmatprep.subr.bf16.mxu0 %v992
  %1073 = vmatpush1.bf16.msra.mxu0 %v991
  %1074 = vmatprep.subr.bf16.mxu0 %v988
  %1075 = vmatpush1.bf16.msra.mxu0 %v987
  %1076 = vmatprep.subr.bf16.mxu0 %v984
  %1077 = vmatpush1.bf16.msra.mxu0 %v983
  %1078 = vmatprep.subr.bf16.mxu0 %v980
  %1079 = vmatpush1.bf16.msra.mxu0 %v979
  %1080 = vmatprep.subr.bf16.mxu0 %v976
  %1081 = vmatpush1.bf16.msra.mxu0 %v975
  %1082 = vmatprep.subr.bf16.mxu0 %v972
  %1083 = vmatpush1.bf16.msra.mxu0 %v971
  %1084 = vmatprep.subr.bf16.mxu0 %v968
  %1085 = vmatpush1.bf16.msra.mxu0 %v967
  %1086 = vmatprep.subr.bf16.mxu0 0
  %1087 = vmatpush2.bf16.msra.mxu0 0
  %1088 = vmatprep.subr.bf16.mxu0 0
  %1089 = vmatpush2.bf16.msra.mxu0 0
  %1090 = vmatprep.subr.bf16.mxu0 0
  %1091 = vmatpush2.bf16.msra.mxu0 0
  %1092 = vmatprep.subr.bf16.mxu0 0
  %1093 = vmatpush2.bf16.msra.mxu0 0
  %1094 = vmatprep.subr.bf16.mxu0 0
  %1095 = vmatpush2.bf16.msra.mxu0 0
  %1096 = vmatprep.subr.bf16.mxu0 0
  %1097 = vmatpush2.bf16.msra.mxu0 0
  %1098 = vmatprep.subr.bf16.mxu0 0
  %1099 = vmatpush2.bf16.msra.mxu0 0
  %1100 = vmatprep.subr.bf16.mxu0 0
  %1101 = vmatpush2.bf16.msra.mxu0 0
  %1102 = vmatprep.mubr.bf16.mxu0 0
  %1103 = vmatmul.mubr.bf16.gmra.mxu0 0
  %v1104 = vpop.f32.mrf.mxu0
  %v1105 = vadd.f32 0.0, %v1104
  %v1106 = vpop.f32.mrf.mxu0
  %v1107 = vadd.f32 0.0, %v1106
  %v1108 = vpop.f32.mrf.mxu0
  %v1109 = vpop.f32.mrf.mxu0
  %1110 = vdwg.mxu0
  %v1111 = vadd.f32 %v833, %v1064
  %v1112 = vadd.f32 %v834, %v1066
  %v1113 = vadd.f32 %v835, %v1105
  %v1114 = vadd.f32 %v836, %v1107
  %s1115 = smul.u32 7, 8
  %s1116 = smul.addr %s1115, 8
  %s1117 = scalar_lea.vmem [#allocation2], %s1116
  %v1118 = vld [vmem:[%s1117 + $0x20] sm:$0xff]
  %v1119 = vld [vmem:[%s1117 + $0x28] sm:$0xff]
  %v1120 = vld [vmem:[%s1117 + $0x30] sm:$0xff]
  %v1121 = vld [vmem:[%s1117 + $0x38] sm:$0xff]
  %v1122 = vld [vmem:[%s3] sm:$0xff]
  %v1123 = vld [vmem:[%s3 + $0x8] sm:$0xff]
  %v1124 = vld [vmem:[%s3 + $0x10] sm:$0xff]
  %v1125 = vld [vmem:[%s3 + $0x18] sm:$0xff]
  %v1126 = vld [vmem:[%s3 + $0x20] sm:$0xff]
  %v1127 = vld [vmem:[%s3 + $0x28] sm:$0xff]
  %v1128 = vld [vmem:[%s3 + $0x30] sm:$0xff]
  %v1129 = vld [vmem:[%s3 + $0x38] sm:$0xff]
  %v1130 = vld [vmem:[%s3 + $0x40] sm:$0xff]
  %v1131 = vld [vmem:[%s3 + $0x48] sm:$0xff]
  %v1132 = vld [vmem:[%s3 + $0x50] sm:$0xff]
  %v1133 = vld [vmem:[%s3 + $0x58] sm:$0xff]
  %v1134 = vld [vmem:[%s3 + $0x60] sm:$0xff]
  %v1135 = vld [vmem:[%s3 + $0x68] sm:$0xff]
  %v1136 = vld [vmem:[%s3 + $0x70] sm:$0xff]
  %v1137 = vld [vmem:[%s3 + $0x78] sm:$0xff]
  %v1138 = vld [vmem:[%s3 + $0x80] sm:$0xff]
  %v1139 = vld [vmem:[%s3 + $0x88] sm:$0xff]
  %v1140 = vld [vmem:[%s3 + $0x90] sm:$0xff]
  %v1141 = vld [vmem:[%s3 + $0x98] sm:$0xff]
  %v1142 = vld [vmem:[%s3 + $0xa0] sm:$0xff]
  %v1143 = vld [vmem:[%s3 + $0xa8] sm:$0xff]
  %v1144 = vld [vmem:[%s3 + $0xb0] sm:$0xff]
  %v1145 = vld [vmem:[%s3 + $0xb8] sm:$0xff]
  %v1146 = vld [vmem:[%s3 + $0xc0] sm:$0xff]
  %v1147 = vld [vmem:[%s3 + $0xc8] sm:$0xff]
  %v1148 = vld [vmem:[%s3 + $0xd0] sm:$0xff]
  %v1149 = vld [vmem:[%s3 + $0xd8] sm:$0xff]
  %v1150 = vld [vmem:[%s3 + $0xe0] sm:$0xff]
  %v1151 = vld [vmem:[%s3 + $0xe8] sm:$0xff]
  %v1152 = vld [vmem:[%s3 + $0xf0] sm:$0xff]
  %v1153 = vld [vmem:[%s3 + $0xf8] sm:$0xff]
  %v1186 = vunpack.c.l.b16 %v1122
  %v1187 = vunpack.c.h.b16 %v1122
  %v1188 = vunpack.c.l.b16 %v1123
  %v1189 = vunpack.c.h.b16 %v1123
  %v1190 = vunpack.c.l.b16 %v1124
  %v1191 = vunpack.c.h.b16 %v1124
  %v1192 = vunpack.c.l.b16 %v1125
  %v1193 = vunpack.c.h.b16 %v1125
  %v1194 = vunpack.c.l.b16 %v1126
  %v1195 = vunpack.c.h.b16 %v1126
  %v1196 = vunpack.c.l.b16 %v1127
  %v1197 = vunpack.c.h.b16 %v1127
  %v1198 = vunpack.c.l.b16 %v1128
  %v1199 = vunpack.c.h.b16 %v1128
  %v1200 = vunpack.c.l.b16 %v1129
  %v1201 = vunpack.c.h.b16 %v1129
  %v1202 = vunpack.c.l.b16 %v1130
  %v1203 = vunpack.c.h.b16 %v1130
  %v1204 = vunpack.c.l.b16 %v1131
  %v1205 = vunpack.c.h.b16 %v1131
  %v1206 = vunpack.c.l.b16 %v1132
  %v1207 = vunpack.c.h.b16 %v1132
  %v1208 = vunpack.c.l.b16 %v1133
  %v1209 = vunpack.c.h.b16 %v1133
  %v1210 = vunpack.c.l.b16 %v1134
  %v1211 = vunpack.c.h.b16 %v1134
  %v1212 = vunpack.c.l.b16 %v1135
  %v1213 = vunpack.c.h.b16 %v1135
  %v1214 = vunpack.c.l.b16 %v1136
  %v1215 = vunpack.c.h.b16 %v1136
  %v1216 = vunpack.c.l.b16 %v1137
  %v1217 = vunpack.c.h.b16 %v1137
  %v1218 = vunpack.c.l.b16 %v1138
  %v1219 = vunpack.c.h.b16 %v1138
  %v1220 = vunpack.c.l.b16 %v1139
  %v1221 = vunpack.c.h.b16 %v1139
  %v1222 = vunpack.c.l.b16 %v1140
  %v1223 = vunpack.c.h.b16 %v1140
  %v1224 = vunpack.c.l.b16 %v1141
  %v1225 = vunpack.c.h.b16 %v1141
  %v1226 = vunpack.c.l.b16 %v1142
  %v1227 = vunpack.c.h.b16 %v1142
  %v1228 = vunpack.c.l.b16 %v1143
  %v1229 = vunpack.c.h.b16 %v1143
  %v1230 = vunpack.c.l.b16 %v1144
  %v1231 = vunpack.c.h.b16 %v1144
  %v1232 = vunpack.c.l.b16 %v1145
  %v1233 = vunpack.c.h.b16 %v1145
  %v1234 = vunpack.c.l.b16 %v1146
  %v1235 = vunpack.c.h.b16 %v1146
  %v1236 = vunpack.c.l.b16 %v1147
  %v1237 = vunpack.c.h.b16 %v1147
  %v1238 = vunpack.c.l.b16 %v1148
  %v1239 = vunpack.c.h.b16 %v1148
  %v1240 = vunpack.c.l.b16 %v1149
  %v1241 = vunpack.c.h.b16 %v1149
  %v1242 = vunpack.c.l.b16 %v1150
  %v1243 = vunpack.c.h.b16 %v1150
  %v1244 = vunpack.c.l.b16 %v1151
  %v1245 = vunpack.c.h.b16 %v1151
  %v1246 = vunpack.c.l.b16 %v1152
  %v1247 = vunpack.c.h.b16 %v1152
  %v1248 = vunpack.c.l.b16 %v1153
  %v1249 = vunpack.c.h.b16 %v1153
  %v1250 = vpack.c.b16 %v1190, %v1186
  %v1251 = vpack.c.b16 %v1191, %v1187
  %v1252 = vpack.c.b16 %v1192, %v1188
  %v1253 = vpack.c.b16 %v1193, %v1189
  %v1254 = vpack.c.b16 %v1198, %v1194
  %v1255 = vpack.c.b16 %v1199, %v1195
  %v1256 = vpack.c.b16 %v1200, %v1196
  %v1257 = vpack.c.b16 %v1201, %v1197
  %v1258 = vpack.c.b16 %v1206, %v1202
  %v1259 = vpack.c.b16 %v1207, %v1203
  %v1260 = vpack.c.b16 %v1208, %v1204
  %v1261 = vpack.c.b16 %v1209, %v1205
  %v1262 = vpack.c.b16 %v1214, %v1210
  %v1263 = vpack.c.b16 %v1215, %v1211
  %v1264 = vpack.c.b16 %v1216, %v1212
  %v1265 = vpack.c.b16 %v1217, %v1213
  %v1266 = vpack.c.b16 %v1222, %v1218
  %v1267 = vpack.c.b16 %v1223, %v1219
  %v1268 = vpack.c.b16 %v1224, %v1220
  %v1269 = vpack.c.b16 %v1225, %v1221
  %v1270 = vpack.c.b16 %v1230, %v1226
  %v1271 = vpack.c.b16 %v1231, %v1227
  %v1272 = vpack.c.b16 %v1232, %v1228
  %v1273 = vpack.c.b16 %v1233, %v1229
  %v1274 = vpack.c.b16 %v1238, %v1234
  %v1275 = vpack.c.b16 %v1239, %v1235
  %v1276 = vpack.c.b16 %v1240, %v1236
  %v1277 = vpack.c.b16 %v1241, %v1237
  %v1278 = vpack.c.b16 %v1246, %v1242
  %v1279 = vpack.c.b16 %v1247, %v1243
  %v1280 = vpack.c.b16 %v1248, %v1244
  %v1281 = vpack.c.b16 %v1249, %v1245
  %1314 = vmatprep.subr.bf16.mxu0 %v1279
  %1315 = vmatpush1.bf16.msra.mxu0 %v1278
  %1316 = vmatprep.subr.bf16.mxu0 %v1275
  %1317 = vmatpush1.bf16.msra.mxu0 %v1274
  %1318 = vmatprep.subr.bf16.mxu0 %v1271
  %1319 = vmatpush1.bf16.msra.mxu0 %v1270
  %1320 = vmatprep.subr.bf16.mxu0 %v1267
  %1321 = vmatpush1.bf16.msra.mxu0 %v1266
  %1322 = vmatprep.subr.bf16.mxu0 %v1263
  %1323 = vmatpush1.bf16.msra.mxu0 %v1262
  %1324 = vmatprep.subr.bf16.mxu0 %v1259
  %1325 = vmatpush1.bf16.msra.mxu0 %v1258
  %1326 = vmatprep.subr.bf16.mxu0 %v1255
  %1327 = vmatpush1.bf16.msra.mxu0 %v1254
  %1328 = vmatprep.subr.bf16.mxu0 %v1251
  %1329 = vmatpush1.bf16.msra.mxu0 %v1250
  %1330 = vmatprep.subr.bf16.mxu0 0
  %1331 = vmatpush2.bf16.msra.mxu0 0
  %1332 = vmatprep.subr.bf16.mxu0 0
  %1333 = vmatpush2.bf16.msra.mxu0 0
  %1334 = vmatprep.subr.bf16.mxu0 0
  %1335 = vmatpush2.bf16.msra.mxu0 0
  %1336 = vmatprep.subr.bf16.mxu0 0
  %1337 = vmatpush2.bf16.msra.mxu0 0
  %1338 = vmatprep.subr.bf16.mxu0 0
  %1339 = vmatpush2.bf16.msra.mxu0 0
  %1340 = vmatprep.subr.bf16.mxu0 0
  %1341 = vmatpush2.bf16.msra.mxu0 0
  %1342 = vmatprep.subr.bf16.mxu0 0
  %1343 = vmatpush2.bf16.msra.mxu0 0
  %1344 = vmatprep.subr.bf16.mxu0 0
  %1345 = vmatpush2.bf16.msra.mxu0 0
  %1346 = vmatprep.mubr.bf16.mxu0 0
  %1347 = vmatmul.mubr.bf16.gmra.mxu0 0
  %v1348 = vpop.f32.mrf.mxu0
  %v1349 = vadd.f32 0.0, %v1348
  %v1350 = vpop.f32.mrf.mxu0
  %v1351 = vadd.f32 0.0, %v1350
  %v1352 = vpop.f32.mrf.mxu0
  %v1353 = vpop.f32.mrf.mxu0
  %1354 = vdwg.mxu0
  %1355 = vmatprep.subr.bf16.mxu0 %v1281
  %1356 = vmatpush1.bf16.msra.mxu0 %v1280
  %1357 = vmatprep.subr.bf16.mxu0 %v1277
  %1358 = vmatpush1.bf16.msra.mxu0 %v1276
  %1359 = vmatprep.subr.bf16.mxu0 %v1273
  %1360 = vmatpush1.bf16.msra.mxu0 %v1272
  %1361 = vmatprep.subr.bf16.mxu0 %v1269
  %1362 = vmatpush1.bf16.msra.mxu0 %v1268
  %1363 = vmatprep.subr.bf16.mxu0 %v1265
  %1364 = vmatpush1.bf16.msra.mxu0 %v1264
  %1365 = vmatprep.subr.bf16.mxu0 %v1261
  %1366 = vmatpush1.bf16.msra.mxu0 %v1260
  %1367 = vmatprep.subr.bf16.mxu0 %v1257
  %1368 = vmatpush1.bf16.msra.mxu0 %v1256
  %1369 = vmatprep.subr.bf16.mxu0 %v1253
  %1370 = vmatpush1.bf16.msra.mxu0 %v1252
  %1371 = vmatprep.subr.bf16.mxu0 0
  %1372 = vmatpush2.bf16.msra.mxu0 0
  %1373 = vmatprep.subr.bf16.mxu0 0
  %1374 = vmatpush2.bf16.msra.mxu0 0
  %1375 = vmatprep.subr.bf16.mxu0 0
  %1376 = vmatpush2.bf16.msra.mxu0 0
  %1377 = vmatprep.subr.bf16.mxu0 0
  %1378 = vmatpush2.bf16.msra.mxu0 0
  %1379 = vmatprep.subr.bf16.mxu0 0
  %1380 = vmatpush2.bf16.msra.mxu0 0
  %1381 = vmatprep.subr.bf16.mxu0 0
  %1382 = vmatpush2.bf16.msra.mxu0 0
  %1383 = vmatprep.subr.bf16.mxu0 0
  %1384 = vmatpush2.bf16.msra.mxu0 0
  %1385 = vmatprep.subr.bf16.mxu0 0
  %1386 = vmatpush2.bf16.msra.mxu0 0
  %1387 = vmatprep.mubr.bf16.mxu0 0
  %1388 = vmatmul.mubr.bf16.gmra.mxu0 0
  %v1389 = vpop.f32.mrf.mxu0
  %v1390 = vadd.f32 0.0, %v1389
  %v1391 = vpop.f32.mrf.mxu0
  %v1392 = vadd.f32 0.0, %v1391
  %v1393 = vpop.f32.mrf.mxu0
  %v1394 = vpop.f32.mrf.mxu0
  %1395 = vdwg.mxu0
  %v1396 = vadd.f32 %v1118, %v1349
  %v1397 = vadd.f32 %v1119, %v1351
  %v1398 = vadd.f32 %v1120, %v1390
  %v1399 = vadd.f32 %v1121, %v1392
  %v1400 = vxor.u32 %v1111, 2147483648
  %v1401 = vxor.u32 %v1112, 2147483648
  %v1402 = vxor.u32 %v1113, 2147483648
  %v1403 = vmul.f32 %v1400, 1.442695
  %v1404 = vpow.pop %v1403
  %v1405 = vmul.f32 %v1401, 1.442695
  %v1406 = vpow.pop %v1405
  %v1407 = vmul.f32 %v1402, 1.442695
  %v1408 = vpow.pop %v1407
  %v1409 = vadd.f32 %v1404, 1.0
  %v1410 = vadd.f32 %v1406, 1.0
  %v1411 = vadd.f32 %v1408, 1.0
  %v1412 = vrcp.pop %v1409
  %v1413 = vmul.f32 1.0, %v1412
  %v1414 = vrcp.pop %v1410
  %v1415 = vmul.f32 1.0, %v1414
  %v1416 = vrcp.pop %v1411
  %v1417 = vmul.f32 1.0, %v1416
  %v1418 = vtanh.pop %v1114
  %v1419 = vmul.f32 %v1415, 0.0
  %v1420 = vmul.f32 %v1413, %v1418
  %v1421 = vadd.f32 %v1419, %v1420
  %v1422 = vtanh.pop %v1421
  %v1423 = vmul.f32 %v1417, %v1422
  %v1424 = vxor.u32 %v1396, 2147483648
  %v1425 = vxor.u32 %v1397, 2147483648
  %v1426 = vxor.u32 %v1398, 2147483648
  %v1427 = vmul.f32 %v1424, 1.442695
  %v1428 = vpow.pop %v1427
  %v1429 = vmul.f32 %v1425, 1.442695
  %v1430 = vpow.pop %v1429
  %v1431 = vmul.f32 %v1426, 1.442695
  %v1432 = vpow.pop %v1431
  %v1433 = vadd.f32 %v1428, 1.0
  %v1434 = vadd.f32 %v1430, 1.0
  %v1435 = vadd.f32 %v1432, 1.0
  %v1436 = vrcp.pop %v1433
  %v1437 = vmul.f32 1.0, %v1436
  %v1438 = vrcp.pop %v1434
  %v1439 = vmul.f32 1.0, %v1438
  %v1440 = vrcp.pop %v1435
  %v1441 = vmul.f32 1.0, %v1440
  %v1442 = vtanh.pop %v1399
  %v1443 = vmul.f32 %v1439, 0.0
  %v1444 = vmul.f32 %v1437, %v1442
  %v1445 = vadd.f32 %v1443, %v1444
  %v1446 = vtanh.pop %v1445
  %v1447 = vmul.f32 %v1441, %v1446
  %s1448 = smul.u32 0, 2
  %s1449 = smul.addr %s1448, 8
  %s1450 = scalar_lea.vmem [#allocation3], %s1449
  %1451 = vst [vmem:[%s1450] sm:$0xff] %v1423
  %s1452 = smul.u32 7, 2
  %s1453 = smul.addr %s1452, 8
  %s1454 = scalar_lea.vmem [#allocation3], %s1453
  %1455 = vst [vmem:[%s1454 + $0x8] sm:$0xff] %v1447
  %s1456 = smul.u32 1, 8
  %s1457 = smul.addr %s1456, 8
  %s1458 = scalar_lea.vmem [#allocation2], %s1457
  %v1459 = vld [vmem:[%s1458] sm:$0xff]
  %v1460 = vld [vmem:[%s1458 + $0x8] sm:$0xff]
  %v1461 = vld [vmem:[%s1458 + $0x10] sm:$0xff]
  %v1462 = vld [vmem:[%s1458 + $0x18] sm:$0xff]
  %v1463 = vpack.c.bf16 %v1423, %v1423
  %v1464 = vld [vmem:[%s2] sm:$0xff]
  %v1465 = vld [vmem:[%s2 + $0x8] sm:$0xff]
  %v1466 = vld [vmem:[%s2 + $0x10] sm:$0xff]
  %v1467 = vld [vmem:[%s2 + $0x18] sm:$0xff]
  %v1468 = vld [vmem:[%s2 + $0x20] sm:$0xff]
  %v1469 = vld [vmem:[%s2 + $0x28] sm:$0xff]
  %v1470 = vld [vmem:[%s2 + $0x30] sm:$0xff]
  %v1471 = vld [vmem:[%s2 + $0x38] sm:$0xff]
  %v1472 = vld [vmem:[%s2 + $0x40] sm:$0xff]
  %v1473 = vld [vmem:[%s2 + $0x48] sm:$0xff]
  %v1474 = vld [vmem:[%s2 + $0x50] sm:$0xff]
  %v1475 = vld [vmem:[%s2 + $0x58] sm:$0xff]
  %v1476 = vld [vmem:[%s2 + $0x60] sm:$0xff]
  %v1477 = vld [vmem:[%s2 + $0x68] sm:$0xff]
  %v1478 = vld [vmem:[%s2 + $0x70] sm:$0xff]
  %v1479 = vld [vmem:[%s2 + $0x78] sm:$0xff]
  %v1480 = vld [vmem:[%s2 + $0x80] sm:$0xff]
  %v1481 = vld [vmem:[%s2 + $0x88] sm:$0xff]
  %v1482 = vld [vmem:[%s2 + $0x90] sm:$0xff]
  %v1483 = vld [vmem:[%s2 + $0x98] sm:$0xff]
  %v1484 = vld [vmem:[%s2 + $0xa0] sm:$0xff]
  %v1485 = vld [vmem:[%s2 + $0xa8] sm:$0xff]
  %v1486 = vld [vmem:[%s2 + $0xb0] sm:$0xff]
  %v1487 = vld [vmem:[%s2 + $0xb8] sm:$0xff]
  %v1488 = vld [vmem:[%s2 + $0xc0] sm:$0xff]
  %v1489 = vld [vmem:[%s2 + $0xc8] sm:$0xff]
  %v1490 = vld [vmem:[%s2 + $0xd0] sm:$0xff]
  %v1491 = vld [vmem:[%s2 + $0xd8] sm:$0xff]
  %v1492 = vld [vmem:[%s2 + $0xe0] sm:$0xff]
  %v1493 = vld [vmem:[%s2 + $0xe8] sm:$0xff]
  %v1494 = vld [vmem:[%s2 + $0xf0] sm:$0xff]
  %v1495 = vld [vmem:[%s2 + $0xf8] sm:$0xff]
  %v1528 = vunpack.c.l.b16 %v1464
  %v1529 = vunpack.c.h.b16 %v1464
  %v1530 = vunpack.c.l.b16 %v1465
  %v1531 = vunpack.c.h.b16 %v1465
  %v1532 = vunpack.c.l.b16 %v1466
  %v1533 = vunpack.c.h.b16 %v1466
  %v1534 = vunpack.c.l.b16 %v1467
  %v1535 = vunpack.c.h.b16 %v1467
  %v1536 = vunpack.c.l.b16 %v1468
  %v1537 = vunpack.c.h.b16 %v1468
  %v1538 = vunpack.c.l.b16 %v1469
  %v1539 = vunpack.c.h.b16 %v1469
  %v1540 = vunpack.c.l.b16 %v1470
  %v1541 = vunpack.c.h.b16 %v1470
  %v1542 = vunpack.c.l.b16 %v1471
  %v1543 = vunpack.c.h.b16 %v1471
  %v1544 = vunpack.c.l.b16 %v1472
  %v1545 = vunpack.c.h.b16 %v1472
  %v1546 = vunpack.c.l.b16 %v1473
  %v1547 = vunpack.c.h.b16 %v1473
  %v1548 = vunpack.c.l.b16 %v1474
  %v1549 = vunpack.c.h.b16 %v1474
  %v1550 = vunpack.c.l.b16 %v1475
  %v1551 = vunpack.c.h.b16 %v1475
  %v1552 = vunpack.c.l.b16 %v1476
  %v1553 = vunpack.c.h.b16 %v1476
  %v1554 = vunpack.c.l.b16 %v1477
  %v1555 = vunpack.c.h.b16 %v1477
  %v1556 = vunpack.c.l.b16 %v1478
  %v1557 = vunpack.c.h.b16 %v1478
  %v1558 = vunpack.c.l.b16 %v1479
  %v1559 = vunpack.c.h.b16 %v1479
  %v1560 = vunpack.c.l.b16 %v1480
  %v1561 = vunpack.c.h.b16 %v1480
  %v1562 = vunpack.c.l.b16 %v1481
  %v1563 = vunpack.c.h.b16 %v1481
  %v1564 = vunpack.c.l.b16 %v1482
  %v1565 = vunpack.c.h.b16 %v1482
  %v1566 = vunpack.c.l.b16 %v1483
  %v1567 = vunpack.c.h.b16 %v1483
  %v1568 = vunpack.c.l.b16 %v1484
  %v1569 = vunpack.c.h.b16 %v1484
  %v1570 = vunpack.c.l.b16 %v1485
  %v1571 = vunpack.c.h.b16 %v1485
  %v1572 = vunpack.c.l.b16 %v1486
  %v1573 = vunpack.c.h.b16 %v1486
  %v1574 = vunpack.c.l.b16 %v1487
  %v1575 = vunpack.c.h.b16 %v1487
  %v1576 = vunpack.c.l.b16 %v1488
  %v1577 = vunpack.c.h.b16 %v1488
  %v1578 = vunpack.c.l.b16 %v1489
  %v1579 = vunpack.c.h.b16 %v1489
  %v1580 = vunpack.c.l.b16 %v1490
  %v1581 = vunpack.c.h.b16 %v1490
  %v1582 = vunpack.c.l.b16 %v1491
  %v1583 = vunpack.c.h.b16 %v1491
  %v1584 = vunpack.c.l.b16 %v1492
  %v1585 = vunpack.c.h.b16 %v1492
  %v1586 = vunpack.c.l.b16 %v1493
  %v1587 = vunpack.c.h.b16 %v1493
  %v1588 = vunpack.c.l.b16 %v1494
  %v1589 = vunpack.c.h.b16 %v1494
  %v1590 = vunpack.c.l.b16 %v1495
  %v1591 = vunpack.c.h.b16 %v1495
  %v1592 = vpack.c.b16 %v1532, %v1528
  %v1593 = vpack.c.b16 %v1533, %v1529
  %v1594 = vpack.c.b16 %v1534, %v1530
  %v1595 = vpack.c.b16 %v1535, %v1531
  %v1596 = vpack.c.b16 %v1540, %v1536
  %v1597 = vpack.c.b16 %v1541, %v1537
  %v1598 = vpack.c.b16 %v1542, %v1538
  %v1599 = vpack.c.b16 %v1543, %v1539
  %v1600 = vpack.c.b16 %v1548, %v1544
  %v1601 = vpack.c.b16 %v1549, %v1545
  %v1602 = vpack.c.b16 %v1550, %v1546
  %v1603 = vpack.c.b16 %v1551, %v1547
  %v1604 = vpack.c.b16 %v1556, %v1552
  %v1605 = vpack.c.b16 %v1557, %v1553
  %v1606 = vpack.c.b16 %v1558, %v1554
  %v1607 = vpack.c.b16 %v1559, %v1555
  %v1608 = vpack.c.b16 %v1564, %v1560
  %v1609 = vpack.c.b16 %v1565, %v1561
  %v1610 = vpack.c.b16 %v1566, %v1562
  %v1611 = vpack.c.b16 %v1567, %v1563
  %v1612 = vpack.c.b16 %v1572, %v1568
  %v1613 = vpack.c.b16 %v1573, %v1569
  %v1614 = vpack.c.b16 %v1574, %v1570
  %v1615 = vpack.c.b16 %v1575, %v1571
  %v1616 = vpack.c.b16 %v1580, %v1576
  %v1617 = vpack.c.b16 %v1581, %v1577
  %v1618 = vpack.c.b16 %v1582, %v1578
  %v1619 = vpack.c.b16 %v1583, %v1579
  %v1620 = vpack.c.b16 %v1588, %v1584
  %v1621 = vpack.c.b16 %v1589, %v1585
  %v1622 = vpack.c.b16 %v1590, %v1586
  %v1623 = vpack.c.b16 %v1591, %v1587
  %1656 = vmatprep.subr.bf16.mxu0 %v1621
  %1657 = vmatpush1.bf16.msra.mxu0 %v1620
  %1658 = vmatprep.subr.bf16.mxu0 %v1617
  %1659 = vmatpush1.bf16.msra.mxu0 %v1616
  %1660 = vmatprep.subr.bf16.mxu0 %v1613
  %1661 = vmatpush1.bf16.msra.mxu0 %v1612
  %1662 = vmatprep.subr.bf16.mxu0 %v1609
  %1663 = vmatpush1.bf16.msra.mxu0 %v1608
  %1664 = vmatprep.subr.bf16.mxu0 %v1605
  %1665 = vmatpush1.bf16.msra.mxu0 %v1604
  %1666 = vmatprep.subr.bf16.mxu0 %v1601
  %1667 = vmatpush1.bf16.msra.mxu0 %v1600
  %1668 = vmatprep.subr.bf16.mxu0 %v1597
  %1669 = vmatpush1.bf16.msra.mxu0 %v1596
  %1670 = vmatprep.subr.bf16.mxu0 %v1593
  %1671 = vmatpush1.bf16.msra.mxu0 %v1592
  %1672 = vmatprep.subr.bf16.mxu0 0
  %1673 = vmatpush2.bf16.msra.mxu0 0
  %1674 = vmatprep.subr.bf16.mxu0 0
  %1675 = vmatpush2.bf16.msra.mxu0 0
  %1676 = vmatprep.subr.bf16.mxu0 0
  %1677 = vmatpush2.bf16.msra.mxu0 0
  %1678 = vmatprep.subr.bf16.mxu0 0
  %1679 = vmatpush2.bf16.msra.mxu0 0
  %1680 = vmatprep.subr.bf16.mxu0 0
  %1681 = vmatpush2.bf16.msra.mxu0 0
  %1682 = vmatprep.subr.bf16.mxu0 0
  %1683 = vmatpush2.bf16.msra.mxu0 0
  %1684 = vmatprep.subr.bf16.mxu0 0
  %1685 = vmatpush2.bf16.msra.mxu0 0
  %1686 = vmatprep.subr.bf16.mxu0 0
  %1687 = vmatpush2.bf16.msra.mxu0 0
  %1688 = vmatprep.mubr.bf16.mxu0 0
  %1689 = vmatmul.mubr.bf16.gmra.mxu0 %v1463
  %v1690 = vpop.f32.mrf.mxu0
  %v1691 = vadd.f32 0.0, %v1690
  %v1692 = vpop.f32.mrf.mxu0
  %v1693 = vadd.f32 0.0, %v1692
  %v1694 = vpop.f32.mrf.mxu0
  %v1695 = vpop.f32.mrf.mxu0
  %1696 = vdwg.mxu0
  %1697 = vmatprep.subr.bf16.mxu0 %v1623
  %1698 = vmatpush1.bf16.msra.mxu0 %v1622
  %1699 = vmatprep.subr.bf16.mxu0 %v1619
  %1700 = vmatpush1.bf16.msra.mxu0 %v1618
  %1701 = vmatprep.subr.bf16.mxu0 %v1615
  %1702 = vmatpush1.bf16.msra.mxu0 %v1614
  %1703 = vmatprep.subr.bf16.mxu0 %v1611
  %1704 = vmatpush1.bf16.msra.mxu0 %v1610
  %1705 = vmatprep.subr.bf16.mxu0 %v1607
  %1706 = vmatpush1.bf16.msra.mxu0 %v1606
  %1707 = vmatprep.subr.bf16.mxu0 %v1603
  %1708 = vmatpush1.bf16.msra.mxu0 %v1602
  %1709 = vmatprep.subr.bf16.mxu0 %v1599
  %1710 = vmatpush1.bf16.msra.mxu0 %v1598
  %1711 = vmatprep.subr.bf16.mxu0 %v1595
  %1712 = vmatpush1.bf16.msra.mxu0 %v1594
  %1713 = vmatprep.subr.bf16.mxu0 0
  %1714 = vmatpush2.bf16.msra.mxu0 0
  %1715 = vmatprep.subr.bf16.mxu0 0
  %1716 = vmatpush2.bf16.msra.mxu0 0
  %1717 = vmatprep.subr.bf16.mxu0 0
  %1718 = vmatpush2.bf16.msra.mxu0 0
  %1719 = vmatprep.subr.bf16.mxu0 0
  %1720 = vmatpush2.bf16.msra.mxu0 0
  %1721 = vmatprep.subr.bf16.mxu0 0
  %1722 = vmatpush2.bf16.msra.mxu0 0
  %1723 = vmatprep.subr.bf16.mxu0 0
  %1724 = vmatpush2.bf16.msra.mxu0 0
  %1725 = vmatprep.subr.bf16.mxu0 0
  %1726 = vmatpush2.bf16.msra.mxu0 0
  %1727 = vmatprep.subr.bf16.mxu0 0
  %1728 = vmatpush2.bf16.msra.mxu0 0
  %1729 = vmatprep.mubr.bf16.mxu0 0
  %1730 = vmatmul.mubr.bf16.gmra.mxu0 %v1463
  %v1731 = vpop.f32.mrf.mxu0
  %v1732 = vadd.f32 0.0, %v1731
  %v1733 = vpop.f32.mrf.mxu0
  %v1734 = vadd.f32 0.0, %v1733
  %v1735 = vpop.f32.mrf.mxu0
  %v1736 = vpop.f32.mrf.mxu0
  %1737 = vdwg.mxu0
  %v1738 = vadd.f32 %v1459, %v1691
  %v1739 = vadd.f32 %v1460, %v1693
  %v1740 = vadd.f32 %v1461, %v1732
  %v1741 = vadd.f32 %v1462, %v1734
  %s1742 = smul.u32 6, 8
  %s1743 = smul.addr %s1742, 8
  %s1744 = scalar_lea.vmem [#allocation2], %s1743
  %v1745 = vld [vmem:[%s1744 + $0x20] sm:$0xff]
  %v1746 = vld [vmem:[%s1744 + $0x28] sm:$0xff]
  %v1747 = vld [vmem:[%s1744 + $0x30] sm:$0xff]
  %v1748 = vld [vmem:[%s1744 + $0x38] sm:$0xff]
  %v1749 = vpack.c.bf16 %v1447, %v1447
  %v1750 = vld [vmem:[%s3] sm:$0xff]
  %v1751 = vld [vmem:[%s3 + $0x8] sm:$0xff]
  %v1752 = vld [vmem:[%s3 + $0x10] sm:$0xff]
  %v1753 = vld [vmem:[%s3 + $0x18] sm:$0xff]
  %v1754 = vld [vmem:[%s3 + $0x20] sm:$0xff]
  %v1755 = vld [vmem:[%s3 + $0x28] sm:$0xff]
  %v1756 = vld [vmem:[%s3 + $0x30] sm:$0xff]
  %v1757 = vld [vmem:[%s3 + $0x38] sm:$0xff]
  %v1758 = vld [vmem:[%s3 + $0x40] sm:$0xff]
  %v1759 = vld [vmem:[%s3 + $0x48] sm:$0xff]
  %v1760 = vld [vmem:[%s3 + $0x50] sm:$0xff]
  %v1761 = vld [vmem:[%s3 + $0x58] sm:$0xff]
  %v1762 = vld [vmem:[%s3 + $0x60] sm:$0xff]
  %v1763 = vld [vmem:[%s3 + $0x68] sm:$0xff]
  %v1764 = vld [vmem:[%s3 + $0x70] sm:$0xff]
  %v1765 = vld [vmem:[%s3 + $0x78] sm:$0xff]
  %v1766 = vld [vmem:[%s3 + $0x80] sm:$0xff]
  %v1767 = vld [vmem:[%s3 + $0x88] sm:$0xff]
  %v1768 = vld [vmem:[%s3 + $0x90] sm:$0xff]
  %v1769 = vld [vmem:[%s3 + $0x98] sm:$0xff]
  %v1770 = vld [vmem:[%s3 + $0xa0] sm:$0xff]
  %v1771 = vld [vmem:[%s3 + $0xa8] sm:$0xff]
  %v1772 = vld [vmem:[%s3 + $0xb0] sm:$0xff]
  %v1773 = vld [vmem:[%s3 + $0xb8] sm:$0xff]
  %v1774 = vld [vmem:[%s3 + $0xc0] sm:$0xff]
  %v1775 = vld [vmem:[%s3 + $0xc8] sm:$0xff]
  %v1776 = vld [vmem:[%s3 + $0xd0] sm:$0xff]
  %v1777 = vld [vmem:[%s3 + $0xd8] sm:$0xff]
  %v1778 = vld [vmem:[%s3 + $0xe0] sm:$0xff]
  %v1779 = vld [vmem:[%s3 + $0xe8] sm:$0xff]
  %v1780 = vld [vmem:[%s3 + $0xf0] sm:$0xff]
  %v1781 = vld [vmem:[%s3 + $0xf8] sm:$0xff]
  %v1814 = vunpack.c.l.b16 %v1750
  %v1815 = vunpack.c.h.b16 %v1750
  %v1816 = vunpack.c.l.b16 %v1751
  %v1817 = vunpack.c.h.b16 %v1751
  %v1818 = vunpack.c.l.b16 %v1752
  %v1819 = vunpack.c.h.b16 %v1752
  %v1820 = vunpack.c.l.b16 %v1753
  %v1821 = vunpack.c.h.b16 %v1753
  %v1822 = vunpack.c.l.b16 %v1754
  %v1823 = vunpack.c.h.b16 %v1754
  %v1824 = vunpack.c.l.b16 %v1755
  %v1825 = vunpack.c.h.b16 %v1755
  %v1826 = vunpack.c.l.b16 %v1756
  %v1827 = vunpack.c.h.b16 %v1756
  %v1828 = vunpack.c.l.b16 %v1757
  %v1829 = vunpack.c.h.b16 %v1757
  %v1830 = vunpack.c.l.b16 %v1758
  %v1831 = vunpack.c.h.b16 %v1758
  %v1832 = vunpack.c.l.b16 %v1759
  %v1833 = vunpack.c.h.b16 %v1759
  %v1834 = vunpack.c.l.b16 %v1760
  %v1835 = vunpack.c.h.b16 %v1760
  %v1836 = vunpack.c.l.b16 %v1761
  %v1837 = vunpack.c.h.b16 %v1761
  %v1838 = vunpack.c.l.b16 %v1762
  %v1839 = vunpack.c.h.b16 %v1762
  %v1840 = vunpack.c.l.b16 %v1763
  %v1841 = vunpack.c.h.b16 %v1763
  %v1842 = vunpack.c.l.b16 %v1764
  %v1843 = vunpack.c.h.b16 %v1764
  %v1844 = vunpack.c.l.b16 %v1765
  %v1845 = vunpack.c.h.b16 %v1765
  %v1846 = vunpack.c.l.b16 %v1766
  %v1847 = vunpack.c.h.b16 %v1766
  %v1848 = vunpack.c.l.b16 %v1767
  %v1849 = vunpack.c.h.b16 %v1767
  %v1850 = vunpack.c.l.b16 %v1768
  %v1851 = vunpack.c.h.b16 %v1768
  %v1852 = vunpack.c.l.b16 %v1769
  %v1853 = vunpack.c.h.b16 %v1769
  %v1854 = vunpack.c.l.b16 %v1770
  %v1855 = vunpack.c.h.b16 %v1770
  %v1856 = vunpack.c.l.b16 %v1771
  %v1857 = vunpack.c.h.b16 %v1771
  %v1858 = vunpack.c.l.b16 %v1772
  %v1859 = vunpack.c.h.b16 %v1772
  %v1860 = vunpack.c.l.b16 %v1773
  %v1861 = vunpack.c.h.b16 %v1773
  %v1862 = vunpack.c.l.b16 %v1774
  %v1863 = vunpack.c.h.b16 %v1774
  %v1864 = vunpack.c.l.b16 %v1775
  %v1865 = vunpack.c.h.b16 %v1775
  %v1866 = vunpack.c.l.b16 %v1776
  %v1867 = vunpack.c.h.b16 %v1776
  %v1868 = vunpack.c.l.b16 %v1777
  %v1869 = vunpack.c.h.b16 %v1777
  %v1870 = vunpack.c.l.b16 %v1778
  %v1871 = vunpack.c.h.b16 %v1778
  %v1872 = vunpack.c.l.b16 %v1779
  %v1873 = vunpack.c.h.b16 %v1779
  %v1874 = vunpack.c.l.b16 %v1780
  %v1875 = vunpack.c.h.b16 %v1780
  %v1876 = vunpack.c.l.b16 %v1781
  %v1877 = vunpack.c.h.b16 %v1781
  %v1878 = vpack.c.b16 %v1818, %v1814
  %v1879 = vpack.c.b16 %v1819, %v1815
  %v1880 = vpack.c.b16 %v1820, %v1816
  %v1881 = vpack.c.b16 %v1821, %v1817
  %v1882 = vpack.c.b16 %v1826, %v1822
  %v1883 = vpack.c.b16 %v1827, %v1823
  %v1884 = vpack.c.b16 %v1828, %v1824
  %v1885 = vpack.c.b16 %v1829, %v1825
  %v1886 = vpack.c.b16 %v1834, %v1830
  %v1887 = vpack.c.b16 %v1835, %v1831
  %v1888 = vpack.c.b16 %v1836, %v1832
  %v1889 = vpack.c.b16 %v1837, %v1833
  %v1890 = vpack.c.b16 %v1842, %v1838
  %v1891 = vpack.c.b16 %v1843, %v1839
  %v1892 = vpack.c.b16 %v1844, %v1840
  %v1893 = vpack.c.b16 %v1845, %v1841
  %v1894 = vpack.c.b16 %v1850, %v1846
  %v1895 = vpack.c.b16 %v1851, %v1847
  %v1896 = vpack.c.b16 %v1852, %v1848
  %v1897 = vpack.c.b16 %v1853, %v1849
  %v1898 = vpack.c.b16 %v1858, %v1854
  %v1899 = vpack.c.b16 %v1859, %v1855
  %v1900 = vpack.c.b16 %v1860, %v1856
  %v1901 = vpack.c.b16 %v1861, %v1857
  %v1902 = vpack.c.b16 %v1866, %v1862
  %v1903 = vpack.c.b16 %v1867, %v1863
  %v1904 = vpack.c.b16 %v1868, %v1864
  %v1905 = vpack.c.b16 %v1869, %v1865
  %v1906 = vpack.c.b16 %v1874, %v1870
  %v1907 = vpack.c.b16 %v1875, %v1871
  %v1908 = vpack.c.b16 %v1876, %v1872
  %v1909 = vpack.c.b16 %v1877, %v1873
  %1942 = vmatprep.subr.bf16.mxu0 %v1907
  %1943 = vmatpush1.bf16.msra.mxu0 %v1906
  %1944 = vmatprep.subr.bf16.mxu0 %v1903
  %1945 = vmatpush1.bf16.msra.mxu0 %v1902
  %1946 = vmatprep.subr.bf16.mxu0 %v1899
  %1947 = vmatpush1.bf16.msra.mxu0 %v1898
  %1948 = vmatprep.subr.bf16.mxu0 %v1895
  %1949 = vmatpush1.bf16.msra.mxu0 %v1894
  %1950 = vmatprep.subr.bf16.mxu0 %v1891
  %1951 = vmatpush1.bf16.msra.mxu0 %v1890
  %1952 = vmatprep.subr.bf16.mxu0 %v1887
  %1953 = vmatpush1.bf16.msra.mxu0 %v1886
  %1954 = vmatprep.subr.bf16.mxu0 %v1883
  %1955 = vmatpush1.bf16.msra.mxu0 %v1882
  %1956 = vmatprep.subr.bf16.mxu0 %v1879
  %1957 = vmatpush1.bf16.msra.mxu0 %v1878
  %1958 = vmatprep.subr.bf16.mxu0 0
  %1959 = vmatpush2.bf16.msra.mxu0 0
  %1960 = vmatprep.subr.bf16.mxu0 0
  %1961 = vmatpush2.bf16.msra.mxu0 0
  %1962 = vmatprep.subr.bf16.mxu0 0
  %1963 = vmatpush2.bf16.msra.mxu0 0
  %1964 = vmatprep.subr.bf16.mxu0 0
  %1965 = vmatpush2.bf16.msra.mxu0 0
  %1966 = vmatprep.subr.bf16.mxu0 0
  %1967 = vmatpush2.bf16.msra.mxu0 0
  %1968 = vmatprep.subr.bf16.mxu0 0
  %1969 = vmatpush2.bf16.msra.mxu0 0
  %1970 = vmatprep.subr.bf16.mxu0 0
  %1971 = vmatpush2.bf16.msra.mxu0 0
  %1972 = vmatprep.subr.bf16.mxu0 0
  %1973 = vmatpush2.bf16.msra.mxu0 0
  %1974 = vmatprep.mubr.bf16.mxu0 0
  %1975 = vmatmul.mubr.bf16.gmra.mxu0 %v1749
  %v1976 = vpop.f32.mrf.mxu0
  %v1977 = vadd.f32 0.0, %v1976
  %v1978 = vpop.f32.mrf.mxu0
  %v1979 = vadd.f32 0.0, %v1978
  %v1980 = vpop.f32.mrf.mxu0
  %v1981 = vpop.f32.mrf.mxu0
  %1982 = vdwg.mxu0
  %1983 = vmatprep.subr.bf16.mxu0 %v1909
  %1984 = vmatpush1.bf16.msra.mxu0 %v1908
  %1985 = vmatprep.subr.bf16.mxu0 %v1905
  %1986 = vmatpush1.bf16.msra.mxu0 %v1904
  %1987 = vmatprep.subr.bf16.mxu0 %v1901
  %1988 = vmatpush1.bf16.msra.mxu0 %v1900
  %1989 = vmatprep.subr.bf16.mxu0 %v1897
  %1990 = vmatpush1.bf16.msra.mxu0 %v1896
  %1991 = vmatprep.subr.bf16.mxu0 %v1893
  %1992 = vmatpush1.bf16.msra.mxu0 %v1892
  %1993 = vmatprep.subr.bf16.mxu0 %v1889
  %1994 = vmatpush1.bf16.msra.mxu0 %v1888
  %1995 = vmatprep.subr.bf16.mxu0 %v1885
  %1996 = vmatpush1.bf16.msra.mxu0 %v1884
  %1997 = vmatprep.subr.bf16.mxu0 %v1881
  %1998 = vmatpush1.bf16.msra.mxu0 %v1880
  %1999 = vmatprep.subr.bf16.mxu0 0
  %2000 = vmatpush2.bf16.msra.mxu0 0
  %2001 = vmatprep.subr.bf16.mxu0 0
  %2002 = vmatpush2.bf16.msra.mxu0 0
  %2003 = vmatprep.subr.bf16.mxu0 0
  %2004 = vmatpush2.bf16.msra.mxu0 0
  %2005 = vmatprep.subr.bf16.mxu0 0
  %2006 = vmatpush2.bf16.msra.mxu0 0
  %2007 = vmatprep.subr.bf16.mxu0 0
  %2008 = vmatpush2.bf16.msra.mxu0 0
  %2009 = vmatprep.subr.bf16.mxu0 0
  %2010 = vmatpush2.bf16.msra.mxu0 0
  %2011 = vmatprep.subr.bf16.mxu0 0
  %2012 = vmatpush2.bf16.msra.mxu0 0
  %2013 = vmatprep.subr.bf16.mxu0 0
  %2014 = vmatpush2.bf16.msra.mxu0 0
  %2015 = vmatprep.mubr.bf16.mxu0 0
  %2016 = vmatmul.mubr.bf16.gmra.mxu0 %v1749
  %v2017 = vpop.f32.mrf.mxu0
  %v2018 = vadd.f32 0.0, %v2017
  %v2019 = vpop.f32.mrf.mxu0
  %v2020 = vadd.f32 0.0, %v2019
  %v2021 = vpop.f32.mrf.mxu0
  %v2022 = vpop.f32.mrf.mxu0
  %2023 = vdwg.mxu0
  %v2024 = vadd.f32 %v1745, %v1977
  %v2025 = vadd.f32 %v1746, %v1979
  %v2026 = vadd.f32 %v1747, %v2018
  %v2027 = vadd.f32 %v1748, %v2020
  %v2028 = vxor.u32 %v1738, 2147483648
  %v2029 = vxor.u32 %v1739, 2147483648
  %v2030 = vxor.u32 %v1740, 2147483648
  %v2031 = vmul.f32 %v2028, 1.442695
  %v2032 = vpow.pop %v2031
  %v2033 = vmul.f32 %v2029, 1.442695
  %v2034 = vpow.pop %v2033
  %v2035 = vmul.f32 %v2030, 1.442695
  %v2036 = vpow.pop %v2035
  %v2037 = vadd.f32 %v2032, 1.0
  %v2038 = vadd.f32 %v2034, 1.0
  %v2039 = vadd.f32 %v2036, 1.0
  %v2040 = vrcp.pop %v2037
  %v2041 = vmul.f32 1.0, %v2040
  %v2042 = vrcp.pop %v2038
  %v2043 = vmul.f32 1.0, %v2042
  %v2044 = vrcp.pop %v2039
  %v2045 = vmul.f32 1.0, %v2044
  %v2046 = vtanh.pop %v1741
  %v2047 = vmul.f32 %v2043, %v1421
  %v2048 = vmul.f32 %v2041, %v2046
  %v2049 = vadd.f32 %v2047, %v2048
  %v2050 = vtanh.pop %v2049
  %v2051 = vmul.f32 %v2045, %v2050
  %v2052 = vxor.u32 %v2024, 2147483648
  %v2053 = vxor.u32 %v2025, 2147483648
  %v2054 = vxor.u32 %v2026, 2147483648
  %v2055 = vmul.f32 %v2052, 1.442695
  %v2056 = vpow.pop %v2055
  %v2057 = vmul.f32 %v2053, 1.442695
  %v2058 = vpow.pop %v2057
  %v2059 = vmul.f32 %v2054, 1.442695
  %v2060 = vpow.pop %v2059
  %v2061 = vadd.f32 %v2056, 1.0
  %v2062 = vadd.f32 %v2058, 1.0
  %v2063 = vadd.f32 %v2060, 1.0
  %v2064 = vrcp.pop %v2061
  %v2065 = vmul.f32 1.0, %v2064
  %v2066 = vrcp.pop %v2062
  %v2067 = vmul.f32 1.0, %v2066
  %v2068 = vrcp.pop %v2063
  %v2069 = vmul.f32 1.0, %v2068
  %v2070 = vtanh.pop %v2027
  %v2071 = vmul.f32 %v2067, %v1445
  %v2072 = vmul.f32 %v2065, %v2070
  %v2073 = vadd.f32 %v2071, %v2072
  %v2074 = vtanh.pop %v2073
  %v2075 = vmul.f32 %v2069, %v2074
  %s2076 = smul.u32 1, 2
  %s2077 = smul.addr %s2076, 8
  %s2078 = scalar_lea.vmem [#allocation3], %s2077
  %2079 = vst [vmem:[%s2078] sm:$0xff] %v2051
  %s2080 = smul.u32 6, 2
  %s2081 = smul.addr %s2080, 8
  %s2082 = scalar_lea.vmem [#allocation3], %s2081
  %2083 = vst [vmem:[%s2082 + $0x8] sm:$0xff] %v2075
  %s2084 = smul.u32 2, 8
  %s2085 = smul.addr %s2084, 8
  %s2086 = scalar_lea.vmem [#allocation2], %s2085
  %v2087 = vld [vmem:[%s2086] sm:$0xff]
  %v2088 = vld [vmem:[%s2086 + $0x8] sm:$0xff]
  %v2089 = vld [vmem:[%s2086 + $0x10] sm:$0xff]
  %v2090 = vld [vmem:[%s2086 + $0x18] sm:$0xff]
  %v2091 = vpack.c.bf16 %v2051, %v2051
  %v2092 = vld [vmem:[%s2] sm:$0xff]
  %v2093 = vld [vmem:[%s2 + $0x8] sm:$0xff]
  %v2094 = vld [vmem:[%s2 + $0x10] sm:$0xff]
  %v2095 = vld [vmem:[%s2 + $0x18] sm:$0xff]
  %v2096 = vld [vmem:[%s2 + $0x20] sm:$0xff]
  %v2097 = vld [vmem:[%s2 + $0x28] sm:$0xff]
  %v2098 = vld [vmem:[%s2 + $0x30] sm:$0xff]
  %v2099 = vld [vmem:[%s2 + $0x38] sm:$0xff]
  %v2100 = vld [vmem:[%s2 + $0x40] sm:$0xff]
  %v2101 = vld [vmem:[%s2 + $0x48] sm:$0xff]
  %v2102 = vld [vmem:[%s2 + $0x50] sm:$0xff]
  %v2103 = vld [vmem:[%s2 + $0x58] sm:$0xff]
  %v2104 = vld [vmem:[%s2 + $0x60] sm:$0xff]
  %v2105 = vld [vmem:[%s2 + $0x68] sm:$0xff]
  %v2106 = vld [vmem:[%s2 + $0x70] sm:$0xff]
  %v2107 = vld [vmem:[%s2 + $0x78] sm:$0xff]
  %v2108 = vld [vmem:[%s2 + $0x80] sm:$0xff]
  %v2109 = vld [vmem:[%s2 + $0x88] sm:$0xff]
  %v2110 = vld [vmem:[%s2 + $0x90] sm:$0xff]
  %v2111 = vld [vmem:[%s2 + $0x98] sm:$0xff]
  %v2112 = vld [vmem:[%s2 + $0xa0] sm:$0xff]
  %v2113 = vld [vmem:[%s2 + $0xa8] sm:$0xff]
  %v2114 = vld [vmem:[%s2 + $0xb0] sm:$0xff]
  %v2115 = vld [vmem:[%s2 + $0xb8] sm:$0xff]
  %v2116 = vld [vmem:[%s2 + $0xc0] sm:$0xff]
  %v2117 = vld [vmem:[%s2 + $0xc8] sm:$0xff]
  %v2118 = vld [vmem:[%s2 + $0xd0] sm:$0xff]
  %v2119 = vld [vmem:[%s2 + $0xd8] sm:$0xff]
  %v2120 = vld [vmem:[%s2 + $0xe0] sm:$0xff]
  %v2121 = vld [vmem:[%s2 + $0xe8] sm:$0xff]
  %v2122 = vld [vmem:[%s2 + $0xf0] sm:$0xff]
  %v2123 = vld [vmem:[%s2 + $0xf8] sm:$0xff]
  %v2156 = vunpack.c.l.b16 %v2092
  %v2157 = vunpack.c.h.b16 %v2092
  %v2158 = vunpack.c.l.b16 %v2093
  %v2159 = vunpack.c.h.b16 %v2093
  %v2160 = vunpack.c.l.b16 %v2094
  %v2161 = vunpack.c.h.b16 %v2094
  %v2162 = vunpack.c.l.b16 %v2095
  %v2163 = vunpack.c.h.b16 %v2095
  %v2164 = vunpack.c.l.b16 %v2096
  %v2165 = vunpack.c.h.b16 %v2096
  %v2166 = vunpack.c.l.b16 %v2097
  %v2167 = vunpack.c.h.b16 %v2097
  %v2168 = vunpack.c.l.b16 %v2098
  %v2169 = vunpack.c.h.b16 %v2098
  %v2170 = vunpack.c.l.b16 %v2099
  %v2171 = vunpack.c.h.b16 %v2099
  %v2172 = vunpack.c.l.b16 %v2100
  %v2173 = vunpack.c.h.b16 %v2100
  %v2174 = vunpack.c.l.b16 %v2101
  %v2175 = vunpack.c.h.b16 %v2101
  %v2176 = vunpack.c.l.b16 %v2102
  %v2177 = vunpack.c.h.b16 %v2102
  %v2178 = vunpack.c.l.b16 %v2103
  %v2179 = vunpack.c.h.b16 %v2103
  %v2180 = vunpack.c.l.b16 %v2104
  %v2181 = vunpack.c.h.b16 %v2104
  %v2182 = vunpack.c.l.b16 %v2105
  %v2183 = vunpack.c.h.b16 %v2105
  %v2184 = vunpack.c.l.b16 %v2106
  %v2185 = vunpack.c.h.b16 %v2106
  %v2186 = vunpack.c.l.b16 %v2107
  %v2187 = vunpack.c.h.b16 %v2107
  %v2188 = vunpack.c.l.b16 %v2108
  %v2189 = vunpack.c.h.b16 %v2108
  %v2190 = vunpack.c.l.b16 %v2109
  %v2191 = vunpack.c.h.b16 %v2109
  %v2192 = vunpack.c.l.b16 %v2110
  %v2193 = vunpack.c.h.b16 %v2110
  %v2194 = vunpack.c.l.b16 %v2111
  %v2195 = vunpack.c.h.b16 %v2111
  %v2196 = vunpack.c.l.b16 %v2112
  %v2197 = vunpack.c.h.b16 %v2112
  %v2198 = vunpack.c.l.b16 %v2113
  %v2199 = vunpack.c.h.b16 %v2113
  %v2200 = vunpack.c.l.b16 %v2114
  %v2201 = vunpack.c.h.b16 %v2114
  %v2202 = vunpack.c.l.b16 %v2115
  %v2203 = vunpack.c.h.b16 %v2115
  %v2204 = vunpack.c.l.b16 %v2116
  %v2205 = vunpack.c.h.b16 %v2116
  %v2206 = vunpack.c.l.b16 %v2117
  %v2207 = vunpack.c.h.b16 %v2117
  %v2208 = vunpack.c.l.b16 %v2118
  %v2209 = vunpack.c.h.b16 %v2118
  %v2210 = vunpack.c.l.b16 %v2119
  %v2211 = vunpack.c.h.b16 %v2119
  %v2212 = vunpack.c.l.b16 %v2120
  %v2213 = vunpack.c.h.b16 %v2120
  %v2214 = vunpack.c.l.b16 %v2121
  %v2215 = vunpack.c.h.b16 %v2121
  %v2216 = vunpack.c.l.b16 %v2122
  %v2217 = vunpack.c.h.b16 %v2122
  %v2218 = vunpack.c.l.b16 %v2123
  %v2219 = vunpack.c.h.b16 %v2123
  %v2220 = vpack.c.b16 %v2160, %v2156
  %v2221 = vpack.c.b16 %v2161, %v2157
  %v2222 = vpack.c.b16 %v2162, %v2158
  %v2223 = vpack.c.b16 %v2163, %v2159
  %v2224 = vpack.c.b16 %v2168, %v2164
  %v2225 = vpack.c.b16 %v2169, %v2165
  %v2226 = vpack.c.b16 %v2170, %v2166
  %v2227 = vpack.c.b16 %v2171, %v2167
  %v2228 = vpack.c.b16 %v2176, %v2172
  %v2229 = vpack.c.b16 %v2177, %v2173
  %v2230 = vpack.c.b16 %v2178, %v2174
  %v2231 = vpack.c.b16 %v2179, %v2175
  %v2232 = vpack.c.b16 %v2184, %v2180
  %v2233 = vpack.c.b16 %v2185, %v2181
  %v2234 = vpack.c.b16 %v2186, %v2182
  %v2235 = vpack.c.b16 %v2187, %v2183
  %v2236 = vpack.c.b16 %v2192, %v2188
  %v2237 = vpack.c.b16 %v2193, %v2189
  %v2238 = vpack.c.b16 %v2194, %v2190
  %v2239 = vpack.c.b16 %v2195, %v2191
  %v2240 = vpack.c.b16 %v2200, %v2196
  %v2241 = vpack.c.b16 %v2201, %v2197
  %v2242 = vpack.c.b16 %v2202, %v2198
  %v2243 = vpack.c.b16 %v2203, %v2199
  %v2244 = vpack.c.b16 %v2208, %v2204
  %v2245 = vpack.c.b16 %v2209, %v2205
  %v2246 = vpack.c.b16 %v2210, %v2206
  %v2247 = vpack.c.b16 %v2211, %v2207
  %v2248 = vpack.c.b16 %v2216, %v2212
  %v2249 = vpack.c.b16 %v2217, %v2213
  %v2250 = vpack.c.b16 %v2218, %v2214
  %v2251 = vpack.c.b16 %v2219, %v2215
  %2284 = vmatprep.subr.bf16.mxu0 %v2249
  %2285 = vmatpush1.bf16.msra.mxu0 %v2248
  %2286 = vmatprep.subr.bf16.mxu0 %v2245
  %2287 = vmatpush1.bf16.msra.mxu0 %v2244
  %2288 = vmatprep.subr.bf16.mxu0 %v2241
  %2289 = vmatpush1.bf16.msra.mxu0 %v2240
  %2290 = vmatprep.subr.bf16.mxu0 %v2237
  %2291 = vmatpush1.bf16.msra.mxu0 %v2236
  %2292 = vmatprep.subr.bf16.mxu0 %v2233
  %2293 = vmatpush1.bf16.msra.mxu0 %v2232
  %2294 = vmatprep.subr.bf16.mxu0 %v2229
  %2295 = vmatpush1.bf16.msra.mxu0 %v2228
  %2296 = vmatprep.subr.bf16.mxu0 %v2225
  %2297 = vmatpush1.bf16.msra.mxu0 %v2224
  %2298 = vmatprep.subr.bf16.mxu0 %v2221
  %2299 = vmatpush1.bf16.msra.mxu0 %v2220
  %2300 = vmatprep.subr.bf16.mxu0 0
  %2301 = vmatpush2.bf16.msra.mxu0 0
  %2302 = vmatprep.subr.bf16.mxu0 0
  %2303 = vmatpush2.bf16.msra.mxu0 0
  %2304 = vmatprep.subr.bf16.mxu0 0
  %2305 = vmatpush2.bf16.msra.mxu0 0
  %2306 = vmatprep.subr.bf16.mxu0 0
  %2307 = vmatpush2.bf16.msra.mxu0 0
  %2308 = vmatprep.subr.bf16.mxu0 0
  %2309 = vmatpush2.bf16.msra.mxu0 0
  %2310 = vmatprep.subr.bf16.mxu0 0
  %2311 = vmatpush2.bf16.msra.mxu0 0
  %2312 = vmatprep.subr.bf16.mxu0 0
  %2313 = vmatpush2.bf16.msra.mxu0 0
  %2314 = vmatprep.subr.bf16.mxu0 0
  %2315 = vmatpush2.bf16.msra.mxu0 0
  %2316 = vmatprep.mubr.bf16.mxu0 0
  %2317 = vmatmul.mubr.bf16.gmra.mxu0 %v2091
  %v2318 = vpop.f32.mrf.mxu0
  %v2319 = vadd.f32 0.0, %v2318
  %v2320 = vpop.f32.mrf.mxu0
  %v2321 = vadd.f32 0.0, %v2320
  %v2322 = vpop.f32.mrf.mxu0
  %v2323 = vpop.f32.mrf.mxu0
  %2324 = vdwg.mxu0
  %2325 = vmatprep.subr.bf16.mxu0 %v2251
  %2326 = vmatpush1.bf16.msra.mxu0 %v2250
  %2327 = vmatprep.subr.bf16.mxu0 %v2247
  %2328 = vmatpush1.bf16.msra.mxu0 %v2246
  %2329 = vmatprep.subr.bf16.mxu0 %v2243
  %2330 = vmatpush1.bf16.msra.mxu0 %v2242
  %2331 = vmatprep.subr.bf16.mxu0 %v2239
  %2332 = vmatpush1.bf16.msra.mxu0 %v2238
  %2333 = vmatprep.subr.bf16.mxu0 %v2235
  %2334 = vmatpush1.bf16.msra.mxu0 %v2234
  %2335 = vmatprep.subr.bf16.mxu0 %v2231
  %2336 = vmatpush1.bf16.msra.mxu0 %v2230
  %2337 = vmatprep.subr.bf16.mxu0 %v2227
  %2338 = vmatpush1.bf16.msra.mxu0 %v2226
  %2339 = vmatprep.subr.bf16.mxu0 %v2223
  %2340 = vmatpush1.bf16.msra.mxu0 %v2222
  %2341 = vmatprep.subr.bf16.mxu0 0
  %2342 = vmatpush2.bf16.msra.mxu0 0
  %2343 = vmatprep.subr.bf16.mxu0 0
  %2344 = vmatpush2.bf16.msra.mxu0 0
  %2345 = vmatprep.subr.bf16.mxu0 0
  %2346 = vmatpush2.bf16.msra.mxu0 0
  %2347 = vmatprep.subr.bf16.mxu0 0
  %2348 = vmatpush2.bf16.msra.mxu0 0
  %2349 = vmatprep.subr.bf16.mxu0 0
  %2350 = vmatpush2.bf16.msra.mxu0 0
  %2351 = vmatprep.subr.bf16.mxu0 0
  %2352 = vmatpush2.bf16.msra.mxu0 0
  %2353 = vmatprep.subr.bf16.mxu0 0
  %2354 = vmatpush2.bf16.msra.mxu0 0
  %2355 = vmatprep.subr.bf16.mxu0 0
  %2356 = vmatpush2.bf16.msra.mxu0 0
  %2357 = vmatprep.mubr.bf16.mxu0 0
  %2358 = vmatmul.mubr.bf16.gmra.mxu0 %v2091
  %v2359 = vpop.f32.mrf.mxu0
  %v2360 = vadd.f32 0.0, %v2359
  %v2361 = vpop.f32.mrf.mxu0
  %v2362 = vadd.f32 0.0, %v2361
  %v2363 = vpop.f32.mrf.mxu0
  %v2364 = vpop.f32.mrf.mxu0
  %2365 = vdwg.mxu0
  %v2366 = vadd.f32 %v2087, %v2319
  %v2367 = vadd.f32 %v2088, %v2321
  %v2368 = vadd.f32 %v2089, %v2360
  %v2369 = vadd.f32 %v2090, %v2362
  %s2370 = smul.u32 5, 8
  %s2371 = smul.addr %s2370, 8
  %s2372 = scalar_lea.vmem [#allocation2], %s2371
  %v2373 = vld [vmem:[%s2372 + $0x20] sm:$0xff]
  %v2374 = vld [vmem:[%s2372 + $0x28] sm:$0xff]
  %v2375 = vld [vmem:[%s2372 + $0x30] sm:$0xff]
  %v2376 = vld [vmem:[%s2372 + $0x38] sm:$0xff]
  %v2377 = vpack.c.bf16 %v2075, %v2075
  %v2378 = vld [vmem:[%s3] sm:$0xff]
  %v2379 = vld [vmem:[%s3 + $0x8] sm:$0xff]
  %v2380 = vld [vmem:[%s3 + $0x10] sm:$0xff]
  %v2381 = vld [vmem:[%s3 + $0x18] sm:$0xff]
  %v2382 = vld [vmem:[%s3 + $0x20] sm:$0xff]
  %v2383 = vld [vmem:[%s3 + $0x28] sm:$0xff]
  %v2384 = vld [vmem:[%s3 + $0x30] sm:$0xff]
  %v2385 = vld [vmem:[%s3 + $0x38] sm:$0xff]
  %v2386 = vld [vmem:[%s3 + $0x40] sm:$0xff]
  %v2387 = vld [vmem:[%s3 + $0x48] sm:$0xff]
  %v2388 = vld [vmem:[%s3 + $0x50] sm:$0xff]
  %v2389 = vld [vmem:[%s3 + $0x58] sm:$0xff]
  %v2390 = vld [vmem:[%s3 + $0x60] sm:$0xff]
  %v2391 = vld [vmem:[%s3 + $0x68] sm:$0xff]
  %v2392 = vld [vmem:[%s3 + $0x70] sm:$0xff]
  %v2393 = vld [vmem:[%s3 + $0x78] sm:$0xff]
  %v2394 = vld [vmem:[%s3 + $0x80] sm:$0xff]
  %v2395 = vld [vmem:[%s3 + $0x88] sm:$0xff]
  %v2396 = vld [vmem:[%s3 + $0x90] sm:$0xff]
  %v2397 = vld [vmem:[%s3 + $0x98] sm:$0xff]
  %v2398 = vld [vmem:[%s3 + $0xa0] sm:$0xff]
  %v2399 = vld [vmem:[%s3 + $0xa8] sm:$0xff]
  %v2400 = vld [vmem:[%s3 + $0xb0] sm:$0xff]
  %v2401 = vld [vmem:[%s3 + $0xb8] sm:$0xff]
  %v2402 = vld [vmem:[%s3 + $0xc0] sm:$0xff]
  %v2403 = vld [vmem:[%s3 + $0xc8] sm:$0xff]
  %v2404 = vld [vmem:[%s3 + $0xd0] sm:$0xff]
  %v2405 = vld [vmem:[%s3 + $0xd8] sm:$0xff]
  %v2406 = vld [vmem:[%s3 + $0xe0] sm:$0xff]
  %v2407 = vld [vmem:[%s3 + $0xe8] sm:$0xff]
  %v2408 = vld [vmem:[%s3 + $0xf0] sm:$0xff]
  %v2409 = vld [vmem:[%s3 + $0xf8] sm:$0xff]
  %v2442 = vunpack.c.l.b16 %v2378
  %v2443 = vunpack.c.h.b16 %v2378
  %v2444 = vunpack.c.l.b16 %v2379
  %v2445 = vunpack.c.h.b16 %v2379
  %v2446 = vunpack.c.l.b16 %v2380
  %v2447 = vunpack.c.h.b16 %v2380
  %v2448 = vunpack.c.l.b16 %v2381
  %v2449 = vunpack.c.h.b16 %v2381
  %v2450 = vunpack.c.l.b16 %v2382
  %v2451 = vunpack.c.h.b16 %v2382
  %v2452 = vunpack.c.l.b16 %v2383
  %v2453 = vunpack.c.h.b16 %v2383
  %v2454 = vunpack.c.l.b16 %v2384
  %v2455 = vunpack.c.h.b16 %v2384
  %v2456 = vunpack.c.l.b16 %v2385
  %v2457 = vunpack.c.h.b16 %v2385
  %v2458 = vunpack.c.l.b16 %v2386
  %v2459 = vunpack.c.h.b16 %v2386
  %v2460 = vunpack.c.l.b16 %v2387
  %v2461 = vunpack.c.h.b16 %v2387
  %v2462 = vunpack.c.l.b16 %v2388
  %v2463 = vunpack.c.h.b16 %v2388
  %v2464 = vunpack.c.l.b16 %v2389
  %v2465 = vunpack.c.h.b16 %v2389
  %v2466 = vunpack.c.l.b16 %v2390
  %v2467 = vunpack.c.h.b16 %v2390
  %v2468 = vunpack.c.l.b16 %v2391
  %v2469 = vunpack.c.h.b16 %v2391
  %v2470 = vunpack.c.l.b16 %v2392
  %v2471 = vunpack.c.h.b16 %v2392
  %v2472 = vunpack.c.l.b16 %v2393
  %v2473 = vunpack.c.h.b16 %v2393
  %v2474 = vunpack.c.l.b16 %v2394
  %v2475 = vunpack.c.h.b16 %v2394
  %v2476 = vunpack.c.l.b16 %v2395
  %v2477 = vunpack.c.h.b16 %v2395
  %v2478 = vunpack.c.l.b16 %v2396
  %v2479 = vunpack.c.h.b16 %v2396
  %v2480 = vunpack.c.l.b16 %v2397
  %v2481 = vunpack.c.h.b16 %v2397
  %v2482 = vunpack.c.l.b16 %v2398
  %v2483 = vunpack.c.h.b16 %v2398
  %v2484 = vunpack.c.l.b16 %v2399
  %v2485 = vunpack.c.h.b16 %v2399
  %v2486 = vunpack.c.l.b16 %v2400
  %v2487 = vunpack.c.h.b16 %v2400
  %v2488 = vunpack.c.l.b16 %v2401
  %v2489 = vunpack.c.h.b16 %v2401
  %v2490 = vunpack.c.l.b16 %v2402
  %v2491 = vunpack.c.h.b16 %v2402
  %v2492 = vunpack.c.l.b16 %v2403
  %v2493 = vunpack.c.h.b16 %v2403
  %v2494 = vunpack.c.l.b16 %v2404
  %v2495 = vunpack.c.h.b16 %v2404
  %v2496 = vunpack.c.l.b16 %v2405
  %v2497 = vunpack.c.h.b16 %v2405
  %v2498 = vunpack.c.l.b16 %v2406
  %v2499 = vunpack.c.h.b16 %v2406
  %v2500 = vunpack.c.l.b16 %v2407
  %v2501 = vunpack.c.h.b16 %v2407
  %v2502 = vunpack.c.l.b16 %v2408
  %v2503 = vunpack.c.h.b16 %v2408
  %v2504 = vunpack.c.l.b16 %v2409
  %v2505 = vunpack.c.h.b16 %v2409
  %v2506 = vpack.c.b16 %v2446, %v2442
  %v2507 = vpack.c.b16 %v2447, %v2443
  %v2508 = vpack.c.b16 %v2448, %v2444
  %v2509 = vpack.c.b16 %v2449, %v2445
  %v2510 = vpack.c.b16 %v2454, %v2450
  %v2511 = vpack.c.b16 %v2455, %v2451
  %v2512 = vpack.c.b16 %v2456, %v2452
  %v2513 = vpack.c.b16 %v2457, %v2453
  %v2514 = vpack.c.b16 %v2462, %v2458
  %v2515 = vpack.c.b16 %v2463, %v2459
  %v2516 = vpack.c.b16 %v2464, %v2460
  %v2517 = vpack.c.b16 %v2465, %v2461
  %v2518 = vpack.c.b16 %v2470, %v2466
  %v2519 = vpack.c.b16 %v2471, %v2467
  %v2520 = vpack.c.b16 %v2472, %v2468
  %v2521 = vpack.c.b16 %v2473, %v2469
  %v2522 = vpack.c.b16 %v2478, %v2474
  %v2523 = vpack.c.b16 %v2479, %v2475
  %v2524 = vpack.c.b16 %v2480, %v2476
  %v2525 = vpack.c.b16 %v2481, %v2477
  %v2526 = vpack.c.b16 %v2486, %v2482
  %v2527 = vpack.c.b16 %v2487, %v2483
  %v2528 = vpack.c.b16 %v2488, %v2484
  %v2529 = vpack.c.b16 %v2489, %v2485
  %v2530 = vpack.c.b16 %v2494, %v2490
  %v2531 = vpack.c.b16 %v2495, %v2491
  %v2532 = vpack.c.b16 %v2496, %v2492
  %v2533 = vpack.c.b16 %v2497, %v2493
  %v2534 = vpack.c.b16 %v2502, %v2498
  %v2535 = vpack.c.b16 %v2503, %v2499
  %v2536 = vpack.c.b16 %v2504, %v2500
  %v2537 = vpack.c.b16 %v2505, %v2501
  %2570 = vmatprep.subr.bf16.mxu0 %v2535
  %2571 = vmatpush1.bf16.msra.mxu0 %v2534
  %2572 = vmatprep.subr.bf16.mxu0 %v2531
  %2573 = vmatpush1.bf16.msra.mxu0 %v2530
  %2574 = vmatprep.subr.bf16.mxu0 %v2527
  %2575 = vmatpush1.bf16.msra.mxu0 %v2526
  %2576 = vmatprep.subr.bf16.mxu0 %v2523
  %2577 = vmatpush1.bf16.msra.mxu0 %v2522
  %2578 = vmatprep.subr.bf16.mxu0 %v2519
  %2579 = vmatpush1.bf16.msra.mxu0 %v2518
  %2580 = vmatprep.subr.bf16.mxu0 %v2515
  %2581 = vmatpush1.bf16.msra.mxu0 %v2514
  %2582 = vmatprep.subr.bf16.mxu0 %v2511
  %2583 = vmatpush1.bf16.msra.mxu0 %v2510
  %2584 = vmatprep.subr.bf16.mxu0 %v2507
  %2585 = vmatpush1.bf16.msra.mxu0 %v2506
  %2586 = vmatprep.subr.bf16.mxu0 0
  %2587 = vmatpush2.bf16.msra.mxu0 0
  %2588 = vmatprep.subr.bf16.mxu0 0
  %2589 = vmatpush2.bf16.msra.mxu0 0
  %2590 = vmatprep.subr.bf16.mxu0 0
  %2591 = vmatpush2.bf16.msra.mxu0 0
  %2592 = vmatprep.subr.bf16.mxu0 0
  %2593 = vmatpush2.bf16.msra.mxu0 0
  %2594 = vmatprep.subr.bf16.mxu0 0
  %2595 = vmatpush2.bf16.msra.mxu0 0
  %2596 = vmatprep.subr.bf16.mxu0 0
  %2597 = vmatpush2.bf16.msra.mxu0 0
  %2598 = vmatprep.subr.bf16.mxu0 0
  %2599 = vmatpush2.bf16.msra.mxu0 0
  %2600 = vmatprep.subr.bf16.mxu0 0
  %2601 = vmatpush2.bf16.msra.mxu0 0
  %2602 = vmatprep.mubr.bf16.mxu0 0
  %2603 = vmatmul.mubr.bf16.gmra.mxu0 %v2377
  %v2604 = vpop.f32.mrf.mxu0
  %v2605 = vadd.f32 0.0, %v2604
  %v2606 = vpop.f32.mrf.mxu0
  %v2607 = vadd.f32 0.0, %v2606
  %v2608 = vpop.f32.mrf.mxu0
  %v2609 = vpop.f32.mrf.mxu0
  %2610 = vdwg.mxu0
  %2611 = vmatprep.subr.bf16.mxu0 %v2537
  %2612 = vmatpush1.bf16.msra.mxu0 %v2536
  %2613 = vmatprep.subr.bf16.mxu0 %v2533
  %2614 = vmatpush1.bf16.msra.mxu0 %v2532
  %2615 = vmatprep.subr.bf16.mxu0 %v2529
  %2616 = vmatpush1.bf16.msra.mxu0 %v2528
  %2617 = vmatprep.subr.bf16.mxu0 %v2525
  %2618 = vmatpush1.bf16.msra.mxu0 %v2524
  %2619 = vmatprep.subr.bf16.mxu0 %v2521
  %2620 = vmatpush1.bf16.msra.mxu0 %v2520
  %2621 = vmatprep.subr.bf16.mxu0 %v2517
  %2622 = vmatpush1.bf16.msra.mxu0 %v2516
  %2623 = vmatprep.subr.bf16.mxu0 %v2513
  %2624 = vmatpush1.bf16.msra.mxu0 %v2512
  %2625 = vmatprep.subr.bf16.mxu0 %v2509
  %2626 = vmatpush1.bf16.msra.mxu0 %v2508
  %2627 = vmatprep.subr.bf16.mxu0 0
  %2628 = vmatpush2.bf16.msra.mxu0 0
  %2629 = vmatprep.subr.bf16.mxu0 0
  %2630 = vmatpush2.bf16.msra.mxu0 0
  %2631 = vmatprep.subr.bf16.mxu0 0
  %2632 = vmatpush2.bf16.msra.mxu0 0
  %2633 = vmatprep.subr.bf16.mxu0 0
  %2634 = vmatpush2.bf16.msra.mxu0 0
  %2635 = vmatprep.subr.bf16.mxu0 0
  %2636 = vmatpush2.bf16.msra.mxu0 0
  %2637 = vmatprep.subr.bf16.mxu0 0
  %2638 = vmatpush2.bf16.msra.mxu0 0
  %2639 = vmatprep.subr.bf16.mxu0 0
  %2640 = vmatpush2.bf16.msra.mxu0 0
  %2641 = vmatprep.subr.bf16.mxu0 0
  %2642 = vmatpush2.bf16.msra.mxu0 0
  %2643 = vmatprep.mubr.bf16.mxu0 0
  %2644 = vmatmul.mubr.bf16.gmra.mxu0 %v2377
  %v2645 = vpop.f32.mrf.mxu0
  %v2646 = vadd.f32 0.0, %v2645
  %v2647 = vpop.f32.mrf.mxu0
  %v2648 = vadd.f32 0.0, %v2647
  %v2649 = vpop.f32.mrf.mxu0
  %v2650 = vpop.f32.mrf.mxu0
  %2651 = vdwg.mxu0
  %v2652 = vadd.f32 %v2373, %v2605
  %v2653 = vadd.f32 %v2374, %v2607
  %v2654 = vadd.f32 %v2375, %v2646
  %v2655 = vadd.f32 %v2376, %v2648
  %v2656 = vxor.u32 %v2366, 2147483648
  %v2657 = vxor.u32 %v2367, 2147483648
  %v2658 = vxor.u32 %v2368, 2147483648
  %v2659 = vmul.f32 %v2656, 1.442695
  %v2660 = vpow.pop %v2659
  %v2661 = vmul.f32 %v2657, 1.442695
  %v2662 = vpow.pop %v2661
  %v2663 = vmul.f32 %v2658, 1.442695
  %v2664 = vpow.pop %v2663
  %v2665 = vadd.f32 %v2660, 1.0
  %v2666 = vadd.f32 %v2662, 1.0
  %v2667 = vadd.f32 %v2664, 1.0
  %v2668 = vrcp.pop %v2665
  %v2669 = vmul.f32 1.0, %v2668
  %v2670 = vrcp.pop %v2666
  %v2671 = vmul.f32 1.0, %v2670
  %v2672 = vrcp.pop %v2667
  %v2673 = vmul.f32 1.0, %v2672
  %v2674 = vtanh.pop %v2369
  %v2675 = vmul.f32 %v2671, %v2049
  %v2676 = vmul.f32 %v2669, %v2674
  %v2677 = vadd.f32 %v2675, %v2676
  %v2678 = vtanh.pop %v2677
  %v2679 = vmul.f32 %v2673, %v2678
  %v2680 = vxor.u32 %v2652, 2147483648
  %v2681 = vxor.u32 %v2653, 2147483648
  %v2682 = vxor.u32 %v2654, 2147483648
  %v2683 = vmul.f32 %v2680, 1.442695
  %v2684 = vpow.pop %v2683
  %v2685 = vmul.f32 %v2681, 1.442695
  %v2686 = vpow.pop %v2685
  %v2687 = vmul.f32 %v2682, 1.442695
  %v2688 = vpow.pop %v2687
  %v2689 = vadd.f32 %v2684, 1.0
  %v2690 = vadd.f32 %v2686, 1.0
  %v2691 = vadd.f32 %v2688, 1.0
  %v2692 = vrcp.pop %v2689
  %v2693 = vmul.f32 1.0, %v2692
  %v2694 = vrcp.pop %v2690
  %v2695 = vmul.f32 1.0, %v2694
  %v2696 = vrcp.pop %v2691
  %v2697 = vmul.f32 1.0, %v2696
  %v2698 = vtanh.pop %v2655
  %v2699 = vmul.f32 %v2695, %v2073
  %v2700 = vmul.f32 %v2693, %v2698
  %v2701 = vadd.f32 %v2699, %v2700
  %v2702 = vtanh.pop %v2701
  %v2703 = vmul.f32 %v2697, %v2702
  %s2704 = smul.u32 2, 2
  %s2705 = smul.addr %s2704, 8
  %s2706 = scalar_lea.vmem [#allocation3], %s2705
  %2707 = vst [vmem:[%s2706] sm:$0xff] %v2679
  %s2708 = smul.u32 5, 2
  %s2709 = smul.addr %s2708, 8
  %s2710 = scalar_lea.vmem [#allocation3], %s2709
  %2711 = vst [vmem:[%s2710 + $0x8] sm:$0xff] %v2703
  %s2712 = smul.u32 3, 8
  %s2713 = smul.addr %s2712, 8
  %s2714 = scalar_lea.vmem [#allocation2], %s2713
  %v2715 = vld [vmem:[%s2714] sm:$0xff]
  %v2716 = vld [vmem:[%s2714 + $0x8] sm:$0xff]
  %v2717 = vld [vmem:[%s2714 + $0x10] sm:$0xff]
  %v2718 = vld [vmem:[%s2714 + $0x18] sm:$0xff]
  %v2719 = vpack.c.bf16 %v2679, %v2679
  %v2720 = vld [vmem:[%s2] sm:$0xff]
  %v2721 = vld [vmem:[%s2 + $0x8] sm:$0xff]
  %v2722 = vld [vmem:[%s2 + $0x10] sm:$0xff]
  %v2723 = vld [vmem:[%s2 + $0x18] sm:$0xff]
  %v2724 = vld [vmem:[%s2 + $0x20] sm:$0xff]
  %v2725 = vld [vmem:[%s2 + $0x28] sm:$0xff]
  %v2726 = vld [vmem:[%s2 + $0x30] sm:$0xff]
  %v2727 = vld [vmem:[%s2 + $0x38] sm:$0xff]
  %v2728 = vld [vmem:[%s2 + $0x40] sm:$0xff]
  %v2729 = vld [vmem:[%s2 + $0x48] sm:$0xff]
  %v2730 = vld [vmem:[%s2 + $0x50] sm:$0xff]
  %v2731 = vld [vmem:[%s2 + $0x58] sm:$0xff]
  %v2732 = vld [vmem:[%s2 + $0x60] sm:$0xff]
  %v2733 = vld [vmem:[%s2 + $0x68] sm:$0xff]
  %v2734 = vld [vmem:[%s2 + $0x70] sm:$0xff]
  %v2735 = vld [vmem:[%s2 + $0x78] sm:$0xff]
  %v2736 = vld [vmem:[%s2 + $0x80] sm:$0xff]
  %v2737 = vld [vmem:[%s2 + $0x88] sm:$0xff]
  %v2738 = vld [vmem:[%s2 + $0x90] sm:$0xff]
  %v2739 = vld [vmem:[%s2 + $0x98] sm:$0xff]
  %v2740 = vld [vmem:[%s2 + $0xa0] sm:$0xff]
  %v2741 = vld [vmem:[%s2 + $0xa8] sm:$0xff]
  %v2742 = vld [vmem:[%s2 + $0xb0] sm:$0xff]
  %v2743 = vld [vmem:[%s2 + $0xb8] sm:$0xff]
  %v2744 = vld [vmem:[%s2 + $0xc0] sm:$0xff]
  %v2745 = vld [vmem:[%s2 + $0xc8] sm:$0xff]
  %v2746 = vld [vmem:[%s2 + $0xd0] sm:$0xff]
  %v2747 = vld [vmem:[%s2 + $0xd8] sm:$0xff]
  %v2748 = vld [vmem:[%s2 + $0xe0] sm:$0xff]
  %v2749 = vld [vmem:[%s2 + $0xe8] sm:$0xff]
  %v2750 = vld [vmem:[%s2 + $0xf0] sm:$0xff]
  %v2751 = vld [vmem:[%s2 + $0xf8] sm:$0xff]
  %v2784 = vunpack.c.l.b16 %v2720
  %v2785 = vunpack.c.h.b16 %v2720
  %v2786 = vunpack.c.l.b16 %v2721
  %v2787 = vunpack.c.h.b16 %v2721
  %v2788 = vunpack.c.l.b16 %v2722
  %v2789 = vunpack.c.h.b16 %v2722
  %v2790 = vunpack.c.l.b16 %v2723
  %v2791 = vunpack.c.h.b16 %v2723
  %v2792 = vunpack.c.l.b16 %v2724
  %v2793 = vunpack.c.h.b16 %v2724
  %v2794 = vunpack.c.l.b16 %v2725
  %v2795 = vunpack.c.h.b16 %v2725
  %v2796 = vunpack.c.l.b16 %v2726
  %v2797 = vunpack.c.h.b16 %v2726
  %v2798 = vunpack.c.l.b16 %v2727
  %v2799 = vunpack.c.h.b16 %v2727
  %v2800 = vunpack.c.l.b16 %v2728
  %v2801 = vunpack.c.h.b16 %v2728
  %v2802 = vunpack.c.l.b16 %v2729
  %v2803 = vunpack.c.h.b16 %v2729
  %v2804 = vunpack.c.l.b16 %v2730
  %v2805 = vunpack.c.h.b16 %v2730
  %v2806 = vunpack.c.l.b16 %v2731
  %v2807 = vunpack.c.h.b16 %v2731
  %v2808 = vunpack.c.l.b16 %v2732
  %v2809 = vunpack.c.h.b16 %v2732
  %v2810 = vunpack.c.l.b16 %v2733
  %v2811 = vunpack.c.h.b16 %v2733
  %v2812 = vunpack.c.l.b16 %v2734
  %v2813 = vunpack.c.h.b16 %v2734
  %v2814 = vunpack.c.l.b16 %v2735
  %v2815 = vunpack.c.h.b16 %v2735
  %v2816 = vunpack.c.l.b16 %v2736
  %v2817 = vunpack.c.h.b16 %v2736
  %v2818 = vunpack.c.l.b16 %v2737
  %v2819 = vunpack.c.h.b16 %v2737
  %v2820 = vunpack.c.l.b16 %v2738
  %v2821 = vunpack.c.h.b16 %v2738
  %v2822 = vunpack.c.l.b16 %v2739
  %v2823 = vunpack.c.h.b16 %v2739
  %v2824 = vunpack.c.l.b16 %v2740
  %v2825 = vunpack.c.h.b16 %v2740
  %v2826 = vunpack.c.l.b16 %v2741
  %v2827 = vunpack.c.h.b16 %v2741
  %v2828 = vunpack.c.l.b16 %v2742
  %v2829 = vunpack.c.h.b16 %v2742
  %v2830 = vunpack.c.l.b16 %v2743
  %v2831 = vunpack.c.h.b16 %v2743
  %v2832 = vunpack.c.l.b16 %v2744
  %v2833 = vunpack.c.h.b16 %v2744
  %v2834 = vunpack.c.l.b16 %v2745
  %v2835 = vunpack.c.h.b16 %v2745
  %v2836 = vunpack.c.l.b16 %v2746
  %v2837 = vunpack.c.h.b16 %v2746
  %v2838 = vunpack.c.l.b16 %v2747
  %v2839 = vunpack.c.h.b16 %v2747
  %v2840 = vunpack.c.l.b16 %v2748
  %v2841 = vunpack.c.h.b16 %v2748
  %v2842 = vunpack.c.l.b16 %v2749
  %v2843 = vunpack.c.h.b16 %v2749
  %v2844 = vunpack.c.l.b16 %v2750
  %v2845 = vunpack.c.h.b16 %v2750
  %v2846 = vunpack.c.l.b16 %v2751
  %v2847 = vunpack.c.h.b16 %v2751
  %v2848 = vpack.c.b16 %v2788, %v2784
  %v2849 = vpack.c.b16 %v2789, %v2785
  %v2850 = vpack.c.b16 %v2790, %v2786
  %v2851 = vpack.c.b16 %v2791, %v2787
  %v2852 = vpack.c.b16 %v2796, %v2792
  %v2853 = vpack.c.b16 %v2797, %v2793
  %v2854 = vpack.c.b16 %v2798, %v2794
  %v2855 = vpack.c.b16 %v2799, %v2795
  %v2856 = vpack.c.b16 %v2804, %v2800
  %v2857 = vpack.c.b16 %v2805, %v2801
  %v2858 = vpack.c.b16 %v2806, %v2802
  %v2859 = vpack.c.b16 %v2807, %v2803
  %v2860 = vpack.c.b16 %v2812, %v2808
  %v2861 = vpack.c.b16 %v2813, %v2809
  %v2862 = vpack.c.b16 %v2814, %v2810
  %v2863 = vpack.c.b16 %v2815, %v2811
  %v2864 = vpack.c.b16 %v2820, %v2816
  %v2865 = vpack.c.b16 %v2821, %v2817
  %v2866 = vpack.c.b16 %v2822, %v2818
  %v2867 = vpack.c.b16 %v2823, %v2819
  %v2868 = vpack.c.b16 %v2828, %v2824
  %v2869 = vpack.c.b16 %v2829, %v2825
  %v2870 = vpack.c.b16 %v2830, %v2826
  %v2871 = vpack.c.b16 %v2831, %v2827
  %v2872 = vpack.c.b16 %v2836, %v2832
  %v2873 = vpack.c.b16 %v2837, %v2833
  %v2874 = vpack.c.b16 %v2838, %v2834
  %v2875 = vpack.c.b16 %v2839, %v2835
  %v2876 = vpack.c.b16 %v2844, %v2840
  %v2877 = vpack.c.b16 %v2845, %v2841
  %v2878 = vpack.c.b16 %v2846, %v2842
  %v2879 = vpack.c.b16 %v2847, %v2843
  %2912 = vmatprep.subr.bf16.mxu0 %v2877
  %2913 = vmatpush1.bf16.msra.mxu0 %v2876
  %2914 = vmatprep.subr.bf16.mxu0 %v2873
  %2915 = vmatpush1.bf16.msra.mxu0 %v2872
  %2916 = vmatprep.subr.bf16.mxu0 %v2869
  %2917 = vmatpush1.bf16.msra.mxu0 %v2868
  %2918 = vmatprep.subr.bf16.mxu0 %v2865
  %2919 = vmatpush1.bf16.msra.mxu0 %v2864
  %2920 = vmatprep.subr.bf16.mxu0 %v2861
  %2921 = vmatpush1.bf16.msra.mxu0 %v2860
  %2922 = vmatprep.subr.bf16.mxu0 %v2857
  %2923 = vmatpush1.bf16.msra.mxu0 %v2856
  %2924 = vmatprep.subr.bf16.mxu0 %v2853
  %2925 = vmatpush1.bf16.msra.mxu0 %v2852
  %2926 = vmatprep.subr.bf16.mxu0 %v2849
  %2927 = vmatpush1.bf16.msra.mxu0 %v2848
  %2928 = vmatprep.subr.bf16.mxu0 0
  %2929 = vmatpush2.bf16.msra.mxu0 0
  %2930 = vmatprep.subr.bf16.mxu0 0
  %2931 = vmatpush2.bf16.msra.mxu0 0
  %2932 = vmatprep.subr.bf16.mxu0 0
  %2933 = vmatpush2.bf16.msra.mxu0 0
  %2934 = vmatprep.subr.bf16.mxu0 0
  %2935 = vmatpush2.bf16.msra.mxu0 0
  %2936 = vmatprep.subr.bf16.mxu0 0
  %2937 = vmatpush2.bf16.msra.mxu0 0
  %2938 = vmatprep.subr.bf16.mxu0 0
  %2939 = vmatpush2.bf16.msra.mxu0 0
  %2940 = vmatprep.subr.bf16.mxu0 0
  %2941 = vmatpush2.bf16.msra.mxu0 0
  %2942 = vmatprep.subr.bf16.mxu0 0
  %2943 = vmatpush2.bf16.msra.mxu0 0
  %2944 = vmatprep.mubr.bf16.mxu0 0
  %2945 = vmatmul.mubr.bf16.gmra.mxu0 %v2719
  %v2946 = vpop.f32.mrf.mxu0
  %v2947 = vadd.f32 0.0, %v2946
  %v2948 = vpop.f32.mrf.mxu0
  %v2949 = vadd.f32 0.0, %v2948
  %v2950 = vpop.f32.mrf.mxu0
  %v2951 = vpop.f32.mrf.mxu0
  %2952 = vdwg.mxu0
  %2953 = vmatprep.subr.bf16.mxu0 %v2879
  %2954 = vmatpush1.bf16.msra.mxu0 %v2878
  %2955 = vmatprep.subr.bf16.mxu0 %v2875
  %2956 = vmatpush1.bf16.msra.mxu0 %v2874
  %2957 = vmatprep.subr.bf16.mxu0 %v2871
  %2958 = vmatpush1.bf16.msra.mxu0 %v2870
  %2959 = vmatprep.subr.bf16.mxu0 %v2867
  %2960 = vmatpush1.bf16.msra.mxu0 %v2866
  %2961 = vmatprep.subr.bf16.mxu0 %v2863
  %2962 = vmatpush1.bf16.msra.mxu0 %v2862
  %2963 = vmatprep.subr.bf16.mxu0 %v2859
  %2964 = vmatpush1.bf16.msra.mxu0 %v2858
  %2965 = vmatprep.subr.bf16.mxu0 %v2855
  %2966 = vmatpush1.bf16.msra.mxu0 %v2854
  %2967 = vmatprep.subr.bf16.mxu0 %v2851
  %2968 = vmatpush1.bf16.msra.mxu0 %v2850
  %2969 = vmatprep.subr.bf16.mxu0 0
  %2970 = vmatpush2.bf16.msra.mxu0 0
  %2971 = vmatprep.subr.bf16.mxu0 0
  %2972 = vmatpush2.bf16.msra.mxu0 0
  %2973 = vmatprep.subr.bf16.mxu0 0
  %2974 = vmatpush2.bf16.msra.mxu0 0
  %2975 = vmatprep.subr.bf16.mxu0 0
  %2976 = vmatpush2.bf16.msra.mxu0 0
  %2977 = vmatprep.subr.bf16.mxu0 0
  %2978 = vmatpush2.bf16.msra.mxu0 0
  %2979 = vmatprep.subr.bf16.mxu0 0
  %2980 = vmatpush2.bf16.msra.mxu0 0
  %2981 = vmatprep.subr.bf16.mxu0 0
  %2982 = vmatpush2.bf16.msra.mxu0 0
  %2983 = vmatprep.subr.bf16.mxu0 0
  %2984 = vmatpush2.bf16.msra.mxu0 0
  %2985 = vmatprep.mubr.bf16.mxu0 0
  %2986 = vmatmul.mubr.bf16.gmra.mxu0 %v2719
  %v2987 = vpop.f32.mrf.mxu0
  %v2988 = vadd.f32 0.0, %v2987
  %v2989 = vpop.f32.mrf.mxu0
  %v2990 = vadd.f32 0.0, %v2989
  %v2991 = vpop.f32.mrf.mxu0
  %v2992 = vpop.f32.mrf.mxu0
  %2993 = vdwg.mxu0
  %v2994 = vadd.f32 %v2715, %v2947
  %v2995 = vadd.f32 %v2716, %v2949
  %v2996 = vadd.f32 %v2717, %v2988
  %v2997 = vadd.f32 %v2718, %v2990
  %s2998 = smul.u32 4, 8
  %s2999 = smul.addr %s2998, 8
  %s3000 = scalar_lea.vmem [#allocation2], %s2999
  %v3001 = vld [vmem:[%s3000 + $0x20] sm:$0xff]
  %v3002 = vld [vmem:[%s3000 + $0x28] sm:$0xff]
  %v3003 = vld [vmem:[%s3000 + $0x30] sm:$0xff]
  %v3004 = vld [vmem:[%s3000 + $0x38] sm:$0xff]
  %v3005 = vpack.c.bf16 %v2703, %v2703
  %v3006 = vld [vmem:[%s3] sm:$0xff]
  %v3007 = vld [vmem:[%s3 + $0x8] sm:$0xff]
  %v3008 = vld [vmem:[%s3 + $0x10] sm:$0xff]
  %v3009 = vld [vmem:[%s3 + $0x18] sm:$0xff]
  %v3010 = vld [vmem:[%s3 + $0x20] sm:$0xff]
  %v3011 = vld [vmem:[%s3 + $0x28] sm:$0xff]
  %v3012 = vld [vmem:[%s3 + $0x30] sm:$0xff]
  %v3013 = vld [vmem:[%s3 + $0x38] sm:$0xff]
  %v3014 = vld [vmem:[%s3 + $0x40] sm:$0xff]
  %v3015 = vld [vmem:[%s3 + $0x48] sm:$0xff]
  %v3016 = vld [vmem:[%s3 + $0x50] sm:$0xff]
  %v3017 = vld [vmem:[%s3 + $0x58] sm:$0xff]
  %v3018 = vld [vmem:[%s3 + $0x60] sm:$0xff]
  %v3019 = vld [vmem:[%s3 + $0x68] sm:$0xff]
  %v3020 = vld [vmem:[%s3 + $0x70] sm:$0xff]
  %v3021 = vld [vmem:[%s3 + $0x78] sm:$0xff]
  %v3022 = vld [vmem:[%s3 + $0x80] sm:$0xff]
  %v3023 = vld [vmem:[%s3 + $0x88] sm:$0xff]
  %v3024 = vld [vmem:[%s3 + $0x90] sm:$0xff]
  %v3025 = vld [vmem:[%s3 + $0x98] sm:$0xff]
  %v3026 = vld [vmem:[%s3 + $0xa0] sm:$0xff]
  %v3027 = vld [vmem:[%s3 + $0xa8] sm:$0xff]
  %v3028 = vld [vmem:[%s3 + $0xb0] sm:$0xff]
  %v3029 = vld [vmem:[%s3 + $0xb8] sm:$0xff]
  %v3030 = vld [vmem:[%s3 + $0xc0] sm:$0xff]
  %v3031 = vld [vmem:[%s3 + $0xc8] sm:$0xff]
  %v3032 = vld [vmem:[%s3 + $0xd0] sm:$0xff]
  %v3033 = vld [vmem:[%s3 + $0xd8] sm:$0xff]
  %v3034 = vld [vmem:[%s3 + $0xe0] sm:$0xff]
  %v3035 = vld [vmem:[%s3 + $0xe8] sm:$0xff]
  %v3036 = vld [vmem:[%s3 + $0xf0] sm:$0xff]
  %v3037 = vld [vmem:[%s3 + $0xf8] sm:$0xff]
  %v3070 = vunpack.c.l.b16 %v3006
  %v3071 = vunpack.c.h.b16 %v3006
  %v3072 = vunpack.c.l.b16 %v3007
  %v3073 = vunpack.c.h.b16 %v3007
  %v3074 = vunpack.c.l.b16 %v3008
  %v3075 = vunpack.c.h.b16 %v3008
  %v3076 = vunpack.c.l.b16 %v3009
  %v3077 = vunpack.c.h.b16 %v3009
  %v3078 = vunpack.c.l.b16 %v3010
  %v3079 = vunpack.c.h.b16 %v3010
  %v3080 = vunpack.c.l.b16 %v3011
  %v3081 = vunpack.c.h.b16 %v3011
  %v3082 = vunpack.c.l.b16 %v3012
  %v3083 = vunpack.c.h.b16 %v3012
  %v3084 = vunpack.c.l.b16 %v3013
  %v3085 = vunpack.c.h.b16 %v3013
  %v3086 = vunpack.c.l.b16 %v3014
  %v3087 = vunpack.c.h.b16 %v3014
  %v3088 = vunpack.c.l.b16 %v3015
  %v3089 = vunpack.c.h.b16 %v3015
  %v3090 = vunpack.c.l.b16 %v3016
  %v3091 = vunpack.c.h.b16 %v3016
  %v3092 = vunpack.c.l.b16 %v3017
  %v3093 = vunpack.c.h.b16 %v3017
  %v3094 = vunpack.c.l.b16 %v3018
  %v3095 = vunpack.c.h.b16 %v3018
  %v3096 = vunpack.c.l.b16 %v3019
  %v3097 = vunpack.c.h.b16 %v3019
  %v3098 = vunpack.c.l.b16 %v3020
  %v3099 = vunpack.c.h.b16 %v3020
  %v3100 = vunpack.c.l.b16 %v3021
  %v3101 = vunpack.c.h.b16 %v3021
  %v3102 = vunpack.c.l.b16 %v3022
  %v3103 = vunpack.c.h.b16 %v3022
  %v3104 = vunpack.c.l.b16 %v3023
  %v3105 = vunpack.c.h.b16 %v3023
  %v3106 = vunpack.c.l.b16 %v3024
  %v3107 = vunpack.c.h.b16 %v3024
  %v3108 = vunpack.c.l.b16 %v3025
  %v3109 = vunpack.c.h.b16 %v3025
  %v3110 = vunpack.c.l.b16 %v3026
  %v3111 = vunpack.c.h.b16 %v3026
  %v3112 = vunpack.c.l.b16 %v3027
  %v3113 = vunpack.c.h.b16 %v3027
  %v3114 = vunpack.c.l.b16 %v3028
  %v3115 = vunpack.c.h.b16 %v3028
  %v3116 = vunpack.c.l.b16 %v3029
  %v3117 = vunpack.c.h.b16 %v3029
  %v3118 = vunpack.c.l.b16 %v3030
  %v3119 = vunpack.c.h.b16 %v3030
  %v3120 = vunpack.c.l.b16 %v3031
  %v3121 = vunpack.c.h.b16 %v3031
  %v3122 = vunpack.c.l.b16 %v3032
  %v3123 = vunpack.c.h.b16 %v3032
  %v3124 = vunpack.c.l.b16 %v3033
  %v3125 = vunpack.c.h.b16 %v3033
  %v3126 = vunpack.c.l.b16 %v3034
  %v3127 = vunpack.c.h.b16 %v3034
  %v3128 = vunpack.c.l.b16 %v3035
  %v3129 = vunpack.c.h.b16 %v3035
  %v3130 = vunpack.c.l.b16 %v3036
  %v3131 = vunpack.c.h.b16 %v3036
  %v3132 = vunpack.c.l.b16 %v3037
  %v3133 = vunpack.c.h.b16 %v3037
  %v3134 = vpack.c.b16 %v3074, %v3070
  %v3135 = vpack.c.b16 %v3075, %v3071
  %v3136 = vpack.c.b16 %v3076, %v3072
  %v3137 = vpack.c.b16 %v3077, %v3073
  %v3138 = vpack.c.b16 %v3082, %v3078
  %v3139 = vpack.c.b16 %v3083, %v3079
  %v3140 = vpack.c.b16 %v3084, %v3080
  %v3141 = vpack.c.b16 %v3085, %v3081
  %v3142 = vpack.c.b16 %v3090, %v3086
  %v3143 = vpack.c.b16 %v3091, %v3087
  %v3144 = vpack.c.b16 %v3092, %v3088
  %v3145 = vpack.c.b16 %v3093, %v3089
  %v3146 = vpack.c.b16 %v3098, %v3094
  %v3147 = vpack.c.b16 %v3099, %v3095
  %v3148 = vpack.c.b16 %v3100, %v3096
  %v3149 = vpack.c.b16 %v3101, %v3097
  %v3150 = vpack.c.b16 %v3106, %v3102
  %v3151 = vpack.c.b16 %v3107, %v3103
  %v3152 = vpack.c.b16 %v3108, %v3104
  %v3153 = vpack.c.b16 %v3109, %v3105
  %v3154 = vpack.c.b16 %v3114, %v3110
  %v3155 = vpack.c.b16 %v3115, %v3111
  %v3156 = vpack.c.b16 %v3116, %v3112
  %v3157 = vpack.c.b16 %v3117, %v3113
  %v3158 = vpack.c.b16 %v3122, %v3118
  %v3159 = vpack.c.b16 %v3123, %v3119
  %v3160 = vpack.c.b16 %v3124, %v3120
  %v3161 = vpack.c.b16 %v3125, %v3121
  %v3162 = vpack.c.b16 %v3130, %v3126
  %v3163 = vpack.c.b16 %v3131, %v3127
  %v3164 = vpack.c.b16 %v3132, %v3128
  %v3165 = vpack.c.b16 %v3133, %v3129
  %3198 = vmatprep.subr.bf16.mxu0 %v3163
  %3199 = vmatpush1.bf16.msra.mxu0 %v3162
  %3200 = vmatprep.subr.bf16.mxu0 %v3159
  %3201 = vmatpush1.bf16.msra.mxu0 %v3158
  %3202 = vmatprep.subr.bf16.mxu0 %v3155
  %3203 = vmatpush1.bf16.msra.mxu0 %v3154
  %3204 = vmatprep.subr.bf16.mxu0 %v3151
  %3205 = vmatpush1.bf16.msra.mxu0 %v3150
  %3206 = vmatprep.subr.bf16.mxu0 %v3147
  %3207 = vmatpush1.bf16.msra.mxu0 %v3146
  %3208 = vmatprep.subr.bf16.mxu0 %v3143
  %3209 = vmatpush1.bf16.msra.mxu0 %v3142
  %3210 = vmatprep.subr.bf16.mxu0 %v3139
  %3211 = vmatpush1.bf16.msra.mxu0 %v3138
  %3212 = vmatprep.subr.bf16.mxu0 %v3135
  %3213 = vmatpush1.bf16.msra.mxu0 %v3134
  %3214 = vmatprep.subr.bf16.mxu0 0
  %3215 = vmatpush2.bf16.msra.mxu0 0
  %3216 = vmatprep.subr.bf16.mxu0 0
  %3217 = vmatpush2.bf16.msra.mxu0 0
  %3218 = vmatprep.subr.bf16.mxu0 0
  %3219 = vmatpush2.bf16.msra.mxu0 0
  %3220 = vmatprep.subr.bf16.mxu0 0
  %3221 = vmatpush2.bf16.msra.mxu0 0
  %3222 = vmatprep.subr.bf16.mxu0 0
  %3223 = vmatpush2.bf16.msra.mxu0 0
  %3224 = vmatprep.subr.bf16.mxu0 0
  %3225 = vmatpush2.bf16.msra.mxu0 0
  %3226 = vmatprep.subr.bf16.mxu0 0
  %3227 = vmatpush2.bf16.msra.mxu0 0
  %3228 = vmatprep.subr.bf16.mxu0 0
  %3229 = vmatpush2.bf16.msra.mxu0 0
  %3230 = vmatprep.mubr.bf16.mxu0 0
  %3231 = vmatmul.mubr.bf16.gmra.mxu0 %v3005
  %v3232 = vpop.f32.mrf.mxu0
  %v3233 = vadd.f32 0.0, %v3232
  %v3234 = vpop.f32.mrf.mxu0
  %v3235 = vadd.f32 0.0, %v3234
  %v3236 = vpop.f32.mrf.mxu0
  %v3237 = vpop.f32.mrf.mxu0
  %3238 = vdwg.mxu0
  %3239 = vmatprep.subr.bf16.mxu0 %v3165
  %3240 = vmatpush1.bf16.msra.mxu0 %v3164
  %3241 = vmatprep.subr.bf16.mxu0 %v3161
  %3242 = vmatpush1.bf16.msra.mxu0 %v3160
  %3243 = vmatprep.subr.bf16.mxu0 %v3157
  %3244 = vmatpush1.bf16.msra.mxu0 %v3156
  %3245 = vmatprep.subr.bf16.mxu0 %v3153
  %3246 = vmatpush1.bf16.msra.mxu0 %v3152
  %3247 = vmatprep.subr.bf16.mxu0 %v3149
  %3248 = vmatpush1.bf16.msra.mxu0 %v3148
  %3249 = vmatprep.subr.bf16.mxu0 %v3145
  %3250 = vmatpush1.bf16.msra.mxu0 %v3144
  %3251 = vmatprep.subr.bf16.mxu0 %v3141
  %3252 = vmatpush1.bf16.msra.mxu0 %v3140
  %3253 = vmatprep.subr.bf16.mxu0 %v3137
  %3254 = vmatpush1.bf16.msra.mxu0 %v3136
  %3255 = vmatprep.subr.bf16.mxu0 0
  %3256 = vmatpush2.bf16.msra.mxu0 0
  %3257 = vmatprep.subr.bf16.mxu0 0
  %3258 = vmatpush2.bf16.msra.mxu0 0
  %3259 = vmatprep.subr.bf16.mxu0 0
  %3260 = vmatpush2.bf16.msra.mxu0 0
  %3261 = vmatprep.subr.bf16.mxu0 0
  %3262 = vmatpush2.bf16.msra.mxu0 0
  %3263 = vmatprep.subr.bf16.mxu0 0
  %3264 = vmatpush2.bf16.msra.mxu0 0
  %3265 = vmatprep.subr.bf16.mxu0 0
  %3266 = vmatpush2.bf16.msra.mxu0 0
  %3267 = vmatprep.subr.bf16.mxu0 0
  %3268 = vmatpush2.bf16.msra.mxu0 0
  %3269 = vmatprep.subr.bf16.mxu0 0
  %3270 = vmatpush2.bf16.msra.mxu0 0
  %3271 = vmatprep.mubr.bf16.mxu0 0
  %3272 = vmatmul.mubr.bf16.gmra.mxu0 %v3005
  %v3273 = vpop.f32.mrf.mxu0
  %v3274 = vadd.f32 0.0, %v3273
  %v3275 = vpop.f32.mrf.mxu0
  %v3276 = vadd.f32 0.0, %v3275
  %v3277 = vpop.f32.mrf.mxu0
  %v3278 = vpop.f32.mrf.mxu0
  %3279 = vdwg.mxu0
  %v3280 = vadd.f32 %v3001, %v3233
  %v3281 = vadd.f32 %v3002, %v3235
  %v3282 = vadd.f32 %v3003, %v3274
  %v3283 = vadd.f32 %v3004, %v3276
  %v3284 = vxor.u32 %v2994, 2147483648
  %v3285 = vxor.u32 %v2995, 2147483648
  %v3286 = vxor.u32 %v2996, 2147483648
  %v3287 = vmul.f32 %v3284, 1.442695
  %v3288 = vpow.pop %v3287
  %v3289 = vmul.f32 %v3285, 1.442695
  %v3290 = vpow.pop %v3289
  %v3291 = vmul.f32 %v3286, 1.442695
  %v3292 = vpow.pop %v3291
  %v3293 = vadd.f32 %v3288, 1.0
  %v3294 = vadd.f32 %v3290, 1.0
  %v3295 = vadd.f32 %v3292, 1.0
  %v3296 = vrcp.pop %v3293
  %v3297 = vmul.f32 1.0, %v3296
  %v3298 = vrcp.pop %v3294
  %v3299 = vmul.f32 1.0, %v3298
  %v3300 = vrcp.pop %v3295
  %v3301 = vmul.f32 1.0, %v3300
  %v3302 = vtanh.pop %v2997
  %v3303 = vmul.f32 %v3299, %v2677
  %v3304 = vmul.f32 %v3297, %v3302
  %v3305 = vadd.f32 %v3303, %v3304
  %v3306 = vtanh.pop %v3305
  %v3307 = vmul.f32 %v3301, %v3306
  %v3308 = vxor.u32 %v3280, 2147483648
  %v3309 = vxor.u32 %v3281, 2147483648
  %v3310 = vxor.u32 %v3282, 2147483648
  %v3311 = vmul.f32 %v3308, 1.442695
  %v3312 = vpow.pop %v3311
  %v3313 = vmul.f32 %v3309, 1.442695
  %v3314 = vpow.pop %v3313
  %v3315 = vmul.f32 %v3310, 1.442695
  %v3316 = vpow.pop %v3315
  %v3317 = vadd.f32 %v3312, 1.0
  %v3318 = vadd.f32 %v3314, 1.0
  %v3319 = vadd.f32 %v3316, 1.0
  %v3320 = vrcp.pop %v3317
  %v3321 = vmul.f32 1.0, %v3320
  %v3322 = vrcp.pop %v3318
  %v3323 = vmul.f32 1.0, %v3322
  %v3324 = vrcp.pop %v3319
  %v3325 = vmul.f32 1.0, %v3324
  %v3326 = vtanh.pop %v3283
  %v3327 = vmul.f32 %v3323, %v2701
  %v3328 = vmul.f32 %v3321, %v3326
  %v3329 = vadd.f32 %v3327, %v3328
  %v3330 = vtanh.pop %v3329
  %v3331 = vmul.f32 %v3325, %v3330
  %s3332 = smul.u32 3, 2
  %s3333 = smul.addr %s3332, 8
  %s3334 = scalar_lea.vmem [#allocation3], %s3333
  %3335 = vst [vmem:[%s3334] sm:$0xff] %v3307
  %s3336 = smul.u32 4, 2
  %s3337 = smul.addr %s3336, 8
  %s3338 = scalar_lea.vmem [#allocation3], %s3337
  %3339 = vst [vmem:[%s3338 + $0x8] sm:$0xff] %v3331
  %v3340 = vld [vmem:[%s3000] sm:$0xff]
  %v3341 = vld [vmem:[%s3000 + $0x8] sm:$0xff]
  %v3342 = vld [vmem:[%s3000 + $0x10] sm:$0xff]
  %v3343 = vld [vmem:[%s3000 + $0x18] sm:$0xff]
  %v3344 = vpack.c.bf16 %v3307, %v3307
  %v3345 = vld [vmem:[%s2] sm:$0xff]
  %v3346 = vld [vmem:[%s2 + $0x8] sm:$0xff]
  %v3347 = vld [vmem:[%s2 + $0x10] sm:$0xff]
  %v3348 = vld [vmem:[%s2 + $0x18] sm:$0xff]
  %v3349 = vld [vmem:[%s2 + $0x20] sm:$0xff]
  %v3350 = vld [vmem:[%s2 + $0x28] sm:$0xff]
  %v3351 = vld [vmem:[%s2 + $0x30] sm:$0xff]
  %v3352 = vld [vmem:[%s2 + $0x38] sm:$0xff]
  %v3353 = vld [vmem:[%s2 + $0x40] sm:$0xff]
  %v3354 = vld [vmem:[%s2 + $0x48] sm:$0xff]
  %v3355 = vld [vmem:[%s2 + $0x50] sm:$0xff]
  %v3356 = vld [vmem:[%s2 + $0x58] sm:$0xff]
  %v3357 = vld [vmem:[%s2 + $0x60] sm:$0xff]
  %v3358 = vld [vmem:[%s2 + $0x68] sm:$0xff]
  %v3359 = vld [vmem:[%s2 + $0x70] sm:$0xff]
  %v3360 = vld [vmem:[%s2 + $0x78] sm:$0xff]
  %v3361 = vld [vmem:[%s2 + $0x80] sm:$0xff]
  %v3362 = vld [vmem:[%s2 + $0x88] sm:$0xff]
  %v3363 = vld [vmem:[%s2 + $0x90] sm:$0xff]
  %v3364 = vld [vmem:[%s2 + $0x98] sm:$0xff]
  %v3365 = vld [vmem:[%s2 + $0xa0] sm:$0xff]
  %v3366 = vld [vmem:[%s2 + $0xa8] sm:$0xff]
  %v3367 = vld [vmem:[%s2 + $0xb0] sm:$0xff]
  %v3368 = vld [vmem:[%s2 + $0xb8] sm:$0xff]
  %v3369 = vld [vmem:[%s2 + $0xc0] sm:$0xff]
  %v3370 = vld [vmem:[%s2 + $0xc8] sm:$0xff]
  %v3371 = vld [vmem:[%s2 + $0xd0] sm:$0xff]
  %v3372 = vld [vmem:[%s2 + $0xd8] sm:$0xff]
  %v3373 = vld [vmem:[%s2 + $0xe0] sm:$0xff]
  %v3374 = vld [vmem:[%s2 + $0xe8] sm:$0xff]
  %v3375 = vld [vmem:[%s2 + $0xf0] sm:$0xff]
  %v3376 = vld [vmem:[%s2 + $0xf8] sm:$0xff]
  %v3409 = vunpack.c.l.b16 %v3345
  %v3410 = vunpack.c.h.b16 %v3345
  %v3411 = vunpack.c.l.b16 %v3346
  %v3412 = vunpack.c.h.b16 %v3346
  %v3413 = vunpack.c.l.b16 %v3347
  %v3414 = vunpack.c.h.b16 %v3347
  %v3415 = vunpack.c.l.b16 %v3348
  %v3416 = vunpack.c.h.b16 %v3348
  %v3417 = vunpack.c.l.b16 %v3349
  %v3418 = vunpack.c.h.b16 %v3349
  %v3419 = vunpack.c.l.b16 %v3350
  %v3420 = vunpack.c.h.b16 %v3350
  %v3421 = vunpack.c.l.b16 %v3351
  %v3422 = vunpack.c.h.b16 %v3351
  %v3423 = vunpack.c.l.b16 %v3352
  %v3424 = vunpack.c.h.b16 %v3352
  %v3425 = vunpack.c.l.b16 %v3353
  %v3426 = vunpack.c.h.b16 %v3353
  %v3427 = vunpack.c.l.b16 %v3354
  %v3428 = vunpack.c.h.b16 %v3354
  %v3429 = vunpack.c.l.b16 %v3355
  %v3430 = vunpack.c.h.b16 %v3355
  %v3431 = vunpack.c.l.b16 %v3356
  %v3432 = vunpack.c.h.b16 %v3356
  %v3433 = vunpack.c.l.b16 %v3357
  %v3434 = vunpack.c.h.b16 %v3357
  %v3435 = vunpack.c.l.b16 %v3358
  %v3436 = vunpack.c.h.b16 %v3358
  %v3437 = vunpack.c.l.b16 %v3359
  %v3438 = vunpack.c.h.b16 %v3359
  %v3439 = vunpack.c.l.b16 %v3360
  %v3440 = vunpack.c.h.b16 %v3360
  %v3441 = vunpack.c.l.b16 %v3361
  %v3442 = vunpack.c.h.b16 %v3361
  %v3443 = vunpack.c.l.b16 %v3362
  %v3444 = vunpack.c.h.b16 %v3362
  %v3445 = vunpack.c.l.b16 %v3363
  %v3446 = vunpack.c.h.b16 %v3363
  %v3447 = vunpack.c.l.b16 %v3364
  %v3448 = vunpack.c.h.b16 %v3364
  %v3449 = vunpack.c.l.b16 %v3365
  %v3450 = vunpack.c.h.b16 %v3365
  %v3451 = vunpack.c.l.b16 %v3366
  %v3452 = vunpack.c.h.b16 %v3366
  %v3453 = vunpack.c.l.b16 %v3367
  %v3454 = vunpack.c.h.b16 %v3367
  %v3455 = vunpack.c.l.b16 %v3368
  %v3456 = vunpack.c.h.b16 %v3368
  %v3457 = vunpack.c.l.b16 %v3369
  %v3458 = vunpack.c.h.b16 %v3369
  %v3459 = vunpack.c.l.b16 %v3370
  %v3460 = vunpack.c.h.b16 %v3370
  %v3461 = vunpack.c.l.b16 %v3371
  %v3462 = vunpack.c.h.b16 %v3371
  %v3463 = vunpack.c.l.b16 %v3372
  %v3464 = vunpack.c.h.b16 %v3372
  %v3465 = vunpack.c.l.b16 %v3373
  %v3466 = vunpack.c.h.b16 %v3373
  %v3467 = vunpack.c.l.b16 %v3374
  %v3468 = vunpack.c.h.b16 %v3374
  %v3469 = vunpack.c.l.b16 %v3375
  %v3470 = vunpack.c.h.b16 %v3375
  %v3471 = vunpack.c.l.b16 %v3376
  %v3472 = vunpack.c.h.b16 %v3376
  %v3473 = vpack.c.b16 %v3413, %v3409
  %v3474 = vpack.c.b16 %v3414, %v3410
  %v3475 = vpack.c.b16 %v3415, %v3411
  %v3476 = vpack.c.b16 %v3416, %v3412
  %v3477 = vpack.c.b16 %v3421, %v3417
  %v3478 = vpack.c.b16 %v3422, %v3418
  %v3479 = vpack.c.b16 %v3423, %v3419
  %v3480 = vpack.c.b16 %v3424, %v3420
  %v3481 = vpack.c.b16 %v3429, %v3425
  %v3482 = vpack.c.b16 %v3430, %v3426
  %v3483 = vpack.c.b16 %v3431, %v3427
  %v3484 = vpack.c.b16 %v3432, %v3428
  %v3485 = vpack.c.b16 %v3437, %v3433
  %v3486 = vpack.c.b16 %v3438, %v3434
  %v3487 = vpack.c.b16 %v3439, %v3435
  %v3488 = vpack.c.b16 %v3440, %v3436
  %v3489 = vpack.c.b16 %v3445, %v3441
  %v3490 = vpack.c.b16 %v3446, %v3442
  %v3491 = vpack.c.b16 %v3447, %v3443
  %v3492 = vpack.c.b16 %v3448, %v3444
  %v3493 = vpack.c.b16 %v3453, %v3449
  %v3494 = vpack.c.b16 %v3454, %v3450
  %v3495 = vpack.c.b16 %v3455, %v3451
  %v3496 = vpack.c.b16 %v3456, %v3452
  %v3497 = vpack.c.b16 %v3461, %v3457
  %v3498 = vpack.c.b16 %v3462, %v3458
  %v3499 = vpack.c.b16 %v3463, %v3459
  %v3500 = vpack.c.b16 %v3464, %v3460
  %v3501 = vpack.c.b16 %v3469, %v3465
  %v3502 = vpack.c.b16 %v3470, %v3466
  %v3503 = vpack.c.b16 %v3471, %v3467
  %v3504 = vpack.c.b16 %v3472, %v3468
  %3537 = vmatprep.subr.bf16.mxu0 %v3502
  %3538 = vmatpush1.bf16.msra.mxu0 %v3501
  %3539 = vmatprep.subr.bf16.mxu0 %v3498
  %3540 = vmatpush1.bf16.msra.mxu0 %v3497
  %3541 = vmatprep.subr.bf16.mxu0 %v3494
  %3542 = vmatpush1.bf16.msra.mxu0 %v3493
  %3543 = vmatprep.subr.bf16.mxu0 %v3490
  %3544 = vmatpush1.bf16.msra.mxu0 %v3489
  %3545 = vmatprep.subr.bf16.mxu0 %v3486
  %3546 = vmatpush1.bf16.msra.mxu0 %v3485
  %3547 = vmatprep.subr.bf16.mxu0 %v3482
  %3548 = vmatpush1.bf16.msra.mxu0 %v3481
  %3549 = vmatprep.subr.bf16.mxu0 %v3478
  %3550 = vmatpush1.bf16.msra.mxu0 %v3477
  %3551 = vmatprep.subr.bf16.mxu0 %v3474
  %3552 = vmatpush1.bf16.msra.mxu0 %v3473
  %3553 = vmatprep.subr.bf16.mxu0 0
  %3554 = vmatpush2.bf16.msra.mxu0 0
  %3555 = vmatprep.subr.bf16.mxu0 0
  %3556 = vmatpush2.bf16.msra.mxu0 0
  %3557 = vmatprep.subr.bf16.mxu0 0
  %3558 = vmatpush2.bf16.msra.mxu0 0
  %3559 = vmatprep.subr.bf16.mxu0 0
  %3560 = vmatpush2.bf16.msra.mxu0 0
  %3561 = vmatprep.subr.bf16.mxu0 0
  %3562 = vmatpush2.bf16.msra.mxu0 0
  %3563 = vmatprep.subr.bf16.mxu0 0
  %3564 = vmatpush2.bf16.msra.mxu0 0
  %3565 = vmatprep.subr.bf16.mxu0 0
  %3566 = vmatpush2.bf16.msra.mxu0 0
  %3567 = vmatprep.subr.bf16.mxu0 0
  %3568 = vmatpush2.bf16.msra.mxu0 0
  %3569 = vmatprep.mubr.bf16.mxu0 0
  %3570 = vmatmul.mubr.bf16.gmra.mxu0 %v3344
  %v3571 = vpop.f32.mrf.mxu0
  %v3572 = vadd.f32 0.0, %v3571
  %v3573 = vpop.f32.mrf.mxu0
  %v3574 = vadd.f32 0.0, %v3573
  %v3575 = vpop.f32.mrf.mxu0
  %v3576 = vpop.f32.mrf.mxu0
  %3577 = vdwg.mxu0
  %3578 = vmatprep.subr.bf16.mxu0 %v3504
  %3579 = vmatpush1.bf16.msra.mxu0 %v3503
  %3580 = vmatprep.subr.bf16.mxu0 %v3500
  %3581 = vmatpush1.bf16.msra.mxu0 %v3499
  %3582 = vmatprep.subr.bf16.mxu0 %v3496
  %3583 = vmatpush1.bf16.msra.mxu0 %v3495
  %3584 = vmatprep.subr.bf16.mxu0 %v3492
  %3585 = vmatpush1.bf16.msra.mxu0 %v3491
  %3586 = vmatprep.subr.bf16.mxu0 %v3488
  %3587 = vmatpush1.bf16.msra.mxu0 %v3487
  %3588 = vmatprep.subr.bf16.mxu0 %v3484
  %3589 = vmatpush1.bf16.msra.mxu0 %v3483
  %3590 = vmatprep.subr.bf16.mxu0 %v3480
  %3591 = vmatpush1.bf16.msra.mxu0 %v3479
  %3592 = vmatprep.subr.bf16.mxu0 %v3476
  %3593 = vmatpush1.bf16.msra.mxu0 %v3475
  %3594 = vmatprep.subr.bf16.mxu0 0
  %3595 = vmatpush2.bf16.msra.mxu0 0
  %3596 = vmatprep.subr.bf16.mxu0 0
  %3597 = vmatpush2.bf16.msra.mxu0 0
  %3598 = vmatprep.subr.bf16.mxu0 0
  %3599 = vmatpush2.bf16.msra.mxu0 0
  %3600 = vmatprep.subr.bf16.mxu0 0
  %3601 = vmatpush2.bf16.msra.mxu0 0
  %3602 = vmatprep.subr.bf16.mxu0 0
  %3603 = vmatpush2.bf16.msra.mxu0 0
  %3604 = vmatprep.subr.bf16.mxu0 0
  %3605 = vmatpush2.bf16.msra.mxu0 0
  %3606 = vmatprep.subr.bf16.mxu0 0
  %3607 = vmatpush2.bf16.msra.mxu0 0
  %3608 = vmatprep.subr.bf16.mxu0 0
  %3609 = vmatpush2.bf16.msra.mxu0 0
  %3610 = vmatprep.mubr.bf16.mxu0 0
  %3611 = vmatmul.mubr.bf16.gmra.mxu0 %v3344
  %v3612 = vpop.f32.mrf.mxu0
  %v3613 = vadd.f32 0.0, %v3612
  %v3614 = vpop.f32.mrf.mxu0
  %v3615 = vadd.f32 0.0, %v3614
  %v3616 = vpop.f32.mrf.mxu0
  %v3617 = vpop.f32.mrf.mxu0
  %3618 = vdwg.mxu0
  %v3619 = vadd.f32 %v3340, %v3572
  %v3620 = vadd.f32 %v3341, %v3574
  %v3621 = vadd.f32 %v3342, %v3613
  %v3622 = vadd.f32 %v3343, %v3615
  %v3623 = vld [vmem:[%s2714 + $0x20] sm:$0xff]
  %v3624 = vld [vmem:[%s2714 + $0x28] sm:$0xff]
  %v3625 = vld [vmem:[%s2714 + $0x30] sm:$0xff]
  %v3626 = vld [vmem:[%s2714 + $0x38] sm:$0xff]
  %v3627 = vpack.c.bf16 %v3331, %v3331
  %v3628 = vld [vmem:[%s3] sm:$0xff]
  %v3629 = vld [vmem:[%s3 + $0x8] sm:$0xff]
  %v3630 = vld [vmem:[%s3 + $0x10] sm:$0xff]
  %v3631 = vld [vmem:[%s3 + $0x18] sm:$0xff]
  %v3632 = vld [vmem:[%s3 + $0x20] sm:$0xff]
  %v3633 = vld [vmem:[%s3 + $0x28] sm:$0xff]
  %v3634 = vld [vmem:[%s3 + $0x30] sm:$0xff]
  %v3635 = vld [vmem:[%s3 + $0x38] sm:$0xff]
  %v3636 = vld [vmem:[%s3 + $0x40] sm:$0xff]
  %v3637 = vld [vmem:[%s3 + $0x48] sm:$0xff]
  %v3638 = vld [vmem:[%s3 + $0x50] sm:$0xff]
  %v3639 = vld [vmem:[%s3 + $0x58] sm:$0xff]
  %v3640 = vld [vmem:[%s3 + $0x60] sm:$0xff]
  %v3641 = vld [vmem:[%s3 + $0x68] sm:$0xff]
  %v3642 = vld [vmem:[%s3 + $0x70] sm:$0xff]
  %v3643 = vld [vmem:[%s3 + $0x78] sm:$0xff]
  %v3644 = vld [vmem:[%s3 + $0x80] sm:$0xff]
  %v3645 = vld [vmem:[%s3 + $0x88] sm:$0xff]
  %v3646 = vld [vmem:[%s3 + $0x90] sm:$0xff]
  %v3647 = vld [vmem:[%s3 + $0x98] sm:$0xff]
  %v3648 = vld [vmem:[%s3 + $0xa0] sm:$0xff]
  %v3649 = vld [vmem:[%s3 + $0xa8] sm:$0xff]
  %v3650 = vld [vmem:[%s3 + $0xb0] sm:$0xff]
  %v3651 = vld [vmem:[%s3 + $0xb8] sm:$0xff]
  %v3652 = vld [vmem:[%s3 + $0xc0] sm:$0xff]
  %v3653 = vld [vmem:[%s3 + $0xc8] sm:$0xff]
  %v3654 = vld [vmem:[%s3 + $0xd0] sm:$0xff]
  %v3655 = vld [vmem:[%s3 + $0xd8] sm:$0xff]
  %v3656 = vld [vmem:[%s3 + $0xe0] sm:$0xff]
  %v3657 = vld [vmem:[%s3 + $0xe8] sm:$0xff]
  %v3658 = vld [vmem:[%s3 + $0xf0] sm:$0xff]
  %v3659 = vld [vmem:[%s3 + $0xf8] sm:$0xff]
  %v3692 = vunpack.c.l.b16 %v3628
  %v3693 = vunpack.c.h.b16 %v3628
  %v3694 = vunpack.c.l.b16 %v3629
  %v3695 = vunpack.c.h.b16 %v3629
  %v3696 = vunpack.c.l.b16 %v3630
  %v3697 = vunpack.c.h.b16 %v3630
  %v3698 = vunpack.c.l.b16 %v3631
  %v3699 = vunpack.c.h.b16 %v3631
  %v3700 = vunpack.c.l.b16 %v3632
  %v3701 = vunpack.c.h.b16 %v3632
  %v3702 = vunpack.c.l.b16 %v3633
  %v3703 = vunpack.c.h.b16 %v3633
  %v3704 = vunpack.c.l.b16 %v3634
  %v3705 = vunpack.c.h.b16 %v3634
  %v3706 = vunpack.c.l.b16 %v3635
  %v3707 = vunpack.c.h.b16 %v3635
  %v3708 = vunpack.c.l.b16 %v3636
  %v3709 = vunpack.c.h.b16 %v3636
  %v3710 = vunpack.c.l.b16 %v3637
  %v3711 = vunpack.c.h.b16 %v3637
  %v3712 = vunpack.c.l.b16 %v3638
  %v3713 = vunpack.c.h.b16 %v3638
  %v3714 = vunpack.c.l.b16 %v3639
  %v3715 = vunpack.c.h.b16 %v3639
  %v3716 = vunpack.c.l.b16 %v3640
  %v3717 = vunpack.c.h.b16 %v3640
  %v3718 = vunpack.c.l.b16 %v3641
  %v3719 = vunpack.c.h.b16 %v3641
  %v3720 = vunpack.c.l.b16 %v3642
  %v3721 = vunpack.c.h.b16 %v3642
  %v3722 = vunpack.c.l.b16 %v3643
  %v3723 = vunpack.c.h.b16 %v3643
  %v3724 = vunpack.c.l.b16 %v3644
  %v3725 = vunpack.c.h.b16 %v3644
  %v3726 = vunpack.c.l.b16 %v3645
  %v3727 = vunpack.c.h.b16 %v3645
  %v3728 = vunpack.c.l.b16 %v3646
  %v3729 = vunpack.c.h.b16 %v3646
  %v3730 = vunpack.c.l.b16 %v3647
  %v3731 = vunpack.c.h.b16 %v3647
  %v3732 = vunpack.c.l.b16 %v3648
  %v3733 = vunpack.c.h.b16 %v3648
  %v3734 = vunpack.c.l.b16 %v3649
  %v3735 = vunpack.c.h.b16 %v3649
  %v3736 = vunpack.c.l.b16 %v3650
  %v3737 = vunpack.c.h.b16 %v3650
  %v3738 = vunpack.c.l.b16 %v3651
  %v3739 = vunpack.c.h.b16 %v3651
  %v3740 = vunpack.c.l.b16 %v3652
  %v3741 = vunpack.c.h.b16 %v3652
  %v3742 = vunpack.c.l.b16 %v3653
  %v3743 = vunpack.c.h.b16 %v3653
  %v3744 = vunpack.c.l.b16 %v3654
  %v3745 = vunpack.c.h.b16 %v3654
  %v3746 = vunpack.c.l.b16 %v3655
  %v3747 = vunpack.c.h.b16 %v3655
  %v3748 = vunpack.c.l.b16 %v3656
  %v3749 = vunpack.c.h.b16 %v3656
  %v3750 = vunpack.c.l.b16 %v3657
  %v3751 = vunpack.c.h.b16 %v3657
  %v3752 = vunpack.c.l.b16 %v3658
  %v3753 = vunpack.c.h.b16 %v3658
  %v3754 = vunpack.c.l.b16 %v3659
  %v3755 = vunpack.c.h.b16 %v3659
  %v3756 = vpack.c.b16 %v3696, %v3692
  %v3757 = vpack.c.b16 %v3697, %v3693
  %v3758 = vpack.c.b16 %v3698, %v3694
  %v3759 = vpack.c.b16 %v3699, %v3695
  %v3760 = vpack.c.b16 %v3704, %v3700
  %v3761 = vpack.c.b16 %v3705, %v3701
  %v3762 = vpack.c.b16 %v3706, %v3702
  %v3763 = vpack.c.b16 %v3707, %v3703
  %v3764 = vpack.c.b16 %v3712, %v3708
  %v3765 = vpack.c.b16 %v3713, %v3709
  %v3766 = vpack.c.b16 %v3714, %v3710
  %v3767 = vpack.c.b16 %v3715, %v3711
  %v3768 = vpack.c.b16 %v3720, %v3716
  %v3769 = vpack.c.b16 %v3721, %v3717
  %v3770 = vpack.c.b16 %v3722, %v3718
  %v3771 = vpack.c.b16 %v3723, %v3719
  %v3772 = vpack.c.b16 %v3728, %v3724
  %v3773 = vpack.c.b16 %v3729, %v3725
  %v3774 = vpack.c.b16 %v3730, %v3726
  %v3775 = vpack.c.b16 %v3731, %v3727
  %v3776 = vpack.c.b16 %v3736, %v3732
  %v3777 = vpack.c.b16 %v3737, %v3733
  %v3778 = vpack.c.b16 %v3738, %v3734
  %v3779 = vpack.c.b16 %v3739, %v3735
  %v3780 = vpack.c.b16 %v3744, %v3740
  %v3781 = vpack.c.b16 %v3745, %v3741
  %v3782 = vpack.c.b16 %v3746, %v3742
  %v3783 = vpack.c.b16 %v3747, %v3743
  %v3784 = vpack.c.b16 %v3752, %v3748
  %v3785 = vpack.c.b16 %v3753, %v3749
  %v3786 = vpack.c.b16 %v3754, %v3750
  %v3787 = vpack.c.b16 %v3755, %v3751
  %3820 = vmatprep.subr.bf16.mxu0 %v3785
  %3821 = vmatpush1.bf16.msra.mxu0 %v3784
  %3822 = vmatprep.subr.bf16.mxu0 %v3781
  %3823 = vmatpush1.bf16.msra.mxu0 %v3780
  %3824 = vmatprep.subr.bf16.mxu0 %v3777
  %3825 = vmatpush1.bf16.msra.mxu0 %v3776
  %3826 = vmatprep.subr.bf16.mxu0 %v3773
  %3827 = vmatpush1.bf16.msra.mxu0 %v3772
  %3828 = vmatprep.subr.bf16.mxu0 %v3769
  %3829 = vmatpush1.bf16.msra.mxu0 %v3768
  %3830 = vmatprep.subr.bf16.mxu0 %v3765
  %3831 = vmatpush1.bf16.msra.mxu0 %v3764
  %3832 = vmatprep.subr.bf16.mxu0 %v3761
  %3833 = vmatpush1.bf16.msra.mxu0 %v3760
  %3834 = vmatprep.subr.bf16.mxu0 %v3757
  %3835 = vmatpush1.bf16.msra.mxu0 %v3756
  %3836 = vmatprep.subr.bf16.mxu0 0
  %3837 = vmatpush2.bf16.msra.mxu0 0
  %3838 = vmatprep.subr.bf16.mxu0 0
  %3839 = vmatpush2.bf16.msra.mxu0 0
  %3840 = vmatprep.subr.bf16.mxu0 0
  %3841 = vmatpush2.bf16.msra.mxu0 0
  %3842 = vmatprep.subr.bf16.mxu0 0
  %3843 = vmatpush2.bf16.msra.mxu0 0
  %3844 = vmatprep.subr.bf16.mxu0 0
  %3845 = vmatpush2.bf16.msra.mxu0 0
  %3846 = vmatprep.subr.bf16.mxu0 0
  %3847 = vmatpush2.bf16.msra.mxu0 0
  %3848 = vmatprep.subr.bf16.mxu0 0
  %3849 = vmatpush2.bf16.msra.mxu0 0
  %3850 = vmatprep.subr.bf16.mxu0 0
  %3851 = vmatpush2.bf16.msra.mxu0 0
  %3852 = vmatprep.mubr.bf16.mxu0 0
  %3853 = vmatmul.mubr.bf16.gmra.mxu0 %v3627
  %v3854 = vpop.f32.mrf.mxu0
  %v3855 = vadd.f32 0.0, %v3854
  %v3856 = vpop.f32.mrf.mxu0
  %v3857 = vadd.f32 0.0, %v3856
  %v3858 = vpop.f32.mrf.mxu0
  %v3859 = vpop.f32.mrf.mxu0
  %3860 = vdwg.mxu0
  %3861 = vmatprep.subr.bf16.mxu0 %v3787
  %3862 = vmatpush1.bf16.msra.mxu0 %v3786
  %3863 = vmatprep.subr.bf16.mxu0 %v3783
  %3864 = vmatpush1.bf16.msra.mxu0 %v3782
  %3865 = vmatprep.subr.bf16.mxu0 %v3779
  %3866 = vmatpush1.bf16.msra.mxu0 %v3778
  %3867 = vmatprep.subr.bf16.mxu0 %v3775
  %3868 = vmatpush1.bf16.msra.mxu0 %v3774
  %3869 = vmatprep.subr.bf16.mxu0 %v3771
  %3870 = vmatpush1.bf16.msra.mxu0 %v3770
  %3871 = vmatprep.subr.bf16.mxu0 %v3767
  %3872 = vmatpush1.bf16.msra.mxu0 %v3766
  %3873 = vmatprep.subr.bf16.mxu0 %v3763
  %3874 = vmatpush1.bf16.msra.mxu0 %v3762
  %3875 = vmatprep.subr.bf16.mxu0 %v3759
  %3876 = vmatpush1.bf16.msra.mxu0 %v3758
  %3877 = vmatprep.subr.bf16.mxu0 0
  %3878 = vmatpush2.bf16.msra.mxu0 0
  %3879 = vmatprep.subr.bf16.mxu0 0
  %3880 = vmatpush2.bf16.msra.mxu0 0
  %3881 = vmatprep.subr.bf16.mxu0 0
  %3882 = vmatpush2.bf16.msra.mxu0 0
  %3883 = vmatprep.subr.bf16.mxu0 0
  %3884 = vmatpush2.bf16.msra.mxu0 0
  %3885 = vmatprep.subr.bf16.mxu0 0
  %3886 = vmatpush2.bf16.msra.mxu0 0
  %3887 = vmatprep.subr.bf16.mxu0 0
  %3888 = vmatpush2.bf16.msra.mxu0 0
  %3889 = vmatprep.subr.bf16.mxu0 0
  %3890 = vmatpush2.bf16.msra.mxu0 0
  %3891 = vmatprep.subr.bf16.mxu0 0
  %3892 = vmatpush2.bf16.msra.mxu0 0
  %3893 = vmatprep.mubr.bf16.mxu0 0
  %3894 = vmatmul.mubr.bf16.gmra.mxu0 %v3627
  %v3895 = vpop.f32.mrf.mxu0
  %v3896 = vadd.f32 0.0, %v3895
  %v3897 = vpop.f32.mrf.mxu0
  %v3898 = vadd.f32 0.0, %v3897
  %v3899 = vpop.f32.mrf.mxu0
  %v3900 = vpop.f32.mrf.mxu0
  %3901 = vdwg.mxu0
  %v3902 = vadd.f32 %v3623, %v3855
  %v3903 = vadd.f32 %v3624, %v3857
  %v3904 = vadd.f32 %v3625, %v3896
  %v3905 = vadd.f32 %v3626, %v3898
  %v3906 = vxor.u32 %v3619, 2147483648
  %v3907 = vxor.u32 %v3620, 2147483648
  %v3908 = vxor.u32 %v3621, 2147483648
  %v3909 = vmul.f32 %v3906, 1.442695
  %v3910 = vpow.pop %v3909
  %v3911 = vmul.f32 %v3907, 1.442695
  %v3912 = vpow.pop %v3911
  %v3913 = vmul.f32 %v3908, 1.442695
  %v3914 = vpow.pop %v3913
  %v3915 = vadd.f32 %v3910, 1.0
  %v3916 = vadd.f32 %v3912, 1.0
  %v3917 = vadd.f32 %v3914, 1.0
  %v3918 = vrcp.pop %v3915
  %v3919 = vmul.f32 1.0, %v3918
  %v3920 = vrcp.pop %v3916
  %v3921 = vmul.f32 1.0, %v3920
  %v3922 = vrcp.pop %v3917
  %v3923 = vmul.f32 1.0, %v3922
  %v3924 = vtanh.pop %v3622
  %v3925 = vmul.f32 %v3921, %v3305
  %v3926 = vmul.f32 %v3919, %v3924
  %v3927 = vadd.f32 %v3925, %v3926
  %v3928 = vtanh.pop %v3927
  %v3929 = vmul.f32 %v3923, %v3928
  %v3930 = vxor.u32 %v3902, 2147483648
  %v3931 = vxor.u32 %v3903, 2147483648
  %v3932 = vxor.u32 %v3904, 2147483648
  %v3933 = vmul.f32 %v3930, 1.442695
  %v3934 = vpow.pop %v3933
  %v3935 = vmul.f32 %v3931, 1.442695
  %v3936 = vpow.pop %v3935
  %v3937 = vmul.f32 %v3932, 1.442695
  %v3938 = vpow.pop %v3937
  %v3939 = vadd.f32 %v3934, 1.0
  %v3940 = vadd.f32 %v3936, 1.0
  %v3941 = vadd.f32 %v3938, 1.0
  %v3942 = vrcp.pop %v3939
  %v3943 = vmul.f32 1.0, %v3942
  %v3944 = vrcp.pop %v3940
  %v3945 = vmul.f32 1.0, %v3944
  %v3946 = vrcp.pop %v3941
  %v3947 = vmul.f32 1.0, %v3946
  %v3948 = vtanh.pop %v3905
  %v3949 = vmul.f32 %v3945, %v3329
  %v3950 = vmul.f32 %v3943, %v3948
  %v3951 = vadd.f32 %v3949, %v3950
  %v3952 = vtanh.pop %v3951
  %v3953 = vmul.f32 %v3947, %v3952
  %3954 = vst [vmem:[%s3338] sm:$0xff] %v3929
  %3955 = vst [vmem:[%s3334 + $0x8] sm:$0xff] %v3953
  %v3956 = vld [vmem:[%s2372] sm:$0xff]
  %v3957 = vld [vmem:[%s2372 + $0x8] sm:$0xff]
  %v3958 = vld [vmem:[%s2372 + $0x10] sm:$0xff]
  %v3959 = vld [vmem:[%s2372 + $0x18] sm:$0xff]
  %v3960 = vpack.c.bf16 %v3929, %v3929
  %v3961 = vld [vmem:[%s2] sm:$0xff]
  %v3962 = vld [vmem:[%s2 + $0x8] sm:$0xff]
  %v3963 = vld [vmem:[%s2 + $0x10] sm:$0xff]
  %v3964 = vld [vmem:[%s2 + $0x18] sm:$0xff]
  %v3965 = vld [vmem:[%s2 + $0x20] sm:$0xff]
  %v3966 = vld [vmem:[%s2 + $0x28] sm:$0xff]
  %v3967 = vld [vmem:[%s2 + $0x30] sm:$0xff]
  %v3968 = vld [vmem:[%s2 + $0x38] sm:$0xff]
  %v3969 = vld [vmem:[%s2 + $0x40] sm:$0xff]
  %v3970 = vld [vmem:[%s2 + $0x48] sm:$0xff]
  %v3971 = vld [vmem:[%s2 + $0x50] sm:$0xff]
  %v3972 = vld [vmem:[%s2 + $0x58] sm:$0xff]
  %v3973 = vld [vmem:[%s2 + $0x60] sm:$0xff]
  %v3974 = vld [vmem:[%s2 + $0x68] sm:$0xff]
  %v3975 = vld [vmem:[%s2 + $0x70] sm:$0xff]
  %v3976 = vld [vmem:[%s2 + $0x78] sm:$0xff]
  %v3977 = vld [vmem:[%s2 + $0x80] sm:$0xff]
  %v3978 = vld [vmem:[%s2 + $0x88] sm:$0xff]
  %v3979 = vld [vmem:[%s2 + $0x90] sm:$0xff]
  %v3980 = vld [vmem:[%s2 + $0x98] sm:$0xff]
  %v3981 = vld [vmem:[%s2 + $0xa0] sm:$0xff]
  %v3982 = vld [vmem:[%s2 + $0xa8] sm:$0xff]
  %v3983 = vld [vmem:[%s2 + $0xb0] sm:$0xff]
  %v3984 = vld [vmem:[%s2 + $0xb8] sm:$0xff]
  %v3985 = vld [vmem:[%s2 + $0xc0] sm:$0xff]
  %v3986 = vld [vmem:[%s2 + $0xc8] sm:$0xff]
  %v3987 = vld [vmem:[%s2 + $0xd0] sm:$0xff]
  %v3988 = vld [vmem:[%s2 + $0xd8] sm:$0xff]
  %v3989 = vld [vmem:[%s2 + $0xe0] sm:$0xff]
  %v3990 = vld [vmem:[%s2 + $0xe8] sm:$0xff]
  %v3991 = vld [vmem:[%s2 + $0xf0] sm:$0xff]
  %v3992 = vld [vmem:[%s2 + $0xf8] sm:$0xff]
  %v4025 = vunpack.c.l.b16 %v3961
  %v4026 = vunpack.c.h.b16 %v3961
  %v4027 = vunpack.c.l.b16 %v3962
  %v4028 = vunpack.c.h.b16 %v3962
  %v4029 = vunpack.c.l.b16 %v3963
  %v4030 = vunpack.c.h.b16 %v3963
  %v4031 = vunpack.c.l.b16 %v3964
  %v4032 = vunpack.c.h.b16 %v3964
  %v4033 = vunpack.c.l.b16 %v3965
  %v4034 = vunpack.c.h.b16 %v3965
  %v4035 = vunpack.c.l.b16 %v3966
  %v4036 = vunpack.c.h.b16 %v3966
  %v4037 = vunpack.c.l.b16 %v3967
  %v4038 = vunpack.c.h.b16 %v3967
  %v4039 = vunpack.c.l.b16 %v3968
  %v4040 = vunpack.c.h.b16 %v3968
  %v4041 = vunpack.c.l.b16 %v3969
  %v4042 = vunpack.c.h.b16 %v3969
  %v4043 = vunpack.c.l.b16 %v3970
  %v4044 = vunpack.c.h.b16 %v3970
  %v4045 = vunpack.c.l.b16 %v3971
  %v4046 = vunpack.c.h.b16 %v3971
  %v4047 = vunpack.c.l.b16 %v3972
  %v4048 = vunpack.c.h.b16 %v3972
  %v4049 = vunpack.c.l.b16 %v3973
  %v4050 = vunpack.c.h.b16 %v3973
  %v4051 = vunpack.c.l.b16 %v3974
  %v4052 = vunpack.c.h.b16 %v3974
  %v4053 = vunpack.c.l.b16 %v3975
  %v4054 = vunpack.c.h.b16 %v3975
  %v4055 = vunpack.c.l.b16 %v3976
  %v4056 = vunpack.c.h.b16 %v3976
  %v4057 = vunpack.c.l.b16 %v3977
  %v4058 = vunpack.c.h.b16 %v3977
  %v4059 = vunpack.c.l.b16 %v3978
  %v4060 = vunpack.c.h.b16 %v3978
  %v4061 = vunpack.c.l.b16 %v3979
  %v4062 = vunpack.c.h.b16 %v3979
  %v4063 = vunpack.c.l.b16 %v3980
  %v4064 = vunpack.c.h.b16 %v3980
  %v4065 = vunpack.c.l.b16 %v3981
  %v4066 = vunpack.c.h.b16 %v3981
  %v4067 = vunpack.c.l.b16 %v3982
  %v4068 = vunpack.c.h.b16 %v3982
  %v4069 = vunpack.c.l.b16 %v3983
  %v4070 = vunpack.c.h.b16 %v3983
  %v4071 = vunpack.c.l.b16 %v3984
  %v4072 = vunpack.c.h.b16 %v3984
  %v4073 = vunpack.c.l.b16 %v3985
  %v4074 = vunpack.c.h.b16 %v3985
  %v4075 = vunpack.c.l.b16 %v3986
  %v4076 = vunpack.c.h.b16 %v3986
  %v4077 = vunpack.c.l.b16 %v3987
  %v4078 = vunpack.c.h.b16 %v3987
  %v4079 = vunpack.c.l.b16 %v3988
  %v4080 = vunpack.c.h.b16 %v3988
  %v4081 = vunpack.c.l.b16 %v3989
  %v4082 = vunpack.c.h.b16 %v3989
  %v4083 = vunpack.c.l.b16 %v3990
  %v4084 = vunpack.c.h.b16 %v3990
  %v4085 = vunpack.c.l.b16 %v3991
  %v4086 = vunpack.c.h.b16 %v3991
  %v4087 = vunpack.c.l.b16 %v3992
  %v4088 = vunpack.c.h.b16 %v3992
  %v4089 = vpack.c.b16 %v4029, %v4025
  %v4090 = vpack.c.b16 %v4030, %v4026
  %v4091 = vpack.c.b16 %v4031, %v4027
  %v4092 = vpack.c.b16 %v4032, %v4028
  %v4093 = vpack.c.b16 %v4037, %v4033
  %v4094 = vpack.c.b16 %v4038, %v4034
  %v4095 = vpack.c.b16 %v4039, %v4035
  %v4096 = vpack.c.b16 %v4040, %v4036
  %v4097 = vpack.c.b16 %v4045, %v4041
  %v4098 = vpack.c.b16 %v4046, %v4042
  %v4099 = vpack.c.b16 %v4047, %v4043
  %v4100 = vpack.c.b16 %v4048, %v4044
  %v4101 = vpack.c.b16 %v4053, %v4049
  %v4102 = vpack.c.b16 %v4054, %v4050
  %v4103 = vpack.c.b16 %v4055, %v4051
  %v4104 = vpack.c.b16 %v4056, %v4052
  %v4105 = vpack.c.b16 %v4061, %v4057
  %v4106 = vpack.c.b16 %v4062, %v4058
  %v4107 = vpack.c.b16 %v4063, %v4059
  %v4108 = vpack.c.b16 %v4064, %v4060
  %v4109 = vpack.c.b16 %v4069, %v4065
  %v4110 = vpack.c.b16 %v4070, %v4066
  %v4111 = vpack.c.b16 %v4071, %v4067
  %v4112 = vpack.c.b16 %v4072, %v4068
  %v4113 = vpack.c.b16 %v4077, %v4073
  %v4114 = vpack.c.b16 %v4078, %v4074
  %v4115 = vpack.c.b16 %v4079, %v4075
  %v4116 = vpack.c.b16 %v4080, %v4076
  %v4117 = vpack.c.b16 %v4085, %v4081
  %v4118 = vpack.c.b16 %v4086, %v4082
  %v4119 = vpack.c.b16 %v4087, %v4083
  %v4120 = vpack.c.b16 %v4088, %v4084
  %4153 = vmatprep.subr.bf16.mxu0 %v4118
  %4154 = vmatpush1.bf16.msra.mxu0 %v4117
  %4155 = vmatprep.subr.bf16.mxu0 %v4114
  %4156 = vmatpush1.bf16.msra.mxu0 %v4113
  %4157 = vmatprep.subr.bf16.mxu0 %v4110
  %4158 = vmatpush1.bf16.msra.mxu0 %v4109
  %4159 = vmatprep.subr.bf16.mxu0 %v4106
  %4160 = vmatpush1.bf16.msra.mxu0 %v4105
  %4161 = vmatprep.subr.bf16.mxu0 %v4102
  %4162 = vmatpush1.bf16.msra.mxu0 %v4101
  %4163 = vmatprep.subr.bf16.mxu0 %v4098
  %4164 = vmatpush1.bf16.msra.mxu0 %v4097
  %4165 = vmatprep.subr.bf16.mxu0 %v4094
  %4166 = vmatpush1.bf16.msra.mxu0 %v4093
  %4167 = vmatprep.subr.bf16.mxu0 %v4090
  %4168 = vmatpush1.bf16.msra.mxu0 %v4089
  %4169 = vmatprep.subr.bf16.mxu0 0
  %4170 = vmatpush2.bf16.msra.mxu0 0
  %4171 = vmatprep.subr.bf16.mxu0 0
  %4172 = vmatpush2.bf16.msra.mxu0 0
  %4173 = vmatprep.subr.bf16.mxu0 0
  %4174 = vmatpush2.bf16.msra.mxu0 0
  %4175 = vmatprep.subr.bf16.mxu0 0
  %4176 = vmatpush2.bf16.msra.mxu0 0
  %4177 = vmatprep.subr.bf16.mxu0 0
  %4178 = vmatpush2.bf16.msra.mxu0 0
  %4179 = vmatprep.subr.bf16.mxu0 0
  %4180 = vmatpush2.bf16.msra.mxu0 0
  %4181 = vmatprep.subr.bf16.mxu0 0
  %4182 = vmatpush2.bf16.msra.mxu0 0
  %4183 = vmatprep.subr.bf16.mxu0 0
  %4184 = vmatpush2.bf16.msra.mxu0 0
  %4185 = vmatprep.mubr.bf16.mxu0 0
  %4186 = vmatmul.mubr.bf16.gmra.mxu0 %v3960
  %v4187 = vpop.f32.mrf.mxu0
  %v4188 = vadd.f32 0.0, %v4187
  %v4189 = vpop.f32.mrf.mxu0
  %v4190 = vadd.f32 0.0, %v4189
  %v4191 = vpop.f32.mrf.mxu0
  %v4192 = vpop.f32.mrf.mxu0
  %4193 = vdwg.mxu0
  %4194 = vmatprep.subr.bf16.mxu0 %v4120
  %4195 = vmatpush1.bf16.msra.mxu0 %v4119
  %4196 = vmatprep.subr.bf16.mxu0 %v4116
  %4197 = vmatpush1.bf16.msra.mxu0 %v4115
  %4198 = vmatprep.subr.bf16.mxu0 %v4112
  %4199 = vmatpush1.bf16.msra.mxu0 %v4111
  %4200 = vmatprep.subr.bf16.mxu0 %v4108
  %4201 = vmatpush1.bf16.msra.mxu0 %v4107
  %4202 = vmatprep.subr.bf16.mxu0 %v4104
  %4203 = vmatpush1.bf16.msra.mxu0 %v4103
  %4204 = vmatprep.subr.bf16.mxu0 %v4100
  %4205 = vmatpush1.bf16.msra.mxu0 %v4099
  %4206 = vmatprep.subr.bf16.mxu0 %v4096
  %4207 = vmatpush1.bf16.msra.mxu0 %v4095
  %4208 = vmatprep.subr.bf16.mxu0 %v4092
  %4209 = vmatpush1.bf16.msra.mxu0 %v4091
  %4210 = vmatprep.subr.bf16.mxu0 0
  %4211 = vmatpush2.bf16.msra.mxu0 0
  %4212 = vmatprep.subr.bf16.mxu0 0
  %4213 = vmatpush2.bf16.msra.mxu0 0
  %4214 = vmatprep.subr.bf16.mxu0 0
  %4215 = vmatpush2.bf16.msra.mxu0 0
  %4216 = vmatprep.subr.bf16.mxu0 0
  %4217 = vmatpush2.bf16.msra.mxu0 0
  %4218 = vmatprep.subr.bf16.mxu0 0
  %4219 = vmatpush2.bf16.msra.mxu0 0
  %4220 = vmatprep.subr.bf16.mxu0 0
  %4221 = vmatpush2.bf16.msra.mxu0 0
  %4222 = vmatprep.subr.bf16.mxu0 0
  %4223 = vmatpush2.bf16.msra.mxu0 0
  %4224 = vmatprep.subr.bf16.mxu0 0
  %4225 = vmatpush2.bf16.msra.mxu0 0
  %4226 = vmatprep.mubr.bf16.mxu0 0
  %4227 = vmatmul.mubr.bf16.gmra.mxu0 %v3960
  %v4228 = vpop.f32.mrf.mxu0
  %v4229 = vadd.f32 0.0, %v4228
  %v4230 = vpop.f32.mrf.mxu0
  %v4231 = vadd.f32 0.0, %v4230
  %v4232 = vpop.f32.mrf.mxu0
  %v4233 = vpop.f32.mrf.mxu0
  %4234 = vdwg.mxu0
  %v4235 = vadd.f32 %v3956, %v4188
  %v4236 = vadd.f32 %v3957, %v4190
  %v4237 = vadd.f32 %v3958, %v4229
  %v4238 = vadd.f32 %v3959, %v4231
  %v4239 = vld [vmem:[%s2086 + $0x20] sm:$0xff]
  %v4240 = vld [vmem:[%s2086 + $0x28] sm:$0xff]
  %v4241 = vld [vmem:[%s2086 + $0x30] sm:$0xff]
  %v4242 = vld [vmem:[%s2086 + $0x38] sm:$0xff]
  %v4243 = vpack.c.bf16 %v3953, %v3953
  %v4244 = vld [vmem:[%s3] sm:$0xff]
  %v4245 = vld [vmem:[%s3 + $0x8] sm:$0xff]
  %v4246 = vld [vmem:[%s3 + $0x10] sm:$0xff]
  %v4247 = vld [vmem:[%s3 + $0x18] sm:$0xff]
  %v4248 = vld [vmem:[%s3 + $0x20] sm:$0xff]
  %v4249 = vld [vmem:[%s3 + $0x28] sm:$0xff]
  %v4250 = vld [vmem:[%s3 + $0x30] sm:$0xff]
  %v4251 = vld [vmem:[%s3 + $0x38] sm:$0xff]
  %v4252 = vld [vmem:[%s3 + $0x40] sm:$0xff]
  %v4253 = vld [vmem:[%s3 + $0x48] sm:$0xff]
  %v4254 = vld [vmem:[%s3 + $0x50] sm:$0xff]
  %v4255 = vld [vmem:[%s3 + $0x58] sm:$0xff]
  %v4256 = vld [vmem:[%s3 + $0x60] sm:$0xff]
  %v4257 = vld [vmem:[%s3 + $0x68] sm:$0xff]
  %v4258 = vld [vmem:[%s3 + $0x70] sm:$0xff]
  %v4259 = vld [vmem:[%s3 + $0x78] sm:$0xff]
  %v4260 = vld [vmem:[%s3 + $0x80] sm:$0xff]
  %v4261 = vld [vmem:[%s3 + $0x88] sm:$0xff]
  %v4262 = vld [vmem:[%s3 + $0x90] sm:$0xff]
  %v4263 = vld [vmem:[%s3 + $0x98] sm:$0xff]
  %v4264 = vld [vmem:[%s3 + $0xa0] sm:$0xff]
  %v4265 = vld [vmem:[%s3 + $0xa8] sm:$0xff]
  %v4266 = vld [vmem:[%s3 + $0xb0] sm:$0xff]
  %v4267 = vld [vmem:[%s3 + $0xb8] sm:$0xff]
  %v4268 = vld [vmem:[%s3 + $0xc0] sm:$0xff]
  %v4269 = vld [vmem:[%s3 + $0xc8] sm:$0xff]
  %v4270 = vld [vmem:[%s3 + $0xd0] sm:$0xff]
  %v4271 = vld [vmem:[%s3 + $0xd8] sm:$0xff]
  %v4272 = vld [vmem:[%s3 + $0xe0] sm:$0xff]
  %v4273 = vld [vmem:[%s3 + $0xe8] sm:$0xff]
  %v4274 = vld [vmem:[%s3 + $0xf0] sm:$0xff]
  %v4275 = vld [vmem:[%s3 + $0xf8] sm:$0xff]
  %v4308 = vunpack.c.l.b16 %v4244
  %v4309 = vunpack.c.h.b16 %v4244
  %v4310 = vunpack.c.l.b16 %v4245
  %v4311 = vunpack.c.h.b16 %v4245
  %v4312 = vunpack.c.l.b16 %v4246
  %v4313 = vunpack.c.h.b16 %v4246
  %v4314 = vunpack.c.l.b16 %v4247
  %v4315 = vunpack.c.h.b16 %v4247
  %v4316 = vunpack.c.l.b16 %v4248
  %v4317 = vunpack.c.h.b16 %v4248
  %v4318 = vunpack.c.l.b16 %v4249
  %v4319 = vunpack.c.h.b16 %v4249
  %v4320 = vunpack.c.l.b16 %v4250
  %v4321 = vunpack.c.h.b16 %v4250
  %v4322 = vunpack.c.l.b16 %v4251
  %v4323 = vunpack.c.h.b16 %v4251
  %v4324 = vunpack.c.l.b16 %v4252
  %v4325 = vunpack.c.h.b16 %v4252
  %v4326 = vunpack.c.l.b16 %v4253
  %v4327 = vunpack.c.h.b16 %v4253
  %v4328 = vunpack.c.l.b16 %v4254
  %v4329 = vunpack.c.h.b16 %v4254
  %v4330 = vunpack.c.l.b16 %v4255
  %v4331 = vunpack.c.h.b16 %v4255
  %v4332 = vunpack.c.l.b16 %v4256
  %v4333 = vunpack.c.h.b16 %v4256
  %v4334 = vunpack.c.l.b16 %v4257
  %v4335 = vunpack.c.h.b16 %v4257
  %v4336 = vunpack.c.l.b16 %v4258
  %v4337 = vunpack.c.h.b16 %v4258
  %v4338 = vunpack.c.l.b16 %v4259
  %v4339 = vunpack.c.h.b16 %v4259
  %v4340 = vunpack.c.l.b16 %v4260
  %v4341 = vunpack.c.h.b16 %v4260
  %v4342 = vunpack.c.l.b16 %v4261
  %v4343 = vunpack.c.h.b16 %v4261
  %v4344 = vunpack.c.l.b16 %v4262
  %v4345 = vunpack.c.h.b16 %v4262
  %v4346 = vunpack.c.l.b16 %v4263
  %v4347 = vunpack.c.h.b16 %v4263
  %v4348 = vunpack.c.l.b16 %v4264
  %v4349 = vunpack.c.h.b16 %v4264
  %v4350 = vunpack.c.l.b16 %v4265
  %v4351 = vunpack.c.h.b16 %v4265
  %v4352 = vunpack.c.l.b16 %v4266
  %v4353 = vunpack.c.h.b16 %v4266
  %v4354 = vunpack.c.l.b16 %v4267
  %v4355 = vunpack.c.h.b16 %v4267
  %v4356 = vunpack.c.l.b16 %v4268
  %v4357 = vunpack.c.h.b16 %v4268
  %v4358 = vunpack.c.l.b16 %v4269
  %v4359 = vunpack.c.h.b16 %v4269
  %v4360 = vunpack.c.l.b16 %v4270
  %v4361 = vunpack.c.h.b16 %v4270
  %v4362 = vunpack.c.l.b16 %v4271
  %v4363 = vunpack.c.h.b16 %v4271
  %v4364 = vunpack.c.l.b16 %v4272
  %v4365 = vunpack.c.h.b16 %v4272
  %v4366 = vunpack.c.l.b16 %v4273
  %v4367 = vunpack.c.h.b16 %v4273
  %v4368 = vunpack.c.l.b16 %v4274
  %v4369 = vunpack.c.h.b16 %v4274
  %v4370 = vunpack.c.l.b16 %v4275
  %v4371 = vunpack.c.h.b16 %v4275
  %v4372 = vpack.c.b16 %v4312, %v4308
  %v4373 = vpack.c.b16 %v4313, %v4309
  %v4374 = vpack.c.b16 %v4314, %v4310
  %v4375 = vpack.c.b16 %v4315, %v4311
  %v4376 = vpack.c.b16 %v4320, %v4316
  %v4377 = vpack.c.b16 %v4321, %v4317
  %v4378 = vpack.c.b16 %v4322, %v4318
  %v4379 = vpack.c.b16 %v4323, %v4319
  %v4380 = vpack.c.b16 %v4328, %v4324
  %v4381 = vpack.c.b16 %v4329, %v4325
  %v4382 = vpack.c.b16 %v4330, %v4326
  %v4383 = vpack.c.b16 %v4331, %v4327
  %v4384 = vpack.c.b16 %v4336, %v4332
  %v4385 = vpack.c.b16 %v4337, %v4333
  %v4386 = vpack.c.b16 %v4338, %v4334
  %v4387 = vpack.c.b16 %v4339, %v4335
  %v4388 = vpack.c.b16 %v4344, %v4340
  %v4389 = vpack.c.b16 %v4345, %v4341
  %v4390 = vpack.c.b16 %v4346, %v4342
  %v4391 = vpack.c.b16 %v4347, %v4343
  %v4392 = vpack.c.b16 %v4352, %v4348
  %v4393 = vpack.c.b16 %v4353, %v4349
  %v4394 = vpack.c.b16 %v4354, %v4350
  %v4395 = vpack.c.b16 %v4355, %v4351
  %v4396 = vpack.c.b16 %v4360, %v4356
  %v4397 = vpack.c.b16 %v4361, %v4357
  %v4398 = vpack.c.b16 %v4362, %v4358
  %v4399 = vpack.c.b16 %v4363, %v4359
  %v4400 = vpack.c.b16 %v4368, %v4364
  %v4401 = vpack.c.b16 %v4369, %v4365
  %v4402 = vpack.c.b16 %v4370, %v4366
  %v4403 = vpack.c.b16 %v4371, %v4367
  %4436 = vmatprep.subr.bf16.mxu0 %v4401
  %4437 = vmatpush1.bf16.msra.mxu0 %v4400
  %4438 = vmatprep.subr.bf16.mxu0 %v4397
  %4439 = vmatpush1.bf16.msra.mxu0 %v4396
  %4440 = vmatprep.subr.bf16.mxu0 %v4393
  %4441 = vmatpush1.bf16.msra.mxu0 %v4392
  %4442 = vmatprep.subr.bf16.mxu0 %v4389
  %4443 = vmatpush1.bf16.msra.mxu0 %v4388
  %4444 = vmatprep.subr.bf16.mxu0 %v4385
  %4445 = vmatpush1.bf16.msra.mxu0 %v4384
  %4446 = vmatprep.subr.bf16.mxu0 %v4381
  %4447 = vmatpush1.bf16.msra.mxu0 %v4380
  %4448 = vmatprep.subr.bf16.mxu0 %v4377
  %4449 = vmatpush1.bf16.msra.mxu0 %v4376
  %4450 = vmatprep.subr.bf16.mxu0 %v4373
  %4451 = vmatpush1.bf16.msra.mxu0 %v4372
  %4452 = vmatprep.subr.bf16.mxu0 0
  %4453 = vmatpush2.bf16.msra.mxu0 0
  %4454 = vmatprep.subr.bf16.mxu0 0
  %4455 = vmatpush2.bf16.msra.mxu0 0
  %4456 = vmatprep.subr.bf16.mxu0 0
  %4457 = vmatpush2.bf16.msra.mxu0 0
  %4458 = vmatprep.subr.bf16.mxu0 0
  %4459 = vmatpush2.bf16.msra.mxu0 0
  %4460 = vmatprep.subr.bf16.mxu0 0
  %4461 = vmatpush2.bf16.msra.mxu0 0
  %4462 = vmatprep.subr.bf16.mxu0 0
  %4463 = vmatpush2.bf16.msra.mxu0 0
  %4464 = vmatprep.subr.bf16.mxu0 0
  %4465 = vmatpush2.bf16.msra.mxu0 0
  %4466 = vmatprep.subr.bf16.mxu0 0
  %4467 = vmatpush2.bf16.msra.mxu0 0
  %4468 = vmatprep.mubr.bf16.mxu0 0
  %4469 = vmatmul.mubr.bf16.gmra.mxu0 %v4243
  %v4470 = vpop.f32.mrf.mxu0
  %v4471 = vadd.f32 0.0, %v4470
  %v4472 = vpop.f32.mrf.mxu0
  %v4473 = vadd.f32 0.0, %v4472
  %v4474 = vpop.f32.mrf.mxu0
  %v4475 = vpop.f32.mrf.mxu0
  %4476 = vdwg.mxu0
  %4477 = vmatprep.subr.bf16.mxu0 %v4403
  %4478 = vmatpush1.bf16.msra.mxu0 %v4402
  %4479 = vmatprep.subr.bf16.mxu0 %v4399
  %4480 = vmatpush1.bf16.msra.mxu0 %v4398
  %4481 = vmatprep.subr.bf16.mxu0 %v4395
  %4482 = vmatpush1.bf16.msra.mxu0 %v4394
  %4483 = vmatprep.subr.bf16.mxu0 %v4391
  %4484 = vmatpush1.bf16.msra.mxu0 %v4390
  %4485 = vmatprep.subr.bf16.mxu0 %v4387
  %4486 = vmatpush1.bf16.msra.mxu0 %v4386
  %4487 = vmatprep.subr.bf16.mxu0 %v4383
  %4488 = vmatpush1.bf16.msra.mxu0 %v4382
  %4489 = vmatprep.subr.bf16.mxu0 %v4379
  %4490 = vmatpush1.bf16.msra.mxu0 %v4378
  %4491 = vmatprep.subr.bf16.mxu0 %v4375
  %4492 = vmatpush1.bf16.msra.mxu0 %v4374
  %4493 = vmatprep.subr.bf16.mxu0 0
  %4494 = vmatpush2.bf16.msra.mxu0 0
  %4495 = vmatprep.subr.bf16.mxu0 0
  %4496 = vmatpush2.bf16.msra.mxu0 0
  %4497 = vmatprep.subr.bf16.mxu0 0
  %4498 = vmatpush2.bf16.msra.mxu0 0
  %4499 = vmatprep.subr.bf16.mxu0 0
  %4500 = vmatpush2.bf16.msra.mxu0 0
  %4501 = vmatprep.subr.bf16.mxu0 0
  %4502 = vmatpush2.bf16.msra.mxu0 0
  %4503 = vmatprep.subr.bf16.mxu0 0
  %4504 = vmatpush2.bf16.msra.mxu0 0
  %4505 = vmatprep.subr.bf16.mxu0 0
  %4506 = vmatpush2.bf16.msra.mxu0 0
  %4507 = vmatprep.subr.bf16.mxu0 0
  %4508 = vmatpush2.bf16.msra.mxu0 0
  %4509 = vmatprep.mubr.bf16.mxu0 0
  %4510 = vmatmul.mubr.bf16.gmra.mxu0 %v4243
  %v4511 = vpop.f32.mrf.mxu0
  %v4512 = vadd.f32 0.0, %v4511
  %v4513 = vpop.f32.mrf.mxu0
  %v4514 = vadd.f32 0.0, %v4513
  %v4515 = vpop.f32.mrf.mxu0
  %v4516 = vpop.f32.mrf.mxu0
  %4517 = vdwg.mxu0
  %v4518 = vadd.f32 %v4239, %v4471
  %v4519 = vadd.f32 %v4240, %v4473
  %v4520 = vadd.f32 %v4241, %v4512
  %v4521 = vadd.f32 %v4242, %v4514
  %v4522 = vxor.u32 %v4235, 2147483648
  %v4523 = vxor.u32 %v4236, 2147483648
  %v4524 = vxor.u32 %v4237, 2147483648
  %v4525 = vmul.f32 %v4522, 1.442695
  %v4526 = vpow.pop %v4525
  %v4527 = vmul.f32 %v4523, 1.442695
  %v4528 = vpow.pop %v4527
  %v4529 = vmul.f32 %v4524, 1.442695
  %v4530 = vpow.pop %v4529
  %v4531 = vadd.f32 %v4526, 1.0
  %v4532 = vadd.f32 %v4528, 1.0
  %v4533 = vadd.f32 %v4530, 1.0
  %v4534 = vrcp.pop %v4531
  %v4535 = vmul.f32 1.0, %v4534
  %v4536 = vrcp.pop %v4532
  %v4537 = vmul.f32 1.0, %v4536
  %v4538 = vrcp.pop %v4533
  %v4539 = vmul.f32 1.0, %v4538
  %v4540 = vtanh.pop %v4238
  %v4541 = vmul.f32 %v4537, %v3927
  %v4542 = vmul.f32 %v4535, %v4540
  %v4543 = vadd.f32 %v4541, %v4542
  %v4544 = vtanh.pop %v4543
  %v4545 = vmul.f32 %v4539, %v4544
  %v4546 = vxor.u32 %v4518, 2147483648
  %v4547 = vxor.u32 %v4519, 2147483648
  %v4548 = vxor.u32 %v4520, 2147483648
  %v4549 = vmul.f32 %v4546, 1.442695
  %v4550 = vpow.pop %v4549
  %v4551 = vmul.f32 %v4547, 1.442695
  %v4552 = vpow.pop %v4551
  %v4553 = vmul.f32 %v4548, 1.442695
  %v4554 = vpow.pop %v4553
  %v4555 = vadd.f32 %v4550, 1.0
  %v4556 = vadd.f32 %v4552, 1.0
  %v4557 = vadd.f32 %v4554, 1.0
  %v4558 = vrcp.pop %v4555
  %v4559 = vmul.f32 1.0, %v4558
  %v4560 = vrcp.pop %v4556
  %v4561 = vmul.f32 1.0, %v4560
  %v4562 = vrcp.pop %v4557
  %v4563 = vmul.f32 1.0, %v4562
  %v4564 = vtanh.pop %v4521
  %v4565 = vmul.f32 %v4561, %v3951
  %v4566 = vmul.f32 %v4559, %v4564
  %v4567 = vadd.f32 %v4565, %v4566
  %v4568 = vtanh.pop %v4567
  %v4569 = vmul.f32 %v4563, %v4568
  %4570 = vst [vmem:[%s2710] sm:$0xff] %v4545
  %4571 = vst [vmem:[%s2706 + $0x8] sm:$0xff] %v4569
  %v4572 = vld [vmem:[%s1744] sm:$0xff]
  %v4573 = vld [vmem:[%s1744 + $0x8] sm:$0xff]
  %v4574 = vld [vmem:[%s1744 + $0x10] sm:$0xff]
  %v4575 = vld [vmem:[%s1744 + $0x18] sm:$0xff]
  %v4576 = vpack.c.bf16 %v4545, %v4545
  %v4577 = vld [vmem:[%s2] sm:$0xff]
  %v4578 = vld [vmem:[%s2 + $0x8] sm:$0xff]
  %v4579 = vld [vmem:[%s2 + $0x10] sm:$0xff]
  %v4580 = vld [vmem:[%s2 + $0x18] sm:$0xff]
  %v4581 = vld [vmem:[%s2 + $0x20] sm:$0xff]
  %v4582 = vld [vmem:[%s2 + $0x28] sm:$0xff]
  %v4583 = vld [vmem:[%s2 + $0x30] sm:$0xff]
  %v4584 = vld [vmem:[%s2 + $0x38] sm:$0xff]
  %v4585 = vld [vmem:[%s2 + $0x40] sm:$0xff]
  %v4586 = vld [vmem:[%s2 + $0x48] sm:$0xff]
  %v4587 = vld [vmem:[%s2 + $0x50] sm:$0xff]
  %v4588 = vld [vmem:[%s2 + $0x58] sm:$0xff]
  %v4589 = vld [vmem:[%s2 + $0x60] sm:$0xff]
  %v4590 = vld [vmem:[%s2 + $0x68] sm:$0xff]
  %v4591 = vld [vmem:[%s2 + $0x70] sm:$0xff]
  %v4592 = vld [vmem:[%s2 + $0x78] sm:$0xff]
  %v4593 = vld [vmem:[%s2 + $0x80] sm:$0xff]
  %v4594 = vld [vmem:[%s2 + $0x88] sm:$0xff]
  %v4595 = vld [vmem:[%s2 + $0x90] sm:$0xff]
  %v4596 = vld [vmem:[%s2 + $0x98] sm:$0xff]
  %v4597 = vld [vmem:[%s2 + $0xa0] sm:$0xff]
  %v4598 = vld [vmem:[%s2 + $0xa8] sm:$0xff]
  %v4599 = vld [vmem:[%s2 + $0xb0] sm:$0xff]
  %v4600 = vld [vmem:[%s2 + $0xb8] sm:$0xff]
  %v4601 = vld [vmem:[%s2 + $0xc0] sm:$0xff]
  %v4602 = vld [vmem:[%s2 + $0xc8] sm:$0xff]
  %v4603 = vld [vmem:[%s2 + $0xd0] sm:$0xff]
  %v4604 = vld [vmem:[%s2 + $0xd8] sm:$0xff]
  %v4605 = vld [vmem:[%s2 + $0xe0] sm:$0xff]
  %v4606 = vld [vmem:[%s2 + $0xe8] sm:$0xff]
  %v4607 = vld [vmem:[%s2 + $0xf0] sm:$0xff]
  %v4608 = vld [vmem:[%s2 + $0xf8] sm:$0xff]
  %v4641 = vunpack.c.l.b16 %v4577
  %v4642 = vunpack.c.h.b16 %v4577
  %v4643 = vunpack.c.l.b16 %v4578
  %v4644 = vunpack.c.h.b16 %v4578
  %v4645 = vunpack.c.l.b16 %v4579
  %v4646 = vunpack.c.h.b16 %v4579
  %v4647 = vunpack.c.l.b16 %v4580
  %v4648 = vunpack.c.h.b16 %v4580
  %v4649 = vunpack.c.l.b16 %v4581
  %v4650 = vunpack.c.h.b16 %v4581
  %v4651 = vunpack.c.l.b16 %v4582
  %v4652 = vunpack.c.h.b16 %v4582
  %v4653 = vunpack.c.l.b16 %v4583
  %v4654 = vunpack.c.h.b16 %v4583
  %v4655 = vunpack.c.l.b16 %v4584
  %v4656 = vunpack.c.h.b16 %v4584
  %v4657 = vunpack.c.l.b16 %v4585
  %v4658 = vunpack.c.h.b16 %v4585
  %v4659 = vunpack.c.l.b16 %v4586
  %v4660 = vunpack.c.h.b16 %v4586
  %v4661 = vunpack.c.l.b16 %v4587
  %v4662 = vunpack.c.h.b16 %v4587
  %v4663 = vunpack.c.l.b16 %v4588
  %v4664 = vunpack.c.h.b16 %v4588
  %v4665 = vunpack.c.l.b16 %v4589
  %v4666 = vunpack.c.h.b16 %v4589
  %v4667 = vunpack.c.l.b16 %v4590
  %v4668 = vunpack.c.h.b16 %v4590
  %v4669 = vunpack.c.l.b16 %v4591
  %v4670 = vunpack.c.h.b16 %v4591
  %v4671 = vunpack.c.l.b16 %v4592
  %v4672 = vunpack.c.h.b16 %v4592
  %v4673 = vunpack.c.l.b16 %v4593
  %v4674 = vunpack.c.h.b16 %v4593
  %v4675 = vunpack.c.l.b16 %v4594
  %v4676 = vunpack.c.h.b16 %v4594
  %v4677 = vunpack.c.l.b16 %v4595
  %v4678 = vunpack.c.h.b16 %v4595
  %v4679 = vunpack.c.l.b16 %v4596
  %v4680 = vunpack.c.h.b16 %v4596
  %v4681 = vunpack.c.l.b16 %v4597
  %v4682 = vunpack.c.h.b16 %v4597
  %v4683 = vunpack.c.l.b16 %v4598
  %v4684 = vunpack.c.h.b16 %v4598
  %v4685 = vunpack.c.l.b16 %v4599
  %v4686 = vunpack.c.h.b16 %v4599
  %v4687 = vunpack.c.l.b16 %v4600
  %v4688 = vunpack.c.h.b16 %v4600
  %v4689 = vunpack.c.l.b16 %v4601
  %v4690 = vunpack.c.h.b16 %v4601
  %v4691 = vunpack.c.l.b16 %v4602
  %v4692 = vunpack.c.h.b16 %v4602
  %v4693 = vunpack.c.l.b16 %v4603
  %v4694 = vunpack.c.h.b16 %v4603
  %v4695 = vunpack.c.l.b16 %v4604
  %v4696 = vunpack.c.h.b16 %v4604
  %v4697 = vunpack.c.l.b16 %v4605
  %v4698 = vunpack.c.h.b16 %v4605
  %v4699 = vunpack.c.l.b16 %v4606
  %v4700 = vunpack.c.h.b16 %v4606
  %v4701 = vunpack.c.l.b16 %v4607
  %v4702 = vunpack.c.h.b16 %v4607
  %v4703 = vunpack.c.l.b16 %v4608
  %v4704 = vunpack.c.h.b16 %v4608
  %v4705 = vpack.c.b16 %v4645, %v4641
  %v4706 = vpack.c.b16 %v4646, %v4642
  %v4707 = vpack.c.b16 %v4647, %v4643
  %v4708 = vpack.c.b16 %v4648, %v4644
  %v4709 = vpack.c.b16 %v4653, %v4649
  %v4710 = vpack.c.b16 %v4654, %v4650
  %v4711 = vpack.c.b16 %v4655, %v4651
  %v4712 = vpack.c.b16 %v4656, %v4652
  %v4713 = vpack.c.b16 %v4661, %v4657
  %v4714 = vpack.c.b16 %v4662, %v4658
  %v4715 = vpack.c.b16 %v4663, %v4659
  %v4716 = vpack.c.b16 %v4664, %v4660
  %v4717 = vpack.c.b16 %v4669, %v4665
  %v4718 = vpack.c.b16 %v4670, %v4666
  %v4719 = vpack.c.b16 %v4671, %v4667
  %v4720 = vpack.c.b16 %v4672, %v4668
  %v4721 = vpack.c.b16 %v4677, %v4673
  %v4722 = vpack.c.b16 %v4678, %v4674
  %v4723 = vpack.c.b16 %v4679, %v4675
  %v4724 = vpack.c.b16 %v4680, %v4676
  %v4725 = vpack.c.b16 %v4685, %v4681
  %v4726 = vpack.c.b16 %v4686, %v4682
  %v4727 = vpack.c.b16 %v4687, %v4683
  %v4728 = vpack.c.b16 %v4688, %v4684
  %v4729 = vpack.c.b16 %v4693, %v4689
  %v4730 = vpack.c.b16 %v4694, %v4690
  %v4731 = vpack.c.b16 %v4695, %v4691
  %v4732 = vpack.c.b16 %v4696, %v4692
  %v4733 = vpack.c.b16 %v4701, %v4697
  %v4734 = vpack.c.b16 %v4702, %v4698
  %v4735 = vpack.c.b16 %v4703, %v4699
  %v4736 = vpack.c.b16 %v4704, %v4700
  %4769 = vmatprep.subr.bf16.mxu0 %v4734
  %4770 = vmatpush1.bf16.msra.mxu0 %v4733
  %4771 = vmatprep.subr.bf16.mxu0 %v4730
  %4772 = vmatpush1.bf16.msra.mxu0 %v4729
  %4773 = vmatprep.subr.bf16.mxu0 %v4726
  %4774 = vmatpush1.bf16.msra.mxu0 %v4725
  %4775 = vmatprep.subr.bf16.mxu0 %v4722
  %4776 = vmatpush1.bf16.msra.mxu0 %v4721
  %4777 = vmatprep.subr.bf16.mxu0 %v4718
  %4778 = vmatpush1.bf16.msra.mxu0 %v4717
  %4779 = vmatprep.subr.bf16.mxu0 %v4714
  %4780 = vmatpush1.bf16.msra.mxu0 %v4713
  %4781 = vmatprep.subr.bf16.mxu0 %v4710
  %4782 = vmatpush1.bf16.msra.mxu0 %v4709
  %4783 = vmatprep.subr.bf16.mxu0 %v4706
  %4784 = vmatpush1.bf16.msra.mxu0 %v4705
  %4785 = vmatprep.subr.bf16.mxu0 0
  %4786 = vmatpush2.bf16.msra.mxu0 0
  %4787 = vmatprep.subr.bf16.mxu0 0
  %4788 = vmatpush2.bf16.msra.mxu0 0
  %4789 = vmatprep.subr.bf16.mxu0 0
  %4790 = vmatpush2.bf16.msra.mxu0 0
  %4791 = vmatprep.subr.bf16.mxu0 0
  %4792 = vmatpush2.bf16.msra.mxu0 0
  %4793 = vmatprep.subr.bf16.mxu0 0
  %4794 = vmatpush2.bf16.msra.mxu0 0
  %4795 = vmatprep.subr.bf16.mxu0 0
  %4796 = vmatpush2.bf16.msra.mxu0 0
  %4797 = vmatprep.subr.bf16.mxu0 0
  %4798 = vmatpush2.bf16.msra.mxu0 0
  %4799 = vmatprep.subr.bf16.mxu0 0
  %4800 = vmatpush2.bf16.msra.mxu0 0
  %4801 = vmatprep.mubr.bf16.mxu0 0
  %4802 = vmatmul.mubr.bf16.gmra.mxu0 %v4576
  %v4803 = vpop.f32.mrf.mxu0
  %v4804 = vadd.f32 0.0, %v4803
  %v4805 = vpop.f32.mrf.mxu0
  %v4806 = vadd.f32 0.0, %v4805
  %v4807 = vpop.f32.mrf.mxu0
  %v4808 = vpop.f32.mrf.mxu0
  %4809 = vdwg.mxu0
  %4810 = vmatprep.subr.bf16.mxu0 %v4736
  %4811 = vmatpush1.bf16.msra.mxu0 %v4735
  %4812 = vmatprep.subr.bf16.mxu0 %v4732
  %4813 = vmatpush1.bf16.msra.mxu0 %v4731
  %4814 = vmatprep.subr.bf16.mxu0 %v4728
  %4815 = vmatpush1.bf16.msra.mxu0 %v4727
  %4816 = vmatprep.subr.bf16.mxu0 %v4724
  %4817 = vmatpush1.bf16.msra.mxu0 %v4723
  %4818 = vmatprep.subr.bf16.mxu0 %v4720
  %4819 = vmatpush1.bf16.msra.mxu0 %v4719
  %4820 = vmatprep.subr.bf16.mxu0 %v4716
  %4821 = vmatpush1.bf16.msra.mxu0 %v4715
  %4822 = vmatprep.subr.bf16.mxu0 %v4712
  %4823 = vmatpush1.bf16.msra.mxu0 %v4711
  %4824 = vmatprep.subr.bf16.mxu0 %v4708
  %4825 = vmatpush1.bf16.msra.mxu0 %v4707
  %4826 = vmatprep.subr.bf16.mxu0 0
  %4827 = vmatpush2.bf16.msra.mxu0 0
  %4828 = vmatprep.subr.bf16.mxu0 0
  %4829 = vmatpush2.bf16.msra.mxu0 0
  %4830 = vmatprep.subr.bf16.mxu0 0
  %4831 = vmatpush2.bf16.msra.mxu0 0
  %4832 = vmatprep.subr.bf16.mxu0 0
  %4833 = vmatpush2.bf16.msra.mxu0 0
  %4834 = vmatprep.subr.bf16.mxu0 0
  %4835 = vmatpush2.bf16.msra.mxu0 0
  %4836 = vmatprep.subr.bf16.mxu0 0
  %4837 = vmatpush2.bf16.msra.mxu0 0
  %4838 = vmatprep.subr.bf16.mxu0 0
  %4839 = vmatpush2.bf16.msra.mxu0 0
  %4840 = vmatprep.subr.bf16.mxu0 0
  %4841 = vmatpush2.bf16.msra.mxu0 0
  %4842 = vmatprep.mubr.bf16.mxu0 0
  %4843 = vmatmul.mubr.bf16.gmra.mxu0 %v4576
  %v4844 = vpop.f32.mrf.mxu0
  %v4845 = vadd.f32 0.0, %v4844
  %v4846 = vpop.f32.mrf.mxu0
  %v4847 = vadd.f32 0.0, %v4846
  %v4848 = vpop.f32.mrf.mxu0
  %v4849 = vpop.f32.mrf.mxu0
  %4850 = vdwg.mxu0
  %v4851 = vadd.f32 %v4572, %v4804
  %v4852 = vadd.f32 %v4573, %v4806
  %v4853 = vadd.f32 %v4574, %v4845
  %v4854 = vadd.f32 %v4575, %v4847
  %v4855 = vld [vmem:[%s1458 + $0x20] sm:$0xff]
  %v4856 = vld [vmem:[%s1458 + $0x28] sm:$0xff]
  %v4857 = vld [vmem:[%s1458 + $0x30] sm:$0xff]
  %v4858 = vld [vmem:[%s1458 + $0x38] sm:$0xff]
  %v4859 = vpack.c.bf16 %v4569, %v4569
  %v4860 = vld [vmem:[%s3] sm:$0xff]
  %v4861 = vld [vmem:[%s3 + $0x8] sm:$0xff]
  %v4862 = vld [vmem:[%s3 + $0x10] sm:$0xff]
  %v4863 = vld [vmem:[%s3 + $0x18] sm:$0xff]
  %v4864 = vld [vmem:[%s3 + $0x20] sm:$0xff]
  %v4865 = vld [vmem:[%s3 + $0x28] sm:$0xff]
  %v4866 = vld [vmem:[%s3 + $0x30] sm:$0xff]
  %v4867 = vld [vmem:[%s3 + $0x38] sm:$0xff]
  %v4868 = vld [vmem:[%s3 + $0x40] sm:$0xff]
  %v4869 = vld [vmem:[%s3 + $0x48] sm:$0xff]
  %v4870 = vld [vmem:[%s3 + $0x50] sm:$0xff]
  %v4871 = vld [vmem:[%s3 + $0x58] sm:$0xff]
  %v4872 = vld [vmem:[%s3 + $0x60] sm:$0xff]
  %v4873 = vld [vmem:[%s3 + $0x68] sm:$0xff]
  %v4874 = vld [vmem:[%s3 + $0x70] sm:$0xff]
  %v4875 = vld [vmem:[%s3 + $0x78] sm:$0xff]
  %v4876 = vld [vmem:[%s3 + $0x80] sm:$0xff]
  %v4877 = vld [vmem:[%s3 + $0x88] sm:$0xff]
  %v4878 = vld [vmem:[%s3 + $0x90] sm:$0xff]
  %v4879 = vld [vmem:[%s3 + $0x98] sm:$0xff]
  %v4880 = vld [vmem:[%s3 + $0xa0] sm:$0xff]
  %v4881 = vld [vmem:[%s3 + $0xa8] sm:$0xff]
  %v4882 = vld [vmem:[%s3 + $0xb0] sm:$0xff]
  %v4883 = vld [vmem:[%s3 + $0xb8] sm:$0xff]
  %v4884 = vld [vmem:[%s3 + $0xc0] sm:$0xff]
  %v4885 = vld [vmem:[%s3 + $0xc8] sm:$0xff]
  %v4886 = vld [vmem:[%s3 + $0xd0] sm:$0xff]
  %v4887 = vld [vmem:[%s3 + $0xd8] sm:$0xff]
  %v4888 = vld [vmem:[%s3 + $0xe0] sm:$0xff]
  %v4889 = vld [vmem:[%s3 + $0xe8] sm:$0xff]
  %v4890 = vld [vmem:[%s3 + $0xf0] sm:$0xff]
  %v4891 = vld [vmem:[%s3 + $0xf8] sm:$0xff]
  %v4924 = vunpack.c.l.b16 %v4860
  %v4925 = vunpack.c.h.b16 %v4860
  %v4926 = vunpack.c.l.b16 %v4861
  %v4927 = vunpack.c.h.b16 %v4861
  %v4928 = vunpack.c.l.b16 %v4862
  %v4929 = vunpack.c.h.b16 %v4862
  %v4930 = vunpack.c.l.b16 %v4863
  %v4931 = vunpack.c.h.b16 %v4863
  %v4932 = vunpack.c.l.b16 %v4864
  %v4933 = vunpack.c.h.b16 %v4864
  %v4934 = vunpack.c.l.b16 %v4865
  %v4935 = vunpack.c.h.b16 %v4865
  %v4936 = vunpack.c.l.b16 %v4866
  %v4937 = vunpack.c.h.b16 %v4866
  %v4938 = vunpack.c.l.b16 %v4867
  %v4939 = vunpack.c.h.b16 %v4867
  %v4940 = vunpack.c.l.b16 %v4868
  %v4941 = vunpack.c.h.b16 %v4868
  %v4942 = vunpack.c.l.b16 %v4869
  %v4943 = vunpack.c.h.b16 %v4869
  %v4944 = vunpack.c.l.b16 %v4870
  %v4945 = vunpack.c.h.b16 %v4870
  %v4946 = vunpack.c.l.b16 %v4871
  %v4947 = vunpack.c.h.b16 %v4871
  %v4948 = vunpack.c.l.b16 %v4872
  %v4949 = vunpack.c.h.b16 %v4872
  %v4950 = vunpack.c.l.b16 %v4873
  %v4951 = vunpack.c.h.b16 %v4873
  %v4952 = vunpack.c.l.b16 %v4874
  %v4953 = vunpack.c.h.b16 %v4874
  %v4954 = vunpack.c.l.b16 %v4875
  %v4955 = vunpack.c.h.b16 %v4875
  %v4956 = vunpack.c.l.b16 %v4876
  %v4957 = vunpack.c.h.b16 %v4876
  %v4958 = vunpack.c.l.b16 %v4877
  %v4959 = vunpack.c.h.b16 %v4877
  %v4960 = vunpack.c.l.b16 %v4878
  %v4961 = vunpack.c.h.b16 %v4878
  %v4962 = vunpack.c.l.b16 %v4879
  %v4963 = vunpack.c.h.b16 %v4879
  %v4964 = vunpack.c.l.b16 %v4880
  %v4965 = vunpack.c.h.b16 %v4880
  %v4966 = vunpack.c.l.b16 %v4881
  %v4967 = vunpack.c.h.b16 %v4881
  %v4968 = vunpack.c.l.b16 %v4882
  %v4969 = vunpack.c.h.b16 %v4882
  %v4970 = vunpack.c.l.b16 %v4883
  %v4971 = vunpack.c.h.b16 %v4883
  %v4972 = vunpack.c.l.b16 %v4884
  %v4973 = vunpack.c.h.b16 %v4884
  %v4974 = vunpack.c.l.b16 %v4885
  %v4975 = vunpack.c.h.b16 %v4885
  %v4976 = vunpack.c.l.b16 %v4886
  %v4977 = vunpack.c.h.b16 %v4886
  %v4978 = vunpack.c.l.b16 %v4887
  %v4979 = vunpack.c.h.b16 %v4887
  %v4980 = vunpack.c.l.b16 %v4888
  %v4981 = vunpack.c.h.b16 %v4888
  %v4982 = vunpack.c.l.b16 %v4889
  %v4983 = vunpack.c.h.b16 %v4889
  %v4984 = vunpack.c.l.b16 %v4890
  %v4985 = vunpack.c.h.b16 %v4890
  %v4986 = vunpack.c.l.b16 %v4891
  %v4987 = vunpack.c.h.b16 %v4891
  %v4988 = vpack.c.b16 %v4928, %v4924
  %v4989 = vpack.c.b16 %v4929, %v4925
  %v4990 = vpack.c.b16 %v4930, %v4926
  %v4991 = vpack.c.b16 %v4931, %v4927
  %v4992 = vpack.c.b16 %v4936, %v4932
  %v4993 = vpack.c.b16 %v4937, %v4933
  %v4994 = vpack.c.b16 %v4938, %v4934
  %v4995 = vpack.c.b16 %v4939, %v4935
  %v4996 = vpack.c.b16 %v4944, %v4940
  %v4997 = vpack.c.b16 %v4945, %v4941
  %v4998 = vpack.c.b16 %v4946, %v4942
  %v4999 = vpack.c.b16 %v4947, %v4943
  %v5000 = vpack.c.b16 %v4952, %v4948
  %v5001 = vpack.c.b16 %v4953, %v4949
  %v5002 = vpack.c.b16 %v4954, %v4950
  %v5003 = vpack.c.b16 %v4955, %v4951
  %v5004 = vpack.c.b16 %v4960, %v4956
  %v5005 = vpack.c.b16 %v4961, %v4957
  %v5006 = vpack.c.b16 %v4962, %v4958
  %v5007 = vpack.c.b16 %v4963, %v4959
  %v5008 = vpack.c.b16 %v4968, %v4964
  %v5009 = vpack.c.b16 %v4969, %v4965
  %v5010 = vpack.c.b16 %v4970, %v4966
  %v5011 = vpack.c.b16 %v4971, %v4967
  %v5012 = vpack.c.b16 %v4976, %v4972
  %v5013 = vpack.c.b16 %v4977, %v4973
  %v5014 = vpack.c.b16 %v4978, %v4974
  %v5015 = vpack.c.b16 %v4979, %v4975
  %v5016 = vpack.c.b16 %v4984, %v4980
  %v5017 = vpack.c.b16 %v4985, %v4981
  %v5018 = vpack.c.b16 %v4986, %v4982
  %v5019 = vpack.c.b16 %v4987, %v4983
  %5052 = vmatprep.subr.bf16.mxu0 %v5017
  %5053 = vmatpush1.bf16.msra.mxu0 %v5016
  %5054 = vmatprep.subr.bf16.mxu0 %v5013
  %5055 = vmatpush1.bf16.msra.mxu0 %v5012
  %5056 = vmatprep.subr.bf16.mxu0 %v5009
  %5057 = vmatpush1.bf16.msra.mxu0 %v5008
  %5058 = vmatprep.subr.bf16.mxu0 %v5005
  %5059 = vmatpush1.bf16.msra.mxu0 %v5004
  %5060 = vmatprep.subr.bf16.mxu0 %v5001
  %5061 = vmatpush1.bf16.msra.mxu0 %v5000
  %5062 = vmatprep.subr.bf16.mxu0 %v4997
  %5063 = vmatpush1.bf16.msra.mxu0 %v4996
  %5064 = vmatprep.subr.bf16.mxu0 %v4993
  %5065 = vmatpush1.bf16.msra.mxu0 %v4992
  %5066 = vmatprep.subr.bf16.mxu0 %v4989
  %5067 = vmatpush1.bf16.msra.mxu0 %v4988
  %5068 = vmatprep.subr.bf16.mxu0 0
  %5069 = vmatpush2.bf16.msra.mxu0 0
  %5070 = vmatprep.subr.bf16.mxu0 0
  %5071 = vmatpush2.bf16.msra.mxu0 0
  %5072 = vmatprep.subr.bf16.mxu0 0
  %5073 = vmatpush2.bf16.msra.mxu0 0
  %5074 = vmatprep.subr.bf16.mxu0 0
  %5075 = vmatpush2.bf16.msra.mxu0 0
  %5076 = vmatprep.subr.bf16.mxu0 0
  %5077 = vmatpush2.bf16.msra.mxu0 0
  %5078 = vmatprep.subr.bf16.mxu0 0
  %5079 = vmatpush2.bf16.msra.mxu0 0
  %5080 = vmatprep.subr.bf16.mxu0 0
  %5081 = vmatpush2.bf16.msra.mxu0 0
  %5082 = vmatprep.subr.bf16.mxu0 0
  %5083 = vmatpush2.bf16.msra.mxu0 0
  %5084 = vmatprep.mubr.bf16.mxu0 0
  %5085 = vmatmul.mubr.bf16.gmra.mxu0 %v4859
  %v5086 = vpop.f32.mrf.mxu0
  %v5087 = vadd.f32 0.0, %v5086
  %v5088 = vpop.f32.mrf.mxu0
  %v5089 = vadd.f32 0.0, %v5088
  %v5090 = vpop.f32.mrf.mxu0
  %v5091 = vpop.f32.mrf.mxu0
  %5092 = vdwg.mxu0
  %5093 = vmatprep.subr.bf16.mxu0 %v5019
  %5094 = vmatpush1.bf16.msra.mxu0 %v5018
  %5095 = vmatprep.subr.bf16.mxu0 %v5015
  %5096 = vmatpush1.bf16.msra.mxu0 %v5014
  %5097 = vmatprep.subr.bf16.mxu0 %v5011
  %5098 = vmatpush1.bf16.msra.mxu0 %v5010
  %5099 = vmatprep.subr.bf16.mxu0 %v5007
  %5100 = vmatpush1.bf16.msra.mxu0 %v5006
  %5101 = vmatprep.subr.bf16.mxu0 %v5003
  %5102 = vmatpush1.bf16.msra.mxu0 %v5002
  %5103 = vmatprep.subr.bf16.mxu0 %v4999
  %5104 = vmatpush1.bf16.msra.mxu0 %v4998
  %5105 = vmatprep.subr.bf16.mxu0 %v4995
  %5106 = vmatpush1.bf16.msra.mxu0 %v4994
  %5107 = vmatprep.subr.bf16.mxu0 %v4991
  %5108 = vmatpush1.bf16.msra.mxu0 %v4990
  %5109 = vmatprep.subr.bf16.mxu0 0
  %5110 = vmatpush2.bf16.msra.mxu0 0
  %5111 = vmatprep.subr.bf16.mxu0 0
  %5112 = vmatpush2.bf16.msra.mxu0 0
  %5113 = vmatprep.subr.bf16.mxu0 0
  %5114 = vmatpush2.bf16.msra.mxu0 0
  %5115 = vmatprep.subr.bf16.mxu0 0
  %5116 = vmatpush2.bf16.msra.mxu0 0
  %5117 = vmatprep.subr.bf16.mxu0 0
  %5118 = vmatpush2.bf16.msra.mxu0 0
  %5119 = vmatprep.subr.bf16.mxu0 0
  %5120 = vmatpush2.bf16.msra.mxu0 0
  %5121 = vmatprep.subr.bf16.mxu0 0
  %5122 = vmatpush2.bf16.msra.mxu0 0
  %5123 = vmatprep.subr.bf16.mxu0 0
  %5124 = vmatpush2.bf16.msra.mxu0 0
  %5125 = vmatprep.mubr.bf16.mxu0 0
  %5126 = vmatmul.mubr.bf16.gmra.mxu0 %v4859
  %v5127 = vpop.f32.mrf.mxu0
  %v5128 = vadd.f32 0.0, %v5127
  %v5129 = vpop.f32.mrf.mxu0
  %v5130 = vadd.f32 0.0, %v5129
  %v5131 = vpop.f32.mrf.mxu0
  %v5132 = vpop.f32.mrf.mxu0
  %5133 = vdwg.mxu0
  %v5134 = vadd.f32 %v4855, %v5087
  %v5135 = vadd.f32 %v4856, %v5089
  %v5136 = vadd.f32 %v4857, %v5128
  %v5137 = vadd.f32 %v4858, %v5130
  %v5138 = vxor.u32 %v4851, 2147483648
  %v5139 = vxor.u32 %v4852, 2147483648
  %v5140 = vxor.u32 %v4853, 2147483648
  %v5141 = vmul.f32 %v5138, 1.442695
  %v5142 = vpow.pop %v5141
  %v5143 = vmul.f32 %v5139, 1.442695
  %v5144 = vpow.pop %v5143
  %v5145 = vmul.f32 %v5140, 1.442695
  %v5146 = vpow.pop %v5145
  %v5147 = vadd.f32 %v5142, 1.0
  %v5148 = vadd.f32 %v5144, 1.0
  %v5149 = vadd.f32 %v5146, 1.0
  %v5150 = vrcp.pop %v5147
  %v5151 = vmul.f32 1.0, %v5150
  %v5152 = vrcp.pop %v5148
  %v5153 = vmul.f32 1.0, %v5152
  %v5154 = vrcp.pop %v5149
  %v5155 = vmul.f32 1.0, %v5154
  %v5156 = vtanh.pop %v4854
  %v5157 = vmul.f32 %v5153, %v4543
  %v5158 = vmul.f32 %v5151, %v5156
  %v5159 = vadd.f32 %v5157, %v5158
  %v5160 = vtanh.pop %v5159
  %v5161 = vmul.f32 %v5155, %v5160
  %v5162 = vxor.u32 %v5134, 2147483648
  %v5163 = vxor.u32 %v5135, 2147483648
  %v5164 = vxor.u32 %v5136, 2147483648
  %v5165 = vmul.f32 %v5162, 1.442695
  %v5166 = vpow.pop %v5165
  %v5167 = vmul.f32 %v5163, 1.442695
  %v5168 = vpow.pop %v5167
  %v5169 = vmul.f32 %v5164, 1.442695
  %v5170 = vpow.pop %v5169
  %v5171 = vadd.f32 %v5166, 1.0
  %v5172 = vadd.f32 %v5168, 1.0
  %v5173 = vadd.f32 %v5170, 1.0
  %v5174 = vrcp.pop %v5171
  %v5175 = vmul.f32 1.0, %v5174
  %v5176 = vrcp.pop %v5172
  %v5177 = vmul.f32 1.0, %v5176
  %v5178 = vrcp.pop %v5173
  %v5179 = vmul.f32 1.0, %v5178
  %v5180 = vtanh.pop %v5137
  %v5181 = vmul.f32 %v5177, %v4567
  %v5182 = vmul.f32 %v5175, %v5180
  %v5183 = vadd.f32 %v5181, %v5182
  %v5184 = vtanh.pop %v5183
  %v5185 = vmul.f32 %v5179, %v5184
  %5186 = vst [vmem:[%s2082] sm:$0xff] %v5161
  %5187 = vst [vmem:[%s2078 + $0x8] sm:$0xff] %v5185
  %v5188 = vld [vmem:[%s1117] sm:$0xff]
  %v5189 = vld [vmem:[%s1117 + $0x8] sm:$0xff]
  %v5190 = vld [vmem:[%s1117 + $0x10] sm:$0xff]
  %v5191 = vld [vmem:[%s1117 + $0x18] sm:$0xff]
  %v5192 = vpack.c.bf16 %v5161, %v5161
  %v5193 = vld [vmem:[%s2] sm:$0xff]
  %v5194 = vld [vmem:[%s2 + $0x8] sm:$0xff]
  %v5195 = vld [vmem:[%s2 + $0x10] sm:$0xff]
  %v5196 = vld [vmem:[%s2 + $0x18] sm:$0xff]
  %v5197 = vld [vmem:[%s2 + $0x20] sm:$0xff]
  %v5198 = vld [vmem:[%s2 + $0x28] sm:$0xff]
  %v5199 = vld [vmem:[%s2 + $0x30] sm:$0xff]
  %v5200 = vld [vmem:[%s2 + $0x38] sm:$0xff]
  %v5201 = vld [vmem:[%s2 + $0x40] sm:$0xff]
  %v5202 = vld [vmem:[%s2 + $0x48] sm:$0xff]
  %v5203 = vld [vmem:[%s2 + $0x50] sm:$0xff]
  %v5204 = vld [vmem:[%s2 + $0x58] sm:$0xff]
  %v5205 = vld [vmem:[%s2 + $0x60] sm:$0xff]
  %v5206 = vld [vmem:[%s2 + $0x68] sm:$0xff]
  %v5207 = vld [vmem:[%s2 + $0x70] sm:$0xff]
  %v5208 = vld [vmem:[%s2 + $0x78] sm:$0xff]
  %v5209 = vld [vmem:[%s2 + $0x80] sm:$0xff]
  %v5210 = vld [vmem:[%s2 + $0x88] sm:$0xff]
  %v5211 = vld [vmem:[%s2 + $0x90] sm:$0xff]
  %v5212 = vld [vmem:[%s2 + $0x98] sm:$0xff]
  %v5213 = vld [vmem:[%s2 + $0xa0] sm:$0xff]
  %v5214 = vld [vmem:[%s2 + $0xa8] sm:$0xff]
  %v5215 = vld [vmem:[%s2 + $0xb0] sm:$0xff]
  %v5216 = vld [vmem:[%s2 + $0xb8] sm:$0xff]
  %v5217 = vld [vmem:[%s2 + $0xc0] sm:$0xff]
  %v5218 = vld [vmem:[%s2 + $0xc8] sm:$0xff]
  %v5219 = vld [vmem:[%s2 + $0xd0] sm:$0xff]
  %v5220 = vld [vmem:[%s2 + $0xd8] sm:$0xff]
  %v5221 = vld [vmem:[%s2 + $0xe0] sm:$0xff]
  %v5222 = vld [vmem:[%s2 + $0xe8] sm:$0xff]
  %v5223 = vld [vmem:[%s2 + $0xf0] sm:$0xff]
  %v5224 = vld [vmem:[%s2 + $0xf8] sm:$0xff]
  %v5257 = vunpack.c.l.b16 %v5193
  %v5258 = vunpack.c.h.b16 %v5193
  %v5259 = vunpack.c.l.b16 %v5194
  %v5260 = vunpack.c.h.b16 %v5194
  %v5261 = vunpack.c.l.b16 %v5195
  %v5262 = vunpack.c.h.b16 %v5195
  %v5263 = vunpack.c.l.b16 %v5196
  %v5264 = vunpack.c.h.b16 %v5196
  %v5265 = vunpack.c.l.b16 %v5197
  %v5266 = vunpack.c.h.b16 %v5197
  %v5267 = vunpack.c.l.b16 %v5198
  %v5268 = vunpack.c.h.b16 %v5198
  %v5269 = vunpack.c.l.b16 %v5199
  %v5270 = vunpack.c.h.b16 %v5199
  %v5271 = vunpack.c.l.b16 %v5200
  %v5272 = vunpack.c.h.b16 %v5200
  %v5273 = vunpack.c.l.b16 %v5201
  %v5274 = vunpack.c.h.b16 %v5201
  %v5275 = vunpack.c.l.b16 %v5202
  %v5276 = vunpack.c.h.b16 %v5202
  %v5277 = vunpack.c.l.b16 %v5203
  %v5278 = vunpack.c.h.b16 %v5203
  %v5279 = vunpack.c.l.b16 %v5204
  %v5280 = vunpack.c.h.b16 %v5204
  %v5281 = vunpack.c.l.b16 %v5205
  %v5282 = vunpack.c.h.b16 %v5205
  %v5283 = vunpack.c.l.b16 %v5206
  %v5284 = vunpack.c.h.b16 %v5206
  %v5285 = vunpack.c.l.b16 %v5207
  %v5286 = vunpack.c.h.b16 %v5207
  %v5287 = vunpack.c.l.b16 %v5208
  %v5288 = vunpack.c.h.b16 %v5208
  %v5289 = vunpack.c.l.b16 %v5209
  %v5290 = vunpack.c.h.b16 %v5209
  %v5291 = vunpack.c.l.b16 %v5210
  %v5292 = vunpack.c.h.b16 %v5210
  %v5293 = vunpack.c.l.b16 %v5211
  %v5294 = vunpack.c.h.b16 %v5211
  %v5295 = vunpack.c.l.b16 %v5212
  %v5296 = vunpack.c.h.b16 %v5212
  %v5297 = vunpack.c.l.b16 %v5213
  %v5298 = vunpack.c.h.b16 %v5213
  %v5299 = vunpack.c.l.b16 %v5214
  %v5300 = vunpack.c.h.b16 %v5214
  %v5301 = vunpack.c.l.b16 %v5215
  %v5302 = vunpack.c.h.b16 %v5215
  %v5303 = vunpack.c.l.b16 %v5216
  %v5304 = vunpack.c.h.b16 %v5216
  %v5305 = vunpack.c.l.b16 %v5217
  %v5306 = vunpack.c.h.b16 %v5217
  %v5307 = vunpack.c.l.b16 %v5218
  %v5308 = vunpack.c.h.b16 %v5218
  %v5309 = vunpack.c.l.b16 %v5219
  %v5310 = vunpack.c.h.b16 %v5219
  %v5311 = vunpack.c.l.b16 %v5220
  %v5312 = vunpack.c.h.b16 %v5220
  %v5313 = vunpack.c.l.b16 %v5221
  %v5314 = vunpack.c.h.b16 %v5221
  %v5315 = vunpack.c.l.b16 %v5222
  %v5316 = vunpack.c.h.b16 %v5222
  %v5317 = vunpack.c.l.b16 %v5223
  %v5318 = vunpack.c.h.b16 %v5223
  %v5319 = vunpack.c.l.b16 %v5224
  %v5320 = vunpack.c.h.b16 %v5224
  %v5321 = vpack.c.b16 %v5261, %v5257
  %v5322 = vpack.c.b16 %v5262, %v5258
  %v5323 = vpack.c.b16 %v5263, %v5259
  %v5324 = vpack.c.b16 %v5264, %v5260
  %v5325 = vpack.c.b16 %v5269, %v5265
  %v5326 = vpack.c.b16 %v5270, %v5266
  %v5327 = vpack.c.b16 %v5271, %v5267
  %v5328 = vpack.c.b16 %v5272, %v5268
  %v5329 = vpack.c.b16 %v5277, %v5273
  %v5330 = vpack.c.b16 %v5278, %v5274
  %v5331 = vpack.c.b16 %v5279, %v5275
  %v5332 = vpack.c.b16 %v5280, %v5276
  %v5333 = vpack.c.b16 %v5285, %v5281
  %v5334 = vpack.c.b16 %v5286, %v5282
  %v5335 = vpack.c.b16 %v5287, %v5283
  %v5336 = vpack.c.b16 %v5288, %v5284
  %v5337 = vpack.c.b16 %v5293, %v5289
  %v5338 = vpack.c.b16 %v5294, %v5290
  %v5339 = vpack.c.b16 %v5295, %v5291
  %v5340 = vpack.c.b16 %v5296, %v5292
  %v5341 = vpack.c.b16 %v5301, %v5297
  %v5342 = vpack.c.b16 %v5302, %v5298
  %v5343 = vpack.c.b16 %v5303, %v5299
  %v5344 = vpack.c.b16 %v5304, %v5300
  %v5345 = vpack.c.b16 %v5309, %v5305
  %v5346 = vpack.c.b16 %v5310, %v5306
  %v5347 = vpack.c.b16 %v5311, %v5307
  %v5348 = vpack.c.b16 %v5312, %v5308
  %v5349 = vpack.c.b16 %v5317, %v5313
  %v5350 = vpack.c.b16 %v5318, %v5314
  %v5351 = vpack.c.b16 %v5319, %v5315
  %v5352 = vpack.c.b16 %v5320, %v5316
  %5385 = vmatprep.subr.bf16.mxu0 %v5350
  %5386 = vmatpush1.bf16.msra.mxu0 %v5349
  %5387 = vmatprep.subr.bf16.mxu0 %v5346
  %5388 = vmatpush1.bf16.msra.mxu0 %v5345
  %5389 = vmatprep.subr.bf16.mxu0 %v5342
  %5390 = vmatpush1.bf16.msra.mxu0 %v5341
  %5391 = vmatprep.subr.bf16.mxu0 %v5338
  %5392 = vmatpush1.bf16.msra.mxu0 %v5337
  %5393 = vmatprep.subr.bf16.mxu0 %v5334
  %5394 = vmatpush1.bf16.msra.mxu0 %v5333
  %5395 = vmatprep.subr.bf16.mxu0 %v5330
  %5396 = vmatpush1.bf16.msra.mxu0 %v5329
  %5397 = vmatprep.subr.bf16.mxu0 %v5326
  %5398 = vmatpush1.bf16.msra.mxu0 %v5325
  %5399 = vmatprep.subr.bf16.mxu0 %v5322
  %5400 = vmatpush1.bf16.msra.mxu0 %v5321
  %5401 = vmatprep.subr.bf16.mxu0 0
  %5402 = vmatpush2.bf16.msra.mxu0 0
  %5403 = vmatprep.subr.bf16.mxu0 0
  %5404 = vmatpush2.bf16.msra.mxu0 0
  %5405 = vmatprep.subr.bf16.mxu0 0
  %5406 = vmatpush2.bf16.msra.mxu0 0
  %5407 = vmatprep.subr.bf16.mxu0 0
  %5408 = vmatpush2.bf16.msra.mxu0 0
  %5409 = vmatprep.subr.bf16.mxu0 0
  %5410 = vmatpush2.bf16.msra.mxu0 0
  %5411 = vmatprep.subr.bf16.mxu0 0
  %5412 = vmatpush2.bf16.msra.mxu0 0
  %5413 = vmatprep.subr.bf16.mxu0 0
  %5414 = vmatpush2.bf16.msra.mxu0 0
  %5415 = vmatprep.subr.bf16.mxu0 0
  %5416 = vmatpush2.bf16.msra.mxu0 0
  %5417 = vmatprep.mubr.bf16.mxu0 0
  %5418 = vmatmul.mubr.bf16.gmra.mxu0 %v5192
  %v5419 = vpop.f32.mrf.mxu0
  %v5420 = vadd.f32 0.0, %v5419
  %v5421 = vpop.f32.mrf.mxu0
  %v5422 = vadd.f32 0.0, %v5421
  %v5423 = vpop.f32.mrf.mxu0
  %v5424 = vpop.f32.mrf.mxu0
  %5425 = vdwg.mxu0
  %5426 = vmatprep.subr.bf16.mxu0 %v5352
  %5427 = vmatpush1.bf16.msra.mxu0 %v5351
  %5428 = vmatprep.subr.bf16.mxu0 %v5348
  %5429 = vmatpush1.bf16.msra.mxu0 %v5347
  %5430 = vmatprep.subr.bf16.mxu0 %v5344
  %5431 = vmatpush1.bf16.msra.mxu0 %v5343
  %5432 = vmatprep.subr.bf16.mxu0 %v5340
  %5433 = vmatpush1.bf16.msra.mxu0 %v5339
  %5434 = vmatprep.subr.bf16.mxu0 %v5336
  %5435 = vmatpush1.bf16.msra.mxu0 %v5335
  %5436 = vmatprep.subr.bf16.mxu0 %v5332
  %5437 = vmatpush1.bf16.msra.mxu0 %v5331
  %5438 = vmatprep.subr.bf16.mxu0 %v5328
  %5439 = vmatpush1.bf16.msra.mxu0 %v5327
  %5440 = vmatprep.subr.bf16.mxu0 %v5324
  %5441 = vmatpush1.bf16.msra.mxu0 %v5323
  %5442 = vmatprep.subr.bf16.mxu0 0
  %5443 = vmatpush2.bf16.msra.mxu0 0
  %5444 = vmatprep.subr.bf16.mxu0 0
  %5445 = vmatpush2.bf16.msra.mxu0 0
  %5446 = vmatprep.subr.bf16.mxu0 0
  %5447 = vmatpush2.bf16.msra.mxu0 0
  %5448 = vmatprep.subr.bf16.mxu0 0
  %5449 = vmatpush2.bf16.msra.mxu0 0
  %5450 = vmatprep.subr.bf16.mxu0 0
  %5451 = vmatpush2.bf16.msra.mxu0 0
  %5452 = vmatprep.subr.bf16.mxu0 0
  %5453 = vmatpush2.bf16.msra.mxu0 0
  %5454 = vmatprep.subr.bf16.mxu0 0
  %5455 = vmatpush2.bf16.msra.mxu0 0
  %5456 = vmatprep.subr.bf16.mxu0 0
  %5457 = vmatpush2.bf16.msra.mxu0 0
  %5458 = vmatprep.mubr.bf16.mxu0 0
  %5459 = vmatmul.mubr.bf16.gmra.mxu0 %v5192
  %v5460 = vpop.f32.mrf.mxu0
  %v5461 = vadd.f32 0.0, %v5460
  %v5462 = vpop.f32.mrf.mxu0
  %v5463 = vadd.f32 0.0, %v5462
  %v5464 = vpop.f32.mrf.mxu0
  %v5465 = vpop.f32.mrf.mxu0
  %5466 = vdwg.mxu0
  %v5467 = vadd.f32 %v5188, %v5420
  %v5468 = vadd.f32 %v5189, %v5422
  %v5469 = vadd.f32 %v5190, %v5461
  %v5470 = vadd.f32 %v5191, %v5463
  %v5471 = vld [vmem:[%s832 + $0x20] sm:$0xff]
  %v5472 = vld [vmem:[%s832 + $0x28] sm:$0xff]
  %v5473 = vld [vmem:[%s832 + $0x30] sm:$0xff]
  %v5474 = vld [vmem:[%s832 + $0x38] sm:$0xff]
  %v5475 = vpack.c.bf16 %v5185, %v5185
  %v5476 = vld [vmem:[%s3] sm:$0xff]
  %v5477 = vld [vmem:[%s3 + $0x8] sm:$0xff]
  %v5478 = vld [vmem:[%s3 + $0x10] sm:$0xff]
  %v5479 = vld [vmem:[%s3 + $0x18] sm:$0xff]
  %v5480 = vld [vmem:[%s3 + $0x20] sm:$0xff]
  %v5481 = vld [vmem:[%s3 + $0x28] sm:$0xff]
  %v5482 = vld [vmem:[%s3 + $0x30] sm:$0xff]
  %v5483 = vld [vmem:[%s3 + $0x38] sm:$0xff]
  %v5484 = vld [vmem:[%s3 + $0x40] sm:$0xff]
  %v5485 = vld [vmem:[%s3 + $0x48] sm:$0xff]
  %v5486 = vld [vmem:[%s3 + $0x50] sm:$0xff]
  %v5487 = vld [vmem:[%s3 + $0x58] sm:$0xff]
  %v5488 = vld [vmem:[%s3 + $0x60] sm:$0xff]
  %v5489 = vld [vmem:[%s3 + $0x68] sm:$0xff]
  %v5490 = vld [vmem:[%s3 + $0x70] sm:$0xff]
  %v5491 = vld [vmem:[%s3 + $0x78] sm:$0xff]
  %v5492 = vld [vmem:[%s3 + $0x80] sm:$0xff]
  %v5493 = vld [vmem:[%s3 + $0x88] sm:$0xff]
  %v5494 = vld [vmem:[%s3 + $0x90] sm:$0xff]
  %v5495 = vld [vmem:[%s3 + $0x98] sm:$0xff]
  %v5496 = vld [vmem:[%s3 + $0xa0] sm:$0xff]
  %v5497 = vld [vmem:[%s3 + $0xa8] sm:$0xff]
  %v5498 = vld [vmem:[%s3 + $0xb0] sm:$0xff]
  %v5499 = vld [vmem:[%s3 + $0xb8] sm:$0xff]
  %v5500 = vld [vmem:[%s3 + $0xc0] sm:$0xff]
  %v5501 = vld [vmem:[%s3 + $0xc8] sm:$0xff]
  %v5502 = vld [vmem:[%s3 + $0xd0] sm:$0xff]
  %v5503 = vld [vmem:[%s3 + $0xd8] sm:$0xff]
  %v5504 = vld [vmem:[%s3 + $0xe0] sm:$0xff]
  %v5505 = vld [vmem:[%s3 + $0xe8] sm:$0xff]
  %v5506 = vld [vmem:[%s3 + $0xf0] sm:$0xff]
  %v5507 = vld [vmem:[%s3 + $0xf8] sm:$0xff]
  %v5540 = vunpack.c.l.b16 %v5476
  %v5541 = vunpack.c.h.b16 %v5476
  %v5542 = vunpack.c.l.b16 %v5477
  %v5543 = vunpack.c.h.b16 %v5477
  %v5544 = vunpack.c.l.b16 %v5478
  %v5545 = vunpack.c.h.b16 %v5478
  %v5546 = vunpack.c.l.b16 %v5479
  %v5547 = vunpack.c.h.b16 %v5479
  %v5548 = vunpack.c.l.b16 %v5480
  %v5549 = vunpack.c.h.b16 %v5480
  %v5550 = vunpack.c.l.b16 %v5481
  %v5551 = vunpack.c.h.b16 %v5481
  %v5552 = vunpack.c.l.b16 %v5482
  %v5553 = vunpack.c.h.b16 %v5482
  %v5554 = vunpack.c.l.b16 %v5483
  %v5555 = vunpack.c.h.b16 %v5483
  %v5556 = vunpack.c.l.b16 %v5484
  %v5557 = vunpack.c.h.b16 %v5484
  %v5558 = vunpack.c.l.b16 %v5485
  %v5559 = vunpack.c.h.b16 %v5485
  %v5560 = vunpack.c.l.b16 %v5486
  %v5561 = vunpack.c.h.b16 %v5486
  %v5562 = vunpack.c.l.b16 %v5487
  %v5563 = vunpack.c.h.b16 %v5487
  %v5564 = vunpack.c.l.b16 %v5488
  %v5565 = vunpack.c.h.b16 %v5488
  %v5566 = vunpack.c.l.b16 %v5489
  %v5567 = vunpack.c.h.b16 %v5489
  %v5568 = vunpack.c.l.b16 %v5490
  %v5569 = vunpack.c.h.b16 %v5490
  %v5570 = vunpack.c.l.b16 %v5491
  %v5571 = vunpack.c.h.b16 %v5491
  %v5572 = vunpack.c.l.b16 %v5492
  %v5573 = vunpack.c.h.b16 %v5492
  %v5574 = vunpack.c.l.b16 %v5493
  %v5575 = vunpack.c.h.b16 %v5493
  %v5576 = vunpack.c.l.b16 %v5494
  %v5577 = vunpack.c.h.b16 %v5494
  %v5578 = vunpack.c.l.b16 %v5495
  %v5579 = vunpack.c.h.b16 %v5495
  %v5580 = vunpack.c.l.b16 %v5496
  %v5581 = vunpack.c.h.b16 %v5496
  %v5582 = vunpack.c.l.b16 %v5497
  %v5583 = vunpack.c.h.b16 %v5497
  %v5584 = vunpack.c.l.b16 %v5498
  %v5585 = vunpack.c.h.b16 %v5498
  %v5586 = vunpack.c.l.b16 %v5499
  %v5587 = vunpack.c.h.b16 %v5499
  %v5588 = vunpack.c.l.b16 %v5500
  %v5589 = vunpack.c.h.b16 %v5500
  %v5590 = vunpack.c.l.b16 %v5501
  %v5591 = vunpack.c.h.b16 %v5501
  %v5592 = vunpack.c.l.b16 %v5502
  %v5593 = vunpack.c.h.b16 %v5502
  %v5594 = vunpack.c.l.b16 %v5503
  %v5595 = vunpack.c.h.b16 %v5503
  %v5596 = vunpack.c.l.b16 %v5504
  %v5597 = vunpack.c.h.b16 %v5504
  %v5598 = vunpack.c.l.b16 %v5505
  %v5599 = vunpack.c.h.b16 %v5505
  %v5600 = vunpack.c.l.b16 %v5506
  %v5601 = vunpack.c.h.b16 %v5506
  %v5602 = vunpack.c.l.b16 %v5507
  %v5603 = vunpack.c.h.b16 %v5507
  %v5604 = vpack.c.b16 %v5544, %v5540
  %v5605 = vpack.c.b16 %v5545, %v5541
  %v5606 = vpack.c.b16 %v5546, %v5542
  %v5607 = vpack.c.b16 %v5547, %v5543
  %v5608 = vpack.c.b16 %v5552, %v5548
  %v5609 = vpack.c.b16 %v5553, %v5549
  %v5610 = vpack.c.b16 %v5554, %v5550
  %v5611 = vpack.c.b16 %v5555, %v5551
  %v5612 = vpack.c.b16 %v5560, %v5556
  %v5613 = vpack.c.b16 %v5561, %v5557
  %v5614 = vpack.c.b16 %v5562, %v5558
  %v5615 = vpack.c.b16 %v5563, %v5559
  %v5616 = vpack.c.b16 %v5568, %v5564
  %v5617 = vpack.c.b16 %v5569, %v5565
  %v5618 = vpack.c.b16 %v5570, %v5566
  %v5619 = vpack.c.b16 %v5571, %v5567
  %v5620 = vpack.c.b16 %v5576, %v5572
  %v5621 = vpack.c.b16 %v5577, %v5573
  %v5622 = vpack.c.b16 %v5578, %v5574
  %v5623 = vpack.c.b16 %v5579, %v5575
  %v5624 = vpack.c.b16 %v5584, %v5580
  %v5625 = vpack.c.b16 %v5585, %v5581
  %v5626 = vpack.c.b16 %v5586, %v5582
  %v5627 = vpack.c.b16 %v5587, %v5583
  %v5628 = vpack.c.b16 %v5592, %v5588
  %v5629 = vpack.c.b16 %v5593, %v5589
  %v5630 = vpack.c.b16 %v5594, %v5590
  %v5631 = vpack.c.b16 %v5595, %v5591
  %v5632 = vpack.c.b16 %v5600, %v5596
  %v5633 = vpack.c.b16 %v5601, %v5597
  %v5634 = vpack.c.b16 %v5602, %v5598
  %v5635 = vpack.c.b16 %v5603, %v5599
  %5668 = vmatprep.subr.bf16.mxu0 %v5633
  %5669 = vmatpush1.bf16.msra.mxu0 %v5632
  %5670 = vmatprep.subr.bf16.mxu0 %v5629
  %5671 = vmatpush1.bf16.msra.mxu0 %v5628
  %5672 = vmatprep.subr.bf16.mxu0 %v5625
  %5673 = vmatpush1.bf16.msra.mxu0 %v5624
  %5674 = vmatprep.subr.bf16.mxu0 %v5621
  %5675 = vmatpush1.bf16.msra.mxu0 %v5620
  %5676 = vmatprep.subr.bf16.mxu0 %v5617
  %5677 = vmatpush1.bf16.msra.mxu0 %v5616
  %5678 = vmatprep.subr.bf16.mxu0 %v5613
  %5679 = vmatpush1.bf16.msra.mxu0 %v5612
  %5680 = vmatprep.subr.bf16.mxu0 %v5609
  %5681 = vmatpush1.bf16.msra.mxu0 %v5608
  %5682 = vmatprep.subr.bf16.mxu0 %v5605
  %5683 = vmatpush1.bf16.msra.mxu0 %v5604
  %5684 = vmatprep.subr.bf16.mxu0 0
  %5685 = vmatpush2.bf16.msra.mxu0 0
  %5686 = vmatprep.subr.bf16.mxu0 0
  %5687 = vmatpush2.bf16.msra.mxu0 0
  %5688 = vmatprep.subr.bf16.mxu0 0
  %5689 = vmatpush2.bf16.msra.mxu0 0
  %5690 = vmatprep.subr.bf16.mxu0 0
  %5691 = vmatpush2.bf16.msra.mxu0 0
  %5692 = vmatprep.subr.bf16.mxu0 0
  %5693 = vmatpush2.bf16.msra.mxu0 0
  %5694 = vmatprep.subr.bf16.mxu0 0
  %5695 = vmatpush2.bf16.msra.mxu0 0
  %5696 = vmatprep.subr.bf16.mxu0 0
  %5697 = vmatpush2.bf16.msra.mxu0 0
  %5698 = vmatprep.subr.bf16.mxu0 0
  %5699 = vmatpush2.bf16.msra.mxu0 0
  %5700 = vmatprep.mubr.bf16.mxu0 0
  %5701 = vmatmul.mubr.bf16.gmra.mxu0 %v5475
  %v5702 = vpop.f32.mrf.mxu0
  %v5703 = vadd.f32 0.0, %v5702
  %v5704 = vpop.f32.mrf.mxu0
  %v5705 = vadd.f32 0.0, %v5704
  %v5706 = vpop.f32.mrf.mxu0
  %v5707 = vpop.f32.mrf.mxu0
  %5708 = vdwg.mxu0
  %5709 = vmatprep.subr.bf16.mxu0 %v5635
  %5710 = vmatpush1.bf16.msra.mxu0 %v5634
  %5711 = vmatprep.subr.bf16.mxu0 %v5631
  %5712 = vmatpush1.bf16.msra.mxu0 %v5630
  %5713 = vmatprep.subr.bf16.mxu0 %v5627
  %5714 = vmatpush1.bf16.msra.mxu0 %v5626
  %5715 = vmatprep.subr.bf16.mxu0 %v5623
  %5716 = vmatpush1.bf16.msra.mxu0 %v5622
  %5717 = vmatprep.subr.bf16.mxu0 %v5619
  %5718 = vmatpush1.bf16.msra.mxu0 %v5618
  %5719 = vmatprep.subr.bf16.mxu0 %v5615
  %5720 = vmatpush1.bf16.msra.mxu0 %v5614
  %5721 = vmatprep.subr.bf16.mxu0 %v5611
  %5722 = vmatpush1.bf16.msra.mxu0 %v5610
  %5723 = vmatprep.subr.bf16.mxu0 %v5607
  %5724 = vmatpush1.bf16.msra.mxu0 %v5606
  %5725 = vmatprep.subr.bf16.mxu0 0
  %5726 = vmatpush2.bf16.msra.mxu0 0
  %5727 = vmatprep.subr.bf16.mxu0 0
  %5728 = vmatpush2.bf16.msra.mxu0 0
  %5729 = vmatprep.subr.bf16.mxu0 0
  %5730 = vmatpush2.bf16.msra.mxu0 0
  %5731 = vmatprep.subr.bf16.mxu0 0
  %5732 = vmatpush2.bf16.msra.mxu0 0
  %5733 = vmatprep.subr.bf16.mxu0 0
  %5734 = vmatpush2.bf16.msra.mxu0 0
  %5735 = vmatprep.subr.bf16.mxu0 0
  %5736 = vmatpush2.bf16.msra.mxu0 0
  %5737 = vmatprep.subr.bf16.mxu0 0
  %5738 = vmatpush2.bf16.msra.mxu0 0
  %5739 = vmatprep.subr.bf16.mxu0 0
  %5740 = vmatpush2.bf16.msra.mxu0 0
  %5741 = vmatprep.mubr.bf16.mxu0 0
  %5742 = vmatmul.mubr.bf16.gmra.mxu0 %v5475
  %v5743 = vpop.f32.mrf.mxu0
  %v5744 = vadd.f32 0.0, %v5743
  %v5745 = vpop.f32.mrf.mxu0
  %v5746 = vadd.f32 0.0, %v5745
  %v5747 = vpop.f32.mrf.mxu0
  %v5748 = vpop.f32.mrf.mxu0
  %5749 = vdwg.mxu0
  %v5750 = vadd.f32 %v5471, %v5703
  %v5751 = vadd.f32 %v5472, %v5705
  %v5752 = vadd.f32 %v5473, %v5744
  %v5753 = vadd.f32 %v5474, %v5746
  %v5754 = vxor.u32 %v5467, 2147483648
  %v5755 = vxor.u32 %v5468, 2147483648
  %v5756 = vxor.u32 %v5469, 2147483648
  %v5757 = vmul.f32 %v5754, 1.442695
  %v5758 = vpow.pop %v5757
  %v5759 = vmul.f32 %v5755, 1.442695
  %v5760 = vpow.pop %v5759
  %v5761 = vmul.f32 %v5756, 1.442695
  %v5762 = vpow.pop %v5761
  %v5763 = vadd.f32 %v5758, 1.0
  %v5764 = vadd.f32 %v5760, 1.0
  %v5765 = vadd.f32 %v5762, 1.0
  %v5766 = vrcp.pop %v5763
  %v5767 = vmul.f32 1.0, %v5766
  %v5768 = vrcp.pop %v5764
  %v5769 = vmul.f32 1.0, %v5768
  %v5770 = vrcp.pop %v5765
  %v5771 = vmul.f32 1.0, %v5770
  %v5772 = vtanh.pop %v5470
  %v5773 = vmul.f32 %v5769, %v5159
  %v5774 = vmul.f32 %v5767, %v5772
  %v5775 = vadd.f32 %v5773, %v5774
  %v5776 = vtanh.pop %v5775
  %v5777 = vmul.f32 %v5771, %v5776
  %v5778 = vxor.u32 %v5750, 2147483648
  %v5779 = vxor.u32 %v5751, 2147483648
  %v5780 = vxor.u32 %v5752, 2147483648
  %v5781 = vmul.f32 %v5778, 1.442695
  %v5782 = vpow.pop %v5781
  %v5783 = vmul.f32 %v5779, 1.442695
  %v5784 = vpow.pop %v5783
  %v5785 = vmul.f32 %v5780, 1.442695
  %v5786 = vpow.pop %v5785
  %v5787 = vadd.f32 %v5782, 1.0
  %v5788 = vadd.f32 %v5784, 1.0
  %v5789 = vadd.f32 %v5786, 1.0
  %v5790 = vrcp.pop %v5787
  %v5791 = vmul.f32 1.0, %v5790
  %v5792 = vrcp.pop %v5788
  %v5793 = vmul.f32 1.0, %v5792
  %v5794 = vrcp.pop %v5789
  %v5795 = vmul.f32 1.0, %v5794
  %v5796 = vtanh.pop %v5753
  %v5797 = vmul.f32 %v5793, %v5183
  %v5798 = vmul.f32 %v5791, %v5796
  %v5799 = vadd.f32 %v5797, %v5798
  %v5800 = vtanh.pop %v5799
  %v5801 = vmul.f32 %v5795, %v5800
  %5802 = vst [vmem:[%s1454] sm:$0xff] %v5777
  %5803 = vst [vmem:[%s1450 + $0x8] sm:$0xff] %v5801
  %v5804 = vld [vmem:[#allocation3] sm:$0xff]
  %v5805 = vld [vmem:[#allocation3 + $0x8] sm:$0xff]
  %v5806 = vld [vmem:[#allocation3 + $0x10] sm:$0xff]
  %v5807 = vld [vmem:[#allocation3 + $0x18] sm:$0xff]
  %v5808 = vld [vmem:[#allocation3 + $0x20] sm:$0xff]
  %v5809 = vld [vmem:[#allocation3 + $0x28] sm:$0xff]
  %v5810 = vld [vmem:[#allocation3 + $0x30] sm:$0xff]
  %v5811 = vld [vmem:[#allocation3 + $0x38] sm:$0xff]
  %v5812 = vld [vmem:[#allocation3 + $0x40] sm:$0xff]
  %v5813 = vld [vmem:[#allocation3 + $0x48] sm:$0xff]
  %v5814 = vld [vmem:[#allocation3 + $0x50] sm:$0xff]
  %v5815 = vld [vmem:[#allocation3 + $0x58] sm:$0xff]
  %v5816 = vld [vmem:[#allocation3 + $0x60] sm:$0xff]
  %v5817 = vld [vmem:[#allocation3 + $0x68] sm:$0xff]
  %v5818 = vld [vmem:[#allocation3 + $0x70] sm:$0xff]
  %v5819 = vld [vmem:[#allocation3 + $0x78] sm:$0xff]
  %v5820 = vpack.c.bf16 %v5806, %v5804
  %v5821 = vpack.c.bf16 %v5807, %v5805
  %v5822 = vpack.c.bf16 %v5810, %v5808
  %v5823 = vpack.c.bf16 %v5811, %v5809
  %v5824 = vpack.c.bf16 %v5814, %v5812
  %v5825 = vpack.c.bf16 %v5815, %v5813
  %v5826 = vpack.c.bf16 %v5818, %v5816
  %v5827 = vpack.c.bf16 %v5819, %v5817
  %v5828 = vld [vmem:[%s5] sm:$0xff]
  %v5829 = vld [vmem:[%s5 + $0x8] sm:$0xff]
  %v5830 = vld [vmem:[%s5 + $0x10] sm:$0xff]
  %v5831 = vld [vmem:[%s5 + $0x18] sm:$0xff]
  %v5832 = vld [vmem:[%s5 + $0x20] sm:$0xff]
  %v5833 = vld [vmem:[%s5 + $0x28] sm:$0xff]
  %v5834 = vld [vmem:[%s5 + $0x30] sm:$0xff]
  %v5835 = vld [vmem:[%s5 + $0x38] sm:$0xff]
  %v5836 = vld [vmem:[%s5 + $0x40] sm:$0xff]
  %v5837 = vld [vmem:[%s5 + $0x48] sm:$0xff]
  %v5838 = vld [vmem:[%s5 + $0x50] sm:$0xff]
  %v5839 = vld [vmem:[%s5 + $0x58] sm:$0xff]
  %v5840 = vld [vmem:[%s5 + $0x60] sm:$0xff]
  %v5841 = vld [vmem:[%s5 + $0x68] sm:$0xff]
  %v5842 = vld [vmem:[%s5 + $0x70] sm:$0xff]
  %v5843 = vld [vmem:[%s5 + $0x78] sm:$0xff]
  %v5844 = vld [vmem:[%s5 + $0x80] sm:$0xff]
  %v5845 = vld [vmem:[%s5 + $0x88] sm:$0xff]
  %v5846 = vld [vmem:[%s5 + $0x90] sm:$0xff]
  %v5847 = vld [vmem:[%s5 + $0x98] sm:$0xff]
  %v5848 = vld [vmem:[%s5 + $0xa0] sm:$0xff]
  %v5849 = vld [vmem:[%s5 + $0xa8] sm:$0xff]
  %v5850 = vld [vmem:[%s5 + $0xb0] sm:$0xff]
  %v5851 = vld [vmem:[%s5 + $0xb8] sm:$0xff]
  %v5852 = vld [vmem:[%s5 + $0xc0] sm:$0xff]
  %v5853 = vld [vmem:[%s5 + $0xc8] sm:$0xff]
  %v5854 = vld [vmem:[%s5 + $0xd0] sm:$0xff]
  %v5855 = vld [vmem:[%s5 + $0xd8] sm:$0xff]
  %v5856 = vld [vmem:[%s5 + $0xe0] sm:$0xff]
  %v5857 = vld [vmem:[%s5 + $0xe8] sm:$0xff]
  %v5858 = vld [vmem:[%s5 + $0xf0] sm:$0xff]
  %v5859 = vld [vmem:[%s5 + $0xf8] sm:$0xff]
  %v5860 = vld [vmem:[%s5 + $0x100] sm:$0xff]
  %v5861 = vld [vmem:[%s5 + $0x108] sm:$0xff]
  %v5862 = vld [vmem:[%s5 + $0x110] sm:$0xff]
  %v5863 = vld [vmem:[%s5 + $0x118] sm:$0xff]
  %v5864 = vld [vmem:[%s5 + $0x120] sm:$0xff]
  %v5865 = vld [vmem:[%s5 + $0x128] sm:$0xff]
  %v5866 = vld [vmem:[%s5 + $0x130] sm:$0xff]
  %v5867 = vld [vmem:[%s5 + $0x138] sm:$0xff]
  %v5868 = vld [vmem:[%s5 + $0x140] sm:$0xff]
  %v5869 = vld [vmem:[%s5 + $0x148] sm:$0xff]
  %v5870 = vld [vmem:[%s5 + $0x150] sm:$0xff]
  %v5871 = vld [vmem:[%s5 + $0x158] sm:$0xff]
  %v5872 = vld [vmem:[%s5 + $0x160] sm:$0xff]
  %v5873 = vld [vmem:[%s5 + $0x168] sm:$0xff]
  %v5874 = vld [vmem:[%s5 + $0x170] sm:$0xff]
  %v5875 = vld [vmem:[%s5 + $0x178] sm:$0xff]
  %v5876 = vld [vmem:[%s5 + $0x180] sm:$0xff]
  %v5877 = vld [vmem:[%s5 + $0x188] sm:$0xff]
  %v5878 = vld [vmem:[%s5 + $0x190] sm:$0xff]
  %v5879 = vld [vmem:[%s5 + $0x198] sm:$0xff]
  %v5880 = vld [vmem:[%s5 + $0x1a0] sm:$0xff]
  %v5881 = vld [vmem:[%s5 + $0x1a8] sm:$0xff]
  %v5882 = vld [vmem:[%s5 + $0x1b0] sm:$0xff]
  %v5883 = vld [vmem:[%s5 + $0x1b8] sm:$0xff]
  %v5884 = vld [vmem:[%s5 + $0x1c0] sm:$0xff]
  %v5885 = vld [vmem:[%s5 + $0x1c8] sm:$0xff]
  %v5886 = vld [vmem:[%s5 + $0x1d0] sm:$0xff]
  %v5887 = vld [vmem:[%s5 + $0x1d8] sm:$0xff]
  %v5888 = vld [vmem:[%s5 + $0x1e0] sm:$0xff]
  %v5889 = vld [vmem:[%s5 + $0x1e8] sm:$0xff]
  %v5890 = vld [vmem:[%s5 + $0x1f0] sm:$0xff]
  %v5891 = vld [vmem:[%s5 + $0x1f8] sm:$0xff]
  %v5892 = vld [vmem:[%s7] sm:$0xf]
  %v5894 = vlaneseq
  %v5895 = vshrl.u32 %v5894, 7
  %v5896 = vsub.s32 0, %v5895
  %v5897 = vrot.slane %v5892, %v5896
  %v5898 = vlaneseq
  %v5899 = vshrl.u32 %v5898, 7
  %v5900 = vsub.s32 1, %v5899
  %v5901 = vrot.slane %v5892, %v5900
  %v5902 = vlaneseq
  %v5903 = vshrl.u32 %v5902, 7
  %v5904 = vsub.s32 2, %v5903
  %v5905 = vrot.slane %v5892, %v5904
  %v5906 = vlaneseq
  %v5907 = vshrl.u32 %v5906, 7
  %v5908 = vsub.s32 3, %v5907
  %v5909 = vrot.slane %v5892, %v5908
  %v5978 = vunpack.c.l.b16 %v5828
  %v5979 = vunpack.c.h.b16 %v5828
  %v5980 = vunpack.c.l.b16 %v5829
  %v5981 = vunpack.c.h.b16 %v5829
  %v5982 = vunpack.c.l.b16 %v5830
  %v5983 = vunpack.c.h.b16 %v5830
  %v5984 = vunpack.c.l.b16 %v5831
  %v5985 = vunpack.c.h.b16 %v5831
  %v5986 = vunpack.c.l.b16 %v5832
  %v5987 = vunpack.c.h.b16 %v5832
  %v5988 = vunpack.c.l.b16 %v5833
  %v5989 = vunpack.c.h.b16 %v5833
  %v5990 = vunpack.c.l.b16 %v5834
  %v5991 = vunpack.c.h.b16 %v5834
  %v5992 = vunpack.c.l.b16 %v5835
  %v5993 = vunpack.c.h.b16 %v5835
  %v5994 = vunpack.c.l.b16 %v5836
  %v5995 = vunpack.c.h.b16 %v5836
  %v5996 = vunpack.c.l.b16 %v5837
  %v5997 = vunpack.c.h.b16 %v5837
  %v5998 = vunpack.c.l.b16 %v5838
  %v5999 = vunpack.c.h.b16 %v5838
  %v6000 = vunpack.c.l.b16 %v5839
  %v6001 = vunpack.c.h.b16 %v5839
  %v6002 = vunpack.c.l.b16 %v5840
  %v6003 = vunpack.c.h.b16 %v5840
  %v6004 = vunpack.c.l.b16 %v5841
  %v6005 = vunpack.c.h.b16 %v5841
  %v6006 = vunpack.c.l.b16 %v5842
  %v6007 = vunpack.c.h.b16 %v5842
  %v6008 = vunpack.c.l.b16 %v5843
  %v6009 = vunpack.c.h.b16 %v5843
  %v6010 = vunpack.c.l.b16 %v5844
  %v6011 = vunpack.c.h.b16 %v5844
  %v6012 = vunpack.c.l.b16 %v5845
  %v6013 = vunpack.c.h.b16 %v5845
  %v6014 = vunpack.c.l.b16 %v5846
  %v6015 = vunpack.c.h.b16 %v5846
  %v6016 = vunpack.c.l.b16 %v5847
  %v6017 = vunpack.c.h.b16 %v5847
  %v6018 = vunpack.c.l.b16 %v5848
  %v6019 = vunpack.c.h.b16 %v5848
  %v6020 = vunpack.c.l.b16 %v5849
  %v6021 = vunpack.c.h.b16 %v5849
  %v6022 = vunpack.c.l.b16 %v5850
  %v6023 = vunpack.c.h.b16 %v5850
  %v6024 = vunpack.c.l.b16 %v5851
  %v6025 = vunpack.c.h.b16 %v5851
  %v6026 = vunpack.c.l.b16 %v5852
  %v6027 = vunpack.c.h.b16 %v5852
  %v6028 = vunpack.c.l.b16 %v5853
  %v6029 = vunpack.c.h.b16 %v5853
  %v6030 = vunpack.c.l.b16 %v5854
  %v6031 = vunpack.c.h.b16 %v5854
  %v6032 = vunpack.c.l.b16 %v5855
  %v6033 = vunpack.c.h.b16 %v5855
  %v6034 = vunpack.c.l.b16 %v5856
  %v6035 = vunpack.c.h.b16 %v5856
  %v6036 = vunpack.c.l.b16 %v5857
  %v6037 = vunpack.c.h.b16 %v5857
  %v6038 = vunpack.c.l.b16 %v5858
  %v6039 = vunpack.c.h.b16 %v5858
  %v6040 = vunpack.c.l.b16 %v5859
  %v6041 = vunpack.c.h.b16 %v5859
  %v6042 = vunpack.c.l.b16 %v5860
  %v6043 = vunpack.c.h.b16 %v5860
  %v6044 = vunpack.c.l.b16 %v5861
  %v6045 = vunpack.c.h.b16 %v5861
  %v6046 = vunpack.c.l.b16 %v5862
  %v6047 = vunpack.c.h.b16 %v5862
  %v6048 = vunpack.c.l.b16 %v5863
  %v6049 = vunpack.c.h.b16 %v5863
  %v6050 = vunpack.c.l.b16 %v5864
  %v6051 = vunpack.c.h.b16 %v5864
  %v6052 = vunpack.c.l.b16 %v5865
  %v6053 = vunpack.c.h.b16 %v5865
  %v6054 = vunpack.c.l.b16 %v5866
  %v6055 = vunpack.c.h.b16 %v5866
  %v6056 = vunpack.c.l.b16 %v5867
  %v6057 = vunpack.c.h.b16 %v5867
  %v6058 = vunpack.c.l.b16 %v5868
  %v6059 = vunpack.c.h.b16 %v5868
  %v6060 = vunpack.c.l.b16 %v5869
  %v6061 = vunpack.c.h.b16 %v5869
  %v6062 = vunpack.c.l.b16 %v5870
  %v6063 = vunpack.c.h.b16 %v5870
  %v6064 = vunpack.c.l.b16 %v5871
  %v6065 = vunpack.c.h.b16 %v5871
  %v6066 = vunpack.c.l.b16 %v5872
  %v6067 = vunpack.c.h.b16 %v5872
  %v6068 = vunpack.c.l.b16 %v5873
  %v6069 = vunpack.c.h.b16 %v5873
  %v6070 = vunpack.c.l.b16 %v5874
  %v6071 = vunpack.c.h.b16 %v5874
  %v6072 = vunpack.c.l.b16 %v5875
  %v6073 = vunpack.c.h.b16 %v5875
  %v6074 = vunpack.c.l.b16 %v5876
  %v6075 = vunpack.c.h.b16 %v5876
  %v6076 = vunpack.c.l.b16 %v5877
  %v6077 = vunpack.c.h.b16 %v5877
  %v6078 = vunpack.c.l.b16 %v5878
  %v6079 = vunpack.c.h.b16 %v5878
  %v6080 = vunpack.c.l.b16 %v5879
  %v6081 = vunpack.c.h.b16 %v5879
  %v6082 = vunpack.c.l.b16 %v5880
  %v6083 = vunpack.c.h.b16 %v5880
  %v6084 = vunpack.c.l.b16 %v5881
  %v6085 = vunpack.c.h.b16 %v5881
  %v6086 = vunpack.c.l.b16 %v5882
  %v6087 = vunpack.c.h.b16 %v5882
  %v6088 = vunpack.c.l.b16 %v5883
  %v6089 = vunpack.c.h.b16 %v5883
  %v6090 = vunpack.c.l.b16 %v5884
  %v6091 = vunpack.c.h.b16 %v5884
  %v6092 = vunpack.c.l.b16 %v5885
  %v6093 = vunpack.c.h.b16 %v5885
  %v6094 = vunpack.c.l.b16 %v5886
  %v6095 = vunpack.c.h.b16 %v5886
  %v6096 = vunpack.c.l.b16 %v5887
  %v6097 = vunpack.c.h.b16 %v5887
  %v6098 = vunpack.c.l.b16 %v5888
  %v6099 = vunpack.c.h.b16 %v5888
  %v6100 = vunpack.c.l.b16 %v5889
  %v6101 = vunpack.c.h.b16 %v5889
  %v6102 = vunpack.c.l.b16 %v5890
  %v6103 = vunpack.c.h.b16 %v5890
  %v6104 = vunpack.c.l.b16 %v5891
  %v6105 = vunpack.c.h.b16 %v5891
  %v6106 = vpack.c.b16 %v5982, %v5978
  %v6107 = vpack.c.b16 %v5983, %v5979
  %v6108 = vpack.c.b16 %v5984, %v5980
  %v6109 = vpack.c.b16 %v5985, %v5981
  %v6110 = vpack.c.b16 %v5990, %v5986
  %v6111 = vpack.c.b16 %v5991, %v5987
  %v6112 = vpack.c.b16 %v5992, %v5988
  %v6113 = vpack.c.b16 %v5993, %v5989
  %v6114 = vpack.c.b16 %v5998, %v5994
  %v6115 = vpack.c.b16 %v5999, %v5995
  %v6116 = vpack.c.b16 %v6000, %v5996
  %v6117 = vpack.c.b16 %v6001, %v5997
  %v6118 = vpack.c.b16 %v6006, %v6002
  %v6119 = vpack.c.b16 %v6007, %v6003
  %v6120 = vpack.c.b16 %v6008, %v6004
  %v6121 = vpack.c.b16 %v6009, %v6005
  %v6122 = vpack.c.b16 %v6014, %v6010
  %v6123 = vpack.c.b16 %v6015, %v6011
  %v6124 = vpack.c.b16 %v6016, %v6012
  %v6125 = vpack.c.b16 %v6017, %v6013
  %v6126 = vpack.c.b16 %v6022, %v6018
  %v6127 = vpack.c.b16 %v6023, %v6019
  %v6128 = vpack.c.b16 %v6024, %v6020
  %v6129 = vpack.c.b16 %v6025, %v6021
  %v6130 = vpack.c.b16 %v6030, %v6026
  %v6131 = vpack.c.b16 %v6031, %v6027
  %v6132 = vpack.c.b16 %v6032, %v6028
  %v6133 = vpack.c.b16 %v6033, %v6029
  %v6134 = vpack.c.b16 %v6038, %v6034
  %v6135 = vpack.c.b16 %v6039, %v6035
  %v6136 = vpack.c.b16 %v6040, %v6036
  %v6137 = vpack.c.b16 %v6041, %v6037
  %v6138 = vpack.c.b16 %v6046, %v6042
  %v6139 = vpack.c.b16 %v6047, %v6043
  %v6140 = vpack.c.b16 %v6048, %v6044
  %v6141 = vpack.c.b16 %v6049, %v6045
  %v6142 = vpack.c.b16 %v6054, %v6050
  %v6143 = vpack.c.b16 %v6055, %v6051
  %v6144 = vpack.c.b16 %v6056, %v6052
  %v6145 = vpack.c.b16 %v6057, %v6053
  %v6146 = vpack.c.b16 %v6062, %v6058
  %v6147 = vpack.c.b16 %v6063, %v6059
  %v6148 = vpack.c.b16 %v6064, %v6060
  %v6149 = vpack.c.b16 %v6065, %v6061
  %v6150 = vpack.c.b16 %v6070, %v6066
  %v6151 = vpack.c.b16 %v6071, %v6067
  %v6152 = vpack.c.b16 %v6072, %v6068
  %v6153 = vpack.c.b16 %v6073, %v6069
  %v6154 = vpack.c.b16 %v6078, %v6074
  %v6155 = vpack.c.b16 %v6079, %v6075
  %v6156 = vpack.c.b16 %v6080, %v6076
  %v6157 = vpack.c.b16 %v6081, %v6077
  %v6158 = vpack.c.b16 %v6086, %v6082
  %v6159 = vpack.c.b16 %v6087, %v6083
  %v6160 = vpack.c.b16 %v6088, %v6084
  %v6161 = vpack.c.b16 %v6089, %v6085
  %v6162 = vpack.c.b16 %v6094, %v6090
  %v6163 = vpack.c.b16 %v6095, %v6091
  %v6164 = vpack.c.b16 %v6096, %v6092
  %v6165 = vpack.c.b16 %v6097, %v6093
  %v6166 = vpack.c.b16 %v6102, %v6098
  %v6167 = vpack.c.b16 %v6103, %v6099
  %v6168 = vpack.c.b16 %v6104, %v6100
  %v6169 = vpack.c.b16 %v6105, %v6101
  %6234 = vmatprep.subr.bf16.mxu0 %v6135
  %6235 = vmatpush1.bf16.msra.mxu0 %v6134
  %6236 = vmatprep.subr.bf16.mxu0 %v6131
  %6237 = vmatpush1.bf16.msra.mxu0 %v6130
  %6238 = vmatprep.subr.bf16.mxu0 %v6127
  %6239 = vmatpush1.bf16.msra.mxu0 %v6126
  %6240 = vmatprep.subr.bf16.mxu0 %v6123
  %6241 = vmatpush1.bf16.msra.mxu0 %v6122
  %6242 = vmatprep.subr.bf16.mxu0 %v6119
  %6243 = vmatpush1.bf16.msra.mxu0 %v6118
  %6244 = vmatprep.subr.bf16.mxu0 %v6115
  %6245 = vmatpush1.bf16.msra.mxu0 %v6114
  %6246 = vmatprep.subr.bf16.mxu0 %v6111
  %6247 = vmatpush1.bf16.msra.mxu0 %v6110
  %6248 = vmatprep.subr.bf16.mxu0 %v6107
  %6249 = vmatpush1.bf16.msra.mxu0 %v6106
  %6250 = vmatprep.subr.bf16.mxu0 %v6167
  %6251 = vmatpush2.bf16.msra.mxu0 %v6166
  %6252 = vmatprep.subr.bf16.mxu0 %v6163
  %6253 = vmatpush2.bf16.msra.mxu0 %v6162
  %6254 = vmatprep.subr.bf16.mxu0 %v6159
  %6255 = vmatpush2.bf16.msra.mxu0 %v6158
  %6256 = vmatprep.subr.bf16.mxu0 %v6155
  %6257 = vmatpush2.bf16.msra.mxu0 %v6154
  %6258 = vmatprep.subr.bf16.mxu0 %v6151
  %6259 = vmatpush2.bf16.msra.mxu0 %v6150
  %6260 = vmatprep.subr.bf16.mxu0 %v6147
  %6261 = vmatpush2.bf16.msra.mxu0 %v6146
  %6262 = vmatprep.subr.bf16.mxu0 %v6143
  %6263 = vmatpush2.bf16.msra.mxu0 %v6142
  %6264 = vmatprep.subr.bf16.mxu0 %v6139
  %6265 = vmatpush2.bf16.msra.mxu0 %v6138
  %6266 = vmatprep.mubr.bf16.mxu0 %v5821
  %6267 = vmatmul.mubr.bf16.gmra.mxu0 %v5820
  %v6268 = vpop.f32.mrf.mxu0
  %v6269 = vadd.f32 %v5897, %v6268
  %v6270 = vpop.f32.mrf.mxu0
  %v6271 = vadd.f32 %v5901, %v6270
  %v6272 = vpop.f32.mrf.mxu0
  %v6273 = vadd.f32 %v5897, %v6272
  %v6274 = vpop.f32.mrf.mxu0
  %v6275 = vadd.f32 %v5901, %v6274
  %6276 = vmatprep.mubr.bf16.mxu0 %v5823
  %6277 = vmatmul.mubr.bf16.gmra.mxu0 %v5822
  %v6278 = vpop.f32.mrf.mxu0
  %v6279 = vadd.f32 %v5897, %v6278
  %v6280 = vpop.f32.mrf.mxu0
  %v6281 = vadd.f32 %v5901, %v6280
  %v6282 = vpop.f32.mrf.mxu0
  %v6283 = vadd.f32 %v5897, %v6282
  %v6284 = vpop.f32.mrf.mxu0
  %v6285 = vadd.f32 %v5901, %v6284
  %6286 = vmatprep.mubr.bf16.mxu0 %v5825
  %6287 = vmatmul.mubr.bf16.gmra.mxu0 %v5824
  %v6288 = vpop.f32.mrf.mxu0
  %v6289 = vadd.f32 %v5897, %v6288
  %v6290 = vpop.f32.mrf.mxu0
  %v6291 = vadd.f32 %v5901, %v6290
  %v6292 = vpop.f32.mrf.mxu0
  %v6293 = vadd.f32 %v5897, %v6292
  %v6294 = vpop.f32.mrf.mxu0
  %v6295 = vadd.f32 %v5901, %v6294
  %6296 = vmatprep.mubr.bf16.mxu0 %v5827
  %6297 = vmatmul.mubr.bf16.gmra.mxu0 %v5826
  %v6298 = vpop.f32.mrf.mxu0
  %v6299 = vadd.f32 %v5897, %v6298
  %v6300 = vpop.f32.mrf.mxu0
  %v6301 = vadd.f32 %v5901, %v6300
  %v6302 = vpop.f32.mrf.mxu0
  %v6303 = vadd.f32 %v5897, %v6302
  %v6304 = vpop.f32.mrf.mxu0
  %v6305 = vadd.f32 %v5901, %v6304
  %6306 = vdwg.mxu0
  %6307 = vmatprep.subr.bf16.mxu0 %v6137
  %6308 = vmatpush1.bf16.msra.mxu0 %v6136
  %6309 = vmatprep.subr.bf16.mxu0 %v6133
  %6310 = vmatpush1.bf16.msra.mxu0 %v6132
  %6311 = vmatprep.subr.bf16.mxu0 %v6129
  %6312 = vmatpush1.bf16.msra.mxu0 %v6128
  %6313 = vmatprep.subr.bf16.mxu0 %v6125
  %6314 = vmatpush1.bf16.msra.mxu0 %v6124
  %6315 = vmatprep.subr.bf16.mxu0 %v6121
  %6316 = vmatpush1.bf16.msra.mxu0 %v6120
  %6317 = vmatprep.subr.bf16.mxu0 %v6117
  %6318 = vmatpush1.bf16.msra.mxu0 %v6116
  %6319 = vmatprep.subr.bf16.mxu0 %v6113
  %6320 = vmatpush1.bf16.msra.mxu0 %v6112
  %6321 = vmatprep.subr.bf16.mxu0 %v6109
  %6322 = vmatpush1.bf16.msra.mxu0 %v6108
  %6323 = vmatprep.subr.bf16.mxu0 %v6169
  %6324 = vmatpush2.bf16.msra.mxu0 %v6168
  %6325 = vmatprep.subr.bf16.mxu0 %v6165
  %6326 = vmatpush2.bf16.msra.mxu0 %v6164
  %6327 = vmatprep.subr.bf16.mxu0 %v6161
  %6328 = vmatpush2.bf16.msra.mxu0 %v6160
  %6329 = vmatprep.subr.bf16.mxu0 %v6157
  %6330 = vmatpush2.bf16.msra.mxu0 %v6156
  %6331 = vmatprep.subr.bf16.mxu0 %v6153
  %6332 = vmatpush2.bf16.msra.mxu0 %v6152
  %6333 = vmatprep.subr.bf16.mxu0 %v6149
  %6334 = vmatpush2.bf16.msra.mxu0 %v6148
  %6335 = vmatprep.subr.bf16.mxu0 %v6145
  %6336 = vmatpush2.bf16.msra.mxu0 %v6144
  %6337 = vmatprep.subr.bf16.mxu0 %v6141
  %6338 = vmatpush2.bf16.msra.mxu0 %v6140
  %6339 = vmatprep.mubr.bf16.mxu0 %v5821
  %6340 = vmatmul.mubr.bf16.gmra.mxu0 %v5820
  %v6341 = vpop.f32.mrf.mxu0
  %v6342 = vadd.f32 %v5905, %v6341
  %v6343 = vpop.f32.mrf.mxu0
  %v6344 = vadd.f32 %v5909, %v6343
  %v6345 = vpop.f32.mrf.mxu0
  %v6346 = vadd.f32 %v5905, %v6345
  %v6347 = vpop.f32.mrf.mxu0
  %v6348 = vadd.f32 %v5909, %v6347
  %6349 = vmatprep.mubr.bf16.mxu0 %v5823
  %6350 = vmatmul.mubr.bf16.gmra.mxu0 %v5822
  %v6351 = vpop.f32.mrf.mxu0
  %v6352 = vadd.f32 %v5905, %v6351
  %v6353 = vpop.f32.mrf.mxu0
  %v6354 = vadd.f32 %v5909, %v6353
  %v6355 = vpop.f32.mrf.mxu0
  %v6356 = vadd.f32 %v5905, %v6355
  %v6357 = vpop.f32.mrf.mxu0
  %v6358 = vadd.f32 %v5909, %v6357
  %6359 = vmatprep.mubr.bf16.mxu0 %v5825
  %6360 = vmatmul.mubr.bf16.gmra.mxu0 %v5824
  %v6361 = vpop.f32.mrf.mxu0
  %v6362 = vadd.f32 %v5905, %v6361
  %v6363 = vpop.f32.mrf.mxu0
  %v6364 = vadd.f32 %v5909, %v6363
  %v6365 = vpop.f32.mrf.mxu0
  %v6366 = vadd.f32 %v5905, %v6365
  %v6367 = vpop.f32.mrf.mxu0
  %v6368 = vadd.f32 %v5909, %v6367
  %6369 = vmatprep.mubr.bf16.mxu0 %v5827
  %6370 = vmatmul.mubr.bf16.gmra.mxu0 %v5826
  %v6371 = vpop.f32.mrf.mxu0
  %v6372 = vadd.f32 %v5905, %v6371
  %v6373 = vpop.f32.mrf.mxu0
  %v6374 = vadd.f32 %v5909, %v6373
  %v6375 = vpop.f32.mrf.mxu0
  %v6376 = vadd.f32 %v5905, %v6375
  %v6377 = vpop.f32.mrf.mxu0
  %v6378 = vadd.f32 %v5909, %v6377
  %6379 = vdwg.mxu0
  %6380 = vst [vmem:[#allocation4] sm:$0xff] %v6269
  %6381 = vst [vmem:[#allocation4 + $0x8] sm:$0xff] %v6271
  %6382 = vst [vmem:[#allocation4 + $0x10] sm:$0xff] %v6342
  %6383 = vst [vmem:[#allocation4 + $0x18] sm:$0xff] %v6344
  %6384 = vst [vmem:[#allocation4 + $0x20] sm:$0xff] %v6273
  %6385 = vst [vmem:[#allocation4 + $0x28] sm:$0xff] %v6275
  %6386 = vst [vmem:[#allocation4 + $0x30] sm:$0xff] %v6346
  %6387 = vst [vmem:[#allocation4 + $0x38] sm:$0xff] %v6348
  %6388 = vst [vmem:[#allocation4 + $0x40] sm:$0xff] %v6279
  %6389 = vst [vmem:[#allocation4 + $0x48] sm:$0xff] %v6281
  %6390 = vst [vmem:[#allocation4 + $0x50] sm:$0xff] %v6352
  %6391 = vst [vmem:[#allocation4 + $0x58] sm:$0xff] %v6354
  %6392 = vst [vmem:[#allocation4 + $0x60] sm:$0xff] %v6283
  %6393 = vst [vmem:[#allocation4 + $0x68] sm:$0xff] %v6285
  %6394 = vst [vmem:[#allocation4 + $0x70] sm:$0xff] %v6356
  %6395 = vst [vmem:[#allocation4 + $0x78] sm:$0xff] %v6358
  %6396 = vst [vmem:[#allocation4 + $0x80] sm:$0xff] %v6289
  %6397 = vst [vmem:[#allocation4 + $0x88] sm:$0xff] %v6291
  %6398 = vst [vmem:[#allocation4 + $0x90] sm:$0xff] %v6362
  %6399 = vst [vmem:[#allocation4 + $0x98] sm:$0xff] %v6364
  %6400 = vst [vmem:[#allocation4 + $0xa0] sm:$0xff] %v6293
  %6401 = vst [vmem:[#allocation4 + $0xa8] sm:$0xff] %v6295
  %6402 = vst [vmem:[#allocation4 + $0xb0] sm:$0xff] %v6366
  %6403 = vst [vmem:[#allocation4 + $0xb8] sm:$0xff] %v6368
  %6404 = vst [vmem:[#allocation4 + $0xc0] sm:$0xff] %v6299
  %6405 = vst [vmem:[#allocation4 + $0xc8] sm:$0xff] %v6301
  %6406 = vst [vmem:[#allocation4 + $0xd0] sm:$0xff] %v6372
  %6407 = vst [vmem:[#allocation4 + $0xd8] sm:$0xff] %v6374
  %6408 = vst [vmem:[#allocation4 + $0xe0] sm:$0xff] %v6303
  %6409 = vst [vmem:[#allocation4 + $0xe8] sm:$0xff] %v6305
  %6410 = vst [vmem:[#allocation4 + $0xf0] sm:$0xff] %v6376
  %6411 = vst [vmem:[#allocation4 + $0xf8] sm:$0xff] %v6378
  %s6412 = smul.u32 7, 4
  %s6413 = smul.addr %s6412, 8
  %s6414 = scalar_lea.vmem [#allocation4], %s6413
  %v6415 = vld [vmem:[%s6414] sm:$0xff]
  %v6416 = vld [vmem:[%s6414 + $0x8] sm:$0xff]
  %v6417 = vld [vmem:[%s6414 + $0x10] sm:$0xff]
  %v6418 = vld [vmem:[%s6414 + $0x18] sm:$0xff]
  %v6419 = vld [vmem:[%s6] sm:$0xff]
  %v6420 = vld [vmem:[%s6 + $0x8] sm:$0xff]
  %v6421 = vld [vmem:[%s6 + $0x10] sm:$0xff]
  %v6422 = vld [vmem:[%s6 + $0x18] sm:$0xff]
  %v6423 = vld [vmem:[%s6 + $0x20] sm:$0xff]
  %v6424 = vld [vmem:[%s6 + $0x28] sm:$0xff]
  %v6425 = vld [vmem:[%s6 + $0x30] sm:$0xff]
  %v6426 = vld [vmem:[%s6 + $0x38] sm:$0xff]
  %v6427 = vld [vmem:[%s6 + $0x40] sm:$0xff]
  %v6428 = vld [vmem:[%s6 + $0x48] sm:$0xff]
  %v6429 = vld [vmem:[%s6 + $0x50] sm:$0xff]
  %v6430 = vld [vmem:[%s6 + $0x58] sm:$0xff]
  %v6431 = vld [vmem:[%s6 + $0x60] sm:$0xff]
  %v6432 = vld [vmem:[%s6 + $0x68] sm:$0xff]
  %v6433 = vld [vmem:[%s6 + $0x70] sm:$0xff]
  %v6434 = vld [vmem:[%s6 + $0x78] sm:$0xff]
  %v6435 = vld [vmem:[%s6 + $0x80] sm:$0xff]
  %v6436 = vld [vmem:[%s6 + $0x88] sm:$0xff]
  %v6437 = vld [vmem:[%s6 + $0x90] sm:$0xff]
  %v6438 = vld [vmem:[%s6 + $0x98] sm:$0xff]
  %v6439 = vld [vmem:[%s6 + $0xa0] sm:$0xff]
  %v6440 = vld [vmem:[%s6 + $0xa8] sm:$0xff]
  %v6441 = vld [vmem:[%s6 + $0xb0] sm:$0xff]
  %v6442 = vld [vmem:[%s6 + $0xb8] sm:$0xff]
  %v6443 = vld [vmem:[%s6 + $0xc0] sm:$0xff]
  %v6444 = vld [vmem:[%s6 + $0xc8] sm:$0xff]
  %v6445 = vld [vmem:[%s6 + $0xd0] sm:$0xff]
  %v6446 = vld [vmem:[%s6 + $0xd8] sm:$0xff]
  %v6447 = vld [vmem:[%s6 + $0xe0] sm:$0xff]
  %v6448 = vld [vmem:[%s6 + $0xe8] sm:$0xff]
  %v6449 = vld [vmem:[%s6 + $0xf0] sm:$0xff]
  %v6450 = vld [vmem:[%s6 + $0xf8] sm:$0xff]
  %v6483 = vunpack.c.l.b16 %v6419
  %v6484 = vunpack.c.h.b16 %v6419
  %v6485 = vunpack.c.l.b16 %v6420
  %v6486 = vunpack.c.h.b16 %v6420
  %v6487 = vunpack.c.l.b16 %v6421
  %v6488 = vunpack.c.h.b16 %v6421
  %v6489 = vunpack.c.l.b16 %v6422
  %v6490 = vunpack.c.h.b16 %v6422
  %v6491 = vunpack.c.l.b16 %v6423
  %v6492 = vunpack.c.h.b16 %v6423
  %v6493 = vunpack.c.l.b16 %v6424
  %v6494 = vunpack.c.h.b16 %v6424
  %v6495 = vunpack.c.l.b16 %v6425
  %v6496 = vunpack.c.h.b16 %v6425
  %v6497 = vunpack.c.l.b16 %v6426
  %v6498 = vunpack.c.h.b16 %v6426
  %v6499 = vunpack.c.l.b16 %v6427
  %v6500 = vunpack.c.h.b16 %v6427
  %v6501 = vunpack.c.l.b16 %v6428
  %v6502 = vunpack.c.h.b16 %v6428
  %v6503 = vunpack.c.l.b16 %v6429
  %v6504 = vunpack.c.h.b16 %v6429
  %v6505 = vunpack.c.l.b16 %v6430
  %v6506 = vunpack.c.h.b16 %v6430
  %v6507 = vunpack.c.l.b16 %v6431
  %v6508 = vunpack.c.h.b16 %v6431
  %v6509 = vunpack.c.l.b16 %v6432
  %v6510 = vunpack.c.h.b16 %v6432
  %v6511 = vunpack.c.l.b16 %v6433
  %v6512 = vunpack.c.h.b16 %v6433
  %v6513 = vunpack.c.l.b16 %v6434
  %v6514 = vunpack.c.h.b16 %v6434
  %v6515 = vunpack.c.l.b16 %v6435
  %v6516 = vunpack.c.h.b16 %v6435
  %v6517 = vunpack.c.l.b16 %v6436
  %v6518 = vunpack.c.h.b16 %v6436
  %v6519 = vunpack.c.l.b16 %v6437
  %v6520 = vunpack.c.h.b16 %v6437
  %v6521 = vunpack.c.l.b16 %v6438
  %v6522 = vunpack.c.h.b16 %v6438
  %v6523 = vunpack.c.l.b16 %v6439
  %v6524 = vunpack.c.h.b16 %v6439
  %v6525 = vunpack.c.l.b16 %v6440
  %v6526 = vunpack.c.h.b16 %v6440
  %v6527 = vunpack.c.l.b16 %v6441
  %v6528 = vunpack.c.h.b16 %v6441
  %v6529 = vunpack.c.l.b16 %v6442
  %v6530 = vunpack.c.h.b16 %v6442
  %v6531 = vunpack.c.l.b16 %v6443
  %v6532 = vunpack.c.h.b16 %v6443
  %v6533 = vunpack.c.l.b16 %v6444
  %v6534 = vunpack.c.h.b16 %v6444
  %v6535 = vunpack.c.l.b16 %v6445
  %v6536 = vunpack.c.h.b16 %v6445
  %v6537 = vunpack.c.l.b16 %v6446
  %v6538 = vunpack.c.h.b16 %v6446
  %v6539 = vunpack.c.l.b16 %v6447
  %v6540 = vunpack.c.h.b16 %v6447
  %v6541 = vunpack.c.l.b16 %v6448
  %v6542 = vunpack.c.h.b16 %v6448
  %v6543 = vunpack.c.l.b16 %v6449
  %v6544 = vunpack.c.h.b16 %v6449
  %v6545 = vunpack.c.l.b16 %v6450
  %v6546 = vunpack.c.h.b16 %v6450
  %v6547 = vpack.c.b16 %v6487, %v6483
  %v6548 = vpack.c.b16 %v6488, %v6484
  %v6549 = vpack.c.b16 %v6489, %v6485
  %v6550 = vpack.c.b16 %v6490, %v6486
  %v6551 = vpack.c.b16 %v6495, %v6491
  %v6552 = vpack.c.b16 %v6496, %v6492
  %v6553 = vpack.c.b16 %v6497, %v6493
  %v6554 = vpack.c.b16 %v6498, %v6494
  %v6555 = vpack.c.b16 %v6503, %v6499
  %v6556 = vpack.c.b16 %v6504, %v6500
  %v6557 = vpack.c.b16 %v6505, %v6501
  %v6558 = vpack.c.b16 %v6506, %v6502
  %v6559 = vpack.c.b16 %v6511, %v6507
  %v6560 = vpack.c.b16 %v6512, %v6508
  %v6561 = vpack.c.b16 %v6513, %v6509
  %v6562 = vpack.c.b16 %v6514, %v6510
  %v6563 = vpack.c.b16 %v6519, %v6515
  %v6564 = vpack.c.b16 %v6520, %v6516
  %v6565 = vpack.c.b16 %v6521, %v6517
  %v6566 = vpack.c.b16 %v6522, %v6518
  %v6567 = vpack.c.b16 %v6527, %v6523
  %v6568 = vpack.c.b16 %v6528, %v6524
  %v6569 = vpack.c.b16 %v6529, %v6525
  %v6570 = vpack.c.b16 %v6530, %v6526
  %v6571 = vpack.c.b16 %v6535, %v6531
  %v6572 = vpack.c.b16 %v6536, %v6532
  %v6573 = vpack.c.b16 %v6537, %v6533
  %v6574 = vpack.c.b16 %v6538, %v6534
  %v6575 = vpack.c.b16 %v6543, %v6539
  %v6576 = vpack.c.b16 %v6544, %v6540
  %v6577 = vpack.c.b16 %v6545, %v6541
  %v6578 = vpack.c.b16 %v6546, %v6542
  %6611 = vmatprep.subr.bf16.mxu0 %v6576
  %6612 = vmatpush1.bf16.msra.mxu0 %v6575
  %6613 = vmatprep.subr.bf16.mxu0 %v6572
  %6614 = vmatpush1.bf16.msra.mxu0 %v6571
  %6615 = vmatprep.subr.bf16.mxu0 %v6568
  %6616 = vmatpush1.bf16.msra.mxu0 %v6567
  %6617 = vmatprep.subr.bf16.mxu0 %v6564
  %6618 = vmatpush1.bf16.msra.mxu0 %v6563
  %6619 = vmatprep.subr.bf16.mxu0 %v6560
  %6620 = vmatpush1.bf16.msra.mxu0 %v6559
  %6621 = vmatprep.subr.bf16.mxu0 %v6556
  %6622 = vmatpush1.bf16.msra.mxu0 %v6555
  %6623 = vmatprep.subr.bf16.mxu0 %v6552
  %6624 = vmatpush1.bf16.msra.mxu0 %v6551
  %6625 = vmatprep.subr.bf16.mxu0 %v6548
  %6626 = vmatpush1.bf16.msra.mxu0 %v6547
  %6627 = vmatprep.subr.bf16.mxu0 0
  %6628 = vmatpush2.bf16.msra.mxu0 0
  %6629 = vmatprep.subr.bf16.mxu0 0
  %6630 = vmatpush2.bf16.msra.mxu0 0
  %6631 = vmatprep.subr.bf16.mxu0 0
  %6632 = vmatpush2.bf16.msra.mxu0 0
  %6633 = vmatprep.subr.bf16.mxu0 0
  %6634 = vmatpush2.bf16.msra.mxu0 0
  %6635 = vmatprep.subr.bf16.mxu0 0
  %6636 = vmatpush2.bf16.msra.mxu0 0
  %6637 = vmatprep.subr.bf16.mxu0 0
  %6638 = vmatpush2.bf16.msra.mxu0 0
  %6639 = vmatprep.subr.bf16.mxu0 0
  %6640 = vmatpush2.bf16.msra.mxu0 0
  %6641 = vmatprep.subr.bf16.mxu0 0
  %6642 = vmatpush2.bf16.msra.mxu0 0
  %6643 = vmatprep.mubr.bf16.mxu0 0
  %6644 = vmatmul.mubr.bf16.gmra.mxu0 0
  %v6645 = vpop.f32.mrf.mxu0
  %v6646 = vadd.f32 0.0, %v6645
  %v6647 = vpop.f32.mrf.mxu0
  %v6648 = vadd.f32 0.0, %v6647
  %v6649 = vpop.f32.mrf.mxu0
  %v6650 = vpop.f32.mrf.mxu0
  %6651 = vdwg.mxu0
  %6652 = vmatprep.subr.bf16.mxu0 %v6578
  %6653 = vmatpush1.bf16.msra.mxu0 %v6577
  %6654 = vmatprep.subr.bf16.mxu0 %v6574
  %6655 = vmatpush1.bf16.msra.mxu0 %v6573
  %6656 = vmatprep.subr.bf16.mxu0 %v6570
  %6657 = vmatpush1.bf16.msra.mxu0 %v6569
  %6658 = vmatprep.subr.bf16.mxu0 %v6566
  %6659 = vmatpush1.bf16.msra.mxu0 %v6565
  %6660 = vmatprep.subr.bf16.mxu0 %v6562
  %6661 = vmatpush1.bf16.msra.mxu0 %v6561
  %6662 = vmatprep.subr.bf16.mxu0 %v6558
  %6663 = vmatpush1.bf16.msra.mxu0 %v6557
  %6664 = vmatprep.subr.bf16.mxu0 %v6554
  %6665 = vmatpush1.bf16.msra.mxu0 %v6553
  %6666 = vmatprep.subr.bf16.mxu0 %v6550
  %6667 = vmatpush1.bf16.msra.mxu0 %v6549
  %6668 = vmatprep.subr.bf16.mxu0 0
  %6669 = vmatpush2.bf16.msra.mxu0 0
  %6670 = vmatprep.subr.bf16.mxu0 0
  %6671 = vmatpush2.bf16.msra.mxu0 0
  %6672 = vmatprep.subr.bf16.mxu0 0
  %6673 = vmatpush2.bf16.msra.mxu0 0
  %6674 = vmatprep.subr.bf16.mxu0 0
  %6675 = vmatpush2.bf16.msra.mxu0 0
  %6676 = vmatprep.subr.bf16.mxu0 0
  %6677 = vmatpush2.bf16.msra.mxu0 0
  %6678 = vmatprep.subr.bf16.mxu0 0
  %6679 = vmatpush2.bf16.msra.mxu0 0
  %6680 = vmatprep.subr.bf16.mxu0 0
  %6681 = vmatpush2.bf16.msra.mxu0 0
  %6682 = vmatprep.subr.bf16.mxu0 0
  %6683 = vmatpush2.bf16.msra.mxu0 0
  %6684 = vmatprep.mubr.bf16.mxu0 0
  %6685 = vmatmul.mubr.bf16.gmra.mxu0 0
  %v6686 = vpop.f32.mrf.mxu0
  %v6687 = vadd.f32 0.0, %v6686
  %v6688 = vpop.f32.mrf.mxu0
  %v6689 = vadd.f32 0.0, %v6688
  %v6690 = vpop.f32.mrf.mxu0
  %v6691 = vpop.f32.mrf.mxu0
  %6692 = vdwg.mxu0
  %v6693 = vadd.f32 %v6415, %v6646
  %v6694 = vadd.f32 %v6416, %v6648
  %v6695 = vadd.f32 %v6417, %v6687
  %v6696 = vadd.f32 %v6418, %v6689
  %v6697 = vxor.u32 %v6693, 2147483648
  %v6698 = vxor.u32 %v6694, 2147483648
  %v6699 = vxor.u32 %v6695, 2147483648
  %v6700 = vmul.f32 %v6697, 1.442695
  %v6701 = vpow.pop %v6700
  %v6702 = vmul.f32 %v6698, 1.442695
  %v6703 = vpow.pop %v6702
  %v6704 = vmul.f32 %v6699, 1.442695
  %v6705 = vpow.pop %v6704
  %v6706 = vadd.f32 %v6701, 1.0
  %v6707 = vadd.f32 %v6703, 1.0
  %v6708 = vadd.f32 %v6705, 1.0
  %v6709 = vrcp.pop %v6706
  %v6710 = vmul.f32 1.0, %v6709
  %v6711 = vrcp.pop %v6707
  %v6712 = vmul.f32 1.0, %v6711
  %v6713 = vrcp.pop %v6708
  %v6714 = vmul.f32 1.0, %v6713
  %v6715 = vtanh.pop %v6696
  %v6716 = vmul.f32 %v6712, 0.0
  %v6717 = vmul.f32 %v6710, %v6715
  %v6718 = vadd.f32 %v6716, %v6717
  %v6719 = vtanh.pop %v6718
  %v6720 = vmul.f32 %v6714, %v6719
  %s6721 = smul.u32 6, 4
  %s6722 = smul.addr %s6721, 8
  %s6723 = scalar_lea.vmem [#allocation4], %s6722
  %v6724 = vld [vmem:[%s6723] sm:$0xff]
  %v6725 = vld [vmem:[%s6723 + $0x8] sm:$0xff]
  %v6726 = vld [vmem:[%s6723 + $0x10] sm:$0xff]
  %v6727 = vld [vmem:[%s6723 + $0x18] sm:$0xff]
  %v6728 = vpack.c.bf16 %v6720, %v6720
  %6729 = vmatprep.subr.bf16.mxu0 %v6576
  %6730 = vmatpush1.bf16.msra.mxu0 %v6575
  %6731 = vmatprep.subr.bf16.mxu0 %v6572
  %6732 = vmatpush1.bf16.msra.mxu0 %v6571
  %6733 = vmatprep.subr.bf16.mxu0 %v6568
  %6734 = vmatpush1.bf16.msra.mxu0 %v6567
  %6735 = vmatprep.subr.bf16.mxu0 %v6564
  %6736 = vmatpush1.bf16.msra.mxu0 %v6563
  %6737 = vmatprep.subr.bf16.mxu0 %v6560
  %6738 = vmatpush1.bf16.msra.mxu0 %v6559
  %6739 = vmatprep.subr.bf16.mxu0 %v6556
  %6740 = vmatpush1.bf16.msra.mxu0 %v6555
  %6741 = vmatprep.subr.bf16.mxu0 %v6552
  %6742 = vmatpush1.bf16.msra.mxu0 %v6551
  %6743 = vmatprep.subr.bf16.mxu0 %v6548
  %6744 = vmatpush1.bf16.msra.mxu0 %v6547
  %6745 = vmatprep.subr.bf16.mxu0 0
  %6746 = vmatpush2.bf16.msra.mxu0 0
  %6747 = vmatprep.subr.bf16.mxu0 0
  %6748 = vmatpush2.bf16.msra.mxu0 0
  %6749 = vmatprep.subr.bf16.mxu0 0
  %6750 = vmatpush2.bf16.msra.mxu0 0
  %6751 = vmatprep.subr.bf16.mxu0 0
  %6752 = vmatpush2.bf16.msra.mxu0 0
  %6753 = vmatprep.subr.bf16.mxu0 0
  %6754 = vmatpush2.bf16.msra.mxu0 0
  %6755 = vmatprep.subr.bf16.mxu0 0
  %6756 = vmatpush2.bf16.msra.mxu0 0
  %6757 = vmatprep.subr.bf16.mxu0 0
  %6758 = vmatpush2.bf16.msra.mxu0 0
  %6759 = vmatprep.subr.bf16.mxu0 0
  %6760 = vmatpush2.bf16.msra.mxu0 0
  %6761 = vmatprep.mubr.bf16.mxu0 0
  %6762 = vmatmul.mubr.bf16.gmra.mxu0 %v6728
  %v6763 = vpop.f32.mrf.mxu0
  %v6764 = vadd.f32 0.0, %v6763
  %v6765 = vpop.f32.mrf.mxu0
  %v6766 = vadd.f32 0.0, %v6765
  %v6767 = vpop.f32.mrf.mxu0
  %v6768 = vpop.f32.mrf.mxu0
  %6769 = vdwg.mxu0
  %6770 = vmatprep.subr.bf16.mxu0 %v6578
  %6771 = vmatpush1.bf16.msra.mxu0 %v6577
  %6772 = vmatprep.subr.bf16.mxu0 %v6574
  %6773 = vmatpush1.bf16.msra.mxu0 %v6573
  %6774 = vmatprep.subr.bf16.mxu0 %v6570
  %6775 = vmatpush1.bf16.msra.mxu0 %v6569
  %6776 = vmatprep.subr.bf16.mxu0 %v6566
  %6777 = vmatpush1.bf16.msra.mxu0 %v6565
  %6778 = vmatprep.subr.bf16.mxu0 %v6562
  %6779 = vmatpush1.bf16.msra.mxu0 %v6561
  %6780 = vmatprep.subr.bf16.mxu0 %v6558
  %6781 = vmatpush1.bf16.msra.mxu0 %v6557
  %6782 = vmatprep.subr.bf16.mxu0 %v6554
  %6783 = vmatpush1.bf16.msra.mxu0 %v6553
  %6784 = vmatprep.subr.bf16.mxu0 %v6550
  %6785 = vmatpush1.bf16.msra.mxu0 %v6549
  %6786 = vmatprep.subr.bf16.mxu0 0
  %6787 = vmatpush2.bf16.msra.mxu0 0
  %6788 = vmatprep.subr.bf16.mxu0 0
  %6789 = vmatpush2.bf16.msra.mxu0 0
  %6790 = vmatprep.subr.bf16.mxu0 0
  %6791 = vmatpush2.bf16.msra.mxu0 0
  %6792 = vmatprep.subr.bf16.mxu0 0
  %6793 = vmatpush2.bf16.msra.mxu0 0
  %6794 = vmatprep.subr.bf16.mxu0 0
  %6795 = vmatpush2.bf16.msra.mxu0 0
  %6796 = vmatprep.subr.bf16.mxu0 0
  %6797 = vmatpush2.bf16.msra.mxu0 0
  %6798 = vmatprep.subr.bf16.mxu0 0
  %6799 = vmatpush2.bf16.msra.mxu0 0
  %6800 = vmatprep.subr.bf16.mxu0 0
  %6801 = vmatpush2.bf16.msra.mxu0 0
  %6802 = vmatprep.mubr.bf16.mxu0 0
  %6803 = vmatmul.mubr.bf16.gmra.mxu0 %v6728
  %v6804 = vpop.f32.mrf.mxu0
  %v6805 = vadd.f32 0.0, %v6804
  %v6806 = vpop.f32.mrf.mxu0
  %v6807 = vadd.f32 0.0, %v6806
  %v6808 = vpop.f32.mrf.mxu0
  %v6809 = vpop.f32.mrf.mxu0
  %6810 = vdwg.mxu0
  %v6811 = vadd.f32 %v6724, %v6764
  %v6812 = vadd.f32 %v6725, %v6766
  %v6813 = vadd.f32 %v6726, %v6805
  %v6814 = vadd.f32 %v6727, %v6807
  %v6815 = vxor.u32 %v6811, 2147483648
  %v6816 = vxor.u32 %v6812, 2147483648
  %v6817 = vxor.u32 %v6813, 2147483648
  %v6818 = vmul.f32 %v6815, 1.442695
  %v6819 = vpow.pop %v6818
  %v6820 = vmul.f32 %v6816, 1.442695
  %v6821 = vpow.pop %v6820
  %v6822 = vmul.f32 %v6817, 1.442695
  %v6823 = vpow.pop %v6822
  %v6824 = vadd.f32 %v6819, 1.0
  %v6825 = vadd.f32 %v6821, 1.0
  %v6826 = vadd.f32 %v6823, 1.0
  %v6827 = vrcp.pop %v6824
  %v6828 = vmul.f32 1.0, %v6827
  %v6829 = vrcp.pop %v6825
  %v6830 = vmul.f32 1.0, %v6829
  %v6831 = vrcp.pop %v6826
  %v6832 = vmul.f32 1.0, %v6831
  %v6833 = vtanh.pop %v6814
  %v6834 = vmul.f32 %v6830, %v6718
  %v6835 = vmul.f32 %v6828, %v6833
  %v6836 = vadd.f32 %v6834, %v6835
  %v6837 = vtanh.pop %v6836
  %v6838 = vmul.f32 %v6832, %v6837
  %s6839 = smul.u32 5, 4
  %s6840 = smul.addr %s6839, 8
  %s6841 = scalar_lea.vmem [#allocation4], %s6840
  %v6842 = vld [vmem:[%s6841] sm:$0xff]
  %v6843 = vld [vmem:[%s6841 + $0x8] sm:$0xff]
  %v6844 = vld [vmem:[%s6841 + $0x10] sm:$0xff]
  %v6845 = vld [vmem:[%s6841 + $0x18] sm:$0xff]
  %v6846 = vpack.c.bf16 %v6838, %v6838
  %6847 = vmatprep.subr.bf16.mxu0 %v6576
  %6848 = vmatpush1.bf16.msra.mxu0 %v6575
  %6849 = vmatprep.subr.bf16.mxu0 %v6572
  %6850 = vmatpush1.bf16.msra.mxu0 %v6571
  %6851 = vmatprep.subr.bf16.mxu0 %v6568
  %6852 = vmatpush1.bf16.msra.mxu0 %v6567
  %6853 = vmatprep.subr.bf16.mxu0 %v6564
  %6854 = vmatpush1.bf16.msra.mxu0 %v6563
  %6855 = vmatprep.subr.bf16.mxu0 %v6560
  %6856 = vmatpush1.bf16.msra.mxu0 %v6559
  %6857 = vmatprep.subr.bf16.mxu0 %v6556
  %6858 = vmatpush1.bf16.msra.mxu0 %v6555
  %6859 = vmatprep.subr.bf16.mxu0 %v6552
  %6860 = vmatpush1.bf16.msra.mxu0 %v6551
  %6861 = vmatprep.subr.bf16.mxu0 %v6548
  %6862 = vmatpush1.bf16.msra.mxu0 %v6547
  %6863 = vmatprep.subr.bf16.mxu0 0
  %6864 = vmatpush2.bf16.msra.mxu0 0
  %6865 = vmatprep.subr.bf16.mxu0 0
  %6866 = vmatpush2.bf16.msra.mxu0 0
  %6867 = vmatprep.subr.bf16.mxu0 0
  %6868 = vmatpush2.bf16.msra.mxu0 0
  %6869 = vmatprep.subr.bf16.mxu0 0
  %6870 = vmatpush2.bf16.msra.mxu0 0
  %6871 = vmatprep.subr.bf16.mxu0 0
  %6872 = vmatpush2.bf16.msra.mxu0 0
  %6873 = vmatprep.subr.bf16.mxu0 0
  %6874 = vmatpush2.bf16.msra.mxu0 0
  %6875 = vmatprep.subr.bf16.mxu0 0
  %6876 = vmatpush2.bf16.msra.mxu0 0
  %6877 = vmatprep.subr.bf16.mxu0 0
  %6878 = vmatpush2.bf16.msra.mxu0 0
  %6879 = vmatprep.mubr.bf16.mxu0 0
  %6880 = vmatmul.mubr.bf16.gmra.mxu0 %v6846
  %v6881 = vpop.f32.mrf.mxu0
  %v6882 = vadd.f32 0.0, %v6881
  %v6883 = vpop.f32.mrf.mxu0
  %v6884 = vadd.f32 0.0, %v6883
  %v6885 = vpop.f32.mrf.mxu0
  %v6886 = vpop.f32.mrf.mxu0
  %6887 = vdwg.mxu0
  %6888 = vmatprep.subr.bf16.mxu0 %v6578
  %6889 = vmatpush1.bf16.msra.mxu0 %v6577
  %6890 = vmatprep.subr.bf16.mxu0 %v6574
  %6891 = vmatpush1.bf16.msra.mxu0 %v6573
  %6892 = vmatprep.subr.bf16.mxu0 %v6570
  %6893 = vmatpush1.bf16.msra.mxu0 %v6569
  %6894 = vmatprep.subr.bf16.mxu0 %v6566
  %6895 = vmatpush1.bf16.msra.mxu0 %v6565
  %6896 = vmatprep.subr.bf16.mxu0 %v6562
  %6897 = vmatpush1.bf16.msra.mxu0 %v6561
  %6898 = vmatprep.subr.bf16.mxu0 %v6558
  %6899 = vmatpush1.bf16.msra.mxu0 %v6557
  %6900 = vmatprep.subr.bf16.mxu0 %v6554
  %6901 = vmatpush1.bf16.msra.mxu0 %v6553
  %6902 = vmatprep.subr.bf16.mxu0 %v6550
  %6903 = vmatpush1.bf16.msra.mxu0 %v6549
  %6904 = vmatprep.subr.bf16.mxu0 0
  %6905 = vmatpush2.bf16.msra.mxu0 0
  %6906 = vmatprep.subr.bf16.mxu0 0
  %6907 = vmatpush2.bf16.msra.mxu0 0
  %6908 = vmatprep.subr.bf16.mxu0 0
  %6909 = vmatpush2.bf16.msra.mxu0 0
  %6910 = vmatprep.subr.bf16.mxu0 0
  %6911 = vmatpush2.bf16.msra.mxu0 0
  %6912 = vmatprep.subr.bf16.mxu0 0
  %6913 = vmatpush2.bf16.msra.mxu0 0
  %6914 = vmatprep.subr.bf16.mxu0 0
  %6915 = vmatpush2.bf16.msra.mxu0 0
  %6916 = vmatprep.subr.bf16.mxu0 0
  %6917 = vmatpush2.bf16.msra.mxu0 0
  %6918 = vmatprep.subr.bf16.mxu0 0
  %6919 = vmatpush2.bf16.msra.mxu0 0
  %6920 = vmatprep.mubr.bf16.mxu0 0
  %6921 = vmatmul.mubr.bf16.gmra.mxu0 %v6846
  %v6922 = vpop.f32.mrf.mxu0
  %v6923 = vadd.f32 0.0, %v6922
  %v6924 = vpop.f32.mrf.mxu0
  %v6925 = vadd.f32 0.0, %v6924
  %v6926 = vpop.f32.mrf.mxu0
  %v6927 = vpop.f32.mrf.mxu0
  %6928 = vdwg.mxu0
  %v6929 = vadd.f32 %v6842, %v6882
  %v6930 = vadd.f32 %v6843, %v6884
  %v6931 = vadd.f32 %v6844, %v6923
  %v6932 = vadd.f32 %v6845, %v6925
  %v6933 = vxor.u32 %v6929, 2147483648
  %v6934 = vxor.u32 %v6930, 2147483648
  %v6935 = vxor.u32 %v6931, 2147483648
  %v6936 = vmul.f32 %v6933, 1.442695
  %v6937 = vpow.pop %v6936
  %v6938 = vmul.f32 %v6934, 1.442695
  %v6939 = vpow.pop %v6938
  %v6940 = vmul.f32 %v6935, 1.442695
  %v6941 = vpow.pop %v6940
  %v6942 = vadd.f32 %v6937, 1.0
  %v6943 = vadd.f32 %v6939, 1.0
  %v6944 = vadd.f32 %v6941, 1.0
  %v6945 = vrcp.pop %v6942
  %v6946 = vmul.f32 1.0, %v6945
  %v6947 = vrcp.pop %v6943
  %v6948 = vmul.f32 1.0, %v6947
  %v6949 = vrcp.pop %v6944
  %v6950 = vmul.f32 1.0, %v6949
  %v6951 = vtanh.pop %v6932
  %v6952 = vmul.f32 %v6948, %v6836
  %v6953 = vmul.f32 %v6946, %v6951
  %v6954 = vadd.f32 %v6952, %v6953
  %v6955 = vtanh.pop %v6954
  %v6956 = vmul.f32 %v6950, %v6955
  %s6957 = smul.u32 4, 4
  %s6958 = smul.addr %s6957, 8
  %s6959 = scalar_lea.vmem [#allocation4], %s6958
  %v6960 = vld [vmem:[%s6959] sm:$0xff]
  %v6961 = vld [vmem:[%s6959 + $0x8] sm:$0xff]
  %v6962 = vld [vmem:[%s6959 + $0x10] sm:$0xff]
  %v6963 = vld [vmem:[%s6959 + $0x18] sm:$0xff]
  %v6964 = vpack.c.bf16 %v6956, %v6956
  %6965 = vmatprep.subr.bf16.mxu0 %v6576
  %6966 = vmatpush1.bf16.msra.mxu0 %v6575
  %6967 = vmatprep.subr.bf16.mxu0 %v6572
  %6968 = vmatpush1.bf16.msra.mxu0 %v6571
  %6969 = vmatprep.subr.bf16.mxu0 %v6568
  %6970 = vmatpush1.bf16.msra.mxu0 %v6567
  %6971 = vmatprep.subr.bf16.mxu0 %v6564
  %6972 = vmatpush1.bf16.msra.mxu0 %v6563
  %6973 = vmatprep.subr.bf16.mxu0 %v6560
  %6974 = vmatpush1.bf16.msra.mxu0 %v6559
  %6975 = vmatprep.subr.bf16.mxu0 %v6556
  %6976 = vmatpush1.bf16.msra.mxu0 %v6555
  %6977 = vmatprep.subr.bf16.mxu0 %v6552
  %6978 = vmatpush1.bf16.msra.mxu0 %v6551
  %6979 = vmatprep.subr.bf16.mxu0 %v6548
  %6980 = vmatpush1.bf16.msra.mxu0 %v6547
  %6981 = vmatprep.subr.bf16.mxu0 0
  %6982 = vmatpush2.bf16.msra.mxu0 0
  %6983 = vmatprep.subr.bf16.mxu0 0
  %6984 = vmatpush2.bf16.msra.mxu0 0
  %6985 = vmatprep.subr.bf16.mxu0 0
  %6986 = vmatpush2.bf16.msra.mxu0 0
  %6987 = vmatprep.subr.bf16.mxu0 0
  %6988 = vmatpush2.bf16.msra.mxu0 0
  %6989 = vmatprep.subr.bf16.mxu0 0
  %6990 = vmatpush2.bf16.msra.mxu0 0
  %6991 = vmatprep.subr.bf16.mxu0 0
  %6992 = vmatpush2.bf16.msra.mxu0 0
  %6993 = vmatprep.subr.bf16.mxu0 0
  %6994 = vmatpush2.bf16.msra.mxu0 0
  %6995 = vmatprep.subr.bf16.mxu0 0
  %6996 = vmatpush2.bf16.msra.mxu0 0
  %6997 = vmatprep.mubr.bf16.mxu0 0
  %6998 = vmatmul.mubr.bf16.gmra.mxu0 %v6964
  %v6999 = vpop.f32.mrf.mxu0
  %v7000 = vadd.f32 0.0, %v6999
  %v7001 = vpop.f32.mrf.mxu0
  %v7002 = vadd.f32 0.0, %v7001
  %v7003 = vpop.f32.mrf.mxu0
  %v7004 = vpop.f32.mrf.mxu0
  %7005 = vdwg.mxu0
  %7006 = vmatprep.subr.bf16.mxu0 %v6578
  %7007 = vmatpush1.bf16.msra.mxu0 %v6577
  %7008 = vmatprep.subr.bf16.mxu0 %v6574
  %7009 = vmatpush1.bf16.msra.mxu0 %v6573
  %7010 = vmatprep.subr.bf16.mxu0 %v6570
  %7011 = vmatpush1.bf16.msra.mxu0 %v6569
  %7012 = vmatprep.subr.bf16.mxu0 %v6566
  %7013 = vmatpush1.bf16.msra.mxu0 %v6565
  %7014 = vmatprep.subr.bf16.mxu0 %v6562
  %7015 = vmatpush1.bf16.msra.mxu0 %v6561
  %7016 = vmatprep.subr.bf16.mxu0 %v6558
  %7017 = vmatpush1.bf16.msra.mxu0 %v6557
  %7018 = vmatprep.subr.bf16.mxu0 %v6554
  %7019 = vmatpush1.bf16.msra.mxu0 %v6553
  %7020 = vmatprep.subr.bf16.mxu0 %v6550
  %7021 = vmatpush1.bf16.msra.mxu0 %v6549
  %7022 = vmatprep.subr.bf16.mxu0 0
  %7023 = vmatpush2.bf16.msra.mxu0 0
  %7024 = vmatprep.subr.bf16.mxu0 0
  %7025 = vmatpush2.bf16.msra.mxu0 0
  %7026 = vmatprep.subr.bf16.mxu0 0
  %7027 = vmatpush2.bf16.msra.mxu0 0
  %7028 = vmatprep.subr.bf16.mxu0 0
  %7029 = vmatpush2.bf16.msra.mxu0 0
  %7030 = vmatprep.subr.bf16.mxu0 0
  %7031 = vmatpush2.bf16.msra.mxu0 0
  %7032 = vmatprep.subr.bf16.mxu0 0
  %7033 = vmatpush2.bf16.msra.mxu0 0
  %7034 = vmatprep.subr.bf16.mxu0 0
  %7035 = vmatpush2.bf16.msra.mxu0 0
  %7036 = vmatprep.subr.bf16.mxu0 0
  %7037 = vmatpush2.bf16.msra.mxu0 0
  %7038 = vmatprep.mubr.bf16.mxu0 0
  %7039 = vmatmul.mubr.bf16.gmra.mxu0 %v6964
  %v7040 = vpop.f32.mrf.mxu0
  %v7041 = vadd.f32 0.0, %v7040
  %v7042 = vpop.f32.mrf.mxu0
  %v7043 = vadd.f32 0.0, %v7042
  %v7044 = vpop.f32.mrf.mxu0
  %v7045 = vpop.f32.mrf.mxu0
  %7046 = vdwg.mxu0
  %v7047 = vadd.f32 %v6960, %v7000
  %v7048 = vadd.f32 %v6961, %v7002
  %v7049 = vadd.f32 %v6962, %v7041
  %v7050 = vadd.f32 %v6963, %v7043
  %v7051 = vxor.u32 %v7047, 2147483648
  %v7052 = vxor.u32 %v7048, 2147483648
  %v7053 = vxor.u32 %v7049, 2147483648
  %v7054 = vmul.f32 %v7051, 1.442695
  %v7055 = vpow.pop %v7054
  %v7056 = vmul.f32 %v7052, 1.442695
  %v7057 = vpow.pop %v7056
  %v7058 = vmul.f32 %v7053, 1.442695
  %v7059 = vpow.pop %v7058
  %v7060 = vadd.f32 %v7055, 1.0
  %v7061 = vadd.f32 %v7057, 1.0
  %v7062 = vadd.f32 %v7059, 1.0
  %v7063 = vrcp.pop %v7060
  %v7064 = vmul.f32 1.0, %v7063
  %v7065 = vrcp.pop %v7061
  %v7066 = vmul.f32 1.0, %v7065
  %v7067 = vrcp.pop %v7062
  %v7068 = vmul.f32 1.0, %v7067
  %v7069 = vtanh.pop %v7050
  %v7070 = vmul.f32 %v7066, %v6954
  %v7071 = vmul.f32 %v7064, %v7069
  %v7072 = vadd.f32 %v7070, %v7071
  %v7073 = vtanh.pop %v7072
  %v7074 = vmul.f32 %v7068, %v7073
  %s7075 = smul.u32 3, 4
  %s7076 = smul.addr %s7075, 8
  %s7077 = scalar_lea.vmem [#allocation4], %s7076
  %v7078 = vld [vmem:[%s7077] sm:$0xff]
  %v7079 = vld [vmem:[%s7077 + $0x8] sm:$0xff]
  %v7080 = vld [vmem:[%s7077 + $0x10] sm:$0xff]
  %v7081 = vld [vmem:[%s7077 + $0x18] sm:$0xff]
  %v7082 = vpack.c.bf16 %v7074, %v7074
  %7083 = vmatprep.subr.bf16.mxu0 %v6576
  %7084 = vmatpush1.bf16.msra.mxu0 %v6575
  %7085 = vmatprep.subr.bf16.mxu0 %v6572
  %7086 = vmatpush1.bf16.msra.mxu0 %v6571
  %7087 = vmatprep.subr.bf16.mxu0 %v6568
  %7088 = vmatpush1.bf16.msra.mxu0 %v6567
  %7089 = vmatprep.subr.bf16.mxu0 %v6564
  %7090 = vmatpush1.bf16.msra.mxu0 %v6563
  %7091 = vmatprep.subr.bf16.mxu0 %v6560
  %7092 = vmatpush1.bf16.msra.mxu0 %v6559
  %7093 = vmatprep.subr.bf16.mxu0 %v6556
  %7094 = vmatpush1.bf16.msra.mxu0 %v6555
  %7095 = vmatprep.subr.bf16.mxu0 %v6552
  %7096 = vmatpush1.bf16.msra.mxu0 %v6551
  %7097 = vmatprep.subr.bf16.mxu0 %v6548
  %7098 = vmatpush1.bf16.msra.mxu0 %v6547
  %7099 = vmatprep.subr.bf16.mxu0 0
  %7100 = vmatpush2.bf16.msra.mxu0 0
  %7101 = vmatprep.subr.bf16.mxu0 0
  %7102 = vmatpush2.bf16.msra.mxu0 0
  %7103 = vmatprep.subr.bf16.mxu0 0
  %7104 = vmatpush2.bf16.msra.mxu0 0
  %7105 = vmatprep.subr.bf16.mxu0 0
  %7106 = vmatpush2.bf16.msra.mxu0 0
  %7107 = vmatprep.subr.bf16.mxu0 0
  %7108 = vmatpush2.bf16.msra.mxu0 0
  %7109 = vmatprep.subr.bf16.mxu0 0
  %7110 = vmatpush2.bf16.msra.mxu0 0
  %7111 = vmatprep.subr.bf16.mxu0 0
  %7112 = vmatpush2.bf16.msra.mxu0 0
  %7113 = vmatprep.subr.bf16.mxu0 0
  %7114 = vmatpush2.bf16.msra.mxu0 0
  %7115 = vmatprep.mubr.bf16.mxu0 0
  %7116 = vmatmul.mubr.bf16.gmra.mxu0 %v7082
  %v7117 = vpop.f32.mrf.mxu0
  %v7118 = vadd.f32 0.0, %v7117
  %v7119 = vpop.f32.mrf.mxu0
  %v7120 = vadd.f32 0.0, %v7119
  %v7121 = vpop.f32.mrf.mxu0
  %v7122 = vpop.f32.mrf.mxu0
  %7123 = vdwg.mxu0
  %7124 = vmatprep.subr.bf16.mxu0 %v6578
  %7125 = vmatpush1.bf16.msra.mxu0 %v6577
  %7126 = vmatprep.subr.bf16.mxu0 %v6574
  %7127 = vmatpush1.bf16.msra.mxu0 %v6573
  %7128 = vmatprep.subr.bf16.mxu0 %v6570
  %7129 = vmatpush1.bf16.msra.mxu0 %v6569
  %7130 = vmatprep.subr.bf16.mxu0 %v6566
  %7131 = vmatpush1.bf16.msra.mxu0 %v6565
  %7132 = vmatprep.subr.bf16.mxu0 %v6562
  %7133 = vmatpush1.bf16.msra.mxu0 %v6561
  %7134 = vmatprep.subr.bf16.mxu0 %v6558
  %7135 = vmatpush1.bf16.msra.mxu0 %v6557
  %7136 = vmatprep.subr.bf16.mxu0 %v6554
  %7137 = vmatpush1.bf16.msra.mxu0 %v6553
  %7138 = vmatprep.subr.bf16.mxu0 %v6550
  %7139 = vmatpush1.bf16.msra.mxu0 %v6549
  %7140 = vmatprep.subr.bf16.mxu0 0
  %7141 = vmatpush2.bf16.msra.mxu0 0
  %7142 = vmatprep.subr.bf16.mxu0 0
  %7143 = vmatpush2.bf16.msra.mxu0 0
  %7144 = vmatprep.subr.bf16.mxu0 0
  %7145 = vmatpush2.bf16.msra.mxu0 0
  %7146 = vmatprep.subr.bf16.mxu0 0
  %7147 = vmatpush2.bf16.msra.mxu0 0
  %7148 = vmatprep.subr.bf16.mxu0 0
  %7149 = vmatpush2.bf16.msra.mxu0 0
  %7150 = vmatprep.subr.bf16.mxu0 0
  %7151 = vmatpush2.bf16.msra.mxu0 0
  %7152 = vmatprep.subr.bf16.mxu0 0
  %7153 = vmatpush2.bf16.msra.mxu0 0
  %7154 = vmatprep.subr.bf16.mxu0 0
  %7155 = vmatpush2.bf16.msra.mxu0 0
  %7156 = vmatprep.mubr.bf16.mxu0 0
  %7157 = vmatmul.mubr.bf16.gmra.mxu0 %v7082
  %v7158 = vpop.f32.mrf.mxu0
  %v7159 = vadd.f32 0.0, %v7158
  %v7160 = vpop.f32.mrf.mxu0
  %v7161 = vadd.f32 0.0, %v7160
  %v7162 = vpop.f32.mrf.mxu0
  %v7163 = vpop.f32.mrf.mxu0
  %7164 = vdwg.mxu0
  %v7165 = vadd.f32 %v7078, %v7118
  %v7166 = vadd.f32 %v7079, %v7120
  %v7167 = vadd.f32 %v7080, %v7159
  %v7168 = vadd.f32 %v7081, %v7161
  %v7169 = vxor.u32 %v7165, 2147483648
  %v7170 = vxor.u32 %v7166, 2147483648
  %v7171 = vxor.u32 %v7167, 2147483648
  %v7172 = vmul.f32 %v7169, 1.442695
  %v7173 = vpow.pop %v7172
  %v7174 = vmul.f32 %v7170, 1.442695
  %v7175 = vpow.pop %v7174
  %v7176 = vmul.f32 %v7171, 1.442695
  %v7177 = vpow.pop %v7176
  %v7178 = vadd.f32 %v7173, 1.0
  %v7179 = vadd.f32 %v7175, 1.0
  %v7180 = vadd.f32 %v7177, 1.0
  %v7181 = vrcp.pop %v7178
  %v7182 = vmul.f32 1.0, %v7181
  %v7183 = vrcp.pop %v7179
  %v7184 = vmul.f32 1.0, %v7183
  %v7185 = vrcp.pop %v7180
  %v7186 = vmul.f32 1.0, %v7185
  %v7187 = vtanh.pop %v7168
  %v7188 = vmul.f32 %v7184, %v7072
  %v7189 = vmul.f32 %v7182, %v7187
  %v7190 = vadd.f32 %v7188, %v7189
  %v7191 = vtanh.pop %v7190
  %v7192 = vmul.f32 %v7186, %v7191
  %s7193 = smul.u32 2, 4
  %s7194 = smul.addr %s7193, 8
  %s7195 = scalar_lea.vmem [#allocation4], %s7194
  %v7196 = vld [vmem:[%s7195] sm:$0xff]
  %v7197 = vld [vmem:[%s7195 + $0x8] sm:$0xff]
  %v7198 = vld [vmem:[%s7195 + $0x10] sm:$0xff]
  %v7199 = vld [vmem:[%s7195 + $0x18] sm:$0xff]
  %v7200 = vpack.c.bf16 %v7192, %v7192
  %7201 = vmatprep.subr.bf16.mxu0 %v6576
  %7202 = vmatpush1.bf16.msra.mxu0 %v6575
  %7203 = vmatprep.subr.bf16.mxu0 %v6572
  %7204 = vmatpush1.bf16.msra.mxu0 %v6571
  %7205 = vmatprep.subr.bf16.mxu0 %v6568
  %7206 = vmatpush1.bf16.msra.mxu0 %v6567
  %7207 = vmatprep.subr.bf16.mxu0 %v6564
  %7208 = vmatpush1.bf16.msra.mxu0 %v6563
  %7209 = vmatprep.subr.bf16.mxu0 %v6560
  %7210 = vmatpush1.bf16.msra.mxu0 %v6559
  %7211 = vmatprep.subr.bf16.mxu0 %v6556
  %7212 = vmatpush1.bf16.msra.mxu0 %v6555
  %7213 = vmatprep.subr.bf16.mxu0 %v6552
  %7214 = vmatpush1.bf16.msra.mxu0 %v6551
  %7215 = vmatprep.subr.bf16.mxu0 %v6548
  %7216 = vmatpush1.bf16.msra.mxu0 %v6547
  %7217 = vmatprep.subr.bf16.mxu0 0
  %7218 = vmatpush2.bf16.msra.mxu0 0
  %7219 = vmatprep.subr.bf16.mxu0 0
  %7220 = vmatpush2.bf16.msra.mxu0 0
  %7221 = vmatprep.subr.bf16.mxu0 0
  %7222 = vmatpush2.bf16.msra.mxu0 0
  %7223 = vmatprep.subr.bf16.mxu0 0
  %7224 = vmatpush2.bf16.msra.mxu0 0
  %7225 = vmatprep.subr.bf16.mxu0 0
  %7226 = vmatpush2.bf16.msra.mxu0 0
  %7227 = vmatprep.subr.bf16.mxu0 0
  %7228 = vmatpush2.bf16.msra.mxu0 0
  %7229 = vmatprep.subr.bf16.mxu0 0
  %7230 = vmatpush2.bf16.msra.mxu0 0
  %7231 = vmatprep.subr.bf16.mxu0 0
  %7232 = vmatpush2.bf16.msra.mxu0 0
  %7233 = vmatprep.mubr.bf16.mxu0 0
  %7234 = vmatmul.mubr.bf16.gmra.mxu0 %v7200
  %v7235 = vpop.f32.mrf.mxu0
  %v7236 = vadd.f32 0.0, %v7235
  %v7237 = vpop.f32.mrf.mxu0
  %v7238 = vadd.f32 0.0, %v7237
  %v7239 = vpop.f32.mrf.mxu0
  %v7240 = vpop.f32.mrf.mxu0
  %7241 = vdwg.mxu0
  %7242 = vmatprep.subr.bf16.mxu0 %v6578
  %7243 = vmatpush1.bf16.msra.mxu0 %v6577
  %7244 = vmatprep.subr.bf16.mxu0 %v6574
  %7245 = vmatpush1.bf16.msra.mxu0 %v6573
  %7246 = vmatprep.subr.bf16.mxu0 %v6570
  %7247 = vmatpush1.bf16.msra.mxu0 %v6569
  %7248 = vmatprep.subr.bf16.mxu0 %v6566
  %7249 = vmatpush1.bf16.msra.mxu0 %v6565
  %7250 = vmatprep.subr.bf16.mxu0 %v6562
  %7251 = vmatpush1.bf16.msra.mxu0 %v6561
  %7252 = vmatprep.subr.bf16.mxu0 %v6558
  %7253 = vmatpush1.bf16.msra.mxu0 %v6557
  %7254 = vmatprep.subr.bf16.mxu0 %v6554
  %7255 = vmatpush1.bf16.msra.mxu0 %v6553
  %7256 = vmatprep.subr.bf16.mxu0 %v6550
  %7257 = vmatpush1.bf16.msra.mxu0 %v6549
  %7258 = vmatprep.subr.bf16.mxu0 0
  %7259 = vmatpush2.bf16.msra.mxu0 0
  %7260 = vmatprep.subr.bf16.mxu0 0
  %7261 = vmatpush2.bf16.msra.mxu0 0
  %7262 = vmatprep.subr.bf16.mxu0 0
  %7263 = vmatpush2.bf16.msra.mxu0 0
  %7264 = vmatprep.subr.bf16.mxu0 0
  %7265 = vmatpush2.bf16.msra.mxu0 0
  %7266 = vmatprep.subr.bf16.mxu0 0
  %7267 = vmatpush2.bf16.msra.mxu0 0
  %7268 = vmatprep.subr.bf16.mxu0 0
  %7269 = vmatpush2.bf16.msra.mxu0 0
  %7270 = vmatprep.subr.bf16.mxu0 0
  %7271 = vmatpush2.bf16.msra.mxu0 0
  %7272 = vmatprep.subr.bf16.mxu0 0
  %7273 = vmatpush2.bf16.msra.mxu0 0
  %7274 = vmatprep.mubr.bf16.mxu0 0
  %7275 = vmatmul.mubr.bf16.gmra.mxu0 %v7200
  %v7276 = vpop.f32.mrf.mxu0
  %v7277 = vadd.f32 0.0, %v7276
  %v7278 = vpop.f32.mrf.mxu0
  %v7279 = vadd.f32 0.0, %v7278
  %v7280 = vpop.f32.mrf.mxu0
  %v7281 = vpop.f32.mrf.mxu0
  %7282 = vdwg.mxu0
  %v7283 = vadd.f32 %v7196, %v7236
  %v7284 = vadd.f32 %v7197, %v7238
  %v7285 = vadd.f32 %v7198, %v7277
  %v7286 = vadd.f32 %v7199, %v7279
  %v7287 = vxor.u32 %v7283, 2147483648
  %v7288 = vxor.u32 %v7284, 2147483648
  %v7289 = vxor.u32 %v7285, 2147483648
  %v7290 = vmul.f32 %v7287, 1.442695
  %v7291 = vpow.pop %v7290
  %v7292 = vmul.f32 %v7288, 1.442695
  %v7293 = vpow.pop %v7292
  %v7294 = vmul.f32 %v7289, 1.442695
  %v7295 = vpow.pop %v7294
  %v7296 = vadd.f32 %v7291, 1.0
  %v7297 = vadd.f32 %v7293, 1.0
  %v7298 = vadd.f32 %v7295, 1.0
  %v7299 = vrcp.pop %v7296
  %v7300 = vmul.f32 1.0, %v7299
  %v7301 = vrcp.pop %v7297
  %v7302 = vmul.f32 1.0, %v7301
  %v7303 = vrcp.pop %v7298
  %v7304 = vmul.f32 1.0, %v7303
  %v7305 = vtanh.pop %v7286
  %v7306 = vmul.f32 %v7302, %v7190
  %v7307 = vmul.f32 %v7300, %v7305
  %v7308 = vadd.f32 %v7306, %v7307
  %v7309 = vtanh.pop %v7308
  %v7310 = vmul.f32 %v7304, %v7309
  %s7311 = smul.u32 1, 4
  %s7312 = smul.addr %s7311, 8
  %s7313 = scalar_lea.vmem [#allocation4], %s7312
  %v7314 = vld [vmem:[%s7313] sm:$0xff]
  %v7315 = vld [vmem:[%s7313 + $0x8] sm:$0xff]
  %v7316 = vld [vmem:[%s7313 + $0x10] sm:$0xff]
  %v7317 = vld [vmem:[%s7313 + $0x18] sm:$0xff]
  %v7318 = vpack.c.bf16 %v7310, %v7310
  %7319 = vmatprep.subr.bf16.mxu0 %v6576
  %7320 = vmatpush1.bf16.msra.mxu0 %v6575
  %7321 = vmatprep.subr.bf16.mxu0 %v6572
  %7322 = vmatpush1.bf16.msra.mxu0 %v6571
  %7323 = vmatprep.subr.bf16.mxu0 %v6568
  %7324 = vmatpush1.bf16.msra.mxu0 %v6567
  %7325 = vmatprep.subr.bf16.mxu0 %v6564
  %7326 = vmatpush1.bf16.msra.mxu0 %v6563
  %7327 = vmatprep.subr.bf16.mxu0 %v6560
  %7328 = vmatpush1.bf16.msra.mxu0 %v6559
  %7329 = vmatprep.subr.bf16.mxu0 %v6556
  %7330 = vmatpush1.bf16.msra.mxu0 %v6555
  %7331 = vmatprep.subr.bf16.mxu0 %v6552
  %7332 = vmatpush1.bf16.msra.mxu0 %v6551
  %7333 = vmatprep.subr.bf16.mxu0 %v6548
  %7334 = vmatpush1.bf16.msra.mxu0 %v6547
  %7335 = vmatprep.subr.bf16.mxu0 0
  %7336 = vmatpush2.bf16.msra.mxu0 0
  %7337 = vmatprep.subr.bf16.mxu0 0
  %7338 = vmatpush2.bf16.msra.mxu0 0
  %7339 = vmatprep.subr.bf16.mxu0 0
  %7340 = vmatpush2.bf16.msra.mxu0 0
  %7341 = vmatprep.subr.bf16.mxu0 0
  %7342 = vmatpush2.bf16.msra.mxu0 0
  %7343 = vmatprep.subr.bf16.mxu0 0
  %7344 = vmatpush2.bf16.msra.mxu0 0
  %7345 = vmatprep.subr.bf16.mxu0 0
  %7346 = vmatpush2.bf16.msra.mxu0 0
  %7347 = vmatprep.subr.bf16.mxu0 0
  %7348 = vmatpush2.bf16.msra.mxu0 0
  %7349 = vmatprep.subr.bf16.mxu0 0
  %7350 = vmatpush2.bf16.msra.mxu0 0
  %7351 = vmatprep.mubr.bf16.mxu0 0
  %7352 = vmatmul.mubr.bf16.gmra.mxu0 %v7318
  %v7353 = vpop.f32.mrf.mxu0
  %v7354 = vadd.f32 0.0, %v7353
  %v7355 = vpop.f32.mrf.mxu0
  %v7356 = vadd.f32 0.0, %v7355
  %v7357 = vpop.f32.mrf.mxu0
  %v7358 = vpop.f32.mrf.mxu0
  %7359 = vdwg.mxu0
  %7360 = vmatprep.subr.bf16.mxu0 %v6578
  %7361 = vmatpush1.bf16.msra.mxu0 %v6577
  %7362 = vmatprep.subr.bf16.mxu0 %v6574
  %7363 = vmatpush1.bf16.msra.mxu0 %v6573
  %7364 = vmatprep.subr.bf16.mxu0 %v6570
  %7365 = vmatpush1.bf16.msra.mxu0 %v6569
  %7366 = vmatprep.subr.bf16.mxu0 %v6566
  %7367 = vmatpush1.bf16.msra.mxu0 %v6565
  %7368 = vmatprep.subr.bf16.mxu0 %v6562
  %7369 = vmatpush1.bf16.msra.mxu0 %v6561
  %7370 = vmatprep.subr.bf16.mxu0 %v6558
  %7371 = vmatpush1.bf16.msra.mxu0 %v6557
  %7372 = vmatprep.subr.bf16.mxu0 %v6554
  %7373 = vmatpush1.bf16.msra.mxu0 %v6553
  %7374 = vmatprep.subr.bf16.mxu0 %v6550
  %7375 = vmatpush1.bf16.msra.mxu0 %v6549
  %7376 = vmatprep.subr.bf16.mxu0 0
  %7377 = vmatpush2.bf16.msra.mxu0 0
  %7378 = vmatprep.subr.bf16.mxu0 0
  %7379 = vmatpush2.bf16.msra.mxu0 0
  %7380 = vmatprep.subr.bf16.mxu0 0
  %7381 = vmatpush2.bf16.msra.mxu0 0
  %7382 = vmatprep.subr.bf16.mxu0 0
  %7383 = vmatpush2.bf16.msra.mxu0 0
  %7384 = vmatprep.subr.bf16.mxu0 0
  %7385 = vmatpush2.bf16.msra.mxu0 0
  %7386 = vmatprep.subr.bf16.mxu0 0
  %7387 = vmatpush2.bf16.msra.mxu0 0
  %7388 = vmatprep.subr.bf16.mxu0 0
  %7389 = vmatpush2.bf16.msra.mxu0 0
  %7390 = vmatprep.subr.bf16.mxu0 0
  %7391 = vmatpush2.bf16.msra.mxu0 0
  %7392 = vmatprep.mubr.bf16.mxu0 0
  %7393 = vmatmul.mubr.bf16.gmra.mxu0 %v7318
  %v7394 = vpop.f32.mrf.mxu0
  %v7395 = vadd.f32 0.0, %v7394
  %v7396 = vpop.f32.mrf.mxu0
  %v7397 = vadd.f32 0.0, %v7396
  %v7398 = vpop.f32.mrf.mxu0
  %v7399 = vpop.f32.mrf.mxu0
  %7400 = vdwg.mxu0
  %v7401 = vadd.f32 %v7314, %v7354
  %v7402 = vadd.f32 %v7315, %v7356
  %v7403 = vadd.f32 %v7316, %v7395
  %v7404 = vadd.f32 %v7317, %v7397
  %v7405 = vxor.u32 %v7401, 2147483648
  %v7406 = vxor.u32 %v7402, 2147483648
  %v7407 = vxor.u32 %v7403, 2147483648
  %v7408 = vmul.f32 %v7405, 1.442695
  %v7409 = vpow.pop %v7408
  %v7410 = vmul.f32 %v7406, 1.442695
  %v7411 = vpow.pop %v7410
  %v7412 = vmul.f32 %v7407, 1.442695
  %v7413 = vpow.pop %v7412
  %v7414 = vadd.f32 %v7409, 1.0
  %v7415 = vadd.f32 %v7411, 1.0
  %v7416 = vadd.f32 %v7413, 1.0
  %v7417 = vrcp.pop %v7414
  %v7418 = vmul.f32 1.0, %v7417
  %v7419 = vrcp.pop %v7415
  %v7420 = vmul.f32 1.0, %v7419
  %v7421 = vrcp.pop %v7416
  %v7422 = vmul.f32 1.0, %v7421
  %v7423 = vtanh.pop %v7404
  %v7424 = vmul.f32 %v7420, %v7308
  %v7425 = vmul.f32 %v7418, %v7423
  %v7426 = vadd.f32 %v7424, %v7425
  %v7427 = vtanh.pop %v7426
  %v7428 = vmul.f32 %v7422, %v7427
  %s7429 = smul.u32 0, 4
  %s7430 = smul.addr %s7429, 8
  %s7431 = scalar_lea.vmem [#allocation4], %s7430
  %v7432 = vld [vmem:[%s7431] sm:$0xff]
  %v7433 = vld [vmem:[%s7431 + $0x8] sm:$0xff]
  %v7434 = vld [vmem:[%s7431 + $0x10] sm:$0xff]
  %v7435 = vld [vmem:[%s7431 + $0x18] sm:$0xff]
  %v7436 = vpack.c.bf16 %v7428, %v7428
  %7437 = vmatprep.subr.bf16.mxu0 %v6576
  %7438 = vmatpush1.bf16.msra.mxu0 %v6575
  %7439 = vmatprep.subr.bf16.mxu0 %v6572
  %7440 = vmatpush1.bf16.msra.mxu0 %v6571
  %7441 = vmatprep.subr.bf16.mxu0 %v6568
  %7442 = vmatpush1.bf16.msra.mxu0 %v6567
  %7443 = vmatprep.subr.bf16.mxu0 %v6564
  %7444 = vmatpush1.bf16.msra.mxu0 %v6563
  %7445 = vmatprep.subr.bf16.mxu0 %v6560
  %7446 = vmatpush1.bf16.msra.mxu0 %v6559
  %7447 = vmatprep.subr.bf16.mxu0 %v6556
  %7448 = vmatpush1.bf16.msra.mxu0 %v6555
  %7449 = vmatprep.subr.bf16.mxu0 %v6552
  %7450 = vmatpush1.bf16.msra.mxu0 %v6551
  %7451 = vmatprep.subr.bf16.mxu0 %v6548
  %7452 = vmatpush1.bf16.msra.mxu0 %v6547
  %7453 = vmatprep.subr.bf16.mxu0 0
  %7454 = vmatpush2.bf16.msra.mxu0 0
  %7455 = vmatprep.subr.bf16.mxu0 0
  %7456 = vmatpush2.bf16.msra.mxu0 0
  %7457 = vmatprep.subr.bf16.mxu0 0
  %7458 = vmatpush2.bf16.msra.mxu0 0
  %7459 = vmatprep.subr.bf16.mxu0 0
  %7460 = vmatpush2.bf16.msra.mxu0 0
  %7461 = vmatprep.subr.bf16.mxu0 0
  %7462 = vmatpush2.bf16.msra.mxu0 0
  %7463 = vmatprep.subr.bf16.mxu0 0
  %7464 = vmatpush2.bf16.msra.mxu0 0
  %7465 = vmatprep.subr.bf16.mxu0 0
  %7466 = vmatpush2.bf16.msra.mxu0 0
  %7467 = vmatprep.subr.bf16.mxu0 0
  %7468 = vmatpush2.bf16.msra.mxu0 0
  %7469 = vmatprep.mubr.bf16.mxu0 0
  %7470 = vmatmul.mubr.bf16.gmra.mxu0 %v7436
  %v7471 = vpop.f32.mrf.mxu0
  %v7472 = vadd.f32 0.0, %v7471
  %v7473 = vpop.f32.mrf.mxu0
  %v7474 = vadd.f32 0.0, %v7473
  %v7475 = vpop.f32.mrf.mxu0
  %v7476 = vpop.f32.mrf.mxu0
  %7477 = vdwg.mxu0
  %7478 = vmatprep.subr.bf16.mxu0 %v6578
  %7479 = vmatpush1.bf16.msra.mxu0 %v6577
  %7480 = vmatprep.subr.bf16.mxu0 %v6574
  %7481 = vmatpush1.bf16.msra.mxu0 %v6573
  %7482 = vmatprep.subr.bf16.mxu0 %v6570
  %7483 = vmatpush1.bf16.msra.mxu0 %v6569
  %7484 = vmatprep.subr.bf16.mxu0 %v6566
  %7485 = vmatpush1.bf16.msra.mxu0 %v6565
  %7486 = vmatprep.subr.bf16.mxu0 %v6562
  %7487 = vmatpush1.bf16.msra.mxu0 %v6561
  %7488 = vmatprep.subr.bf16.mxu0 %v6558
  %7489 = vmatpush1.bf16.msra.mxu0 %v6557
  %7490 = vmatprep.subr.bf16.mxu0 %v6554
  %7491 = vmatpush1.bf16.msra.mxu0 %v6553
  %7492 = vmatprep.subr.bf16.mxu0 %v6550
  %7493 = vmatpush1.bf16.msra.mxu0 %v6549
  %7494 = vmatprep.subr.bf16.mxu0 0
  %7495 = vmatpush2.bf16.msra.mxu0 0
  %7496 = vmatprep.subr.bf16.mxu0 0
  %7497 = vmatpush2.bf16.msra.mxu0 0
  %7498 = vmatprep.subr.bf16.mxu0 0
  %7499 = vmatpush2.bf16.msra.mxu0 0
  %7500 = vmatprep.subr.bf16.mxu0 0
  %7501 = vmatpush2.bf16.msra.mxu0 0
  %7502 = vmatprep.subr.bf16.mxu0 0
  %7503 = vmatpush2.bf16.msra.mxu0 0
  %7504 = vmatprep.subr.bf16.mxu0 0
  %7505 = vmatpush2.bf16.msra.mxu0 0
  %7506 = vmatprep.subr.bf16.mxu0 0
  %7507 = vmatpush2.bf16.msra.mxu0 0
  %7508 = vmatprep.subr.bf16.mxu0 0
  %7509 = vmatpush2.bf16.msra.mxu0 0
  %7510 = vmatprep.mubr.bf16.mxu0 0
  %7511 = vmatmul.mubr.bf16.gmra.mxu0 %v7436
  %v7512 = vpop.f32.mrf.mxu0
  %v7513 = vadd.f32 0.0, %v7512
  %v7514 = vpop.f32.mrf.mxu0
  %v7515 = vadd.f32 0.0, %v7514
  %v7516 = vpop.f32.mrf.mxu0
  %v7517 = vpop.f32.mrf.mxu0
  %7518 = vdwg.mxu0
  %v7519 = vadd.f32 %v7432, %v7472
  %v7520 = vadd.f32 %v7433, %v7474
  %v7521 = vadd.f32 %v7434, %v7513
  %v7522 = vadd.f32 %v7435, %v7515
  %v7523 = vxor.u32 %v7519, 2147483648
  %v7524 = vxor.u32 %v7520, 2147483648
  %v7525 = vxor.u32 %v7521, 2147483648
  %v7526 = vmul.f32 %v7523, 1.442695
  %v7527 = vpow.pop %v7526
  %v7528 = vmul.f32 %v7524, 1.442695
  %v7529 = vpow.pop %v7528
  %v7530 = vmul.f32 %v7525, 1.442695
  %v7531 = vpow.pop %v7530
  %v7532 = vadd.f32 %v7527, 1.0
  %v7533 = vadd.f32 %v7529, 1.0
  %v7534 = vadd.f32 %v7531, 1.0
  %v7535 = vrcp.pop %v7532
  %v7536 = vmul.f32 1.0, %v7535
  %v7537 = vrcp.pop %v7533
  %v7538 = vmul.f32 1.0, %v7537
  %v7539 = vrcp.pop %v7534
  %v7540 = vmul.f32 1.0, %v7539
  %v7541 = vtanh.pop %v7522
  %v7542 = vmul.f32 %v7538, %v7426
  %v7543 = vmul.f32 %v7536, %v7541
  %v7544 = vadd.f32 %v7542, %v7543
  %v7545 = vtanh.pop %v7544
  %v7546 = vmul.f32 %v7540, %v7545
  %v7547 = vadd.f32 %v7546, %v7544
  %v7548 = vtanh.pop %v7547
  %v7549 = vpack.c.bf16 %v7548, %v7548
  %v7550 = vld [vmem:[%s8] sm:$0xf]
  %v7551 = vld [vmem:[%s8 + $0x4] sm:$0xf]
  %v7552 = vld [vmem:[%s8 + $0x8] sm:$0xf]
  %v7553 = vld [vmem:[%s8 + $0xc] sm:$0xf]
  %v7554 = vld [vmem:[%s8 + $0x10] sm:$0xf]
  %v7555 = vld [vmem:[%s8 + $0x14] sm:$0xf]
  %v7556 = vld [vmem:[%s8 + $0x18] sm:$0xf]
  %v7557 = vld [vmem:[%s8 + $0x1c] sm:$0xf]
  %v7558 = vld [vmem:[%s8 + $0x20] sm:$0xf]
  %v7559 = vld [vmem:[%s8 + $0x24] sm:$0xf]
  %v7560 = vld [vmem:[%s8 + $0x28] sm:$0xf]
  %v7561 = vld [vmem:[%s8 + $0x2c] sm:$0xf]
  %v7562 = vld [vmem:[%s8 + $0x30] sm:$0xf]
  %v7563 = vld [vmem:[%s8 + $0x34] sm:$0xf]
  %v7564 = vld [vmem:[%s8 + $0x38] sm:$0xf]
  %v7565 = vld [vmem:[%s8 + $0x3c] sm:$0xf]
  %v7566 = vld [vmem:[%s9] sm:$0x1]
  %v7568 = vlaneseq
  %v7569 = vshrl.u32 %v7568, 7
  %v7570 = vsub.s32 0, %v7569
  %v7571 = vrot.slane %v7566, %v7570
  %v7589 = vunpack.c.l.b16 %v7550
  %v7590 = vunpack.c.l.b16 %v7551
  %v7591 = vunpack.c.l.b16 %v7552
  %v7592 = vunpack.c.l.b16 %v7553
  %v7593 = vunpack.c.l.b16 %v7554
  %v7594 = vunpack.c.l.b16 %v7555
  %v7595 = vunpack.c.l.b16 %v7556
  %v7596 = vunpack.c.l.b16 %v7557
  %v7597 = vunpack.c.l.b16 %v7558
  %v7598 = vunpack.c.l.b16 %v7559
  %v7599 = vunpack.c.l.b16 %v7560
  %v7600 = vunpack.c.l.b16 %v7561
  %v7601 = vunpack.c.l.b16 %v7562
  %v7602 = vunpack.c.l.b16 %v7563
  %v7603 = vunpack.c.l.b16 %v7564
  %v7604 = vunpack.c.l.b16 %v7565
  %v7605 = vpack.c.b16 %v7590, %v7589
  %v7606 = vpack.c.b16 %v7592, %v7591
  %v7607 = vpack.c.b16 %v7594, %v7593
  %v7608 = vpack.c.b16 %v7596, %v7595
  %v7609 = vpack.c.b16 %v7598, %v7597
  %v7610 = vpack.c.b16 %v7600, %v7599
  %v7611 = vpack.c.b16 %v7602, %v7601
  %v7612 = vpack.c.b16 %v7604, %v7603
  %7621 = vmatprep.subr.bf16.mxu0 0
  %7622 = vmatpush1.bf16.msra.mxu0 %v7612
  %7623 = vmatprep.subr.bf16.mxu0 0
  %7624 = vmatpush1.bf16.msra.mxu0 %v7611
  %7625 = vmatprep.subr.bf16.mxu0 0
  %7626 = vmatpush1.bf16.msra.mxu0 %v7610
  %7627 = vmatprep.subr.bf16.mxu0 0
  %7628 = vmatpush1.bf16.msra.mxu0 %v7609
  %7629 = vmatprep.subr.bf16.mxu0 0
  %7630 = vmatpush1.bf16.msra.mxu0 %v7608
  %7631 = vmatprep.subr.bf16.mxu0 0
  %7632 = vmatpush1.bf16.msra.mxu0 %v7607
  %7633 = vmatprep.subr.bf16.mxu0 0
  %7634 = vmatpush1.bf16.msra.mxu0 %v7606
  %7635 = vmatprep.subr.bf16.mxu0 0
  %7636 = vmatpush1.bf16.msra.mxu0 %v7605
  %7637 = vmatprep.subr.bf16.mxu0 0
  %7638 = vmatpush2.bf16.msra.mxu0 0
  %7639 = vmatprep.subr.bf16.mxu0 0
  %7640 = vmatpush2.bf16.msra.mxu0 0
  %7641 = vmatprep.subr.bf16.mxu0 0
  %7642 = vmatpush2.bf16.msra.mxu0 0
  %7643 = vmatprep.subr.bf16.mxu0 0
  %7644 = vmatpush2.bf16.msra.mxu0 0
  %7645 = vmatprep.subr.bf16.mxu0 0
  %7646 = vmatpush2.bf16.msra.mxu0 0
  %7647 = vmatprep.subr.bf16.mxu0 0
  %7648 = vmatpush2.bf16.msra.mxu0 0
  %7649 = vmatprep.subr.bf16.mxu0 0
  %7650 = vmatpush2.bf16.msra.mxu0 0
  %7651 = vmatprep.subr.bf16.mxu0 0
  %7652 = vmatpush2.bf16.msra.mxu0 0
  %7653 = vmatprep.mubr.bf16.mxu0 0
  %7654 = vmatmul.mubr.bf16.gmra.mxu0 %v7549
  %v7655 = vpop.f32.mrf.mxu0
  %v7656 = vadd.f32 %v7571, %v7655
  %v7657 = vpop.f32.mrf.mxu0
  %v7658 = vpop.f32.mrf.mxu0
  %v7659 = vpop.f32.mrf.mxu0
  %7660 = vdwg.mxu0
  %7661 = vst [vmem:[%s10] sm:$0xff] %v7656
  // Predicated region
  $region42: #{bilstm2vec_forward.1} parent=0 // pred_check
    _
  $region43: #{bilstm2vec_forward.1} parent=0 // pred_check_branch
    %7663 = sbr.rel (0) target = $region45
  $region44: #{bilstm2vec_forward.1} parent=0 // pred_region
    _
  $region45: #{bilstm2vec_forward.1} parent=0 // pred_fallthru
    _
  // Predicated region
  $region46: #{bilstm2vec_forward.1} parent=0 // pred_check
    _
  $region47: #{bilstm2vec_forward.1} parent=0 // pred_check_branch
    %7665 = sbr.rel (0) target = $region49
  $region48: #{bilstm2vec_forward.1} parent=0 // pred_region
    _
  $region49: #{bilstm2vec_forward.1} parent=0 // pred_fallthru
    _

</llo_original>
